<compile_context>
chip_gen: v7x
topology: tpu7x:2x2x1
jax: 0.10.0
libtpu: 0.0.40
codegen_flags: <defaults>
</compile_context>

<pallas_src>
import functools

import numpy as np
import jax
import jax.numpy as jnp
from jax.experimental import pallas as pl
from jax.experimental.pallas import tpu as pltpu


# ----------------------------------------------------------------------------
# Fused kernel: whole forward pass for one image per grid step.
# ----------------------------------------------------------------------------
def _fused_kernel(x_ref, w1_ref, b1_ref, r1_ref, c1_ref, w2l_ref, b2l_ref,
                  r2_ref, c2_ref, w3_ref, mhn_ref, gsum_ref, bfc_ref,
                  o_ref, h1_ref, *, nch, K, H, W, ncls):
    ho1, wo1 = H - K + 1, W - K + 1          # 104, 104
    hp1, wp1 = ho1 // 2, wo1 // 2            # 52, 52
    ho2, wo2 = hp1 - K + 1, wp1 - K + 1      # 50, 50
    hp2, wp2 = ho2 // 2, wo2 // 2            # 25, 25
    rstride = ((hp1 + 7) // 8) * 8           # 56  (8-aligned channel row stride)
    lw = nch * wp1                           # 208 (packed lane width)

    # ---------------- layer 1: conv1 + 2x2 maxpool + relu --------------------
    # ONE output channel at a time -> a single (104,104) accumulator live.
    for co in range(nch):
        acc = jnp.full((ho1, wo1), b1_ref[co], dtype=jnp.float32)
        for kh in range(K):
            for kw in range(K):
                patch = x_ref[0, 0, pl.ds(kh, ho1), pl.ds(kw, wo1)]   # (104,104)
                acc = acc + patch * w1_ref[co * K * K + kh * K + kw]
        # exact 2x2 max pre-fold (VPU), then even-row / even-col selection on
        # the MXU; the column matrix also REPLICATES the channel into all nch
        # 52-lane blocks and zero-fills the 2 pad lanes.
        m1 = jnp.maximum(acc[:ho1 - 1, :], acc[1:, :])                # (103,104)
        m2 = jnp.maximum(m1[:, :wo1 - 1], m1[:, 1:])                  # (103,103)
        rsel = jnp.dot(r1_ref[...], m2,
                       preferred_element_type=jnp.float32)            # (56,103)
        blk = jnp.maximum(
            jnp.dot(rsel, c1_ref[...], preferred_element_type=jnp.float32),
            0.0)                                                       # (56,210)
        h1_ref[pl.ds(co * rstride, rstride), :] = blk

    # ---------------- layer 2: conv2, output channels packed along lanes -----
    # acc2[r, co*52 + c] accumulates output channel co at spatial (r, c).
    acc2 = jnp.zeros((ho2, lw), jnp.float32) + b2l_ref[...]           # (50,208)
    for ci in range(nch):
        for kh in range(K):
            for kw in range(K):
                patch = h1_ref[pl.ds(ci * rstride + kh, ho2),
                               pl.ds(kw, lw)]                          # (50,208)
                widx = (ci * K + kh) * K + kw
                acc2 = acc2 + patch * w2l_ref[pl.ds(widx, 1), :]       # 1 wide FMA

    # ------- 2x2 max-pool (packed) + relu, placed into fc layout (25,100) ----
    n1 = jnp.maximum(acc2[:ho2 - 1, :], acc2[1:, :])                   # (49,208)
    n2 = jnp.maximum(n1[:, :lw - 1], n1[:, 1:])                        # (49,207)
    pr = jnp.dot(r2_ref[...], n2,
                 preferred_element_type=jnp.float32)                   # (25,207)
    h2 = jnp.maximum(
        jnp.dot(pr, c2_ref[...], preferred_element_type=jnp.float32),
        0.0)                                                            # (25,100)

    # ---------------- fc (2500 -> 10): masked-matmul diagonal pick -----------
    # u[h', h*10+n] = sum_{co,w} h2[h', co*25+w] * wfc[n, co*625 + h*25 + w]
    u = jnp.dot(h2, w3_ref[...], preferred_element_type=jnp.float32)   # (25,250)
    red = jnp.sum(u * mhn_ref[...], axis=0, keepdims=True)             # (1,250)
    logits = jnp.dot(red, gsum_ref[...],
                     preferred_element_type=jnp.float32) + bfc_ref[...]  # (1,10)

    # ---------------- log_softmax --------------------------------------------
    mval = jnp.max(logits, axis=-1, keepdims=True)
    shifted = logits - mval
    lse = jnp.log(jnp.sum(jnp.exp(shifted), axis=-1, keepdims=True))
    o_ref[0] = shifted - lse


# ----------------------------------------------------------------------------
# One-time host-side preparation: kernel-friendly weight layouts plus the
# 0/1 selection / placement / replication / mask matrices.
# ----------------------------------------------------------------------------
def prepare_params(w1, b1, w2, b2, wfc, bfc, H, W):
    nch, cin, K, _ = w1.shape
    assert cin == 1
    ncls = wfc.shape[0]
    ho1, wo1 = H - K + 1, W - K + 1
    hp1, wp1 = ho1 // 2, wo1 // 2
    ho2, wo2 = hp1 - K + 1, wp1 - K + 1
    hp2, wp2 = ho2 // 2, wo2 // 2
    assert wfc.shape[1] == nch * hp2 * wp2
    rstride = ((hp1 + 7) // 8) * 8          # 56
    lw = nch * wp1                          # 208

    # layer-1: even-row selector (padded to the 8-aligned channel stride) and
    # even-column selector that replicates the channel into all nch lane blocks
    # (with K-1 explicit zero pad lanes at the end).
    r1 = np.zeros((rstride, ho1 - 1), np.float32)
    r1[np.arange(hp1), 2 * np.arange(hp1)] = 1.0
    c1 = np.zeros((wo1 - 1, lw + K - 1), np.float32)
    for k in range(nch):
        c1[2 * np.arange(wp1), k * wp1 + np.arange(wp1)] = 1.0

    # layer-2: lane-broadcast conv2 weight table and lane bias row.
    w2np = np.asarray(w2, np.float32)
    w2l = np.zeros((nch * K * K, lw), np.float32)
    for ci in range(nch):
        for kh in range(K):
            for kw in range(K):
                row = (ci * K + kh) * K + kw
                for co in range(nch):
                    w2l[row, co * wp1:(co + 1) * wp1] = w2np[co, ci, kh, kw]
    b2l = np.zeros((1, lw), np.float32)
    for co in range(nch):
        b2l[0, co * wp1:(co + 1) * wp1] = np.asarray(b2, np.float32)[co]

    # layer-2 pooling: even-row selector and even-column select + placement
    # into the (hp2, nch*wp2) fc activation layout.
    r2 = np.zeros((hp2, ho2 - 1), np.float32)
    r2[np.arange(hp2), 2 * np.arange(hp2)] = 1.0
    c2 = np.zeros((lw - 1, nch * wp2), np.float32)
    for co in range(nch):
        c2[co * wp1 + 2 * np.arange(wp2), co * wp2 + np.arange(wp2)] = 1.0

    # fc: lane-dense rearranged weight + diagonal-pick mask + group-sum matrix.
    # kernel activation layout h2[h, co*wp2 + w]; torch flatten index is
    # co*hp2*wp2 + h*wp2 + w.
    w3 = (jnp.asarray(wfc)
          .reshape(ncls, nch, hp2, wp2)
          .transpose(1, 3, 2, 0)
          .reshape(nch * wp2, hp2 * ncls))              # (100, 250)
    mhn = np.zeros((hp2, hp2 * ncls), np.float32)
    for h in range(hp2):
        mhn[h, h * ncls:(h + 1) * ncls] = 1.0
    gsum = np.zeros((hp2 * ncls, ncls), np.float32)
    for h in range(hp2):
        gsum[h * ncls + np.arange(ncls), np.arange(ncls)] = 1.0

    return dict(
        dims=(nch, K, H, W, ncls),
        w1=jnp.asarray(w1, jnp.float32).reshape(-1),
        b1=jnp.asarray(b1, jnp.float32),
        r1=jnp.asarray(r1), c1=jnp.asarray(c1),
        w2l=jnp.asarray(w2l), b2l=jnp.asarray(b2l),
        r2=jnp.asarray(r2), c2=jnp.asarray(c2),
        w3=w3, mhn=jnp.asarray(mhn), gsum=jnp.asarray(gsum),
        bfc=jnp.asarray(bfc, jnp.float32).reshape(1, -1),
    )


# ----------------------------------------------------------------------------
# Forward pass: one fused pallas_call, grid over the batch dimension.
# ----------------------------------------------------------------------------
def convo_model_forward(x, params):
    nch, K, H, W, ncls = params["dims"]
    B = x.shape[0]
    ho1, wo1 = H - K + 1, W - K + 1
    hp1, wp1 = ho1 // 2, wo1 // 2
    ho2, wo2 = hp1 - K + 1, wp1 - K + 1
    hp2, wp2 = ho2 // 2, wo2 // 2
    rstride = ((hp1 + 7) // 8) * 8
    lw = nch * wp1

    kernel = functools.partial(_fused_kernel, nch=nch, K=K, H=H, W=W, ncls=ncls)

    smem = pl.BlockSpec(memory_space=pltpu.MemorySpace.SMEM)

    def const(shape):
        nd = len(shape)
        return pl.BlockSpec(shape, lambda b, _nd=nd: (0,) * _nd)

    out3 = pl.pallas_call(
        kernel,
        out_shape=jax.ShapeDtypeStruct((B, 1, ncls), jnp.float32),
        grid_spec=pltpu.PrefetchScalarGridSpec(
            num_scalar_prefetch=0,
            grid=(B,),
            in_specs=[
                pl.BlockSpec((1, 1, H, W), lambda b: (b, 0, 0, 0)),   # image
                smem, smem,                                           # w1, b1
                const((rstride, ho1 - 1)),                            # r1
                const((wo1 - 1, lw + K - 1)),                         # c1
                const((nch * K * K, lw)),                             # w2l
                const((1, lw)),                                       # b2l
                const((hp2, ho2 - 1)),                                # r2
                const((lw - 1, nch * wp2)),                           # c2
                const((nch * wp2, hp2 * ncls)),                       # w3
                const((hp2, hp2 * ncls)),                             # mhn
                const((hp2 * ncls, ncls)),                            # gsum
                const((1, ncls)),                                     # bfc
            ],
            out_specs=pl.BlockSpec((1, 1, ncls), lambda b: (b, 0, 0)),
            scratch_shapes=[
                pltpu.VMEM((nch * rstride, lw + K - 1), jnp.float32)],  # h1
        ),
        compiler_params=pltpu.CompilerParams(
            dimension_semantics=("parallel",)),
    )(x, params["w1"], params["b1"], params["r1"], params["c1"],
      params["w2l"], params["b2l"], params["r2"], params["c2"],
      params["w3"], params["mhn"], params["gsum"], params["bfc"])
    return out3.reshape(B, ncls)


# ----------------------------------------------------------------------------
# Pure-JAX reference (correctness check)
# ----------------------------------------------------------------------------
def ref_forward(x, w1, b1, w2, b2, wfc, bfc):
    def conv(y, w, b):
        out = jax.lax.conv_general_dilated(
            y, w, (1, 1), "VALID", dimension_numbers=("NCHW", "OIHW", "NCHW"))
        return out + b[None, :, None, None]

    def mp(y):
        return jax.lax.reduce_window(y, -jnp.inf, jax.lax.max,
                                     (1, 1, 2, 2), (1, 1, 2, 2), "VALID")

    h = jax.nn.relu(mp(conv(x, w1, b1)))
    h = jax.nn.relu(mp(conv(h, w2, b2)))
    h = h.reshape(x.shape[0], -1)
    logits = h @ wfc.T + bfc
    return jax.nn.log_softmax(logits, axis=1)


if __name__ == "__main__":
    # fc1 expects 2500 = nChannel * 25 * 25 features, so with nChannel=4 and
    # kernel_size=3 the input must be (B, 1, 106, 106).
    nChannel, ksize = 4, 3
    B, H, W = 2, 106, 106

    key = jax.random.PRNGKey(0)
    k = jax.random.split(key, 7)
    x   = jax.random.normal(k[0], (B, 1, H, W), jnp.float32)
    w1  = jax.random.normal(k[1], (nChannel, 1, ksize, ksize), jnp.float32) * 0.30
    b1  = jax.random.normal(k[2], (nChannel,), jnp.float32) * 0.10
    w2  = jax.random.normal(k[3], (nChannel, nChannel, ksize, ksize), jnp.float32) * 0.15
    b2  = jax.random.normal(k[4], (nChannel,), jnp.float32) * 0.10
    wfc = jax.random.normal(k[5], (10, 2500), jnp.float32) * 0.02
    bfc = jax.random.normal(k[6], (10,), jnp.float32) * 0.01

    params = prepare_params(w1, b1, w2, b2, wfc, bfc, H, W)   # one-time prep
    out = convo_model_forward(x, params)
    out = jax.block_until_ready(out)

    ref = jax.block_until_ready(ref_forward(x, w1, b1, w2, b2, wfc, bfc))
    np.testing.assert_allclose(np.asarray(out), np.asarray(ref),
                               rtol=2e-3, atol=2e-3)

    print("KERNEL_OK")
</pallas_src>

<mosaic_0001>
module attributes {stable_mosaic.version = 11 : i64} {
  func.func @_fused_kernel(%arg0: i32, %arg1: memref<1x1x106x106xf32, #tpu.memory_space<vmem>>, %arg2: memref<36xf32, #tpu.memory_space<smem>>, %arg3: memref<4xf32, #tpu.memory_space<smem>>, %arg4: memref<56x103xf32, #tpu.memory_space<vmem>>, %arg5: memref<103x210xf32, #tpu.memory_space<vmem>>, %arg6: memref<36x208xf32, #tpu.memory_space<vmem>>, %arg7: memref<1x208xf32, #tpu.memory_space<vmem>>, %arg8: memref<25x49xf32, #tpu.memory_space<vmem>>, %arg9: memref<207x100xf32, #tpu.memory_space<vmem>>, %arg10: memref<100x250xf32, #tpu.memory_space<vmem>>, %arg11: memref<25x250xf32, #tpu.memory_space<vmem>>, %arg12: memref<250x10xf32, #tpu.memory_space<vmem>>, %arg13: memref<1x10xf32, #tpu.memory_space<vmem>>, %arg14: memref<1x1x10xf32, #tpu.memory_space<vmem>>, %arg15: memref<224x210xf32, #tpu.memory_space<vmem>>) attributes {dimension_semantics = [#tpu.dimension_semantics<parallel>], iteration_bounds = array<i64: 2>, scalar_prefetch = 0 : i64, scratch_operands = 1 : i64, tpu.core_type = #tpu.core_type<tc>, window_params = [{transform_indices = @transform_0, window_bounds = array<i64: 1, 1, 106, 106>}, {transform_indices = @transform_1, window_bounds = array<i64: 36>}, {transform_indices = @transform_2, window_bounds = array<i64: 4>}, {pipeline_mode = #tpu.pipeline_mode<synchronous>, transform_indices = @transform_3, window_bounds = array<i64: 56, 103>}, {pipeline_mode = #tpu.pipeline_mode<synchronous>, transform_indices = @transform_4, window_bounds = array<i64: 103, 210>}, {pipeline_mode = #tpu.pipeline_mode<synchronous>, transform_indices = @transform_5, window_bounds = array<i64: 36, 208>}, {pipeline_mode = #tpu.pipeline_mode<synchronous>, transform_indices = @transform_6, window_bounds = array<i64: 1, 208>}, {pipeline_mode = #tpu.pipeline_mode<synchronous>, transform_indices = @transform_7, window_bounds = array<i64: 25, 49>}, {pipeline_mode = #tpu.pipeline_mode<synchronous>, transform_indices = @transform_8, window_bounds = array<i64: 207, 100>}, {pipeline_mode = #tpu.pipeline_mode<synchronous>, transform_indices = @transform_9, window_bounds = array<i64: 100, 250>}, {pipeline_mode = #tpu.pipeline_mode<synchronous>, transform_indices = @transform_10, window_bounds = array<i64: 25, 250>}, {pipeline_mode = #tpu.pipeline_mode<synchronous>, transform_indices = @transform_11, window_bounds = array<i64: 250, 10>}, {pipeline_mode = #tpu.pipeline_mode<synchronous>, transform_indices = @transform_12, window_bounds = array<i64: 1, 10>}, {transform_indices = @transform_13, window_bounds = array<i64: 1, 1, 10>}]} {
    %c0 = arith.constant 0 : index
    %0 = memref.load %arg3[%c0] : memref<4xf32, #tpu.memory_space<smem>>
    %1 = vector.broadcast %0 : f32 to vector<104x104xf32>
    %c0_0 = arith.constant 0 : index
    %c0_1 = arith.constant 0 : index
    %c0_2 = arith.constant 0 : index
    %c0_3 = arith.constant 0 : index
    %2 = vector.load %arg1[%c0_0, %c0_1, %c0_2, %c0_3] : memref<1x1x106x106xf32, #tpu.memory_space<vmem>>, vector<1x1x104x104xf32>
    %3 = vector.shape_cast %2 : vector<1x1x104x104xf32> to vector<104x104xf32>
    %c0_4 = arith.constant 0 : index
    %4 = memref.load %arg2[%c0_4] : memref<36xf32, #tpu.memory_space<smem>>
    %5 = vector.broadcast %4 : f32 to vector<104x104xf32>
    %6 = arith.mulf %3, %5 : vector<104x104xf32>
    %7 = arith.addf %1, %6 : vector<104x104xf32>
    %c0_5 = arith.constant 0 : index
    %c0_6 = arith.constant 0 : index
    %c0_7 = arith.constant 0 : index
    %c1 = arith.constant 1 : index
    %8 = vector.load %arg1[%c0_5, %c0_6, %c0_7, %c1] : memref<1x1x106x106xf32, #tpu.memory_space<vmem>>, vector<1x1x104x104xf32>
    %9 = vector.shape_cast %8 : vector<1x1x104x104xf32> to vector<104x104xf32>
    %c1_8 = arith.constant 1 : index
    %10 = memref.load %arg2[%c1_8] : memref<36xf32, #tpu.memory_space<smem>>
    %11 = vector.broadcast %10 : f32 to vector<104x104xf32>
    %12 = arith.mulf %9, %11 : vector<104x104xf32>
    %13 = arith.addf %7, %12 : vector<104x104xf32>
    %c0_9 = arith.constant 0 : index
    %c0_10 = arith.constant 0 : index
    %c0_11 = arith.constant 0 : index
    %c2 = arith.constant 2 : index
    %14 = vector.load %arg1[%c0_9, %c0_10, %c0_11, %c2] : memref<1x1x106x106xf32, #tpu.memory_space<vmem>>, vector<1x1x104x104xf32>
    %15 = vector.shape_cast %14 : vector<1x1x104x104xf32> to vector<104x104xf32>
    %c2_12 = arith.constant 2 : index
    %16 = memref.load %arg2[%c2_12] : memref<36xf32, #tpu.memory_space<smem>>
    %17 = vector.broadcast %16 : f32 to vector<104x104xf32>
    %18 = arith.mulf %15, %17 : vector<104x104xf32>
    %19 = arith.addf %13, %18 : vector<104x104xf32>
    %c0_13 = arith.constant 0 : index
    %c0_14 = arith.constant 0 : index
    %c1_15 = arith.constant 1 : index
    %c0_16 = arith.constant 0 : index
    %20 = vector.load %arg1[%c0_13, %c0_14, %c1_15, %c0_16] : memref<1x1x106x106xf32, #tpu.memory_space<vmem>>, vector<1x1x104x104xf32>
    %21 = vector.shape_cast %20 : vector<1x1x104x104xf32> to vector<104x104xf32>
    %c3 = arith.constant 3 : index
    %22 = memref.load %arg2[%c3] : memref<36xf32, #tpu.memory_space<smem>>
    %23 = vector.broadcast %22 : f32 to vector<104x104xf32>
    %24 = arith.mulf %21, %23 : vector<104x104xf32>
    %25 = arith.addf %19, %24 : vector<104x104xf32>
    %c0_17 = arith.constant 0 : index
    %c0_18 = arith.constant 0 : index
    %c1_19 = arith.constant 1 : index
    %c1_20 = arith.constant 1 : index
    %26 = vector.load %arg1[%c0_17, %c0_18, %c1_19, %c1_20] : memref<1x1x106x106xf32, #tpu.memory_space<vmem>>, vector<1x1x104x104xf32>
    %27 = vector.shape_cast %26 : vector<1x1x104x104xf32> to vector<104x104xf32>
    %c4 = arith.constant 4 : index
    %28 = memref.load %arg2[%c4] : memref<36xf32, #tpu.memory_space<smem>>
    %29 = vector.broadcast %28 : f32 to vector<104x104xf32>
    %30 = arith.mulf %27, %29 : vector<104x104xf32>
    %31 = arith.addf %25, %30 : vector<104x104xf32>
    %c0_21 = arith.constant 0 : index
    %c0_22 = arith.constant 0 : index
    %c1_23 = arith.constant 1 : index
    %c2_24 = arith.constant 2 : index
    %32 = vector.load %arg1[%c0_21, %c0_22, %c1_23, %c2_24] : memref<1x1x106x106xf32, #tpu.memory_space<vmem>>, vector<1x1x104x104xf32>
    %33 = vector.shape_cast %32 : vector<1x1x104x104xf32> to vector<104x104xf32>
    %c5 = arith.constant 5 : index
    %34 = memref.load %arg2[%c5] : memref<36xf32, #tpu.memory_space<smem>>
    %35 = vector.broadcast %34 : f32 to vector<104x104xf32>
    %36 = arith.mulf %33, %35 : vector<104x104xf32>
    %37 = arith.addf %31, %36 : vector<104x104xf32>
    %c0_25 = arith.constant 0 : index
    %c0_26 = arith.constant 0 : index
    %c2_27 = arith.constant 2 : index
    %c0_28 = arith.constant 0 : index
    %38 = vector.load %arg1[%c0_25, %c0_26, %c2_27, %c0_28] : memref<1x1x106x106xf32, #tpu.memory_space<vmem>>, vector<1x1x104x104xf32>
    %39 = vector.shape_cast %38 : vector<1x1x104x104xf32> to vector<104x104xf32>
    %c6 = arith.constant 6 : index
    %40 = memref.load %arg2[%c6] : memref<36xf32, #tpu.memory_space<smem>>
    %41 = vector.broadcast %40 : f32 to vector<104x104xf32>
    %42 = arith.mulf %39, %41 : vector<104x104xf32>
    %43 = arith.addf %37, %42 : vector<104x104xf32>
    %c0_29 = arith.constant 0 : index
    %c0_30 = arith.constant 0 : index
    %c2_31 = arith.constant 2 : index
    %c1_32 = arith.constant 1 : index
    %44 = vector.load %arg1[%c0_29, %c0_30, %c2_31, %c1_32] : memref<1x1x106x106xf32, #tpu.memory_space<vmem>>, vector<1x1x104x104xf32>
    %45 = vector.shape_cast %44 : vector<1x1x104x104xf32> to vector<104x104xf32>
    %c7 = arith.constant 7 : index
    %46 = memref.load %arg2[%c7] : memref<36xf32, #tpu.memory_space<smem>>
    %47 = vector.broadcast %46 : f32 to vector<104x104xf32>
    %48 = arith.mulf %45, %47 : vector<104x104xf32>
    %49 = arith.addf %43, %48 : vector<104x104xf32>
    %c0_33 = arith.constant 0 : index
    %c0_34 = arith.constant 0 : index
    %c2_35 = arith.constant 2 : index
    %c2_36 = arith.constant 2 : index
    %50 = vector.load %arg1[%c0_33, %c0_34, %c2_35, %c2_36] : memref<1x1x106x106xf32, #tpu.memory_space<vmem>>, vector<1x1x104x104xf32>
    %51 = vector.shape_cast %50 : vector<1x1x104x104xf32> to vector<104x104xf32>
    %c8 = arith.constant 8 : index
    %52 = memref.load %arg2[%c8] : memref<36xf32, #tpu.memory_space<smem>>
    %53 = vector.broadcast %52 : f32 to vector<104x104xf32>
    %54 = arith.mulf %51, %53 : vector<104x104xf32>
    %55 = arith.addf %49, %54 : vector<104x104xf32>
    %56 = vector.extract_strided_slice %55 {offsets = [0, 0], sizes = [103, 104], strides = [1, 1]} : vector<104x104xf32> to vector<103x104xf32>
    %57 = vector.extract_strided_slice %55 {offsets = [1, 0], sizes = [103, 104], strides = [1, 1]} : vector<104x104xf32> to vector<103x104xf32>
    %58 = arith.maximumf %56, %57 : vector<103x104xf32>
    %59 = vector.extract_strided_slice %58 {offsets = [0, 0], sizes = [103, 103], strides = [1, 1]} : vector<103x104xf32> to vector<103x103xf32>
    %60 = vector.extract_strided_slice %58 {offsets = [0, 1], sizes = [103, 103], strides = [1, 1]} : vector<103x104xf32> to vector<103x103xf32>
    %61 = arith.maximumf %59, %60 : vector<103x103xf32>
    %c0_37 = arith.constant 0 : index
    %c0_38 = arith.constant 0 : index
    %62 = vector.load %arg4[%c0_37, %c0_38] : memref<56x103xf32, #tpu.memory_space<vmem>>, vector<56x103xf32>
    %cst = arith.constant dense<0.000000e+00> : vector<56x103xf32>
    %63 = tpu.matmul %62, %61, %cst {dimension_numbers = #tpu.dot_dimension_numbers<[1], [0], [0], [1], [0, 0, 1, 1], [], []>} : vector<56x103xf32>, vector<103x103xf32>, vector<56x103xf32> -> vector<56x103xf32>
    %c0_39 = arith.constant 0 : index
    %c0_40 = arith.constant 0 : index
    %64 = vector.load %arg5[%c0_39, %c0_40] : memref<103x210xf32, #tpu.memory_space<vmem>>, vector<103x210xf32>
    %cst_41 = arith.constant dense<0.000000e+00> : vector<56x210xf32>
    %65 = tpu.matmul %63, %64, %cst_41 {dimension_numbers = #tpu.dot_dimension_numbers<[1], [0], [0], [1], [0, 0, 1, 1], [], []>} : vector<56x103xf32>, vector<103x210xf32>, vector<56x210xf32> -> vector<56x210xf32>
    %cst_42 = arith.constant 0.000000e+00 : f32
    %66 = vector.broadcast %cst_42 : f32 to vector<56x210xf32>
    %67 = arith.maximumf %65, %66 : vector<56x210xf32>
    %c0_43 = arith.constant 0 : index
    %c0_44 = arith.constant 0 : index
    %68 = vector.load %arg15[%c0_43, %c0_44] : memref<224x210xf32, #tpu.memory_space<vmem>>, vector<56x210xf32>
    tpu.vector_store %arg15[%c0_43, %c0_44], %67 {strides = array<i32>} : memref<224x210xf32, #tpu.memory_space<vmem>>, vector<56x210xf32>,
    %c1_45 = arith.constant 1 : index
    %69 = memref.load %arg3[%c1_45] : memref<4xf32, #tpu.memory_space<smem>>
    %70 = vector.broadcast %69 : f32 to vector<104x104xf32>
    %c0_46 = arith.constant 0 : index
    %c0_47 = arith.constant 0 : index
    %c0_48 = arith.constant 0 : index
    %c0_49 = arith.constant 0 : index
    %71 = vector.load %arg1[%c0_46, %c0_47, %c0_48, %c0_49] : memref<1x1x106x106xf32, #tpu.memory_space<vmem>>, vector<1x1x104x104xf32>
    %72 = vector.shape_cast %71 : vector<1x1x104x104xf32> to vector<104x104xf32>
    %c9 = arith.constant 9 : index
    %73 = memref.load %arg2[%c9] : memref<36xf32, #tpu.memory_space<smem>>
    %74 = vector.broadcast %73 : f32 to vector<104x104xf32>
    %75 = arith.mulf %72, %74 : vector<104x104xf32>
    %76 = arith.addf %70, %75 : vector<104x104xf32>
    %c0_50 = arith.constant 0 : index
    %c0_51 = arith.constant 0 : index
    %c0_52 = arith.constant 0 : index
    %c1_53 = arith.constant 1 : index
    %77 = vector.load %arg1[%c0_50, %c0_51, %c0_52, %c1_53] : memref<1x1x106x106xf32, #tpu.memory_space<vmem>>, vector<1x1x104x104xf32>
    %78 = vector.shape_cast %77 : vector<1x1x104x104xf32> to vector<104x104xf32>
    %c10 = arith.constant 10 : index
    %79 = memref.load %arg2[%c10] : memref<36xf32, #tpu.memory_space<smem>>
    %80 = vector.broadcast %79 : f32 to vector<104x104xf32>
    %81 = arith.mulf %78, %80 : vector<104x104xf32>
    %82 = arith.addf %76, %81 : vector<104x104xf32>
    %c0_54 = arith.constant 0 : index
    %c0_55 = arith.constant 0 : index
    %c0_56 = arith.constant 0 : index
    %c2_57 = arith.constant 2 : index
    %83 = vector.load %arg1[%c0_54, %c0_55, %c0_56, %c2_57] : memref<1x1x106x106xf32, #tpu.memory_space<vmem>>, vector<1x1x104x104xf32>
    %84 = vector.shape_cast %83 : vector<1x1x104x104xf32> to vector<104x104xf32>
    %c11 = arith.constant 11 : index
    %85 = memref.load %arg2[%c11] : memref<36xf32, #tpu.memory_space<smem>>
    %86 = vector.broadcast %85 : f32 to vector<104x104xf32>
    %87 = arith.mulf %84, %86 : vector<104x104xf32>
    %88 = arith.addf %82, %87 : vector<104x104xf32>
    %c0_58 = arith.constant 0 : index
    %c0_59 = arith.constant 0 : index
    %c1_60 = arith.constant 1 : index
    %c0_61 = arith.constant 0 : index
    %89 = vector.load %arg1[%c0_58, %c0_59, %c1_60, %c0_61] : memref<1x1x106x106xf32, #tpu.memory_space<vmem>>, vector<1x1x104x104xf32>
    %90 = vector.shape_cast %89 : vector<1x1x104x104xf32> to vector<104x104xf32>
    %c12 = arith.constant 12 : index
    %91 = memref.load %arg2[%c12] : memref<36xf32, #tpu.memory_space<smem>>
    %92 = vector.broadcast %91 : f32 to vector<104x104xf32>
    %93 = arith.mulf %90, %92 : vector<104x104xf32>
    %94 = arith.addf %88, %93 : vector<104x104xf32>
    %c0_62 = arith.constant 0 : index
    %c0_63 = arith.constant 0 : index
    %c1_64 = arith.constant 1 : index
    %c1_65 = arith.constant 1 : index
    %95 = vector.load %arg1[%c0_62, %c0_63, %c1_64, %c1_65] : memref<1x1x106x106xf32, #tpu.memory_space<vmem>>, vector<1x1x104x104xf32>
    %96 = vector.shape_cast %95 : vector<1x1x104x104xf32> to vector<104x104xf32>
    %c13 = arith.constant 13 : index
    %97 = memref.load %arg2[%c13] : memref<36xf32, #tpu.memory_space<smem>>
    %98 = vector.broadcast %97 : f32 to vector<104x104xf32>
    %99 = arith.mulf %96, %98 : vector<104x104xf32>
    %100 = arith.addf %94, %99 : vector<104x104xf32>
    %c0_66 = arith.constant 0 : index
    %c0_67 = arith.constant 0 : index
    %c1_68 = arith.constant 1 : index
    %c2_69 = arith.constant 2 : index
    %101 = vector.load %arg1[%c0_66, %c0_67, %c1_68, %c2_69] : memref<1x1x106x106xf32, #tpu.memory_space<vmem>>, vector<1x1x104x104xf32>
    %102 = vector.shape_cast %101 : vector<1x1x104x104xf32> to vector<104x104xf32>
    %c14 = arith.constant 14 : index
    %103 = memref.load %arg2[%c14] : memref<36xf32, #tpu.memory_space<smem>>
    %104 = vector.broadcast %103 : f32 to vector<104x104xf32>
    %105 = arith.mulf %102, %104 : vector<104x104xf32>
    %106 = arith.addf %100, %105 : vector<104x104xf32>
    %c0_70 = arith.constant 0 : index
    %c0_71 = arith.constant 0 : index
    %c2_72 = arith.constant 2 : index
    %c0_73 = arith.constant 0 : index
    %107 = vector.load %arg1[%c0_70, %c0_71, %c2_72, %c0_73] : memref<1x1x106x106xf32, #tpu.memory_space<vmem>>, vector<1x1x104x104xf32>
    %108 = vector.shape_cast %107 : vector<1x1x104x104xf32> to vector<104x104xf32>
    %c15 = arith.constant 15 : index
    %109 = memref.load %arg2[%c15] : memref<36xf32, #tpu.memory_space<smem>>
    %110 = vector.broadcast %109 : f32 to vector<104x104xf32>
    %111 = arith.mulf %108, %110 : vector<104x104xf32>
    %112 = arith.addf %106, %111 : vector<104x104xf32>
    %c0_74 = arith.constant 0 : index
    %c0_75 = arith.constant 0 : index
    %c2_76 = arith.constant 2 : index
    %c1_77 = arith.constant 1 : index
    %113 = vector.load %arg1[%c0_74, %c0_75, %c2_76, %c1_77] : memref<1x1x106x106xf32, #tpu.memory_space<vmem>>, vector<1x1x104x104xf32>
    %114 = vector.shape_cast %113 : vector<1x1x104x104xf32> to vector<104x104xf32>
    %c16 = arith.constant 16 : index
    %115 = memref.load %arg2[%c16] : memref<36xf32, #tpu.memory_space<smem>>
    %116 = vector.broadcast %115 : f32 to vector<104x104xf32>
    %117 = arith.mulf %114, %116 : vector<104x104xf32>
    %118 = arith.addf %112, %117 : vector<104x104xf32>
    %c0_78 = arith.constant 0 : index
    %c0_79 = arith.constant 0 : index
    %c2_80 = arith.constant 2 : index
    %c2_81 = arith.constant 2 : index
    %119 = vector.load %arg1[%c0_78, %c0_79, %c2_80, %c2_81] : memref<1x1x106x106xf32, #tpu.memory_space<vmem>>, vector<1x1x104x104xf32>
    %120 = vector.shape_cast %119 : vector<1x1x104x104xf32> to vector<104x104xf32>
    %c17 = arith.constant 17 : index
    %121 = memref.load %arg2[%c17] : memref<36xf32, #tpu.memory_space<smem>>
    %122 = vector.broadcast %121 : f32 to vector<104x104xf32>
    %123 = arith.mulf %120, %122 : vector<104x104xf32>
    %124 = arith.addf %118, %123 : vector<104x104xf32>
    %125 = vector.extract_strided_slice %124 {offsets = [0, 0], sizes = [103, 104], strides = [1, 1]} : vector<104x104xf32> to vector<103x104xf32>
    %126 = vector.extract_strided_slice %124 {offsets = [1, 0], sizes = [103, 104], strides = [1, 1]} : vector<104x104xf32> to vector<103x104xf32>
    %127 = arith.maximumf %125, %126 : vector<103x104xf32>
    %128 = vector.extract_strided_slice %127 {offsets = [0, 0], sizes = [103, 103], strides = [1, 1]} : vector<103x104xf32> to vector<103x103xf32>
    %129 = vector.extract_strided_slice %127 {offsets = [0, 1], sizes = [103, 103], strides = [1, 1]} : vector<103x104xf32> to vector<103x103xf32>
    %130 = arith.maximumf %128, %129 : vector<103x103xf32>
    %c0_82 = arith.constant 0 : index
    %c0_83 = arith.constant 0 : index
    %131 = vector.load %arg4[%c0_82, %c0_83] : memref<56x103xf32, #tpu.memory_space<vmem>>, vector<56x103xf32>
    %cst_84 = arith.constant dense<0.000000e+00> : vector<56x103xf32>
    %132 = tpu.matmul %131, %130, %cst_84 {dimension_numbers = #tpu.dot_dimension_numbers<[1], [0], [0], [1], [0, 0, 1, 1], [], []>} : vector<56x103xf32>, vector<103x103xf32>, vector<56x103xf32> -> vector<56x103xf32>
    %c0_85 = arith.constant 0 : index
    %c0_86 = arith.constant 0 : index
    %133 = vector.load %arg5[%c0_85, %c0_86] : memref<103x210xf32, #tpu.memory_space<vmem>>, vector<103x210xf32>
    %cst_87 = arith.constant dense<0.000000e+00> : vector<56x210xf32>
    %134 = tpu.matmul %132, %133, %cst_87 {dimension_numbers = #tpu.dot_dimension_numbers<[1], [0], [0], [1], [0, 0, 1, 1], [], []>} : vector<56x103xf32>, vector<103x210xf32>, vector<56x210xf32> -> vector<56x210xf32>
    %cst_88 = arith.constant 0.000000e+00 : f32
    %135 = vector.broadcast %cst_88 : f32 to vector<56x210xf32>
    %136 = arith.maximumf %134, %135 : vector<56x210xf32>
    %c56 = arith.constant 56 : index
    %c0_89 = arith.constant 0 : index
    %137 = vector.load %arg15[%c56, %c0_89] : memref<224x210xf32, #tpu.memory_space<vmem>>, vector<56x210xf32>
    tpu.vector_store %arg15[%c56, %c0_89], %136 {strides = array<i32>} : memref<224x210xf32, #tpu.memory_space<vmem>>, vector<56x210xf32>,
    %c2_90 = arith.constant 2 : index
    %138 = memref.load %arg3[%c2_90] : memref<4xf32, #tpu.memory_space<smem>>
    %139 = vector.broadcast %138 : f32 to vector<104x104xf32>
    %c0_91 = arith.constant 0 : index
    %c0_92 = arith.constant 0 : index
    %c0_93 = arith.constant 0 : index
    %c0_94 = arith.constant 0 : index
    %140 = vector.load %arg1[%c0_91, %c0_92, %c0_93, %c0_94] : memref<1x1x106x106xf32, #tpu.memory_space<vmem>>, vector<1x1x104x104xf32>
    %141 = vector.shape_cast %140 : vector<1x1x104x104xf32> to vector<104x104xf32>
    %c18 = arith.constant 18 : index
    %142 = memref.load %arg2[%c18] : memref<36xf32, #tpu.memory_space<smem>>
    %143 = vector.broadcast %142 : f32 to vector<104x104xf32>
    %144 = arith.mulf %141, %143 : vector<104x104xf32>
    %145 = arith.addf %139, %144 : vector<104x104xf32>
    %c0_95 = arith.constant 0 : index
    %c0_96 = arith.constant 0 : index
    %c0_97 = arith.constant 0 : index
    %c1_98 = arith.constant 1 : index
    %146 = vector.load %arg1[%c0_95, %c0_96, %c0_97, %c1_98] : memref<1x1x106x106xf32, #tpu.memory_space<vmem>>, vector<1x1x104x104xf32>
    %147 = vector.shape_cast %146 : vector<1x1x104x104xf32> to vector<104x104xf32>
    %c19 = arith.constant 19 : index
    %148 = memref.load %arg2[%c19] : memref<36xf32, #tpu.memory_space<smem>>
    %149 = vector.broadcast %148 : f32 to vector<104x104xf32>
    %150 = arith.mulf %147, %149 : vector<104x104xf32>
    %151 = arith.addf %145, %150 : vector<104x104xf32>
    %c0_99 = arith.constant 0 : index
    %c0_100 = arith.constant 0 : index
    %c0_101 = arith.constant 0 : index
    %c2_102 = arith.constant 2 : index
    %152 = vector.load %arg1[%c0_99, %c0_100, %c0_101, %c2_102] : memref<1x1x106x106xf32, #tpu.memory_space<vmem>>, vector<1x1x104x104xf32>
    %153 = vector.shape_cast %152 : vector<1x1x104x104xf32> to vector<104x104xf32>
    %c20 = arith.constant 20 : index
    %154 = memref.load %arg2[%c20] : memref<36xf32, #tpu.memory_space<smem>>
    %155 = vector.broadcast %154 : f32 to vector<104x104xf32>
    %156 = arith.mulf %153, %155 : vector<104x104xf32>
    %157 = arith.addf %151, %156 : vector<104x104xf32>
    %c0_103 = arith.constant 0 : index
    %c0_104 = arith.constant 0 : index
    %c1_105 = arith.constant 1 : index
    %c0_106 = arith.constant 0 : index
    %158 = vector.load %arg1[%c0_103, %c0_104, %c1_105, %c0_106] : memref<1x1x106x106xf32, #tpu.memory_space<vmem>>, vector<1x1x104x104xf32>
    %159 = vector.shape_cast %158 : vector<1x1x104x104xf32> to vector<104x104xf32>
    %c21 = arith.constant 21 : index
    %160 = memref.load %arg2[%c21] : memref<36xf32, #tpu.memory_space<smem>>
    %161 = vector.broadcast %160 : f32 to vector<104x104xf32>
    %162 = arith.mulf %159, %161 : vector<104x104xf32>
    %163 = arith.addf %157, %162 : vector<104x104xf32>
    %c0_107 = arith.constant 0 : index
    %c0_108 = arith.constant 0 : index
    %c1_109 = arith.constant 1 : index
    %c1_110 = arith.constant 1 : index
    %164 = vector.load %arg1[%c0_107, %c0_108, %c1_109, %c1_110] : memref<1x1x106x106xf32, #tpu.memory_space<vmem>>, vector<1x1x104x104xf32>
    %165 = vector.shape_cast %164 : vector<1x1x104x104xf32> to vector<104x104xf32>
    %c22 = arith.constant 22 : index
    %166 = memref.load %arg2[%c22] : memref<36xf32, #tpu.memory_space<smem>>
    %167 = vector.broadcast %166 : f32 to vector<104x104xf32>
    %168 = arith.mulf %165, %167 : vector<104x104xf32>
    %169 = arith.addf %163, %168 : vector<104x104xf32>
    %c0_111 = arith.constant 0 : index
    %c0_112 = arith.constant 0 : index
    %c1_113 = arith.constant 1 : index
    %c2_114 = arith.constant 2 : index
    %170 = vector.load %arg1[%c0_111, %c0_112, %c1_113, %c2_114] : memref<1x1x106x106xf32, #tpu.memory_space<vmem>>, vector<1x1x104x104xf32>
    %171 = vector.shape_cast %170 : vector<1x1x104x104xf32> to vector<104x104xf32>
    %c23 = arith.constant 23 : index
    %172 = memref.load %arg2[%c23] : memref<36xf32, #tpu.memory_space<smem>>
    %173 = vector.broadcast %172 : f32 to vector<104x104xf32>
    %174 = arith.mulf %171, %173 : vector<104x104xf32>
    %175 = arith.addf %169, %174 : vector<104x104xf32>
    %c0_115 = arith.constant 0 : index
    %c0_116 = arith.constant 0 : index
    %c2_117 = arith.constant 2 : index
    %c0_118 = arith.constant 0 : index
    %176 = vector.load %arg1[%c0_115, %c0_116, %c2_117, %c0_118] : memref<1x1x106x106xf32, #tpu.memory_space<vmem>>, vector<1x1x104x104xf32>
    %177 = vector.shape_cast %176 : vector<1x1x104x104xf32> to vector<104x104xf32>
    %c24 = arith.constant 24 : index
    %178 = memref.load %arg2[%c24] : memref<36xf32, #tpu.memory_space<smem>>
    %179 = vector.broadcast %178 : f32 to vector<104x104xf32>
    %180 = arith.mulf %177, %179 : vector<104x104xf32>
    %181 = arith.addf %175, %180 : vector<104x104xf32>
    %c0_119 = arith.constant 0 : index
    %c0_120 = arith.constant 0 : index
    %c2_121 = arith.constant 2 : index
    %c1_122 = arith.constant 1 : index
    %182 = vector.load %arg1[%c0_119, %c0_120, %c2_121, %c1_122] : memref<1x1x106x106xf32, #tpu.memory_space<vmem>>, vector<1x1x104x104xf32>
    %183 = vector.shape_cast %182 : vector<1x1x104x104xf32> to vector<104x104xf32>
    %c25 = arith.constant 25 : index
    %184 = memref.load %arg2[%c25] : memref<36xf32, #tpu.memory_space<smem>>
    %185 = vector.broadcast %184 : f32 to vector<104x104xf32>
    %186 = arith.mulf %183, %185 : vector<104x104xf32>
    %187 = arith.addf %181, %186 : vector<104x104xf32>
    %c0_123 = arith.constant 0 : index
    %c0_124 = arith.constant 0 : index
    %c2_125 = arith.constant 2 : index
    %c2_126 = arith.constant 2 : index
    %188 = vector.load %arg1[%c0_123, %c0_124, %c2_125, %c2_126] : memref<1x1x106x106xf32, #tpu.memory_space<vmem>>, vector<1x1x104x104xf32>
    %189 = vector.shape_cast %188 : vector<1x1x104x104xf32> to vector<104x104xf32>
    %c26 = arith.constant 26 : index
    %190 = memref.load %arg2[%c26] : memref<36xf32, #tpu.memory_space<smem>>
    %191 = vector.broadcast %190 : f32 to vector<104x104xf32>
    %192 = arith.mulf %189, %191 : vector<104x104xf32>
    %193 = arith.addf %187, %192 : vector<104x104xf32>
    %194 = vector.extract_strided_slice %193 {offsets = [0, 0], sizes = [103, 104], strides = [1, 1]} : vector<104x104xf32> to vector<103x104xf32>
    %195 = vector.extract_strided_slice %193 {offsets = [1, 0], sizes = [103, 104], strides = [1, 1]} : vector<104x104xf32> to vector<103x104xf32>
    %196 = arith.maximumf %194, %195 : vector<103x104xf32>
    %197 = vector.extract_strided_slice %196 {offsets = [0, 0], sizes = [103, 103], strides = [1, 1]} : vector<103x104xf32> to vector<103x103xf32>
    %198 = vector.extract_strided_slice %196 {offsets = [0, 1], sizes = [103, 103], strides = [1, 1]} : vector<103x104xf32> to vector<103x103xf32>
    %199 = arith.maximumf %197, %198 : vector<103x103xf32>
    %c0_127 = arith.constant 0 : index
    %c0_128 = arith.constant 0 : index
    %200 = vector.load %arg4[%c0_127, %c0_128] : memref<56x103xf32, #tpu.memory_space<vmem>>, vector<56x103xf32>
    %cst_129 = arith.constant dense<0.000000e+00> : vector<56x103xf32>
    %201 = tpu.matmul %200, %199, %cst_129 {dimension_numbers = #tpu.dot_dimension_numbers<[1], [0], [0], [1], [0, 0, 1, 1], [], []>} : vector<56x103xf32>, vector<103x103xf32>, vector<56x103xf32> -> vector<56x103xf32>
    %c0_130 = arith.constant 0 : index
    %c0_131 = arith.constant 0 : index
    %202 = vector.load %arg5[%c0_130, %c0_131] : memref<103x210xf32, #tpu.memory_space<vmem>>, vector<103x210xf32>
    %cst_132 = arith.constant dense<0.000000e+00> : vector<56x210xf32>
    %203 = tpu.matmul %201, %202, %cst_132 {dimension_numbers = #tpu.dot_dimension_numbers<[1], [0], [0], [1], [0, 0, 1, 1], [], []>} : vector<56x103xf32>, vector<103x210xf32>, vector<56x210xf32> -> vector<56x210xf32>
    %cst_133 = arith.constant 0.000000e+00 : f32
    %204 = vector.broadcast %cst_133 : f32 to vector<56x210xf32>
    %205 = arith.maximumf %203, %204 : vector<56x210xf32>
    %c112 = arith.constant 112 : index
    %c0_134 = arith.constant 0 : index
    %206 = vector.load %arg15[%c112, %c0_134] : memref<224x210xf32, #tpu.memory_space<vmem>>, vector<56x210xf32>
    tpu.vector_store %arg15[%c112, %c0_134], %205 {strides = array<i32>} : memref<224x210xf32, #tpu.memory_space<vmem>>, vector<56x210xf32>,
    %c3_135 = arith.constant 3 : index
    %207 = memref.load %arg3[%c3_135] : memref<4xf32, #tpu.memory_space<smem>>
    %208 = vector.broadcast %207 : f32 to vector<104x104xf32>
    %c0_136 = arith.constant 0 : index
    %c0_137 = arith.constant 0 : index
    %c0_138 = arith.constant 0 : index
    %c0_139 = arith.constant 0 : index
    %209 = vector.load %arg1[%c0_136, %c0_137, %c0_138, %c0_139] : memref<1x1x106x106xf32, #tpu.memory_space<vmem>>, vector<1x1x104x104xf32>
    %210 = vector.shape_cast %209 : vector<1x1x104x104xf32> to vector<104x104xf32>
    %c27 = arith.constant 27 : index
    %211 = memref.load %arg2[%c27] : memref<36xf32, #tpu.memory_space<smem>>
    %212 = vector.broadcast %211 : f32 to vector<104x104xf32>
    %213 = arith.mulf %210, %212 : vector<104x104xf32>
    %214 = arith.addf %208, %213 : vector<104x104xf32>
    %c0_140 = arith.constant 0 : index
    %c0_141 = arith.constant 0 : index
    %c0_142 = arith.constant 0 : index
    %c1_143 = arith.constant 1 : index
    %215 = vector.load %arg1[%c0_140, %c0_141, %c0_142, %c1_143] : memref<1x1x106x106xf32, #tpu.memory_space<vmem>>, vector<1x1x104x104xf32>
    %216 = vector.shape_cast %215 : vector<1x1x104x104xf32> to vector<104x104xf32>
    %c28 = arith.constant 28 : index
    %217 = memref.load %arg2[%c28] : memref<36xf32, #tpu.memory_space<smem>>
    %218 = vector.broadcast %217 : f32 to vector<104x104xf32>
    %219 = arith.mulf %216, %218 : vector<104x104xf32>
    %220 = arith.addf %214, %219 : vector<104x104xf32>
    %c0_144 = arith.constant 0 : index
    %c0_145 = arith.constant 0 : index
    %c0_146 = arith.constant 0 : index
    %c2_147 = arith.constant 2 : index
    %221 = vector.load %arg1[%c0_144, %c0_145, %c0_146, %c2_147] : memref<1x1x106x106xf32, #tpu.memory_space<vmem>>, vector<1x1x104x104xf32>
    %222 = vector.shape_cast %221 : vector<1x1x104x104xf32> to vector<104x104xf32>
    %c29 = arith.constant 29 : index
    %223 = memref.load %arg2[%c29] : memref<36xf32, #tpu.memory_space<smem>>
    %224 = vector.broadcast %223 : f32 to vector<104x104xf32>
    %225 = arith.mulf %222, %224 : vector<104x104xf32>
    %226 = arith.addf %220, %225 : vector<104x104xf32>
    %c0_148 = arith.constant 0 : index
    %c0_149 = arith.constant 0 : index
    %c1_150 = arith.constant 1 : index
    %c0_151 = arith.constant 0 : index
    %227 = vector.load %arg1[%c0_148, %c0_149, %c1_150, %c0_151] : memref<1x1x106x106xf32, #tpu.memory_space<vmem>>, vector<1x1x104x104xf32>
    %228 = vector.shape_cast %227 : vector<1x1x104x104xf32> to vector<104x104xf32>
    %c30 = arith.constant 30 : index
    %229 = memref.load %arg2[%c30] : memref<36xf32, #tpu.memory_space<smem>>
    %230 = vector.broadcast %229 : f32 to vector<104x104xf32>
    %231 = arith.mulf %228, %230 : vector<104x104xf32>
    %232 = arith.addf %226, %231 : vector<104x104xf32>
    %c0_152 = arith.constant 0 : index
    %c0_153 = arith.constant 0 : index
    %c1_154 = arith.constant 1 : index
    %c1_155 = arith.constant 1 : index
    %233 = vector.load %arg1[%c0_152, %c0_153, %c1_154, %c1_155] : memref<1x1x106x106xf32, #tpu.memory_space<vmem>>, vector<1x1x104x104xf32>
    %234 = vector.shape_cast %233 : vector<1x1x104x104xf32> to vector<104x104xf32>
    %c31 = arith.constant 31 : index
    %235 = memref.load %arg2[%c31] : memref<36xf32, #tpu.memory_space<smem>>
    %236 = vector.broadcast %235 : f32 to vector<104x104xf32>
    %237 = arith.mulf %234, %236 : vector<104x104xf32>
    %238 = arith.addf %232, %237 : vector<104x104xf32>
    %c0_156 = arith.constant 0 : index
    %c0_157 = arith.constant 0 : index
    %c1_158 = arith.constant 1 : index
    %c2_159 = arith.constant 2 : index
    %239 = vector.load %arg1[%c0_156, %c0_157, %c1_158, %c2_159] : memref<1x1x106x106xf32, #tpu.memory_space<vmem>>, vector<1x1x104x104xf32>
    %240 = vector.shape_cast %239 : vector<1x1x104x104xf32> to vector<104x104xf32>
    %c32 = arith.constant 32 : index
    %241 = memref.load %arg2[%c32] : memref<36xf32, #tpu.memory_space<smem>>
    %242 = vector.broadcast %241 : f32 to vector<104x104xf32>
    %243 = arith.mulf %240, %242 : vector<104x104xf32>
    %244 = arith.addf %238, %243 : vector<104x104xf32>
    %c0_160 = arith.constant 0 : index
    %c0_161 = arith.constant 0 : index
    %c2_162 = arith.constant 2 : index
    %c0_163 = arith.constant 0 : index
    %245 = vector.load %arg1[%c0_160, %c0_161, %c2_162, %c0_163] : memref<1x1x106x106xf32, #tpu.memory_space<vmem>>, vector<1x1x104x104xf32>
    %246 = vector.shape_cast %245 : vector<1x1x104x104xf32> to vector<104x104xf32>
    %c33 = arith.constant 33 : index
    %247 = memref.load %arg2[%c33] : memref<36xf32, #tpu.memory_space<smem>>
    %248 = vector.broadcast %247 : f32 to vector<104x104xf32>
    %249 = arith.mulf %246, %248 : vector<104x104xf32>
    %250 = arith.addf %244, %249 : vector<104x104xf32>
    %c0_164 = arith.constant 0 : index
    %c0_165 = arith.constant 0 : index
    %c2_166 = arith.constant 2 : index
    %c1_167 = arith.constant 1 : index
    %251 = vector.load %arg1[%c0_164, %c0_165, %c2_166, %c1_167] : memref<1x1x106x106xf32, #tpu.memory_space<vmem>>, vector<1x1x104x104xf32>
    %252 = vector.shape_cast %251 : vector<1x1x104x104xf32> to vector<104x104xf32>
    %c34 = arith.constant 34 : index
    %253 = memref.load %arg2[%c34] : memref<36xf32, #tpu.memory_space<smem>>
    %254 = vector.broadcast %253 : f32 to vector<104x104xf32>
    %255 = arith.mulf %252, %254 : vector<104x104xf32>
    %256 = arith.addf %250, %255 : vector<104x104xf32>
    %c0_168 = arith.constant 0 : index
    %c0_169 = arith.constant 0 : index
    %c2_170 = arith.constant 2 : index
    %c2_171 = arith.constant 2 : index
    %257 = vector.load %arg1[%c0_168, %c0_169, %c2_170, %c2_171] : memref<1x1x106x106xf32, #tpu.memory_space<vmem>>, vector<1x1x104x104xf32>
    %258 = vector.shape_cast %257 : vector<1x1x104x104xf32> to vector<104x104xf32>
    %c35 = arith.constant 35 : index
    %259 = memref.load %arg2[%c35] : memref<36xf32, #tpu.memory_space<smem>>
    %260 = vector.broadcast %259 : f32 to vector<104x104xf32>
    %261 = arith.mulf %258, %260 : vector<104x104xf32>
    %262 = arith.addf %256, %261 : vector<104x104xf32>
    %263 = vector.extract_strided_slice %262 {offsets = [0, 0], sizes = [103, 104], strides = [1, 1]} : vector<104x104xf32> to vector<103x104xf32>
    %264 = vector.extract_strided_slice %262 {offsets = [1, 0], sizes = [103, 104], strides = [1, 1]} : vector<104x104xf32> to vector<103x104xf32>
    %265 = arith.maximumf %263, %264 : vector<103x104xf32>
    %266 = vector.extract_strided_slice %265 {offsets = [0, 0], sizes = [103, 103], strides = [1, 1]} : vector<103x104xf32> to vector<103x103xf32>
    %267 = vector.extract_strided_slice %265 {offsets = [0, 1], sizes = [103, 103], strides = [1, 1]} : vector<103x104xf32> to vector<103x103xf32>
    %268 = arith.maximumf %266, %267 : vector<103x103xf32>
    %c0_172 = arith.constant 0 : index
    %c0_173 = arith.constant 0 : index
    %269 = vector.load %arg4[%c0_172, %c0_173] : memref<56x103xf32, #tpu.memory_space<vmem>>, vector<56x103xf32>
    %cst_174 = arith.constant dense<0.000000e+00> : vector<56x103xf32>
    %270 = tpu.matmul %269, %268, %cst_174 {dimension_numbers = #tpu.dot_dimension_numbers<[1], [0], [0], [1], [0, 0, 1, 1], [], []>} : vector<56x103xf32>, vector<103x103xf32>, vector<56x103xf32> -> vector<56x103xf32>
    %c0_175 = arith.constant 0 : index
    %c0_176 = arith.constant 0 : index
    %271 = vector.load %arg5[%c0_175, %c0_176] : memref<103x210xf32, #tpu.memory_space<vmem>>, vector<103x210xf32>
    %cst_177 = arith.constant dense<0.000000e+00> : vector<56x210xf32>
    %272 = tpu.matmul %270, %271, %cst_177 {dimension_numbers = #tpu.dot_dimension_numbers<[1], [0], [0], [1], [0, 0, 1, 1], [], []>} : vector<56x103xf32>, vector<103x210xf32>, vector<56x210xf32> -> vector<56x210xf32>
    %cst_178 = arith.constant 0.000000e+00 : f32
    %273 = vector.broadcast %cst_178 : f32 to vector<56x210xf32>
    %274 = arith.maximumf %272, %273 : vector<56x210xf32>
    %c168 = arith.constant 168 : index
    %c0_179 = arith.constant 0 : index
    %275 = vector.load %arg15[%c168, %c0_179] : memref<224x210xf32, #tpu.memory_space<vmem>>, vector<56x210xf32>
    tpu.vector_store %arg15[%c168, %c0_179], %274 {strides = array<i32>} : memref<224x210xf32, #tpu.memory_space<vmem>>, vector<56x210xf32>,
    %cst_180 = arith.constant 0.000000e+00 : f32
    %276 = vector.broadcast %cst_180 : f32 to vector<50x208xf32>
    %c0_181 = arith.constant 0 : index
    %c0_182 = arith.constant 0 : index
    %277 = vector.load %arg7[%c0_181, %c0_182] : memref<1x208xf32, #tpu.memory_space<vmem>>, vector<1x208xf32>
    %278 = vector.broadcast %277 : vector<1x208xf32> to vector<50x208xf32>
    %279 = arith.addf %276, %278 : vector<50x208xf32>
    %c0_183 = arith.constant 0 : index
    %c0_184 = arith.constant 0 : index
    %280 = vector.load %arg15[%c0_183, %c0_184] : memref<224x210xf32, #tpu.memory_space<vmem>>, vector<50x208xf32>
    %c0_185 = arith.constant 0 : index
    %c0_186 = arith.constant 0 : index
    %281 = vector.load %arg6[%c0_185, %c0_186] : memref<36x208xf32, #tpu.memory_space<vmem>>, vector<1x208xf32>
    %282 = vector.broadcast %281 : vector<1x208xf32> to vector<50x208xf32>
    %283 = arith.mulf %280, %282 : vector<50x208xf32>
    %284 = arith.addf %279, %283 : vector<50x208xf32>
    %c0_187 = arith.constant 0 : index
    %c1_188 = arith.constant 1 : index
    %285 = vector.load %arg15[%c0_187, %c1_188] : memref<224x210xf32, #tpu.memory_space<vmem>>, vector<50x208xf32>
    %c1_189 = arith.constant 1 : index
    %c0_190 = arith.constant 0 : index
    %286 = vector.load %arg6[%c1_189, %c0_190] : memref<36x208xf32, #tpu.memory_space<vmem>>, vector<1x208xf32>
    %287 = vector.broadcast %286 : vector<1x208xf32> to vector<50x208xf32>
    %288 = arith.mulf %285, %287 : vector<50x208xf32>
    %289 = arith.addf %284, %288 : vector<50x208xf32>
    %c0_191 = arith.constant 0 : index
    %c2_192 = arith.constant 2 : index
    %290 = vector.load %arg15[%c0_191, %c2_192] : memref<224x210xf32, #tpu.memory_space<vmem>>, vector<50x208xf32>
    %c2_193 = arith.constant 2 : index
    %c0_194 = arith.constant 0 : index
    %291 = vector.load %arg6[%c2_193, %c0_194] : memref<36x208xf32, #tpu.memory_space<vmem>>, vector<1x208xf32>
    %292 = vector.broadcast %291 : vector<1x208xf32> to vector<50x208xf32>
    %293 = arith.mulf %290, %292 : vector<50x208xf32>
    %294 = arith.addf %289, %293 : vector<50x208xf32>
    %c1_195 = arith.constant 1 : index
    %c0_196 = arith.constant 0 : index
    %295 = vector.load %arg15[%c1_195, %c0_196] : memref<224x210xf32, #tpu.memory_space<vmem>>, vector<50x208xf32>
    %c3_197 = arith.constant 3 : index
    %c0_198 = arith.constant 0 : index
    %296 = vector.load %arg6[%c3_197, %c0_198] : memref<36x208xf32, #tpu.memory_space<vmem>>, vector<1x208xf32>
    %297 = vector.broadcast %296 : vector<1x208xf32> to vector<50x208xf32>
    %298 = arith.mulf %295, %297 : vector<50x208xf32>
    %299 = arith.addf %294, %298 : vector<50x208xf32>
    %c1_199 = arith.constant 1 : index
    %c1_200 = arith.constant 1 : index
    %300 = vector.load %arg15[%c1_199, %c1_200] : memref<224x210xf32, #tpu.memory_space<vmem>>, vector<50x208xf32>
    %c4_201 = arith.constant 4 : index
    %c0_202 = arith.constant 0 : index
    %301 = vector.load %arg6[%c4_201, %c0_202] : memref<36x208xf32, #tpu.memory_space<vmem>>, vector<1x208xf32>
    %302 = vector.broadcast %301 : vector<1x208xf32> to vector<50x208xf32>
    %303 = arith.mulf %300, %302 : vector<50x208xf32>
    %304 = arith.addf %299, %303 : vector<50x208xf32>
    %c1_203 = arith.constant 1 : index
    %c2_204 = arith.constant 2 : index
    %305 = vector.load %arg15[%c1_203, %c2_204] : memref<224x210xf32, #tpu.memory_space<vmem>>, vector<50x208xf32>
    %c5_205 = arith.constant 5 : index
    %c0_206 = arith.constant 0 : index
    %306 = vector.load %arg6[%c5_205, %c0_206] : memref<36x208xf32, #tpu.memory_space<vmem>>, vector<1x208xf32>
    %307 = vector.broadcast %306 : vector<1x208xf32> to vector<50x208xf32>
    %308 = arith.mulf %305, %307 : vector<50x208xf32>
    %309 = arith.addf %304, %308 : vector<50x208xf32>
    %c2_207 = arith.constant 2 : index
    %c0_208 = arith.constant 0 : index
    %310 = vector.load %arg15[%c2_207, %c0_208] : memref<224x210xf32, #tpu.memory_space<vmem>>, vector<50x208xf32>
    %c6_209 = arith.constant 6 : index
    %c0_210 = arith.constant 0 : index
    %311 = vector.load %arg6[%c6_209, %c0_210] : memref<36x208xf32, #tpu.memory_space<vmem>>, vector<1x208xf32>
    %312 = vector.broadcast %311 : vector<1x208xf32> to vector<50x208xf32>
    %313 = arith.mulf %310, %312 : vector<50x208xf32>
    %314 = arith.addf %309, %313 : vector<50x208xf32>
    %c2_211 = arith.constant 2 : index
    %c1_212 = arith.constant 1 : index
    %315 = vector.load %arg15[%c2_211, %c1_212] : memref<224x210xf32, #tpu.memory_space<vmem>>, vector<50x208xf32>
    %c7_213 = arith.constant 7 : index
    %c0_214 = arith.constant 0 : index
    %316 = vector.load %arg6[%c7_213, %c0_214] : memref<36x208xf32, #tpu.memory_space<vmem>>, vector<1x208xf32>
    %317 = vector.broadcast %316 : vector<1x208xf32> to vector<50x208xf32>
    %318 = arith.mulf %315, %317 : vector<50x208xf32>
    %319 = arith.addf %314, %318 : vector<50x208xf32>
    %c2_215 = arith.constant 2 : index
    %c2_216 = arith.constant 2 : index
    %320 = vector.load %arg15[%c2_215, %c2_216] : memref<224x210xf32, #tpu.memory_space<vmem>>, vector<50x208xf32>
    %c8_217 = arith.constant 8 : index
    %c0_218 = arith.constant 0 : index
    %321 = vector.load %arg6[%c8_217, %c0_218] : memref<36x208xf32, #tpu.memory_space<vmem>>, vector<1x208xf32>
    %322 = vector.broadcast %321 : vector<1x208xf32> to vector<50x208xf32>
    %323 = arith.mulf %320, %322 : vector<50x208xf32>
    %324 = arith.addf %319, %323 : vector<50x208xf32>
    %c56_219 = arith.constant 56 : index
    %c0_220 = arith.constant 0 : index
    %325 = vector.load %arg15[%c56_219, %c0_220] : memref<224x210xf32, #tpu.memory_space<vmem>>, vector<50x208xf32>
    %c9_221 = arith.constant 9 : index
    %c0_222 = arith.constant 0 : index
    %326 = vector.load %arg6[%c9_221, %c0_222] : memref<36x208xf32, #tpu.memory_space<vmem>>, vector<1x208xf32>
    %327 = vector.broadcast %326 : vector<1x208xf32> to vector<50x208xf32>
    %328 = arith.mulf %325, %327 : vector<50x208xf32>
    %329 = arith.addf %324, %328 : vector<50x208xf32>
    %c56_223 = arith.constant 56 : index
    %c1_224 = arith.constant 1 : index
    %330 = vector.load %arg15[%c56_223, %c1_224] : memref<224x210xf32, #tpu.memory_space<vmem>>, vector<50x208xf32>
    %c10_225 = arith.constant 10 : index
    %c0_226 = arith.constant 0 : index
    %331 = vector.load %arg6[%c10_225, %c0_226] : memref<36x208xf32, #tpu.memory_space<vmem>>, vector<1x208xf32>
    %332 = vector.broadcast %331 : vector<1x208xf32> to vector<50x208xf32>
    %333 = arith.mulf %330, %332 : vector<50x208xf32>
    %334 = arith.addf %329, %333 : vector<50x208xf32>
    %c56_227 = arith.constant 56 : index
    %c2_228 = arith.constant 2 : index
    %335 = vector.load %arg15[%c56_227, %c2_228] : memref<224x210xf32, #tpu.memory_space<vmem>>, vector<50x208xf32>
    %c11_229 = arith.constant 11 : index
    %c0_230 = arith.constant 0 : index
    %336 = vector.load %arg6[%c11_229, %c0_230] : memref<36x208xf32, #tpu.memory_space<vmem>>, vector<1x208xf32>
    %337 = vector.broadcast %336 : vector<1x208xf32> to vector<50x208xf32>
    %338 = arith.mulf %335, %337 : vector<50x208xf32>
    %339 = arith.addf %334, %338 : vector<50x208xf32>
    %c57 = arith.constant 57 : index
    %c0_231 = arith.constant 0 : index
    %340 = vector.load %arg15[%c57, %c0_231] : memref<224x210xf32, #tpu.memory_space<vmem>>, vector<50x208xf32>
    %c12_232 = arith.constant 12 : index
    %c0_233 = arith.constant 0 : index
    %341 = vector.load %arg6[%c12_232, %c0_233] : memref<36x208xf32, #tpu.memory_space<vmem>>, vector<1x208xf32>
    %342 = vector.broadcast %341 : vector<1x208xf32> to vector<50x208xf32>
    %343 = arith.mulf %340, %342 : vector<50x208xf32>
    %344 = arith.addf %339, %343 : vector<50x208xf32>
    %c57_234 = arith.constant 57 : index
    %c1_235 = arith.constant 1 : index
    %345 = vector.load %arg15[%c57_234, %c1_235] : memref<224x210xf32, #tpu.memory_space<vmem>>, vector<50x208xf32>
    %c13_236 = arith.constant 13 : index
    %c0_237 = arith.constant 0 : index
    %346 = vector.load %arg6[%c13_236, %c0_237] : memref<36x208xf32, #tpu.memory_space<vmem>>, vector<1x208xf32>
    %347 = vector.broadcast %346 : vector<1x208xf32> to vector<50x208xf32>
    %348 = arith.mulf %345, %347 : vector<50x208xf32>
    %349 = arith.addf %344, %348 : vector<50x208xf32>
    %c57_238 = arith.constant 57 : index
    %c2_239 = arith.constant 2 : index
    %350 = vector.load %arg15[%c57_238, %c2_239] : memref<224x210xf32, #tpu.memory_space<vmem>>, vector<50x208xf32>
    %c14_240 = arith.constant 14 : index
    %c0_241 = arith.constant 0 : index
    %351 = vector.load %arg6[%c14_240, %c0_241] : memref<36x208xf32, #tpu.memory_space<vmem>>, vector<1x208xf32>
    %352 = vector.broadcast %351 : vector<1x208xf32> to vector<50x208xf32>
    %353 = arith.mulf %350, %352 : vector<50x208xf32>
    %354 = arith.addf %349, %353 : vector<50x208xf32>
    %c58 = arith.constant 58 : index
    %c0_242 = arith.constant 0 : index
    %355 = vector.load %arg15[%c58, %c0_242] : memref<224x210xf32, #tpu.memory_space<vmem>>, vector<50x208xf32>
    %c15_243 = arith.constant 15 : index
    %c0_244 = arith.constant 0 : index
    %356 = vector.load %arg6[%c15_243, %c0_244] : memref<36x208xf32, #tpu.memory_space<vmem>>, vector<1x208xf32>
    %357 = vector.broadcast %356 : vector<1x208xf32> to vector<50x208xf32>
    %358 = arith.mulf %355, %357 : vector<50x208xf32>
    %359 = arith.addf %354, %358 : vector<50x208xf32>
    %c58_245 = arith.constant 58 : index
    %c1_246 = arith.constant 1 : index
    %360 = vector.load %arg15[%c58_245, %c1_246] : memref<224x210xf32, #tpu.memory_space<vmem>>, vector<50x208xf32>
    %c16_247 = arith.constant 16 : index
    %c0_248 = arith.constant 0 : index
    %361 = vector.load %arg6[%c16_247, %c0_248] : memref<36x208xf32, #tpu.memory_space<vmem>>, vector<1x208xf32>
    %362 = vector.broadcast %361 : vector<1x208xf32> to vector<50x208xf32>
    %363 = arith.mulf %360, %362 : vector<50x208xf32>
    %364 = arith.addf %359, %363 : vector<50x208xf32>
    %c58_249 = arith.constant 58 : index
    %c2_250 = arith.constant 2 : index
    %365 = vector.load %arg15[%c58_249, %c2_250] : memref<224x210xf32, #tpu.memory_space<vmem>>, vector<50x208xf32>
    %c17_251 = arith.constant 17 : index
    %c0_252 = arith.constant 0 : index
    %366 = vector.load %arg6[%c17_251, %c0_252] : memref<36x208xf32, #tpu.memory_space<vmem>>, vector<1x208xf32>
    %367 = vector.broadcast %366 : vector<1x208xf32> to vector<50x208xf32>
    %368 = arith.mulf %365, %367 : vector<50x208xf32>
    %369 = arith.addf %364, %368 : vector<50x208xf32>
    %c112_253 = arith.constant 112 : index
    %c0_254 = arith.constant 0 : index
    %370 = vector.load %arg15[%c112_253, %c0_254] : memref<224x210xf32, #tpu.memory_space<vmem>>, vector<50x208xf32>
    %c18_255 = arith.constant 18 : index
    %c0_256 = arith.constant 0 : index
    %371 = vector.load %arg6[%c18_255, %c0_256] : memref<36x208xf32, #tpu.memory_space<vmem>>, vector<1x208xf32>
    %372 = vector.broadcast %371 : vector<1x208xf32> to vector<50x208xf32>
    %373 = arith.mulf %370, %372 : vector<50x208xf32>
    %374 = arith.addf %369, %373 : vector<50x208xf32>
    %c112_257 = arith.constant 112 : index
    %c1_258 = arith.constant 1 : index
    %375 = vector.load %arg15[%c112_257, %c1_258] : memref<224x210xf32, #tpu.memory_space<vmem>>, vector<50x208xf32>
    %c19_259 = arith.constant 19 : index
    %c0_260 = arith.constant 0 : index
    %376 = vector.load %arg6[%c19_259, %c0_260] : memref<36x208xf32, #tpu.memory_space<vmem>>, vector<1x208xf32>
    %377 = vector.broadcast %376 : vector<1x208xf32> to vector<50x208xf32>
    %378 = arith.mulf %375, %377 : vector<50x208xf32>
    %379 = arith.addf %374, %378 : vector<50x208xf32>
    %c112_261 = arith.constant 112 : index
    %c2_262 = arith.constant 2 : index
    %380 = vector.load %arg15[%c112_261, %c2_262] : memref<224x210xf32, #tpu.memory_space<vmem>>, vector<50x208xf32>
    %c20_263 = arith.constant 20 : index
    %c0_264 = arith.constant 0 : index
    %381 = vector.load %arg6[%c20_263, %c0_264] : memref<36x208xf32, #tpu.memory_space<vmem>>, vector<1x208xf32>
    %382 = vector.broadcast %381 : vector<1x208xf32> to vector<50x208xf32>
    %383 = arith.mulf %380, %382 : vector<50x208xf32>
    %384 = arith.addf %379, %383 : vector<50x208xf32>
    %c113 = arith.constant 113 : index
    %c0_265 = arith.constant 0 : index
    %385 = vector.load %arg15[%c113, %c0_265] : memref<224x210xf32, #tpu.memory_space<vmem>>, vector<50x208xf32>
    %c21_266 = arith.constant 21 : index
    %c0_267 = arith.constant 0 : index
    %386 = vector.load %arg6[%c21_266, %c0_267] : memref<36x208xf32, #tpu.memory_space<vmem>>, vector<1x208xf32>
    %387 = vector.broadcast %386 : vector<1x208xf32> to vector<50x208xf32>
    %388 = arith.mulf %385, %387 : vector<50x208xf32>
    %389 = arith.addf %384, %388 : vector<50x208xf32>
    %c113_268 = arith.constant 113 : index
    %c1_269 = arith.constant 1 : index
    %390 = vector.load %arg15[%c113_268, %c1_269] : memref<224x210xf32, #tpu.memory_space<vmem>>, vector<50x208xf32>
    %c22_270 = arith.constant 22 : index
    %c0_271 = arith.constant 0 : index
    %391 = vector.load %arg6[%c22_270, %c0_271] : memref<36x208xf32, #tpu.memory_space<vmem>>, vector<1x208xf32>
    %392 = vector.broadcast %391 : vector<1x208xf32> to vector<50x208xf32>
    %393 = arith.mulf %390, %392 : vector<50x208xf32>
    %394 = arith.addf %389, %393 : vector<50x208xf32>
    %c113_272 = arith.constant 113 : index
    %c2_273 = arith.constant 2 : index
    %395 = vector.load %arg15[%c113_272, %c2_273] : memref<224x210xf32, #tpu.memory_space<vmem>>, vector<50x208xf32>
    %c23_274 = arith.constant 23 : index
    %c0_275 = arith.constant 0 : index
    %396 = vector.load %arg6[%c23_274, %c0_275] : memref<36x208xf32, #tpu.memory_space<vmem>>, vector<1x208xf32>
    %397 = vector.broadcast %396 : vector<1x208xf32> to vector<50x208xf32>
    %398 = arith.mulf %395, %397 : vector<50x208xf32>
    %399 = arith.addf %394, %398 : vector<50x208xf32>
    %c114 = arith.constant 114 : index
    %c0_276 = arith.constant 0 : index
    %400 = vector.load %arg15[%c114, %c0_276] : memref<224x210xf32, #tpu.memory_space<vmem>>, vector<50x208xf32>
    %c24_277 = arith.constant 24 : index
    %c0_278 = arith.constant 0 : index
    %401 = vector.load %arg6[%c24_277, %c0_278] : memref<36x208xf32, #tpu.memory_space<vmem>>, vector<1x208xf32>
    %402 = vector.broadcast %401 : vector<1x208xf32> to vector<50x208xf32>
    %403 = arith.mulf %400, %402 : vector<50x208xf32>
    %404 = arith.addf %399, %403 : vector<50x208xf32>
    %c114_279 = arith.constant 114 : index
    %c1_280 = arith.constant 1 : index
    %405 = vector.load %arg15[%c114_279, %c1_280] : memref<224x210xf32, #tpu.memory_space<vmem>>, vector<50x208xf32>
    %c25_281 = arith.constant 25 : index
    %c0_282 = arith.constant 0 : index
    %406 = vector.load %arg6[%c25_281, %c0_282] : memref<36x208xf32, #tpu.memory_space<vmem>>, vector<1x208xf32>
    %407 = vector.broadcast %406 : vector<1x208xf32> to vector<50x208xf32>
    %408 = arith.mulf %405, %407 : vector<50x208xf32>
    %409 = arith.addf %404, %408 : vector<50x208xf32>
    %c114_283 = arith.constant 114 : index
    %c2_284 = arith.constant 2 : index
    %410 = vector.load %arg15[%c114_283, %c2_284] : memref<224x210xf32, #tpu.memory_space<vmem>>, vector<50x208xf32>
    %c26_285 = arith.constant 26 : index
    %c0_286 = arith.constant 0 : index
    %411 = vector.load %arg6[%c26_285, %c0_286] : memref<36x208xf32, #tpu.memory_space<vmem>>, vector<1x208xf32>
    %412 = vector.broadcast %411 : vector<1x208xf32> to vector<50x208xf32>
    %413 = arith.mulf %410, %412 : vector<50x208xf32>
    %414 = arith.addf %409, %413 : vector<50x208xf32>
    %c168_287 = arith.constant 168 : index
    %c0_288 = arith.constant 0 : index
    %415 = vector.load %arg15[%c168_287, %c0_288] : memref<224x210xf32, #tpu.memory_space<vmem>>, vector<50x208xf32>
    %c27_289 = arith.constant 27 : index
    %c0_290 = arith.constant 0 : index
    %416 = vector.load %arg6[%c27_289, %c0_290] : memref<36x208xf32, #tpu.memory_space<vmem>>, vector<1x208xf32>
    %417 = vector.broadcast %416 : vector<1x208xf32> to vector<50x208xf32>
    %418 = arith.mulf %415, %417 : vector<50x208xf32>
    %419 = arith.addf %414, %418 : vector<50x208xf32>
    %c168_291 = arith.constant 168 : index
    %c1_292 = arith.constant 1 : index
    %420 = vector.load %arg15[%c168_291, %c1_292] : memref<224x210xf32, #tpu.memory_space<vmem>>, vector<50x208xf32>
    %c28_293 = arith.constant 28 : index
    %c0_294 = arith.constant 0 : index
    %421 = vector.load %arg6[%c28_293, %c0_294] : memref<36x208xf32, #tpu.memory_space<vmem>>, vector<1x208xf32>
    %422 = vector.broadcast %421 : vector<1x208xf32> to vector<50x208xf32>
    %423 = arith.mulf %420, %422 : vector<50x208xf32>
    %424 = arith.addf %419, %423 : vector<50x208xf32>
    %c168_295 = arith.constant 168 : index
    %c2_296 = arith.constant 2 : index
    %425 = vector.load %arg15[%c168_295, %c2_296] : memref<224x210xf32, #tpu.memory_space<vmem>>, vector<50x208xf32>
    %c29_297 = arith.constant 29 : index
    %c0_298 = arith.constant 0 : index
    %426 = vector.load %arg6[%c29_297, %c0_298] : memref<36x208xf32, #tpu.memory_space<vmem>>, vector<1x208xf32>
    %427 = vector.broadcast %426 : vector<1x208xf32> to vector<50x208xf32>
    %428 = arith.mulf %425, %427 : vector<50x208xf32>
    %429 = arith.addf %424, %428 : vector<50x208xf32>
    %c169 = arith.constant 169 : index
    %c0_299 = arith.constant 0 : index
    %430 = vector.load %arg15[%c169, %c0_299] : memref<224x210xf32, #tpu.memory_space<vmem>>, vector<50x208xf32>
    %c30_300 = arith.constant 30 : index
    %c0_301 = arith.constant 0 : index
    %431 = vector.load %arg6[%c30_300, %c0_301] : memref<36x208xf32, #tpu.memory_space<vmem>>, vector<1x208xf32>
    %432 = vector.broadcast %431 : vector<1x208xf32> to vector<50x208xf32>
    %433 = arith.mulf %430, %432 : vector<50x208xf32>
    %434 = arith.addf %429, %433 : vector<50x208xf32>
    %c169_302 = arith.constant 169 : index
    %c1_303 = arith.constant 1 : index
    %435 = vector.load %arg15[%c169_302, %c1_303] : memref<224x210xf32, #tpu.memory_space<vmem>>, vector<50x208xf32>
    %c31_304 = arith.constant 31 : index
    %c0_305 = arith.constant 0 : index
    %436 = vector.load %arg6[%c31_304, %c0_305] : memref<36x208xf32, #tpu.memory_space<vmem>>, vector<1x208xf32>
    %437 = vector.broadcast %436 : vector<1x208xf32> to vector<50x208xf32>
    %438 = arith.mulf %435, %437 : vector<50x208xf32>
    %439 = arith.addf %434, %438 : vector<50x208xf32>
    %c169_306 = arith.constant 169 : index
    %c2_307 = arith.constant 2 : index
    %440 = vector.load %arg15[%c169_306, %c2_307] : memref<224x210xf32, #tpu.memory_space<vmem>>, vector<50x208xf32>
    %c32_308 = arith.constant 32 : index
    %c0_309 = arith.constant 0 : index
    %441 = vector.load %arg6[%c32_308, %c0_309] : memref<36x208xf32, #tpu.memory_space<vmem>>, vector<1x208xf32>
    %442 = vector.broadcast %441 : vector<1x208xf32> to vector<50x208xf32>
    %443 = arith.mulf %440, %442 : vector<50x208xf32>
    %444 = arith.addf %439, %443 : vector<50x208xf32>
    %c170 = arith.constant 170 : index
    %c0_310 = arith.constant 0 : index
    %445 = vector.load %arg15[%c170, %c0_310] : memref<224x210xf32, #tpu.memory_space<vmem>>, vector<50x208xf32>
    %c33_311 = arith.constant 33 : index
    %c0_312 = arith.constant 0 : index
    %446 = vector.load %arg6[%c33_311, %c0_312] : memref<36x208xf32, #tpu.memory_space<vmem>>, vector<1x208xf32>
    %447 = vector.broadcast %446 : vector<1x208xf32> to vector<50x208xf32>
    %448 = arith.mulf %445, %447 : vector<50x208xf32>
    %449 = arith.addf %444, %448 : vector<50x208xf32>
    %c170_313 = arith.constant 170 : index
    %c1_314 = arith.constant 1 : index
    %450 = vector.load %arg15[%c170_313, %c1_314] : memref<224x210xf32, #tpu.memory_space<vmem>>, vector<50x208xf32>
    %c34_315 = arith.constant 34 : index
    %c0_316 = arith.constant 0 : index
    %451 = vector.load %arg6[%c34_315, %c0_316] : memref<36x208xf32, #tpu.memory_space<vmem>>, vector<1x208xf32>
    %452 = vector.broadcast %451 : vector<1x208xf32> to vector<50x208xf32>
    %453 = arith.mulf %450, %452 : vector<50x208xf32>
    %454 = arith.addf %449, %453 : vector<50x208xf32>
    %c170_317 = arith.constant 170 : index
    %c2_318 = arith.constant 2 : index
    %455 = vector.load %arg15[%c170_317, %c2_318] : memref<224x210xf32, #tpu.memory_space<vmem>>, vector<50x208xf32>
    %c35_319 = arith.constant 35 : index
    %c0_320 = arith.constant 0 : index
    %456 = vector.load %arg6[%c35_319, %c0_320] : memref<36x208xf32, #tpu.memory_space<vmem>>, vector<1x208xf32>
    %457 = vector.broadcast %456 : vector<1x208xf32> to vector<50x208xf32>
    %458 = arith.mulf %455, %457 : vector<50x208xf32>
    %459 = arith.addf %454, %458 : vector<50x208xf32>
    %460 = vector.extract_strided_slice %459 {offsets = [0, 0], sizes = [49, 208], strides = [1, 1]} : vector<50x208xf32> to vector<49x208xf32>
    %461 = vector.extract_strided_slice %459 {offsets = [1, 0], sizes = [49, 208], strides = [1, 1]} : vector<50x208xf32> to vector<49x208xf32>
    %462 = arith.maximumf %460, %461 : vector<49x208xf32>
    %463 = vector.extract_strided_slice %462 {offsets = [0, 0], sizes = [49, 207], strides = [1, 1]} : vector<49x208xf32> to vector<49x207xf32>
    %464 = vector.extract_strided_slice %462 {offsets = [0, 1], sizes = [49, 207], strides = [1, 1]} : vector<49x208xf32> to vector<49x207xf32>
    %465 = arith.maximumf %463, %464 : vector<49x207xf32>
    %c0_321 = arith.constant 0 : index
    %c0_322 = arith.constant 0 : index
    %466 = vector.load %arg8[%c0_321, %c0_322] : memref<25x49xf32, #tpu.memory_space<vmem>>, vector<25x49xf32>
    %cst_323 = arith.constant dense<0.000000e+00> : vector<25x207xf32>
    %467 = tpu.matmul %466, %465, %cst_323 {dimension_numbers = #tpu.dot_dimension_numbers<[1], [0], [0], [1], [0, 0, 1, 1], [], []>} : vector<25x49xf32>, vector<49x207xf32>, vector<25x207xf32> -> vector<25x207xf32>
    %c0_324 = arith.constant 0 : index
    %c0_325 = arith.constant 0 : index
    %468 = vector.load %arg9[%c0_324, %c0_325] : memref<207x100xf32, #tpu.memory_space<vmem>>, vector<207x100xf32>
    %cst_326 = arith.constant dense<0.000000e+00> : vector<25x100xf32>
    %469 = tpu.matmul %467, %468, %cst_326 {dimension_numbers = #tpu.dot_dimension_numbers<[1], [0], [0], [1], [0, 0, 1, 1], [], []>} : vector<25x207xf32>, vector<207x100xf32>, vector<25x100xf32> -> vector<25x100xf32>
    %cst_327 = arith.constant 0.000000e+00 : f32
    %470 = vector.broadcast %cst_327 : f32 to vector<25x100xf32>
    %471 = arith.maximumf %469, %470 : vector<25x100xf32>
    %c0_328 = arith.constant 0 : index
    %c0_329 = arith.constant 0 : index
    %472 = vector.load %arg10[%c0_328, %c0_329] : memref<100x250xf32, #tpu.memory_space<vmem>>, vector<100x250xf32>
    %cst_330 = arith.constant dense<0.000000e+00> : vector<25x250xf32>
    %473 = tpu.matmul %471, %472, %cst_330 {dimension_numbers = #tpu.dot_dimension_numbers<[1], [0], [0], [1], [0, 0, 1, 1], [], []>} : vector<25x100xf32>, vector<100x250xf32>, vector<25x250xf32> -> vector<25x250xf32>
    %c0_331 = arith.constant 0 : index
    %c0_332 = arith.constant 0 : index
    %474 = vector.load %arg11[%c0_331, %c0_332] : memref<25x250xf32, #tpu.memory_space<vmem>>, vector<25x250xf32>
    %475 = arith.mulf %473, %474 : vector<25x250xf32>
    %cst_333 = arith.constant dense<0.000000e+00> : vector<250xf32>
    %476 = vector.multi_reduction <add>, %475, %cst_333 [0] : vector<25x250xf32> to vector<250xf32>
    %477 = vector.shape_cast %476 : vector<250xf32> to vector<1x250xf32>
    %c0_334 = arith.constant 0 : index
    %c0_335 = arith.constant 0 : index
    %478 = vector.load %arg12[%c0_334, %c0_335] : memref<250x10xf32, #tpu.memory_space<vmem>>, vector<250x10xf32>
    %cst_336 = arith.constant dense<0.000000e+00> : vector<1x10xf32>
    %479 = tpu.matmul %477, %478, %cst_336 {dimension_numbers = #tpu.dot_dimension_numbers<[1], [0], [0], [1], [0, 0, 1, 1], [], []>} : vector<1x250xf32>, vector<250x10xf32>, vector<1x10xf32> -> vector<1x10xf32>
    %c0_337 = arith.constant 0 : index
    %c0_338 = arith.constant 0 : index
    %480 = vector.load %arg13[%c0_337, %c0_338] : memref<1x10xf32, #tpu.memory_space<vmem>>, vector<1x10xf32>
    %481 = arith.addf %479, %480 : vector<1x10xf32>
    %cst_339 = arith.constant dense<0xFF800000> : vector<1xf32>
    %482 = vector.multi_reduction <maximumf>, %481, %cst_339 [1] : vector<1x10xf32> to vector<1xf32>
    %483 = vector.shape_cast %482 : vector<1xf32> to vector<1x1xf32>
    %484 = vector.broadcast %483 : vector<1x1xf32> to vector<1x10xf32>
    %485 = arith.subf %481, %484 : vector<1x10xf32>
    %486 = math.exp %485 : vector<1x10xf32>
    %cst_340 = arith.constant dense<0.000000e+00> : vector<1xf32>
    %487 = vector.multi_reduction <add>, %486, %cst_340 [1] : vector<1x10xf32> to vector<1xf32>
    %488 = vector.shape_cast %487 : vector<1xf32> to vector<1x1xf32>
    %489 = math.log %488 : vector<1x1xf32>
    %490 = vector.broadcast %489 : vector<1x1xf32> to vector<1x10xf32>
    %491 = arith.subf %485, %490 : vector<1x10xf32>
    %c0_341 = arith.constant 0 : index
    %c0_342 = arith.constant 0 : index
    %c0_343 = arith.constant 0 : index
    %492 = vector.load %arg14[%c0_341, %c0_342, %c0_343] : memref<1x1x10xf32, #tpu.memory_space<vmem>>, vector<1x1x10xf32>
    %493 = vector.shape_cast %492 : vector<1x1x10xf32> to vector<1x10xf32>
    %494 = vector.shape_cast %491 : vector<1x10xf32> to vector<1x1x10xf32>
    tpu.vector_store %arg14[%c0_341, %c0_342, %c0_343], %494 {strides = array<i32>} : memref<1x1x10xf32, #tpu.memory_space<vmem>>, vector<1x1x10xf32>,
    return
  }
  func.func @transform_0(%arg0: i32) -> (i32, i32, i32, i32) {
    %c0_i32 = arith.constant 0 : i32
    %c0_i32_0 = arith.constant 0 : i32
    %c0_i32_1 = arith.constant 0 : i32
    %c0_i32_2 = arith.constant 0 : i32
    return %arg0, %c0_i32, %c0_i32_0, %c0_i32_1 : i32, i32, i32, i32
  }
  func.func @transform_1(%arg0: i32) -> i32 {
    %c0_i32 = arith.constant 0 : i32
    %c0_i32_0 = arith.constant 0 : i32
    return %c0_i32 : i32
  }
  func.func @transform_2(%arg0: i32) -> i32 {
    %c0_i32 = arith.constant 0 : i32
    %c0_i32_0 = arith.constant 0 : i32
    return %c0_i32 : i32
  }
  func.func @transform_3(%arg0: i32) -> (i32, i32) {
    %c0_i32 = arith.constant 0 : i32
    %c0_i32_0 = arith.constant 0 : i32
    %c0_i32_1 = arith.constant 0 : i32
    return %c0_i32, %c0_i32_0 : i32, i32
  }
  func.func @transform_4(%arg0: i32) -> (i32, i32) {
    %c0_i32 = arith.constant 0 : i32
    %c0_i32_0 = arith.constant 0 : i32
    %c0_i32_1 = arith.constant 0 : i32
    return %c0_i32, %c0_i32_0 : i32, i32
  }
  func.func @transform_5(%arg0: i32) -> (i32, i32) {
    %c0_i32 = arith.constant 0 : i32
    %c0_i32_0 = arith.constant 0 : i32
    %c0_i32_1 = arith.constant 0 : i32
    return %c0_i32, %c0_i32_0 : i32, i32
  }
  func.func @transform_6(%arg0: i32) -> (i32, i32) {
    %c0_i32 = arith.constant 0 : i32
    %c0_i32_0 = arith.constant 0 : i32
    %c0_i32_1 = arith.constant 0 : i32
    return %c0_i32, %c0_i32_0 : i32, i32
  }
  func.func @transform_7(%arg0: i32) -> (i32, i32) {
    %c0_i32 = arith.constant 0 : i32
    %c0_i32_0 = arith.constant 0 : i32
    %c0_i32_1 = arith.constant 0 : i32
    return %c0_i32, %c0_i32_0 : i32, i32
  }
  func.func @transform_8(%arg0: i32) -> (i32, i32) {
    %c0_i32 = arith.constant 0 : i32
    %c0_i32_0 = arith.constant 0 : i32
    %c0_i32_1 = arith.constant 0 : i32
    return %c0_i32, %c0_i32_0 : i32, i32
  }
  func.func @transform_9(%arg0: i32) -> (i32, i32) {
    %c0_i32 = arith.constant 0 : i32
    %c0_i32_0 = arith.constant 0 : i32
    %c0_i32_1 = arith.constant 0 : i32
    return %c0_i32, %c0_i32_0 : i32, i32
  }
  func.func @transform_10(%arg0: i32) -> (i32, i32) {
    %c0_i32 = arith.constant 0 : i32
    %c0_i32_0 = arith.constant 0 : i32
    %c0_i32_1 = arith.constant 0 : i32
    return %c0_i32, %c0_i32_0 : i32, i32
  }
  func.func @transform_11(%arg0: i32) -> (i32, i32) {
    %c0_i32 = arith.constant 0 : i32
    %c0_i32_0 = arith.constant 0 : i32
    %c0_i32_1 = arith.constant 0 : i32
    return %c0_i32, %c0_i32_0 : i32, i32
  }
  func.func @transform_12(%arg0: i32) -> (i32, i32) {
    %c0_i32 = arith.constant 0 : i32
    %c0_i32_0 = arith.constant 0 : i32
    %c0_i32_1 = arith.constant 0 : i32
    return %c0_i32, %c0_i32_0 : i32, i32
  }
  func.func @transform_13(%arg0: i32) -> (i32, i32, i32) {
    %c0_i32 = arith.constant 0 : i32
    %c0_i32_0 = arith.constant 0 : i32
    %c0_i32_1 = arith.constant 0 : i32
    return %arg0, %c0_i32, %c0_i32_0 : i32, i32, i32
  }
}

</mosaic_0001>

<llo_original>
// kernel: tpu_custom_call.1
$region0: #{tpu_custom_call.1}
  #allocation0 [shape = 'u32[]', space=smem, size = 0x4, offset = 0x4, fixed_abs, tag = 'smem constant byte address 0x4 - core index']
  #allocation1 [shape = 'u32[144,128]{1,0:T(1,128)}', space=vmem, size = 0x12000, scoped, tag = 'internal scratch']
  #allocation2 [shape = 'f32[224,210]{1,0:T(8,128)}', space=vmem, size = 0x38000, scoped, tag = 'scratch operand']
  %s0 = inlined_call_operand.vmem [shape: f32[2,1,106,106], index: 0, kind: input, shape index: {}]
  %s1 = inlined_call_operand.vmem [shape: f32[36], index: 1, kind: input, shape index: {}]
  %s2 = inlined_call_operand.hbm [shape: f32[4], index: 2, kind: input, shape index: {}]
  %s3 = inlined_call_operand.hbm [shape: f32[56,103], index: 3, kind: input, shape index: {}]
  %s4 = inlined_call_operand.vmem [shape: f32[103,210], index: 4, kind: input, shape index: {}]
  %s5 = inlined_call_operand.vmem [shape: f32[36,208], index: 5, kind: input, shape index: {}]
  %s6 = inlined_call_operand.vmem [shape: f32[1,208], index: 6, kind: input, shape index: {}]
  %s7 = inlined_call_operand.hbm [shape: f32[25,49], index: 7, kind: input, shape index: {}]
  %s8 = inlined_call_operand.vmem [shape: f32[207,100], index: 8, kind: input, shape index: {}]
  %s9 = inlined_call_operand.vmem [shape: f32[100,250], index: 9, kind: input, shape index: {}]
  %s10 = inlined_call_operand.hbm [shape: f32[25,250], index: 10, kind: input, shape index: {}]
  %s11 = inlined_call_operand.vmem [shape: f32[250,10], index: 11, kind: input, shape index: {}]
  %s12 = inlined_call_operand.vmem [shape: f32[1,10], index: 12, kind: input, shape index: {}]
  %s13 = inlined_call_operand.hbm [shape: f32[2,1,10], index: 13, kind: output, shape index: {}]
  %s14 = sld [smem:[#allocation0]]
  $region105: #{tpu_custom_call.1} parent=0
    _
  %s16 = ssub.s32 1, %s14
  %s17 = scalar_select 0, %s16, %s14
  $region1: #{tpu_custom_call.1} parent=0
    #allocation3 [shape = 'u8[512]{0}', space=smem, size = 0x200, scoped, tag = 'input window, operand 1, single buffered']
    #allocation4 [shape = 's32[2]{0}', space=sflag, size = 0x8, scoped, tag = 'scoped memory for tpu_custom_call.1']
    #allocation5 [shape = 's32[2]{0}', space=sflag, size = 0x8, scoped, tag = 'scoped memory for tpu_custom_call.1']
    #allocation6 [shape = 's32[2]{0}', space=sflag, size = 0x8, scoped, tag = 'scoped memory for tpu_custom_call.1']
    #allocation7 [shape = 's32[2]{0}', space=sflag, size = 0x8, scoped, tag = 'scoped memory for tpu_custom_call.1']
    #allocation8 [shape = 'u8[512]{0}', space=smem, size = 0x200, scoped, tag = 'input window, operand 2, single buffered']
    #allocation9 [shape = 'u8[28672]{0}', space=vmem, size = 0x7000, scoped, tag = 'input window, operand 3, single buffered']
    #allocation10 [shape = 'u8[16384]{0}', space=vmem, size = 0x4000, scoped, tag = 'input window, operand 7, single buffered']
    #allocation11 [shape = 's32[1]{0}', space=sflag, size = 0x4, scoped, tag = 'scoped memory for tpu_custom_call.1']
    #allocation12 [shape = 'u8[32768]{0}', space=vmem, size = 0x8000, scoped, tag = 'input window, operand 10, single buffered']
    #allocation13 [shape = 'u8[1024]{0}', space=vmem, size = 0x400, scoped, tag = 'output window, operand 0']
    %18 = vsyncpa [#allocation7], 0
    %19 = vsyncpa [#allocation6], 0
    %20 = vsyncpa [#allocation4], 0
    %21 = vsyncpa [#allocation11], 0
    %22 = vsyncpa [#allocation5], 0
    %s23 = scalar_lea.sflag [#allocation5], 1
    %24 = vsyncpa %s23, 0
    loop: start=0, step=1, limit=4
    $region2: #{tpu_custom_call.1} parent=1 // loop_pre_header
      _
    $region3: #{tpu_custom_call.1} parent=1 // loop_header
      %s26 = sphi 0, %s30
      %p27 = scmp.ge.s32.totalorder %s26, 4
      %s36 = sphi 0, %s38
      %s39 = sphi 0, %s36
      %s40 = sphi 0, %s39
      %s56 = sphi 0, %s40
      %s60 = sphi 0, %s60
      %s62 = sphi 0, %s60
      %s63 = sphi 0, %s62
      %s77 = sphi 0, %s63
      %s81 = sphi 0, %s81
      %s83 = sphi 0, %s81
      %s84 = sphi 0, %s83
      %s98 = sphi 0, %s84
      %s102 = sphi 0, %s102
      %s104 = sphi 0, %s102
      %s105 = sphi 0, %s104
      %s119 = sphi 0, %s105
      %s123 = sphi 0, %s123
      %s125 = sphi 0, %s123
      %s126 = sphi 0, %s125
      %s140 = sphi 0, %s126
      %s144 = sphi 0, %s144
      %s146 = sphi 0, %s144
      %s147 = sphi 0, %s146
      %s161 = sphi 0, %s147
      %s165 = sphi 0, %s165
      %s167 = sphi 0, %s165
      %s168 = sphi 0, %s167
      %s182 = sphi 0, %s168
      %s186 = sphi 0, %s186
      %s188 = sphi 0, %s186
      %s189 = sphi 0, %s188
      %s203 = sphi 0, %s189
      %s207 = sphi 0, %s207
      %s209 = sphi 0, %s207
      %s210 = sphi 0, %s209
      %s224 = sphi 0, %s210
      %s228 = sphi 0, %s228
      %s230 = sphi 0, %s228
      %s231 = sphi 0, %s230
      %s245 = sphi 0, %s231
      %s249 = sphi 0, %s249
      %s251 = sphi 0, %s249
      %s252 = sphi 0, %s251
      %s266 = sphi 0, %s252
      %s270 = sphi 0, %s270
      %s272 = sphi 0, %s270
      %s273 = sphi 0, %s272
      %s287 = sphi 0, %s273
      %s291 = sphi 0, %s291
      %s293 = sphi 0, %s291
      %s294 = sphi 0, %s293
      %s308 = sphi 0, %s294
      %s314 = sphi 0, %s316
      %s317 = sphi 0, %s314
      %s318 = sphi 0, %s317
      %s334 = sphi 0, %s318
    $region4: #{tpu_custom_call.1} parent=1 // loop_header_branch
      %29 = sbr.rel (%p27) target = $region8
    $region5: #{tpu_custom_call.1} parent=1 // loop_body
      %s31 = ssub.s32 %s26, 1
      %s32 = ssub.s32 %s26, 2
      %s33 = sadd.s32 %s26, 1
      %s34 = ssub.s32 %s26, %s33
      %p35 = scmp.eq.s32.totalorder %s34, 0
      %s37 = sadd.s32 %s36, 1
      %s38 = scalar_select %p35, %s36, %s37
      %p41 = pneg %p35
      %p42 = scmp.eq.s32.totalorder %s26, 1
      %p43 = por %p41, %p42
      %p44 = scmp.ne.s32.totalorder %s36, %s39
      %p45 = scmp.eq.s32.totalorder %s26, 0
      %p46 = por %p44, %p45
      %p47 = scmp.ne.s32.totalorder %s36, %s39
      %p48 = scmp.eq.s32.totalorder %s31, 1
      %p49 = por %p47, %p48
      %p50 = scmp.ne.s32.totalorder %s39, %s40
      %p51 = scmp.eq.s32.totalorder %s31, 0
      %p52 = por %p50, %p51
      %p53 = scmp.ne.s32.totalorder %s39, %s40
      %p54 = scmp.eq.s32.totalorder %s32, 1
      %p55 = por %p53, %p54
      %p57 = scmp.ne.s32.totalorder %s40, %s56
      %p58 = scmp.eq.s32.totalorder %s32, 0
      %p59 = por %p57, %p58
      %s61 = sadd.s32 %s60, 1
      %p64 = scmp.eq.s32.totalorder %s26, 1
      %p65 = scmp.ne.s32.totalorder %s60, %s62
      %p66 = scmp.eq.s32.totalorder %s26, 0
      %p67 = por %p65, %p66
      %p68 = scmp.ne.s32.totalorder %s60, %s62
      %p69 = scmp.eq.s32.totalorder %s31, 1
      %p70 = por %p68, %p69
      %p71 = scmp.ne.s32.totalorder %s62, %s63
      %p72 = scmp.eq.s32.totalorder %s31, 0
      %p73 = por %p71, %p72
      %p74 = scmp.ne.s32.totalorder %s62, %s63
      %p75 = scmp.eq.s32.totalorder %s32, 1
      %p76 = por %p74, %p75
      %p78 = scmp.ne.s32.totalorder %s63, %s77
      %p79 = scmp.eq.s32.totalorder %s32, 0
      %p80 = por %p78, %p79
      %s82 = sadd.s32 %s81, 1
      %p85 = scmp.eq.s32.totalorder %s26, 1
      %p86 = scmp.ne.s32.totalorder %s81, %s83
      %p87 = scmp.eq.s32.totalorder %s26, 0
      %p88 = por %p86, %p87
      %p89 = scmp.ne.s32.totalorder %s81, %s83
      %p90 = scmp.eq.s32.totalorder %s31, 1
      %p91 = por %p89, %p90
      %p92 = scmp.ne.s32.totalorder %s83, %s84
      %p93 = scmp.eq.s32.totalorder %s31, 0
      %p94 = por %p92, %p93
      %p95 = scmp.ne.s32.totalorder %s83, %s84
      %p96 = scmp.eq.s32.totalorder %s32, 1
      %p97 = por %p95, %p96
      %p99 = scmp.ne.s32.totalorder %s84, %s98
      %p100 = scmp.eq.s32.totalorder %s32, 0
      %p101 = por %p99, %p100
      %s103 = sadd.s32 %s102, 1
      %p106 = scmp.eq.s32.totalorder %s26, 1
      %p107 = scmp.ne.s32.totalorder %s102, %s104
      %p108 = scmp.eq.s32.totalorder %s26, 0
      %p109 = por %p107, %p108
      %p110 = scmp.ne.s32.totalorder %s102, %s104
      %p111 = scmp.eq.s32.totalorder %s31, 1
      %p112 = por %p110, %p111
      %p113 = scmp.ne.s32.totalorder %s104, %s105
      %p114 = scmp.eq.s32.totalorder %s31, 0
      %p115 = por %p113, %p114
      %p116 = scmp.ne.s32.totalorder %s104, %s105
      %p117 = scmp.eq.s32.totalorder %s32, 1
      %p118 = por %p116, %p117
      %p120 = scmp.ne.s32.totalorder %s105, %s119
      %p121 = scmp.eq.s32.totalorder %s32, 0
      %p122 = por %p120, %p121
      %s124 = sadd.s32 %s123, 1
      %p127 = scmp.eq.s32.totalorder %s26, 1
      %p128 = scmp.ne.s32.totalorder %s123, %s125
      %p129 = scmp.eq.s32.totalorder %s26, 0
      %p130 = por %p128, %p129
      %p131 = scmp.ne.s32.totalorder %s123, %s125
      %p132 = scmp.eq.s32.totalorder %s31, 1
      %p133 = por %p131, %p132
      %p134 = scmp.ne.s32.totalorder %s125, %s126
      %p135 = scmp.eq.s32.totalorder %s31, 0
      %p136 = por %p134, %p135
      %p137 = scmp.ne.s32.totalorder %s125, %s126
      %p138 = scmp.eq.s32.totalorder %s32, 1
      %p139 = por %p137, %p138
      %p141 = scmp.ne.s32.totalorder %s126, %s140
      %p142 = scmp.eq.s32.totalorder %s32, 0
      %p143 = por %p141, %p142
      %s145 = sadd.s32 %s144, 1
      %p148 = scmp.eq.s32.totalorder %s26, 1
      %p149 = scmp.ne.s32.totalorder %s144, %s146
      %p150 = scmp.eq.s32.totalorder %s26, 0
      %p151 = por %p149, %p150
      %p152 = scmp.ne.s32.totalorder %s144, %s146
      %p153 = scmp.eq.s32.totalorder %s31, 1
      %p154 = por %p152, %p153
      %p155 = scmp.ne.s32.totalorder %s146, %s147
      %p156 = scmp.eq.s32.totalorder %s31, 0
      %p157 = por %p155, %p156
      %p158 = scmp.ne.s32.totalorder %s146, %s147
      %p159 = scmp.eq.s32.totalorder %s32, 1
      %p160 = por %p158, %p159
      %p162 = scmp.ne.s32.totalorder %s147, %s161
      %p163 = scmp.eq.s32.totalorder %s32, 0
      %p164 = por %p162, %p163
      %s166 = sadd.s32 %s165, 1
      %p169 = scmp.eq.s32.totalorder %s26, 1
      %p170 = scmp.ne.s32.totalorder %s165, %s167
      %p171 = scmp.eq.s32.totalorder %s26, 0
      %p172 = por %p170, %p171
      %p173 = scmp.ne.s32.totalorder %s165, %s167
      %p174 = scmp.eq.s32.totalorder %s31, 1
      %p175 = por %p173, %p174
      %p176 = scmp.ne.s32.totalorder %s167, %s168
      %p177 = scmp.eq.s32.totalorder %s31, 0
      %p178 = por %p176, %p177
      %p179 = scmp.ne.s32.totalorder %s167, %s168
      %p180 = scmp.eq.s32.totalorder %s32, 1
      %p181 = por %p179, %p180
      %p183 = scmp.ne.s32.totalorder %s168, %s182
      %p184 = scmp.eq.s32.totalorder %s32, 0
      %p185 = por %p183, %p184
      %s187 = sadd.s32 %s186, 1
      %p190 = scmp.eq.s32.totalorder %s26, 1
      %p191 = scmp.ne.s32.totalorder %s186, %s188
      %p192 = scmp.eq.s32.totalorder %s26, 0
      %p193 = por %p191, %p192
      %p194 = scmp.ne.s32.totalorder %s186, %s188
      %p195 = scmp.eq.s32.totalorder %s31, 1
      %p196 = por %p194, %p195
      %p197 = scmp.ne.s32.totalorder %s188, %s189
      %p198 = scmp.eq.s32.totalorder %s31, 0
      %p199 = por %p197, %p198
      %p200 = scmp.ne.s32.totalorder %s188, %s189
      %p201 = scmp.eq.s32.totalorder %s32, 1
      %p202 = por %p200, %p201
      %p204 = scmp.ne.s32.totalorder %s189, %s203
      %p205 = scmp.eq.s32.totalorder %s32, 0
      %p206 = por %p204, %p205
      %s208 = sadd.s32 %s207, 1
      %p211 = scmp.eq.s32.totalorder %s26, 1
      %p212 = scmp.ne.s32.totalorder %s207, %s209
      %p213 = scmp.eq.s32.totalorder %s26, 0
      %p214 = por %p212, %p213
      %p215 = scmp.ne.s32.totalorder %s207, %s209
      %p216 = scmp.eq.s32.totalorder %s31, 1
      %p217 = por %p215, %p216
      %p218 = scmp.ne.s32.totalorder %s209, %s210
      %p219 = scmp.eq.s32.totalorder %s31, 0
      %p220 = por %p218, %p219
      %p221 = scmp.ne.s32.totalorder %s209, %s210
      %p222 = scmp.eq.s32.totalorder %s32, 1
      %p223 = por %p221, %p222
      %p225 = scmp.ne.s32.totalorder %s210, %s224
      %p226 = scmp.eq.s32.totalorder %s32, 0
      %p227 = por %p225, %p226
      %s229 = sadd.s32 %s228, 1
      %p232 = scmp.eq.s32.totalorder %s26, 1
      %p233 = scmp.ne.s32.totalorder %s228, %s230
      %p234 = scmp.eq.s32.totalorder %s26, 0
      %p235 = por %p233, %p234
      %p236 = scmp.ne.s32.totalorder %s228, %s230
      %p237 = scmp.eq.s32.totalorder %s31, 1
      %p238 = por %p236, %p237
      %p239 = scmp.ne.s32.totalorder %s230, %s231
      %p240 = scmp.eq.s32.totalorder %s31, 0
      %p241 = por %p239, %p240
      %p242 = scmp.ne.s32.totalorder %s230, %s231
      %p243 = scmp.eq.s32.totalorder %s32, 1
      %p244 = por %p242, %p243
      %p246 = scmp.ne.s32.totalorder %s231, %s245
      %p247 = scmp.eq.s32.totalorder %s32, 0
      %p248 = por %p246, %p247
      %s250 = sadd.s32 %s249, 1
      %p253 = scmp.eq.s32.totalorder %s26, 1
      %p254 = scmp.ne.s32.totalorder %s249, %s251
      %p255 = scmp.eq.s32.totalorder %s26, 0
      %p256 = por %p254, %p255
      %p257 = scmp.ne.s32.totalorder %s249, %s251
      %p258 = scmp.eq.s32.totalorder %s31, 1
      %p259 = por %p257, %p258
      %p260 = scmp.ne.s32.totalorder %s251, %s252
      %p261 = scmp.eq.s32.totalorder %s31, 0
      %p262 = por %p260, %p261
      %p263 = scmp.ne.s32.totalorder %s251, %s252
      %p264 = scmp.eq.s32.totalorder %s32, 1
      %p265 = por %p263, %p264
      %p267 = scmp.ne.s32.totalorder %s252, %s266
      %p268 = scmp.eq.s32.totalorder %s32, 0
      %p269 = por %p267, %p268
      %s271 = sadd.s32 %s270, 1
      %p274 = scmp.eq.s32.totalorder %s26, 1
      %p275 = scmp.ne.s32.totalorder %s270, %s272
      %p276 = scmp.eq.s32.totalorder %s26, 0
      %p277 = por %p275, %p276
      %p278 = scmp.ne.s32.totalorder %s270, %s272
      %p279 = scmp.eq.s32.totalorder %s31, 1
      %p280 = por %p278, %p279
      %p281 = scmp.ne.s32.totalorder %s272, %s273
      %p282 = scmp.eq.s32.totalorder %s31, 0
      %p283 = por %p281, %p282
      %p284 = scmp.ne.s32.totalorder %s272, %s273
      %p285 = scmp.eq.s32.totalorder %s32, 1
      %p286 = por %p284, %p285
      %p288 = scmp.ne.s32.totalorder %s273, %s287
      %p289 = scmp.eq.s32.totalorder %s32, 0
      %p290 = por %p288, %p289
      %s292 = sadd.s32 %s291, 1
      %p295 = scmp.eq.s32.totalorder %s26, 1
      %p296 = scmp.ne.s32.totalorder %s291, %s293
      %p297 = scmp.eq.s32.totalorder %s26, 0
      %p298 = por %p296, %p297
      %p299 = scmp.ne.s32.totalorder %s291, %s293
      %p300 = scmp.eq.s32.totalorder %s31, 1
      %p301 = por %p299, %p300
      %p302 = scmp.ne.s32.totalorder %s293, %s294
      %p303 = scmp.eq.s32.totalorder %s31, 0
      %p304 = por %p302, %p303
      %p305 = scmp.ne.s32.totalorder %s293, %s294
      %p306 = scmp.eq.s32.totalorder %s32, 1
      %p307 = por %p305, %p306
      %p309 = scmp.ne.s32.totalorder %s294, %s308
      %p310 = scmp.eq.s32.totalorder %s32, 0
      %p311 = por %p309, %p310
      %s312 = ssub.s32 %s26, %s33
      %p313 = scmp.eq.s32.totalorder %s312, 0
      %s315 = sadd.s32 %s314, 1
      %s316 = scalar_select %p313, %s314, %s315
      %p319 = pneg %p313
      %p320 = scmp.eq.s32.totalorder %s26, 1
      %p321 = por %p319, %p320
      %p322 = scmp.ne.s32.totalorder %s314, %s317
      %p323 = scmp.eq.s32.totalorder %s26, 0
      %p324 = por %p322, %p323
      %p325 = scmp.ne.s32.totalorder %s314, %s317
      %p326 = scmp.eq.s32.totalorder %s31, 1
      %p327 = por %p325, %p326
      %p328 = scmp.ne.s32.totalorder %s317, %s318
      %p329 = scmp.eq.s32.totalorder %s31, 0
      %p330 = por %p328, %p329
      %p331 = scmp.ne.s32.totalorder %s317, %s318
      %p332 = scmp.eq.s32.totalorder %s32, 1
      %p333 = por %p331, %p332
      %p335 = scmp.ne.s32.totalorder %s318, %s334
      %p336 = scmp.eq.s32.totalorder %s32, 0
      %p337 = por %p335, %p336
      %p338 = scmp.le.s32.totalorder 1, %s26
      %p339 = scmp.lt.s32.totalorder %s26, 3
      %p340 = pnand %p338, %p339
      %p341 = pneg %p340
      // Predicated region
      $region9: #{tpu_custom_call.1} parent=5 // pred_check
        _
      $region10: #{tpu_custom_call.1} parent=5 // pred_check_branch
        %343 = sbr.rel (%p340) target = $region12
      $region11: #{tpu_custom_call.1} parent=5 // pred_region
        %s344 = ssub.s32 %s26, 1
        // Predicated region
        $region13: #{tpu_custom_call.1} parent=11 // pred_check
          %p345 = pneg %p73
        $region14: #{tpu_custom_call.1} parent=11 // pred_check_branch
          %347 = sbr.rel (%p345) target = $region16
        $region15: #{tpu_custom_call.1} parent=11 // pred_region
          %s349 = ssub.s32 16, 16
          %350 = vsyncadd [#allocation7], %s349
          %s352 = sshll.u32 %s1, 4
          %s353 = int_to_ptr.vmem [resolvable:$true] %s352
          %355 = dma.vmem_to_smem %s353, 16, [#allocation3], [#allocation7]
        $region16: #{tpu_custom_call.1} parent=11 // pred_fallthru
          _
        // Predicated region
        $region17: #{tpu_custom_call.1} parent=11 // pred_check
          %p356 = pneg %p94
        $region18: #{tpu_custom_call.1} parent=11 // pred_check_branch
          %358 = sbr.rel (%p356) target = $region20
        $region19: #{tpu_custom_call.1} parent=11 // pred_region
          %s360 = ssub.s32 16, 16
          %361 = vsyncadd [#allocation6], %s360
          %364 = dma.hbm_to_smem %s2, 16, [#allocation8], [#allocation6]
        $region20: #{tpu_custom_call.1} parent=11 // pred_fallthru
          _
        // Predicated region
        $region21: #{tpu_custom_call.1} parent=11 // pred_check
          %p365 = pneg %p115
        $region22: #{tpu_custom_call.1} parent=11 // pred_check_branch
          %367 = sbr.rel (%p365) target = $region24
        $region23: #{tpu_custom_call.1} parent=11 // pred_region
          %s369 = ssub.s32 896, 896
          %370 = vsyncadd [#allocation4], %s369
          %s371 = sshll.u32 [#allocation9], 4
          %s372 = int_to_ptr.vmem [resolvable:$true] %s371
          %377 = dma.hbm_to_vmem [thread:$0]  %s3, 896, %s372, [#allocation4], 128, 128, 8
        $region24: #{tpu_custom_call.1} parent=11 // pred_fallthru
          _
        // Predicated region
        $region25: #{tpu_custom_call.1} parent=11 // pred_check
          %p378 = pneg %p136
        $region26: #{tpu_custom_call.1} parent=11 // pred_check_branch
          %380 = sbr.rel (%p378) target = $region28
        $region27: #{tpu_custom_call.1} parent=11 // pred_region
          _
        $region28: #{tpu_custom_call.1} parent=11 // pred_fallthru
          _
        // Predicated region
        $region29: #{tpu_custom_call.1} parent=11 // pred_check
          %p381 = pneg %p157
        $region30: #{tpu_custom_call.1} parent=11 // pred_check_branch
          %383 = sbr.rel (%p381) target = $region32
        $region31: #{tpu_custom_call.1} parent=11 // pred_region
          _
        $region32: #{tpu_custom_call.1} parent=11 // pred_fallthru
          _
        // Predicated region
        $region33: #{tpu_custom_call.1} parent=11 // pred_check
          %p384 = pneg %p178
        $region34: #{tpu_custom_call.1} parent=11 // pred_check_branch
          %386 = sbr.rel (%p384) target = $region36
        $region35: #{tpu_custom_call.1} parent=11 // pred_region
          _
        $region36: #{tpu_custom_call.1} parent=11 // pred_fallthru
          _
        // Predicated region
        $region37: #{tpu_custom_call.1} parent=11 // pred_check
          %p387 = pneg %p199
        $region38: #{tpu_custom_call.1} parent=11 // pred_check_branch
          %389 = sbr.rel (%p387) target = $region40
        $region39: #{tpu_custom_call.1} parent=11 // pred_region
          %s391 = ssub.s32 512, 512
          %392 = vsyncadd [#allocation11], %s391
          %s393 = sshll.u32 [#allocation10], 4
          %s394 = int_to_ptr.vmem [resolvable:$true] %s393
          %399 = dma.hbm_to_vmem [thread:$0]  %s7, 512, %s394, [#allocation11], 128, 128, 8
        $region40: #{tpu_custom_call.1} parent=11 // pred_fallthru
          _
        // Predicated region
        $region41: #{tpu_custom_call.1} parent=11 // pred_check
          %p400 = pneg %p220
        $region42: #{tpu_custom_call.1} parent=11 // pred_check_branch
          %402 = sbr.rel (%p400) target = $region44
        $region43: #{tpu_custom_call.1} parent=11 // pred_region
          _
        $region44: #{tpu_custom_call.1} parent=11 // pred_fallthru
          _
        // Predicated region
        $region45: #{tpu_custom_call.1} parent=11 // pred_check
          %p403 = pneg %p241
        $region46: #{tpu_custom_call.1} parent=11 // pred_check_branch
          %405 = sbr.rel (%p403) target = $region48
        $region47: #{tpu_custom_call.1} parent=11 // pred_region
          _
        $region48: #{tpu_custom_call.1} parent=11 // pred_fallthru
          _
        // Predicated region
        $region49: #{tpu_custom_call.1} parent=11 // pred_check
          %p406 = pneg %p262
        $region50: #{tpu_custom_call.1} parent=11 // pred_check_branch
          %408 = sbr.rel (%p406) target = $region52
        $region51: #{tpu_custom_call.1} parent=11 // pred_region
          %s410 = ssub.s32 1024, 1024
          %411 = vsyncadd [#allocation11], %s410
          %s412 = sshll.u32 [#allocation12], 4
          %s413 = int_to_ptr.vmem [resolvable:$true] %s412
          %418 = dma.hbm_to_vmem [thread:$0]  %s10, 1024, %s413, [#allocation11], 256, 256, 16
        $region52: #{tpu_custom_call.1} parent=11 // pred_fallthru
          _
        // Predicated region
        $region53: #{tpu_custom_call.1} parent=11 // pred_check
          %p419 = pneg %p283
        $region54: #{tpu_custom_call.1} parent=11 // pred_check_branch
          %421 = sbr.rel (%p419) target = $region56
        $region55: #{tpu_custom_call.1} parent=11 // pred_region
          _
        $region56: #{tpu_custom_call.1} parent=11 // pred_fallthru
          _
        // Predicated region
        $region57: #{tpu_custom_call.1} parent=11 // pred_check
          %p422 = pneg %p304
        $region58: #{tpu_custom_call.1} parent=11 // pred_check_branch
          %424 = sbr.rel (%p422) target = $region60
        $region59: #{tpu_custom_call.1} parent=11 // pred_region
          _
        $region60: #{tpu_custom_call.1} parent=11 // pred_fallthru
          _
      $region12: #{tpu_custom_call.1} parent=5 // pred_fallthru
        _
      %p425 = scmp.lt.s32.totalorder %s26, 2
      // Predicated region
      $region61: #{tpu_custom_call.1} parent=5 // pred_check
        %p426 = pneg %p425
      $region62: #{tpu_custom_call.1} parent=5 // pred_check_branch
        %428 = sbr.rel (%p426) target = $region64
      $region63: #{tpu_custom_call.1} parent=5 // pred_region
        // Predicated region
        $region65: #{tpu_custom_call.1} parent=63 // pred_check
          %p429 = pneg %p46
        $region66: #{tpu_custom_call.1} parent=63 // pred_check_branch
          %431 = sbr.rel (%p429) target = $region68
        $region67: #{tpu_custom_call.1} parent=63 // pred_region
          %p432 = scmp.lt.s32.totalorder %s26, 1
          %s433 = scalar_select %p432, %s26, 1
          %s434 = smul.addr %s433, 14
          %s435 = smul.addr %s434, 8
          %s436 = scalar_lea.vmem %s0, %s435
        $region68: #{tpu_custom_call.1} parent=63 // pred_fallthru
          _
      $region64: #{tpu_custom_call.1} parent=5 // pred_fallthru
        _
      %p437 = scmp.le.s32.totalorder 1, %s26
      %p438 = scmp.lt.s32.totalorder %s26, 3
      %p439 = pnand %p437, %p438
      %p440 = pneg %p439
      // Predicated region
      $region69: #{tpu_custom_call.1} parent=5 // pred_check
        _
      $region70: #{tpu_custom_call.1} parent=5 // pred_check_branch
        %442 = sbr.rel (%p439) target = $region72
      $region71: #{tpu_custom_call.1} parent=5 // pred_region
        %s443 = ssub.s32 %s26, 1
        // Predicated region
        $region73: #{tpu_custom_call.1} parent=71 // pred_check
          %p444 = pneg %p73
        $region74: #{tpu_custom_call.1} parent=71 // pred_check_branch
          %446 = sbr.rel (%p444) target = $region76
        $region75: #{tpu_custom_call.1} parent=71 // pred_region
          %447 = dma.done [#allocation7], 16
        $region76: #{tpu_custom_call.1} parent=71 // pred_fallthru
          _
        // Predicated region
        $region77: #{tpu_custom_call.1} parent=71 // pred_check
          %p448 = pneg %p94
        $region78: #{tpu_custom_call.1} parent=71 // pred_check_branch
          %450 = sbr.rel (%p448) target = $region80
        $region79: #{tpu_custom_call.1} parent=71 // pred_region
          %451 = dma.done [#allocation6], 16
        $region80: #{tpu_custom_call.1} parent=71 // pred_fallthru
          _
        // Predicated region
        $region81: #{tpu_custom_call.1} parent=71 // pred_check
          %p452 = pneg %p115
        $region82: #{tpu_custom_call.1} parent=71 // pred_check_branch
          %454 = sbr.rel (%p452) target = $region84
        $region83: #{tpu_custom_call.1} parent=71 // pred_region
          %455 = dma.done [#allocation4], 896
        $region84: #{tpu_custom_call.1} parent=71 // pred_fallthru
          _
        // Predicated region
        $region85: #{tpu_custom_call.1} parent=71 // pred_check
          %p456 = pneg %p199
        $region86: #{tpu_custom_call.1} parent=71 // pred_check_branch
          %458 = sbr.rel (%p456) target = $region88
        $region87: #{tpu_custom_call.1} parent=71 // pred_region
          %459 = dma.done [#allocation11], 512
        $region88: #{tpu_custom_call.1} parent=71 // pred_fallthru
          _
        // Predicated region
        $region89: #{tpu_custom_call.1} parent=71 // pred_check
          %p460 = pneg %p262
        $region90: #{tpu_custom_call.1} parent=71 // pred_check_branch
          %462 = sbr.rel (%p460) target = $region92
        $region91: #{tpu_custom_call.1} parent=71 // pred_region
          %463 = dma.done [#allocation11], 1024
        $region92: #{tpu_custom_call.1} parent=71 // pred_fallthru
          _
        %464 = sfence
        %p465 = scmp.lt.s32.totalorder %s31, 1
        %s466 = scalar_select %p465, %s31, 1
        %s467 = smul.addr %s466, 14
        %s468 = smul.addr %s467, 8
        %s469 = scalar_lea.vmem %s0, %s468
        %p470 = pneg %p52
        %p471 = pneg %p49
        %p472 = pneg %p73
        %p473 = pneg %p70
        %p474 = pneg %p94
        %p475 = pneg %p91
        %p476 = pneg %p115
        %p477 = pneg %p112
        %p478 = pneg %p136
        %p479 = pneg %p133
        %p480 = pneg %p157
        %p481 = pneg %p154
        %p482 = pneg %p178
        %p483 = pneg %p175
        %p484 = pneg %p199
        %p485 = pneg %p196
        %p486 = pneg %p220
        %p487 = pneg %p217
        %p488 = pneg %p241
        %p489 = pneg %p238
        %p490 = pneg %p262
        %p491 = pneg %p259
        %p492 = pneg %p283
        %p493 = pneg %p280
        %p494 = pneg %p304
        %p495 = pneg %p301
        %p496 = pneg %p330
        %p497 = pneg %p327
        %s498 = sand.u32 %s317, 1
        %s499 = scalar_lea.sflag [#allocation5], %s498
        %s500 = sand.u32 %s317, 1
        %s501 = scalar_lea.vmem [#allocation13], %s500
        %p502 = scmp.lt.s32.totalorder %s31, 1
        %s503 = scalar_select %p502, %s31, 1
        %s504 = smul.addr %s503, 14
        %s505 = smul.addr %s504, 8
        %s506 = scalar_lea.vmem %s0, %s505
        %s507 = sld [smem:[#allocation8]]
        %v508 = vstv %s507
        %v509 = vld [vmem:[%s506] sm:$0xff]
        %v510 = vld [vmem:[%s506 + $0x8] sm:$0xff]
        %v511 = vld [vmem:[%s506 + $0x10] sm:$0xff]
        %v512 = vld [vmem:[%s506 + $0x18] sm:$0xff]
        %v513 = vld [vmem:[%s506 + $0x20] sm:$0xff]
        %v514 = vld [vmem:[%s506 + $0x28] sm:$0xff]
        %v515 = vld [vmem:[%s506 + $0x30] sm:$0xff]
        %v516 = vld [vmem:[%s506 + $0x38] sm:$0xff]
        %v517 = vld [vmem:[%s506 + $0x40] sm:$0xff]
        %v518 = vld [vmem:[%s506 + $0x48] sm:$0xff]
        %v519 = vld [vmem:[%s506 + $0x50] sm:$0xff]
        %v520 = vld [vmem:[%s506 + $0x58] sm:$0xff]
        %v521 = vld [vmem:[%s506 + $0x60] sm:$0xff]
        %s522 = sld [smem:[#allocation3]]
        %v523 = vstv %s522
        %v524 = vmul.f32 %v509, %v523
        %v525 = vmul.f32 %v510, %v523
        %v526 = vmul.f32 %v511, %v523
        %v527 = vmul.f32 %v512, %v523
        %v528 = vmul.f32 %v513, %v523
        %v529 = vmul.f32 %v514, %v523
        %v530 = vmul.f32 %v515, %v523
        %v531 = vmul.f32 %v516, %v523
        %v532 = vmul.f32 %v517, %v523
        %v533 = vmul.f32 %v518, %v523
        %v534 = vmul.f32 %v519, %v523
        %v535 = vmul.f32 %v520, %v523
        %v536 = vmul.f32 %v521, %v523
        %v537 = vadd.f32 %v508, %v524
        %v538 = vadd.f32 %v508, %v525
        %v539 = vadd.f32 %v508, %v526
        %v540 = vadd.f32 %v508, %v527
        %v541 = vadd.f32 %v508, %v528
        %v542 = vadd.f32 %v508, %v529
        %v543 = vadd.f32 %v508, %v530
        %v544 = vadd.f32 %v508, %v531
        %v545 = vadd.f32 %v508, %v532
        %v546 = vadd.f32 %v508, %v533
        %v547 = vadd.f32 %v508, %v534
        %v548 = vadd.f32 %v508, %v535
        %v549 = vadd.f32 %v508, %v536
        %s550 = sld [smem:[#allocation3 + $0x1]]
        %v551 = vstv %s550
        %v552 = vmul.f32 %v509, %v551
        %v553 = vmul.f32 %v510, %v551
        %v554 = vmul.f32 %v511, %v551
        %v555 = vmul.f32 %v512, %v551
        %v556 = vmul.f32 %v513, %v551
        %v557 = vmul.f32 %v514, %v551
        %v558 = vmul.f32 %v515, %v551
        %v559 = vmul.f32 %v516, %v551
        %v560 = vmul.f32 %v517, %v551
        %v561 = vmul.f32 %v518, %v551
        %v562 = vmul.f32 %v519, %v551
        %v563 = vmul.f32 %v520, %v551
        %v564 = vmul.f32 %v521, %v551
        %578 = vrot.lane.b32.xlu0 %v552, 127
        %v579 = vpop.permute.xlu0 %578
        %580 = vrot.lane.b32.xlu0 %v553, 127
        %v581 = vpop.permute.xlu0 %580
        %582 = vrot.lane.b32.xlu0 %v554, 127
        %v583 = vpop.permute.xlu0 %582
        %584 = vrot.lane.b32.xlu0 %v555, 127
        %v585 = vpop.permute.xlu0 %584
        %586 = vrot.lane.b32.xlu0 %v556, 127
        %v587 = vpop.permute.xlu0 %586
        %588 = vrot.lane.b32.xlu0 %v557, 127
        %v589 = vpop.permute.xlu0 %588
        %590 = vrot.lane.b32.xlu0 %v558, 127
        %v591 = vpop.permute.xlu0 %590
        %592 = vrot.lane.b32.xlu0 %v559, 127
        %v593 = vpop.permute.xlu0 %592
        %594 = vrot.lane.b32.xlu0 %v560, 127
        %v595 = vpop.permute.xlu0 %594
        %596 = vrot.lane.b32.xlu0 %v561, 127
        %v597 = vpop.permute.xlu0 %596
        %598 = vrot.lane.b32.xlu0 %v562, 127
        %v599 = vpop.permute.xlu0 %598
        %600 = vrot.lane.b32.xlu0 %v563, 127
        %v601 = vpop.permute.xlu0 %600
        %602 = vrot.lane.b32.xlu0 %v564, 127
        %v603 = vpop.permute.xlu0 %602
        %v617 = vadd.f32 %v537, %v579
        %v618 = vadd.f32 %v538, %v581
        %v619 = vadd.f32 %v539, %v583
        %v620 = vadd.f32 %v540, %v585
        %v621 = vadd.f32 %v541, %v587
        %v622 = vadd.f32 %v542, %v589
        %v623 = vadd.f32 %v543, %v591
        %v624 = vadd.f32 %v544, %v593
        %v625 = vadd.f32 %v545, %v595
        %v626 = vadd.f32 %v546, %v597
        %v627 = vadd.f32 %v547, %v599
        %v628 = vadd.f32 %v548, %v601
        %v629 = vadd.f32 %v549, %v603
        %s630 = sld [smem:[#allocation3 + $0x2]]
        %v631 = vstv %s630
        %v632 = vmul.f32 %v509, %v631
        %v633 = vmul.f32 %v510, %v631
        %v634 = vmul.f32 %v511, %v631
        %v635 = vmul.f32 %v512, %v631
        %v636 = vmul.f32 %v513, %v631
        %v637 = vmul.f32 %v514, %v631
        %v638 = vmul.f32 %v515, %v631
        %v639 = vmul.f32 %v516, %v631
        %v640 = vmul.f32 %v517, %v631
        %v641 = vmul.f32 %v518, %v631
        %v642 = vmul.f32 %v519, %v631
        %v643 = vmul.f32 %v520, %v631
        %v644 = vmul.f32 %v521, %v631
        %658 = vrot.lane.b32.xlu0 %v632, 126
        %v659 = vpop.permute.xlu0 %658
        %660 = vrot.lane.b32.xlu0 %v633, 126
        %v661 = vpop.permute.xlu0 %660
        %662 = vrot.lane.b32.xlu0 %v634, 126
        %v663 = vpop.permute.xlu0 %662
        %664 = vrot.lane.b32.xlu0 %v635, 126
        %v665 = vpop.permute.xlu0 %664
        %666 = vrot.lane.b32.xlu0 %v636, 126
        %v667 = vpop.permute.xlu0 %666
        %668 = vrot.lane.b32.xlu0 %v637, 126
        %v669 = vpop.permute.xlu0 %668
        %670 = vrot.lane.b32.xlu0 %v638, 126
        %v671 = vpop.permute.xlu0 %670
        %672 = vrot.lane.b32.xlu0 %v639, 126
        %v673 = vpop.permute.xlu0 %672
        %674 = vrot.lane.b32.xlu0 %v640, 126
        %v675 = vpop.permute.xlu0 %674
        %676 = vrot.lane.b32.xlu0 %v641, 126
        %v677 = vpop.permute.xlu0 %676
        %678 = vrot.lane.b32.xlu0 %v642, 126
        %v679 = vpop.permute.xlu0 %678
        %680 = vrot.lane.b32.xlu0 %v643, 126
        %v681 = vpop.permute.xlu0 %680
        %682 = vrot.lane.b32.xlu0 %v644, 126
        %v683 = vpop.permute.xlu0 %682
        %v697 = vadd.f32 %v617, %v659
        %v698 = vadd.f32 %v618, %v661
        %v699 = vadd.f32 %v619, %v663
        %v700 = vadd.f32 %v620, %v665
        %v701 = vadd.f32 %v621, %v667
        %v702 = vadd.f32 %v622, %v669
        %v703 = vadd.f32 %v623, %v671
        %v704 = vadd.f32 %v624, %v673
        %v705 = vadd.f32 %v625, %v675
        %v706 = vadd.f32 %v626, %v677
        %v707 = vadd.f32 %v627, %v679
        %v708 = vadd.f32 %v628, %v681
        %v709 = vadd.f32 %v629, %v683
        %v710 = vld [vmem:[%s506 + $0x1] sm:$0xff]
        %v711 = vld [vmem:[%s506 + $0x9] sm:$0xff]
        %v712 = vld [vmem:[%s506 + $0x11] sm:$0xff]
        %v713 = vld [vmem:[%s506 + $0x19] sm:$0xff]
        %v714 = vld [vmem:[%s506 + $0x21] sm:$0xff]
        %v715 = vld [vmem:[%s506 + $0x29] sm:$0xff]
        %v716 = vld [vmem:[%s506 + $0x31] sm:$0xff]
        %v717 = vld [vmem:[%s506 + $0x39] sm:$0xff]
        %v718 = vld [vmem:[%s506 + $0x41] sm:$0xff]
        %v719 = vld [vmem:[%s506 + $0x49] sm:$0xff]
        %v720 = vld [vmem:[%s506 + $0x51] sm:$0xff]
        %v721 = vld [vmem:[%s506 + $0x59] sm:$0xff]
        %v722 = vld [vmem:[%s506 + $0x61] sm:$0xff]
        %s723 = sld [smem:[#allocation3 + $0x3]]
        %v724 = vstv %s723
        %v725 = vmul.f32 %v710, %v724
        %v726 = vmul.f32 %v711, %v724
        %v727 = vmul.f32 %v712, %v724
        %v728 = vmul.f32 %v713, %v724
        %v729 = vmul.f32 %v714, %v724
        %v730 = vmul.f32 %v715, %v724
        %v731 = vmul.f32 %v716, %v724
        %v732 = vmul.f32 %v717, %v724
        %v733 = vmul.f32 %v718, %v724
        %v734 = vmul.f32 %v719, %v724
        %v735 = vmul.f32 %v720, %v724
        %v736 = vmul.f32 %v721, %v724
        %v737 = vmul.f32 %v722, %v724
        %v738 = vadd.f32 %v697, %v725
        %v739 = vadd.f32 %v698, %v726
        %v740 = vadd.f32 %v699, %v727
        %v741 = vadd.f32 %v700, %v728
        %v742 = vadd.f32 %v701, %v729
        %v743 = vadd.f32 %v702, %v730
        %v744 = vadd.f32 %v703, %v731
        %v745 = vadd.f32 %v704, %v732
        %v746 = vadd.f32 %v705, %v733
        %v747 = vadd.f32 %v706, %v734
        %v748 = vadd.f32 %v707, %v735
        %v749 = vadd.f32 %v708, %v736
        %v750 = vadd.f32 %v709, %v737
        %s751 = sld [smem:[#allocation3 + $0x4]]
        %v752 = vstv %s751
        %v753 = vmul.f32 %v710, %v752
        %v754 = vmul.f32 %v711, %v752
        %v755 = vmul.f32 %v712, %v752
        %v756 = vmul.f32 %v713, %v752
        %v757 = vmul.f32 %v714, %v752
        %v758 = vmul.f32 %v715, %v752
        %v759 = vmul.f32 %v716, %v752
        %v760 = vmul.f32 %v717, %v752
        %v761 = vmul.f32 %v718, %v752
        %v762 = vmul.f32 %v719, %v752
        %v763 = vmul.f32 %v720, %v752
        %v764 = vmul.f32 %v721, %v752
        %v765 = vmul.f32 %v722, %v752
        %779 = vrot.lane.b32.xlu0 %v753, 127
        %v780 = vpop.permute.xlu0 %779
        %781 = vrot.lane.b32.xlu0 %v754, 127
        %v782 = vpop.permute.xlu0 %781
        %783 = vrot.lane.b32.xlu0 %v755, 127
        %v784 = vpop.permute.xlu0 %783
        %785 = vrot.lane.b32.xlu0 %v756, 127
        %v786 = vpop.permute.xlu0 %785
        %787 = vrot.lane.b32.xlu0 %v757, 127
        %v788 = vpop.permute.xlu0 %787
        %789 = vrot.lane.b32.xlu0 %v758, 127
        %v790 = vpop.permute.xlu0 %789
        %791 = vrot.lane.b32.xlu0 %v759, 127
        %v792 = vpop.permute.xlu0 %791
        %793 = vrot.lane.b32.xlu0 %v760, 127
        %v794 = vpop.permute.xlu0 %793
        %795 = vrot.lane.b32.xlu0 %v761, 127
        %v796 = vpop.permute.xlu0 %795
        %797 = vrot.lane.b32.xlu0 %v762, 127
        %v798 = vpop.permute.xlu0 %797
        %799 = vrot.lane.b32.xlu0 %v763, 127
        %v800 = vpop.permute.xlu0 %799
        %801 = vrot.lane.b32.xlu0 %v764, 127
        %v802 = vpop.permute.xlu0 %801
        %803 = vrot.lane.b32.xlu0 %v765, 127
        %v804 = vpop.permute.xlu0 %803
        %v818 = vadd.f32 %v738, %v780
        %v819 = vadd.f32 %v739, %v782
        %v820 = vadd.f32 %v740, %v784
        %v821 = vadd.f32 %v741, %v786
        %v822 = vadd.f32 %v742, %v788
        %v823 = vadd.f32 %v743, %v790
        %v824 = vadd.f32 %v744, %v792
        %v825 = vadd.f32 %v745, %v794
        %v826 = vadd.f32 %v746, %v796
        %v827 = vadd.f32 %v747, %v798
        %v828 = vadd.f32 %v748, %v800
        %v829 = vadd.f32 %v749, %v802
        %v830 = vadd.f32 %v750, %v804
        %s831 = sld [smem:[#allocation3 + $0x5]]
        %v832 = vstv %s831
        %v833 = vmul.f32 %v710, %v832
        %v834 = vmul.f32 %v711, %v832
        %v835 = vmul.f32 %v712, %v832
        %v836 = vmul.f32 %v713, %v832
        %v837 = vmul.f32 %v714, %v832
        %v838 = vmul.f32 %v715, %v832
        %v839 = vmul.f32 %v716, %v832
        %v840 = vmul.f32 %v717, %v832
        %v841 = vmul.f32 %v718, %v832
        %v842 = vmul.f32 %v719, %v832
        %v843 = vmul.f32 %v720, %v832
        %v844 = vmul.f32 %v721, %v832
        %v845 = vmul.f32 %v722, %v832
        %859 = vrot.lane.b32.xlu0 %v833, 126
        %v860 = vpop.permute.xlu0 %859
        %861 = vrot.lane.b32.xlu0 %v834, 126
        %v862 = vpop.permute.xlu0 %861
        %863 = vrot.lane.b32.xlu0 %v835, 126
        %v864 = vpop.permute.xlu0 %863
        %865 = vrot.lane.b32.xlu0 %v836, 126
        %v866 = vpop.permute.xlu0 %865
        %867 = vrot.lane.b32.xlu0 %v837, 126
        %v868 = vpop.permute.xlu0 %867
        %869 = vrot.lane.b32.xlu0 %v838, 126
        %v870 = vpop.permute.xlu0 %869
        %871 = vrot.lane.b32.xlu0 %v839, 126
        %v872 = vpop.permute.xlu0 %871
        %873 = vrot.lane.b32.xlu0 %v840, 126
        %v874 = vpop.permute.xlu0 %873
        %875 = vrot.lane.b32.xlu0 %v841, 126
        %v876 = vpop.permute.xlu0 %875
        %877 = vrot.lane.b32.xlu0 %v842, 126
        %v878 = vpop.permute.xlu0 %877
        %879 = vrot.lane.b32.xlu0 %v843, 126
        %v880 = vpop.permute.xlu0 %879
        %881 = vrot.lane.b32.xlu0 %v844, 126
        %v882 = vpop.permute.xlu0 %881
        %883 = vrot.lane.b32.xlu0 %v845, 126
        %v884 = vpop.permute.xlu0 %883
        %v898 = vadd.f32 %v818, %v860
        %v899 = vadd.f32 %v819, %v862
        %v900 = vadd.f32 %v820, %v864
        %v901 = vadd.f32 %v821, %v866
        %v902 = vadd.f32 %v822, %v868
        %v903 = vadd.f32 %v823, %v870
        %v904 = vadd.f32 %v824, %v872
        %v905 = vadd.f32 %v825, %v874
        %v906 = vadd.f32 %v826, %v876
        %v907 = vadd.f32 %v827, %v878
        %v908 = vadd.f32 %v828, %v880
        %v909 = vadd.f32 %v829, %v882
        %v910 = vadd.f32 %v830, %v884
        %v911 = vld [vmem:[%s506 + $0x2] sm:$0xff]
        %v912 = vld [vmem:[%s506 + $0xa] sm:$0xff]
        %v913 = vld [vmem:[%s506 + $0x12] sm:$0xff]
        %v914 = vld [vmem:[%s506 + $0x1a] sm:$0xff]
        %v915 = vld [vmem:[%s506 + $0x22] sm:$0xff]
        %v916 = vld [vmem:[%s506 + $0x2a] sm:$0xff]
        %v917 = vld [vmem:[%s506 + $0x32] sm:$0xff]
        %v918 = vld [vmem:[%s506 + $0x3a] sm:$0xff]
        %v919 = vld [vmem:[%s506 + $0x42] sm:$0xff]
        %v920 = vld [vmem:[%s506 + $0x4a] sm:$0xff]
        %v921 = vld [vmem:[%s506 + $0x52] sm:$0xff]
        %v922 = vld [vmem:[%s506 + $0x5a] sm:$0xff]
        %v923 = vld [vmem:[%s506 + $0x62] sm:$0xff]
        %s924 = sld [smem:[#allocation3 + $0x6]]
        %v925 = vstv %s924
        %v926 = vmul.f32 %v911, %v925
        %v927 = vmul.f32 %v912, %v925
        %v928 = vmul.f32 %v913, %v925
        %v929 = vmul.f32 %v914, %v925
        %v930 = vmul.f32 %v915, %v925
        %v931 = vmul.f32 %v916, %v925
        %v932 = vmul.f32 %v917, %v925
        %v933 = vmul.f32 %v918, %v925
        %v934 = vmul.f32 %v919, %v925
        %v935 = vmul.f32 %v920, %v925
        %v936 = vmul.f32 %v921, %v925
        %v937 = vmul.f32 %v922, %v925
        %v938 = vmul.f32 %v923, %v925
        %v939 = vadd.f32 %v898, %v926
        %v940 = vadd.f32 %v899, %v927
        %v941 = vadd.f32 %v900, %v928
        %v942 = vadd.f32 %v901, %v929
        %v943 = vadd.f32 %v902, %v930
        %v944 = vadd.f32 %v903, %v931
        %v945 = vadd.f32 %v904, %v932
        %v946 = vadd.f32 %v905, %v933
        %v947 = vadd.f32 %v906, %v934
        %v948 = vadd.f32 %v907, %v935
        %v949 = vadd.f32 %v908, %v936
        %v950 = vadd.f32 %v909, %v937
        %v951 = vadd.f32 %v910, %v938
        %s952 = sld [smem:[#allocation3 + $0x7]]
        %v953 = vstv %s952
        %v954 = vmul.f32 %v911, %v953
        %v955 = vmul.f32 %v912, %v953
        %v956 = vmul.f32 %v913, %v953
        %v957 = vmul.f32 %v914, %v953
        %v958 = vmul.f32 %v915, %v953
        %v959 = vmul.f32 %v916, %v953
        %v960 = vmul.f32 %v917, %v953
        %v961 = vmul.f32 %v918, %v953
        %v962 = vmul.f32 %v919, %v953
        %v963 = vmul.f32 %v920, %v953
        %v964 = vmul.f32 %v921, %v953
        %v965 = vmul.f32 %v922, %v953
        %v966 = vmul.f32 %v923, %v953
        %980 = vrot.lane.b32.xlu0 %v954, 127
        %v981 = vpop.permute.xlu0 %980
        %982 = vrot.lane.b32.xlu0 %v955, 127
        %v983 = vpop.permute.xlu0 %982
        %984 = vrot.lane.b32.xlu0 %v956, 127
        %v985 = vpop.permute.xlu0 %984
        %986 = vrot.lane.b32.xlu0 %v957, 127
        %v987 = vpop.permute.xlu0 %986
        %988 = vrot.lane.b32.xlu0 %v958, 127
        %v989 = vpop.permute.xlu0 %988
        %990 = vrot.lane.b32.xlu0 %v959, 127
        %v991 = vpop.permute.xlu0 %990
        %992 = vrot.lane.b32.xlu0 %v960, 127
        %v993 = vpop.permute.xlu0 %992
        %994 = vrot.lane.b32.xlu0 %v961, 127
        %v995 = vpop.permute.xlu0 %994
        %996 = vrot.lane.b32.xlu0 %v962, 127
        %v997 = vpop.permute.xlu0 %996
        %998 = vrot.lane.b32.xlu0 %v963, 127
        %v999 = vpop.permute.xlu0 %998
        %1000 = vrot.lane.b32.xlu0 %v964, 127
        %v1001 = vpop.permute.xlu0 %1000
        %1002 = vrot.lane.b32.xlu0 %v965, 127
        %v1003 = vpop.permute.xlu0 %1002
        %1004 = vrot.lane.b32.xlu0 %v966, 127
        %v1005 = vpop.permute.xlu0 %1004
        %v1019 = vadd.f32 %v939, %v981
        %v1020 = vadd.f32 %v940, %v983
        %v1021 = vadd.f32 %v941, %v985
        %v1022 = vadd.f32 %v942, %v987
        %v1023 = vadd.f32 %v943, %v989
        %v1024 = vadd.f32 %v944, %v991
        %v1025 = vadd.f32 %v945, %v993
        %v1026 = vadd.f32 %v946, %v995
        %v1027 = vadd.f32 %v947, %v997
        %v1028 = vadd.f32 %v948, %v999
        %v1029 = vadd.f32 %v949, %v1001
        %v1030 = vadd.f32 %v950, %v1003
        %v1031 = vadd.f32 %v951, %v1005
        %s1032 = sld [smem:[#allocation3 + $0x8]]
        %v1033 = vstv %s1032
        %v1034 = vmul.f32 %v911, %v1033
        %v1035 = vmul.f32 %v912, %v1033
        %v1036 = vmul.f32 %v913, %v1033
        %v1037 = vmul.f32 %v914, %v1033
        %v1038 = vmul.f32 %v915, %v1033
        %v1039 = vmul.f32 %v916, %v1033
        %v1040 = vmul.f32 %v917, %v1033
        %v1041 = vmul.f32 %v918, %v1033
        %v1042 = vmul.f32 %v919, %v1033
        %v1043 = vmul.f32 %v920, %v1033
        %v1044 = vmul.f32 %v921, %v1033
        %v1045 = vmul.f32 %v922, %v1033
        %v1046 = vmul.f32 %v923, %v1033
        %1060 = vrot.lane.b32.xlu0 %v1034, 126
        %v1061 = vpop.permute.xlu0 %1060
        %1062 = vrot.lane.b32.xlu0 %v1035, 126
        %v1063 = vpop.permute.xlu0 %1062
        %1064 = vrot.lane.b32.xlu0 %v1036, 126
        %v1065 = vpop.permute.xlu0 %1064
        %1066 = vrot.lane.b32.xlu0 %v1037, 126
        %v1067 = vpop.permute.xlu0 %1066
        %1068 = vrot.lane.b32.xlu0 %v1038, 126
        %v1069 = vpop.permute.xlu0 %1068
        %1070 = vrot.lane.b32.xlu0 %v1039, 126
        %v1071 = vpop.permute.xlu0 %1070
        %1072 = vrot.lane.b32.xlu0 %v1040, 126
        %v1073 = vpop.permute.xlu0 %1072
        %1074 = vrot.lane.b32.xlu0 %v1041, 126
        %v1075 = vpop.permute.xlu0 %1074
        %1076 = vrot.lane.b32.xlu0 %v1042, 126
        %v1077 = vpop.permute.xlu0 %1076
        %1078 = vrot.lane.b32.xlu0 %v1043, 126
        %v1079 = vpop.permute.xlu0 %1078
        %1080 = vrot.lane.b32.xlu0 %v1044, 126
        %v1081 = vpop.permute.xlu0 %1080
        %1082 = vrot.lane.b32.xlu0 %v1045, 126
        %v1083 = vpop.permute.xlu0 %1082
        %1084 = vrot.lane.b32.xlu0 %v1046, 126
        %v1085 = vpop.permute.xlu0 %1084
        %v1099 = vadd.f32 %v1019, %v1061
        %v1100 = vadd.f32 %v1020, %v1063
        %v1101 = vadd.f32 %v1021, %v1065
        %v1102 = vadd.f32 %v1022, %v1067
        %v1103 = vadd.f32 %v1023, %v1069
        %v1104 = vadd.f32 %v1024, %v1071
        %v1105 = vadd.f32 %v1025, %v1073
        %v1106 = vadd.f32 %v1026, %v1075
        %v1107 = vadd.f32 %v1027, %v1077
        %v1108 = vadd.f32 %v1028, %v1079
        %v1109 = vadd.f32 %v1029, %v1081
        %v1110 = vadd.f32 %v1030, %v1083
        %v1111 = vadd.f32 %v1031, %v1085
        %vm1125 = vcmask 1046528
        %v1126 = vrot.slane %v1099, 1
        %v1127 = vrot.slane %v1100, 1
        %v1128 = vsel %vm1125, %v1126, %v1127
        %v1129 = vrot.slane %v1101, 1
        %v1130 = vsel %vm1125, %v1127, %v1129
        %v1131 = vrot.slane %v1102, 1
        %v1132 = vsel %vm1125, %v1129, %v1131
        %v1133 = vrot.slane %v1103, 1
        %v1134 = vsel %vm1125, %v1131, %v1133
        %v1135 = vrot.slane %v1104, 1
        %v1136 = vsel %vm1125, %v1133, %v1135
        %v1137 = vrot.slane %v1105, 1
        %v1138 = vsel %vm1125, %v1135, %v1137
        %v1139 = vrot.slane %v1106, 1
        %v1140 = vsel %vm1125, %v1137, %v1139
        %v1141 = vrot.slane %v1107, 1
        %v1142 = vsel %vm1125, %v1139, %v1141
        %v1143 = vrot.slane %v1108, 1
        %v1144 = vsel %vm1125, %v1141, %v1143
        %v1145 = vrot.slane %v1109, 1
        %v1146 = vsel %vm1125, %v1143, %v1145
        %v1147 = vrot.slane %v1110, 1
        %v1148 = vsel %vm1125, %v1145, %v1147
        %v1149 = vrot.slane %v1111, 1
        %v1150 = vsel %vm1125, %v1147, %v1149
        %v1164 = vmax.f32 %v1099, %v1128
        %v1165 = vmax.f32 %v1100, %v1130
        %v1166 = vmax.f32 %v1101, %v1132
        %v1167 = vmax.f32 %v1102, %v1134
        %v1168 = vmax.f32 %v1103, %v1136
        %v1169 = vmax.f32 %v1104, %v1138
        %v1170 = vmax.f32 %v1105, %v1140
        %v1171 = vmax.f32 %v1106, %v1142
        %v1172 = vmax.f32 %v1107, %v1144
        %v1173 = vmax.f32 %v1108, %v1146
        %v1174 = vmax.f32 %v1109, %v1148
        %v1175 = vmax.f32 %v1110, %v1150
        %v1176 = vmax.f32 %v1111, %v1149
        %1190 = vrot.lane.b32.xlu0 %v1164, 127
        %v1191 = vpop.permute.xlu0 %1190
        %1192 = vrot.lane.b32.xlu0 %v1165, 127
        %v1193 = vpop.permute.xlu0 %1192
        %1194 = vrot.lane.b32.xlu0 %v1166, 127
        %v1195 = vpop.permute.xlu0 %1194
        %1196 = vrot.lane.b32.xlu0 %v1167, 127
        %v1197 = vpop.permute.xlu0 %1196
        %1198 = vrot.lane.b32.xlu0 %v1168, 127
        %v1199 = vpop.permute.xlu0 %1198
        %1200 = vrot.lane.b32.xlu0 %v1169, 127
        %v1201 = vpop.permute.xlu0 %1200
        %1202 = vrot.lane.b32.xlu0 %v1170, 127
        %v1203 = vpop.permute.xlu0 %1202
        %1204 = vrot.lane.b32.xlu0 %v1171, 127
        %v1205 = vpop.permute.xlu0 %1204
        %1206 = vrot.lane.b32.xlu0 %v1172, 127
        %v1207 = vpop.permute.xlu0 %1206
        %1208 = vrot.lane.b32.xlu0 %v1173, 127
        %v1209 = vpop.permute.xlu0 %1208
        %1210 = vrot.lane.b32.xlu0 %v1174, 127
        %v1211 = vpop.permute.xlu0 %1210
        %1212 = vrot.lane.b32.xlu0 %v1175, 127
        %v1213 = vpop.permute.xlu0 %1212
        %1214 = vrot.lane.b32.xlu0 %v1176, 127
        %v1215 = vpop.permute.xlu0 %1214
        %v1229 = vmax.f32 %v1164, %v1191
        %v1230 = vmax.f32 %v1165, %v1193
        %v1231 = vmax.f32 %v1166, %v1195
        %v1232 = vmax.f32 %v1167, %v1197
        %v1233 = vmax.f32 %v1168, %v1199
        %v1234 = vmax.f32 %v1169, %v1201
        %v1235 = vmax.f32 %v1170, %v1203
        %v1236 = vmax.f32 %v1171, %v1205
        %v1237 = vmax.f32 %v1172, %v1207
        %v1238 = vmax.f32 %v1173, %v1209
        %v1239 = vmax.f32 %v1174, %v1211
        %v1240 = vmax.f32 %v1175, %v1213
        %v1241 = vmax.f32 %v1176, %v1215
        %v1242 = vld [vmem:[#allocation9] sm:$0xff]
        %v1243 = vld [vmem:[#allocation9 + $0x8] sm:$0xff]
        %v1244 = vld [vmem:[#allocation9 + $0x10] sm:$0xff]
        %v1245 = vld [vmem:[#allocation9 + $0x18] sm:$0xff]
        %v1246 = vld [vmem:[#allocation9 + $0x20] sm:$0xff]
        %v1247 = vld [vmem:[#allocation9 + $0x28] sm:$0xff]
        %v1248 = vld [vmem:[#allocation9 + $0x30] sm:$0xff]
        %vm1249 = vcmask 842752
        %v1251 = vsel %vm1249, %v1242, 0
        %v1254 = vsel %vm1249, %v1243, 0
        %v1257 = vsel %vm1249, %v1244, 0
        %v1260 = vsel %vm1249, %v1245, 0
        %v1263 = vsel %vm1249, %v1246, 0
        %v1266 = vsel %vm1249, %v1247, 0
        %v1269 = vsel %vm1249, %v1248, 0
        %v1272 = vsel %vm1125, %v1241, 0
        %1274 = vmatprep.subr.mxu0 0.0
        %1275 = vmatpush1.msra.mxu0 %v1229
        %1276 = vmatprep.subr.mxu0 0.0
        %1277 = vmatpush1.msra.mxu0 %v1230
        %1278 = vmatprep.subr.mxu0 0.0
        %1279 = vmatpush1.msra.mxu0 %v1231
        %1280 = vmatprep.subr.mxu0 0.0
        %1281 = vmatpush1.msra.mxu0 %v1232
        %1282 = vmatprep.subr.mxu0 0.0
        %1283 = vmatpush1.msra.mxu0 %v1233
        %1284 = vmatprep.subr.mxu0 0.0
        %1285 = vmatpush1.msra.mxu0 %v1234
        %1286 = vmatprep.subr.mxu0 0.0
        %1287 = vmatpush1.msra.mxu0 %v1235
        %1288 = vmatprep.subr.mxu0 0.0
        %1289 = vmatpush1.msra.mxu0 %v1236
        %1290 = vmatprep.subr.mxu0 0.0
        %1291 = vmatpush1.msra.mxu0 %v1237
        %1292 = vmatprep.subr.mxu0 0.0
        %1293 = vmatpush1.msra.mxu0 %v1238
        %1294 = vmatprep.subr.mxu0 0.0
        %1295 = vmatpush1.msra.mxu0 %v1239
        %1296 = vmatprep.subr.mxu0 0.0
        %1297 = vmatpush1.msra.mxu0 %v1240
        %1298 = vmatprep.subr.mxu0 0.0
        %1299 = vmatpush1.msra.mxu0 %v1272
        %1300 = vmatprep.subr.mxu0 0.0
        %1301 = vmatpush1.msra.mxu0 0.0
        %1302 = vmatprep.subr.mxu0 0.0
        %1303 = vmatpush1.msra.mxu0 0.0
        %1304 = vmatprep.subr.mxu0 0.0
        %1305 = vmatpush1.msra.mxu0 0.0
        %1306 = vmatprep.subr.mxu0 0.0
        %1307 = vmatpush1.msra.mxu0 0.0
        %1308 = vmatprep.subr.mxu0 0.0
        %1309 = vmatpush1.msra.mxu0 0.0
        %1310 = vmatprep.subr.mxu0 0.0
        %1311 = vmatpush1.msra.mxu0 0.0
        %1312 = vmatprep.subr.mxu0 0.0
        %1313 = vmatpush1.msra.mxu0 0.0
        %1314 = vmatprep.subr.mxu0 0.0
        %1315 = vmatpush1.msra.mxu0 0.0
        %1316 = vmatprep.subr.mxu0 0.0
        %1317 = vmatpush1.msra.mxu0 0.0
        %1318 = vmatprep.subr.mxu0 0.0
        %1319 = vmatpush1.msra.mxu0 0.0
        %1320 = vmatprep.subr.mxu0 0.0
        %1321 = vmatpush1.msra.mxu0 0.0
        %1322 = vmatprep.subr.mxu0 0.0
        %1323 = vmatpush1.msra.mxu0 0.0
        %1324 = vmatprep.subr.mxu0 0.0
        %1325 = vmatpush1.msra.mxu0 0.0
        %1326 = vmatprep.subr.mxu0 0.0
        %1327 = vmatpush1.msra.mxu0 0.0
        %1328 = vmatprep.subr.mxu0 0.0
        %1329 = vmatpush1.msra.mxu0 0.0
        %1330 = vmatprep.subr.mxu0 0.0
        %1331 = vmatpush1.msra.mxu0 0.0
        %1332 = vmatprep.subr.mxu0 0.0
        %1333 = vmatpush1.msra.mxu0 0.0
        %1334 = vmatprep.subr.mxu0 0.0
        %1335 = vmatpush1.msra.mxu0 0.0
        %1336 = vmatprep.subr.mxu0 0.0
        %1337 = vmatpush1.msra.mxu0 0.0
        %1338 = vmatprep.mubr.f32.mxu0 0.0
        %1339 = vmatmul.mubr.f32.gmra.mrb[0].mxu0 %v1251
        %v1340 = vpop.f32.mrb[0].mxu0
        %v1341 = vadd.f32 0.0, %v1340
        %v1342 = vpop.f32.mrb[0].mxu0
        %1343 = vmatprep.mubr.f32.mxu0 0.0
        %1344 = vmatmul.mubr.f32.gmra.mrb[0].mxu0 %v1254
        %v1345 = vpop.f32.mrb[0].mxu0
        %v1346 = vadd.f32 0.0, %v1345
        %v1347 = vpop.f32.mrb[0].mxu0
        %1348 = vmatprep.mubr.f32.mxu0 0.0
        %1349 = vmatmul.mubr.f32.gmra.mrb[0].mxu0 %v1257
        %v1350 = vpop.f32.mrb[0].mxu0
        %v1351 = vadd.f32 0.0, %v1350
        %v1352 = vpop.f32.mrb[0].mxu0
        %1353 = vmatprep.mubr.f32.mxu0 0.0
        %1354 = vmatmul.mubr.f32.gmra.mrb[0].mxu0 %v1260
        %v1355 = vpop.f32.mrb[0].mxu0
        %v1356 = vadd.f32 0.0, %v1355
        %v1357 = vpop.f32.mrb[0].mxu0
        %1358 = vmatprep.mubr.f32.mxu0 0.0
        %1359 = vmatmul.mubr.f32.gmra.mrb[0].mxu0 %v1263
        %v1360 = vpop.f32.mrb[0].mxu0
        %v1361 = vadd.f32 0.0, %v1360
        %v1362 = vpop.f32.mrb[0].mxu0
        %1363 = vmatprep.mubr.f32.mxu0 0.0
        %1364 = vmatmul.mubr.f32.gmra.mrb[0].mxu0 %v1266
        %v1365 = vpop.f32.mrb[0].mxu0
        %v1366 = vadd.f32 0.0, %v1365
        %v1367 = vpop.f32.mrb[0].mxu0
        %1368 = vmatprep.mubr.f32.mxu0 0.0
        %1369 = vmatmul.mubr.f32.gmra.mrb[0].mxu0 %v1269
        %v1370 = vpop.f32.mrb[0].mxu0
        %v1371 = vadd.f32 0.0, %v1370
        %v1372 = vpop.f32.mrb[0].mxu0
        %1373 = vdwg.mxu0
        %v1374 = vld [vmem:[%s4] sm:$0xff]
        %v1375 = vld [vmem:[%s4 + $0x8] sm:$0xff]
        %v1376 = vld [vmem:[%s4 + $0x10] sm:$0xff]
        %v1377 = vld [vmem:[%s4 + $0x18] sm:$0xff]
        %v1378 = vld [vmem:[%s4 + $0x20] sm:$0xff]
        %v1379 = vld [vmem:[%s4 + $0x28] sm:$0xff]
        %v1380 = vld [vmem:[%s4 + $0x30] sm:$0xff]
        %v1381 = vld [vmem:[%s4 + $0x38] sm:$0xff]
        %v1382 = vld [vmem:[%s4 + $0x40] sm:$0xff]
        %v1383 = vld [vmem:[%s4 + $0x48] sm:$0xff]
        %v1384 = vld [vmem:[%s4 + $0x50] sm:$0xff]
        %v1385 = vld [vmem:[%s4 + $0x58] sm:$0xff]
        %v1386 = vld [vmem:[%s4 + $0x60] sm:$0xff]
        %v1387 = vld [vmem:[%s4 + $0x68] sm:$0xff]
        %v1388 = vld [vmem:[%s4 + $0x70] sm:$0xff]
        %v1389 = vld [vmem:[%s4 + $0x78] sm:$0xff]
        %v1390 = vld [vmem:[%s4 + $0x80] sm:$0xff]
        %v1391 = vld [vmem:[%s4 + $0x88] sm:$0xff]
        %v1392 = vld [vmem:[%s4 + $0x90] sm:$0xff]
        %v1393 = vld [vmem:[%s4 + $0x98] sm:$0xff]
        %v1394 = vld [vmem:[%s4 + $0xa0] sm:$0xff]
        %v1395 = vld [vmem:[%s4 + $0xa8] sm:$0xff]
        %v1396 = vld [vmem:[%s4 + $0xb0] sm:$0xff]
        %v1397 = vld [vmem:[%s4 + $0xb8] sm:$0xff]
        %v1398 = vld [vmem:[%s4 + $0xc0] sm:$0x7f]
        %v1399 = vld [vmem:[%s4 + $0xc8] sm:$0x7f]
        %v1401 = vsel %vm1249, %v1341, 0
        %v1404 = vsel %vm1249, %v1346, 0
        %v1407 = vsel %vm1249, %v1351, 0
        %v1410 = vsel %vm1249, %v1356, 0
        %v1413 = vsel %vm1249, %v1361, 0
        %v1416 = vsel %vm1249, %v1366, 0
        %v1419 = vsel %vm1249, %v1371, 0
        %v1422 = vsel %vm1125, %v1398, 0
        %v1425 = vsel %vm1125, %v1399, 0
        %1427 = vmatprep.subr.mxu0 %v1375
        %1428 = vmatpush1.msra.mxu0 %v1374
        %1429 = vmatprep.subr.mxu0 %v1377
        %1430 = vmatpush1.msra.mxu0 %v1376
        %1431 = vmatprep.subr.mxu0 %v1379
        %1432 = vmatpush1.msra.mxu0 %v1378
        %1433 = vmatprep.subr.mxu0 %v1381
        %1434 = vmatpush1.msra.mxu0 %v1380
        %1435 = vmatprep.subr.mxu0 %v1383
        %1436 = vmatpush1.msra.mxu0 %v1382
        %1437 = vmatprep.subr.mxu0 %v1385
        %1438 = vmatpush1.msra.mxu0 %v1384
        %1439 = vmatprep.subr.mxu0 %v1387
        %1440 = vmatpush1.msra.mxu0 %v1386
        %1441 = vmatprep.subr.mxu0 %v1389
        %1442 = vmatpush1.msra.mxu0 %v1388
        %1443 = vmatprep.subr.mxu0 %v1391
        %1444 = vmatpush1.msra.mxu0 %v1390
        %1445 = vmatprep.subr.mxu0 %v1393
        %1446 = vmatpush1.msra.mxu0 %v1392
        %1447 = vmatprep.subr.mxu0 %v1395
        %1448 = vmatpush1.msra.mxu0 %v1394
        %1449 = vmatprep.subr.mxu0 %v1397
        %1450 = vmatpush1.msra.mxu0 %v1396
        %1451 = vmatprep.subr.mxu0 %v1425
        %1452 = vmatpush1.msra.mxu0 %v1422
        %1453 = vmatprep.subr.mxu0 0.0
        %1454 = vmatpush1.msra.mxu0 0.0
        %1455 = vmatprep.subr.mxu0 0.0
        %1456 = vmatpush1.msra.mxu0 0.0
        %1457 = vmatprep.subr.mxu0 0.0
        %1458 = vmatpush1.msra.mxu0 0.0
        %1459 = vmatprep.subr.mxu0 0.0
        %1460 = vmatpush1.msra.mxu0 0.0
        %1461 = vmatprep.subr.mxu0 0.0
        %1462 = vmatpush1.msra.mxu0 0.0
        %1463 = vmatprep.subr.mxu0 0.0
        %1464 = vmatpush1.msra.mxu0 0.0
        %1465 = vmatprep.subr.mxu0 0.0
        %1466 = vmatpush1.msra.mxu0 0.0
        %1467 = vmatprep.subr.mxu0 0.0
        %1468 = vmatpush1.msra.mxu0 0.0
        %1469 = vmatprep.subr.mxu0 0.0
        %1470 = vmatpush1.msra.mxu0 0.0
        %1471 = vmatprep.subr.mxu0 0.0
        %1472 = vmatpush1.msra.mxu0 0.0
        %1473 = vmatprep.subr.mxu0 0.0
        %1474 = vmatpush1.msra.mxu0 0.0
        %1475 = vmatprep.subr.mxu0 0.0
        %1476 = vmatpush1.msra.mxu0 0.0
        %1477 = vmatprep.subr.mxu0 0.0
        %1478 = vmatpush1.msra.mxu0 0.0
        %1479 = vmatprep.subr.mxu0 0.0
        %1480 = vmatpush1.msra.mxu0 0.0
        %1481 = vmatprep.subr.mxu0 0.0
        %1482 = vmatpush1.msra.mxu0 0.0
        %1483 = vmatprep.subr.mxu0 0.0
        %1484 = vmatpush1.msra.mxu0 0.0
        %1485 = vmatprep.subr.mxu0 0.0
        %1486 = vmatpush1.msra.mxu0 0.0
        %1487 = vmatprep.subr.mxu0 0.0
        %1488 = vmatpush1.msra.mxu0 0.0
        %1489 = vmatprep.subr.mxu0 0.0
        %1490 = vmatpush1.msra.mxu0 0.0
        %1491 = vmatprep.mubr.f32.mxu0 0.0
        %1492 = vmatmul.mubr.f32.gmra.mrb[0].mxu0 %v1401
        %v1493 = vpop.f32.mrb[0].mxu0
        %v1494 = vadd.f32 0.0, %v1493
        %v1495 = vpop.f32.mrb[0].mxu0
        %v1496 = vadd.f32 0.0, %v1495
        %1497 = vmatprep.mubr.f32.mxu0 0.0
        %1498 = vmatmul.mubr.f32.gmra.mrb[0].mxu0 %v1404
        %v1499 = vpop.f32.mrb[0].mxu0
        %v1500 = vadd.f32 0.0, %v1499
        %v1501 = vpop.f32.mrb[0].mxu0
        %v1502 = vadd.f32 0.0, %v1501
        %1503 = vmatprep.mubr.f32.mxu0 0.0
        %1504 = vmatmul.mubr.f32.gmra.mrb[0].mxu0 %v1407
        %v1505 = vpop.f32.mrb[0].mxu0
        %v1506 = vadd.f32 0.0, %v1505
        %v1507 = vpop.f32.mrb[0].mxu0
        %v1508 = vadd.f32 0.0, %v1507
        %1509 = vmatprep.mubr.f32.mxu0 0.0
        %1510 = vmatmul.mubr.f32.gmra.mrb[0].mxu0 %v1410
        %v1511 = vpop.f32.mrb[0].mxu0
        %v1512 = vadd.f32 0.0, %v1511
        %v1513 = vpop.f32.mrb[0].mxu0
        %v1514 = vadd.f32 0.0, %v1513
        %1515 = vmatprep.mubr.f32.mxu0 0.0
        %1516 = vmatmul.mubr.f32.gmra.mrb[0].mxu0 %v1413
        %v1517 = vpop.f32.mrb[0].mxu0
        %v1518 = vadd.f32 0.0, %v1517
        %v1519 = vpop.f32.mrb[0].mxu0
        %v1520 = vadd.f32 0.0, %v1519
        %1521 = vmatprep.mubr.f32.mxu0 0.0
        %1522 = vmatmul.mubr.f32.gmra.mrb[0].mxu0 %v1416
        %v1523 = vpop.f32.mrb[0].mxu0
        %v1524 = vadd.f32 0.0, %v1523
        %v1525 = vpop.f32.mrb[0].mxu0
        %v1526 = vadd.f32 0.0, %v1525
        %1527 = vmatprep.mubr.f32.mxu0 0.0
        %1528 = vmatmul.mubr.f32.gmra.mrb[0].mxu0 %v1419
        %v1529 = vpop.f32.mrb[0].mxu0
        %v1530 = vadd.f32 0.0, %v1529
        %v1531 = vpop.f32.mrb[0].mxu0
        %v1532 = vadd.f32 0.0, %v1531
        %1533 = vdwg.mxu0
        %v1534 = vmax.f32 %v1494, 0.0
        %v1535 = vmax.f32 %v1496, 0.0
        %v1536 = vmax.f32 %v1500, 0.0
        %v1537 = vmax.f32 %v1502, 0.0
        %v1538 = vmax.f32 %v1506, 0.0
        %v1539 = vmax.f32 %v1508, 0.0
        %v1540 = vmax.f32 %v1512, 0.0
        %v1541 = vmax.f32 %v1514, 0.0
        %v1542 = vmax.f32 %v1518, 0.0
        %v1543 = vmax.f32 %v1520, 0.0
        %v1544 = vmax.f32 %v1524, 0.0
        %v1545 = vmax.f32 %v1526, 0.0
        %v1546 = vmax.f32 %v1530, 0.0
        %v1547 = vmax.f32 %v1532, 0.0
        %1548 = vst [vmem:[#allocation2] sm:$0xff] %v1534
        %vm1549 = vcmask 670720
        %1550 = vst.msk [vmem:[#allocation2 + $0x8] sm:$0xff] %vm1549, %v1535
        %1551 = vst [vmem:[#allocation2 + $0x10] sm:$0xff] %v1536
        %1552 = vst.msk [vmem:[#allocation2 + $0x18] sm:$0xff] %vm1549, %v1537
        %1553 = vst [vmem:[#allocation2 + $0x20] sm:$0xff] %v1538
        %1554 = vst.msk [vmem:[#allocation2 + $0x28] sm:$0xff] %vm1549, %v1539
        %1555 = vst [vmem:[#allocation2 + $0x30] sm:$0xff] %v1540
        %1556 = vst.msk [vmem:[#allocation2 + $0x38] sm:$0xff] %vm1549, %v1541
        %1557 = vst [vmem:[#allocation2 + $0x40] sm:$0xff] %v1542
        %1558 = vst.msk [vmem:[#allocation2 + $0x48] sm:$0xff] %vm1549, %v1543
        %1559 = vst [vmem:[#allocation2 + $0x50] sm:$0xff] %v1544
        %1560 = vst.msk [vmem:[#allocation2 + $0x58] sm:$0xff] %vm1549, %v1545
        %1561 = vst [vmem:[#allocation2 + $0x60] sm:$0xff] %v1546
        %1562 = vst.msk [vmem:[#allocation2 + $0x68] sm:$0xff] %vm1549, %v1547
        %s1563 = sld [smem:[#allocation8 + $0x1]]
        %v1564 = vstv %s1563
        %v1565 = vld [vmem:[%s506] sm:$0xff]
        %v1566 = vld [vmem:[%s506 + $0x8] sm:$0xff]
        %v1567 = vld [vmem:[%s506 + $0x10] sm:$0xff]
        %v1568 = vld [vmem:[%s506 + $0x18] sm:$0xff]
        %v1569 = vld [vmem:[%s506 + $0x20] sm:$0xff]
        %v1570 = vld [vmem:[%s506 + $0x28] sm:$0xff]
        %v1571 = vld [vmem:[%s506 + $0x30] sm:$0xff]
        %v1572 = vld [vmem:[%s506 + $0x38] sm:$0xff]
        %v1573 = vld [vmem:[%s506 + $0x40] sm:$0xff]
        %v1574 = vld [vmem:[%s506 + $0x48] sm:$0xff]
        %v1575 = vld [vmem:[%s506 + $0x50] sm:$0xff]
        %v1576 = vld [vmem:[%s506 + $0x58] sm:$0xff]
        %v1577 = vld [vmem:[%s506 + $0x60] sm:$0xff]
        %s1578 = sld [smem:[#allocation3 + $0x9]]
        %v1579 = vstv %s1578
        %v1580 = vmul.f32 %v1565, %v1579
        %v1581 = vmul.f32 %v1566, %v1579
        %v1582 = vmul.f32 %v1567, %v1579
        %v1583 = vmul.f32 %v1568, %v1579
        %v1584 = vmul.f32 %v1569, %v1579
        %v1585 = vmul.f32 %v1570, %v1579
        %v1586 = vmul.f32 %v1571, %v1579
        %v1587 = vmul.f32 %v1572, %v1579
        %v1588 = vmul.f32 %v1573, %v1579
        %v1589 = vmul.f32 %v1574, %v1579
        %v1590 = vmul.f32 %v1575, %v1579
        %v1591 = vmul.f32 %v1576, %v1579
        %v1592 = vmul.f32 %v1577, %v1579
        %v1593 = vadd.f32 %v1564, %v1580
        %v1594 = vadd.f32 %v1564, %v1581
        %v1595 = vadd.f32 %v1564, %v1582
        %v1596 = vadd.f32 %v1564, %v1583
        %v1597 = vadd.f32 %v1564, %v1584
        %v1598 = vadd.f32 %v1564, %v1585
        %v1599 = vadd.f32 %v1564, %v1586
        %v1600 = vadd.f32 %v1564, %v1587
        %v1601 = vadd.f32 %v1564, %v1588
        %v1602 = vadd.f32 %v1564, %v1589
        %v1603 = vadd.f32 %v1564, %v1590
        %v1604 = vadd.f32 %v1564, %v1591
        %v1605 = vadd.f32 %v1564, %v1592
        %s1606 = sld [smem:[#allocation3 + $0xa]]
        %v1607 = vstv %s1606
        %v1608 = vmul.f32 %v1565, %v1607
        %v1609 = vmul.f32 %v1566, %v1607
        %v1610 = vmul.f32 %v1567, %v1607
        %v1611 = vmul.f32 %v1568, %v1607
        %v1612 = vmul.f32 %v1569, %v1607
        %v1613 = vmul.f32 %v1570, %v1607
        %v1614 = vmul.f32 %v1571, %v1607
        %v1615 = vmul.f32 %v1572, %v1607
        %v1616 = vmul.f32 %v1573, %v1607
        %v1617 = vmul.f32 %v1574, %v1607
        %v1618 = vmul.f32 %v1575, %v1607
        %v1619 = vmul.f32 %v1576, %v1607
        %v1620 = vmul.f32 %v1577, %v1607
        %1634 = vrot.lane.b32.xlu0 %v1608, 127
        %v1635 = vpop.permute.xlu0 %1634
        %1636 = vrot.lane.b32.xlu0 %v1609, 127
        %v1637 = vpop.permute.xlu0 %1636
        %1638 = vrot.lane.b32.xlu0 %v1610, 127
        %v1639 = vpop.permute.xlu0 %1638
        %1640 = vrot.lane.b32.xlu0 %v1611, 127
        %v1641 = vpop.permute.xlu0 %1640
        %1642 = vrot.lane.b32.xlu0 %v1612, 127
        %v1643 = vpop.permute.xlu0 %1642
        %1644 = vrot.lane.b32.xlu0 %v1613, 127
        %v1645 = vpop.permute.xlu0 %1644
        %1646 = vrot.lane.b32.xlu0 %v1614, 127
        %v1647 = vpop.permute.xlu0 %1646
        %1648 = vrot.lane.b32.xlu0 %v1615, 127
        %v1649 = vpop.permute.xlu0 %1648
        %1650 = vrot.lane.b32.xlu0 %v1616, 127
        %v1651 = vpop.permute.xlu0 %1650
        %1652 = vrot.lane.b32.xlu0 %v1617, 127
        %v1653 = vpop.permute.xlu0 %1652
        %1654 = vrot.lane.b32.xlu0 %v1618, 127
        %v1655 = vpop.permute.xlu0 %1654
        %1656 = vrot.lane.b32.xlu0 %v1619, 127
        %v1657 = vpop.permute.xlu0 %1656
        %1658 = vrot.lane.b32.xlu0 %v1620, 127
        %v1659 = vpop.permute.xlu0 %1658
        %v1673 = vadd.f32 %v1593, %v1635
        %v1674 = vadd.f32 %v1594, %v1637
        %v1675 = vadd.f32 %v1595, %v1639
        %v1676 = vadd.f32 %v1596, %v1641
        %v1677 = vadd.f32 %v1597, %v1643
        %v1678 = vadd.f32 %v1598, %v1645
        %v1679 = vadd.f32 %v1599, %v1647
        %v1680 = vadd.f32 %v1600, %v1649
        %v1681 = vadd.f32 %v1601, %v1651
        %v1682 = vadd.f32 %v1602, %v1653
        %v1683 = vadd.f32 %v1603, %v1655
        %v1684 = vadd.f32 %v1604, %v1657
        %v1685 = vadd.f32 %v1605, %v1659
        %s1686 = sld [smem:[#allocation3 + $0xb]]
        %v1687 = vstv %s1686
        %v1688 = vmul.f32 %v1565, %v1687
        %v1689 = vmul.f32 %v1566, %v1687
        %v1690 = vmul.f32 %v1567, %v1687
        %v1691 = vmul.f32 %v1568, %v1687
        %v1692 = vmul.f32 %v1569, %v1687
        %v1693 = vmul.f32 %v1570, %v1687
        %v1694 = vmul.f32 %v1571, %v1687
        %v1695 = vmul.f32 %v1572, %v1687
        %v1696 = vmul.f32 %v1573, %v1687
        %v1697 = vmul.f32 %v1574, %v1687
        %v1698 = vmul.f32 %v1575, %v1687
        %v1699 = vmul.f32 %v1576, %v1687
        %v1700 = vmul.f32 %v1577, %v1687
        %1714 = vrot.lane.b32.xlu0 %v1688, 126
        %v1715 = vpop.permute.xlu0 %1714
        %1716 = vrot.lane.b32.xlu0 %v1689, 126
        %v1717 = vpop.permute.xlu0 %1716
        %1718 = vrot.lane.b32.xlu0 %v1690, 126
        %v1719 = vpop.permute.xlu0 %1718
        %1720 = vrot.lane.b32.xlu0 %v1691, 126
        %v1721 = vpop.permute.xlu0 %1720
        %1722 = vrot.lane.b32.xlu0 %v1692, 126
        %v1723 = vpop.permute.xlu0 %1722
        %1724 = vrot.lane.b32.xlu0 %v1693, 126
        %v1725 = vpop.permute.xlu0 %1724
        %1726 = vrot.lane.b32.xlu0 %v1694, 126
        %v1727 = vpop.permute.xlu0 %1726
        %1728 = vrot.lane.b32.xlu0 %v1695, 126
        %v1729 = vpop.permute.xlu0 %1728
        %1730 = vrot.lane.b32.xlu0 %v1696, 126
        %v1731 = vpop.permute.xlu0 %1730
        %1732 = vrot.lane.b32.xlu0 %v1697, 126
        %v1733 = vpop.permute.xlu0 %1732
        %1734 = vrot.lane.b32.xlu0 %v1698, 126
        %v1735 = vpop.permute.xlu0 %1734
        %1736 = vrot.lane.b32.xlu0 %v1699, 126
        %v1737 = vpop.permute.xlu0 %1736
        %1738 = vrot.lane.b32.xlu0 %v1700, 126
        %v1739 = vpop.permute.xlu0 %1738
        %v1753 = vadd.f32 %v1673, %v1715
        %v1754 = vadd.f32 %v1674, %v1717
        %v1755 = vadd.f32 %v1675, %v1719
        %v1756 = vadd.f32 %v1676, %v1721
        %v1757 = vadd.f32 %v1677, %v1723
        %v1758 = vadd.f32 %v1678, %v1725
        %v1759 = vadd.f32 %v1679, %v1727
        %v1760 = vadd.f32 %v1680, %v1729
        %v1761 = vadd.f32 %v1681, %v1731
        %v1762 = vadd.f32 %v1682, %v1733
        %v1763 = vadd.f32 %v1683, %v1735
        %v1764 = vadd.f32 %v1684, %v1737
        %v1765 = vadd.f32 %v1685, %v1739
        %v1766 = vld [vmem:[%s506 + $0x1] sm:$0xff]
        %v1767 = vld [vmem:[%s506 + $0x9] sm:$0xff]
        %v1768 = vld [vmem:[%s506 + $0x11] sm:$0xff]
        %v1769 = vld [vmem:[%s506 + $0x19] sm:$0xff]
        %v1770 = vld [vmem:[%s506 + $0x21] sm:$0xff]
        %v1771 = vld [vmem:[%s506 + $0x29] sm:$0xff]
        %v1772 = vld [vmem:[%s506 + $0x31] sm:$0xff]
        %v1773 = vld [vmem:[%s506 + $0x39] sm:$0xff]
        %v1774 = vld [vmem:[%s506 + $0x41] sm:$0xff]
        %v1775 = vld [vmem:[%s506 + $0x49] sm:$0xff]
        %v1776 = vld [vmem:[%s506 + $0x51] sm:$0xff]
        %v1777 = vld [vmem:[%s506 + $0x59] sm:$0xff]
        %v1778 = vld [vmem:[%s506 + $0x61] sm:$0xff]
        %s1779 = sld [smem:[#allocation3 + $0xc]]
        %v1780 = vstv %s1779
        %v1781 = vmul.f32 %v1766, %v1780
        %v1782 = vmul.f32 %v1767, %v1780
        %v1783 = vmul.f32 %v1768, %v1780
        %v1784 = vmul.f32 %v1769, %v1780
        %v1785 = vmul.f32 %v1770, %v1780
        %v1786 = vmul.f32 %v1771, %v1780
        %v1787 = vmul.f32 %v1772, %v1780
        %v1788 = vmul.f32 %v1773, %v1780
        %v1789 = vmul.f32 %v1774, %v1780
        %v1790 = vmul.f32 %v1775, %v1780
        %v1791 = vmul.f32 %v1776, %v1780
        %v1792 = vmul.f32 %v1777, %v1780
        %v1793 = vmul.f32 %v1778, %v1780
        %v1794 = vadd.f32 %v1753, %v1781
        %v1795 = vadd.f32 %v1754, %v1782
        %v1796 = vadd.f32 %v1755, %v1783
        %v1797 = vadd.f32 %v1756, %v1784
        %v1798 = vadd.f32 %v1757, %v1785
        %v1799 = vadd.f32 %v1758, %v1786
        %v1800 = vadd.f32 %v1759, %v1787
        %v1801 = vadd.f32 %v1760, %v1788
        %v1802 = vadd.f32 %v1761, %v1789
        %v1803 = vadd.f32 %v1762, %v1790
        %v1804 = vadd.f32 %v1763, %v1791
        %v1805 = vadd.f32 %v1764, %v1792
        %v1806 = vadd.f32 %v1765, %v1793
        %s1807 = sld [smem:[#allocation3 + $0xd]]
        %v1808 = vstv %s1807
        %v1809 = vmul.f32 %v1766, %v1808
        %v1810 = vmul.f32 %v1767, %v1808
        %v1811 = vmul.f32 %v1768, %v1808
        %v1812 = vmul.f32 %v1769, %v1808
        %v1813 = vmul.f32 %v1770, %v1808
        %v1814 = vmul.f32 %v1771, %v1808
        %v1815 = vmul.f32 %v1772, %v1808
        %v1816 = vmul.f32 %v1773, %v1808
        %v1817 = vmul.f32 %v1774, %v1808
        %v1818 = vmul.f32 %v1775, %v1808
        %v1819 = vmul.f32 %v1776, %v1808
        %v1820 = vmul.f32 %v1777, %v1808
        %v1821 = vmul.f32 %v1778, %v1808
        %1835 = vrot.lane.b32.xlu0 %v1809, 127
        %v1836 = vpop.permute.xlu0 %1835
        %1837 = vrot.lane.b32.xlu0 %v1810, 127
        %v1838 = vpop.permute.xlu0 %1837
        %1839 = vrot.lane.b32.xlu0 %v1811, 127
        %v1840 = vpop.permute.xlu0 %1839
        %1841 = vrot.lane.b32.xlu0 %v1812, 127
        %v1842 = vpop.permute.xlu0 %1841
        %1843 = vrot.lane.b32.xlu0 %v1813, 127
        %v1844 = vpop.permute.xlu0 %1843
        %1845 = vrot.lane.b32.xlu0 %v1814, 127
        %v1846 = vpop.permute.xlu0 %1845
        %1847 = vrot.lane.b32.xlu0 %v1815, 127
        %v1848 = vpop.permute.xlu0 %1847
        %1849 = vrot.lane.b32.xlu0 %v1816, 127
        %v1850 = vpop.permute.xlu0 %1849
        %1851 = vrot.lane.b32.xlu0 %v1817, 127
        %v1852 = vpop.permute.xlu0 %1851
        %1853 = vrot.lane.b32.xlu0 %v1818, 127
        %v1854 = vpop.permute.xlu0 %1853
        %1855 = vrot.lane.b32.xlu0 %v1819, 127
        %v1856 = vpop.permute.xlu0 %1855
        %1857 = vrot.lane.b32.xlu0 %v1820, 127
        %v1858 = vpop.permute.xlu0 %1857
        %1859 = vrot.lane.b32.xlu0 %v1821, 127
        %v1860 = vpop.permute.xlu0 %1859
        %v1874 = vadd.f32 %v1794, %v1836
        %v1875 = vadd.f32 %v1795, %v1838
        %v1876 = vadd.f32 %v1796, %v1840
        %v1877 = vadd.f32 %v1797, %v1842
        %v1878 = vadd.f32 %v1798, %v1844
        %v1879 = vadd.f32 %v1799, %v1846
        %v1880 = vadd.f32 %v1800, %v1848
        %v1881 = vadd.f32 %v1801, %v1850
        %v1882 = vadd.f32 %v1802, %v1852
        %v1883 = vadd.f32 %v1803, %v1854
        %v1884 = vadd.f32 %v1804, %v1856
        %v1885 = vadd.f32 %v1805, %v1858
        %v1886 = vadd.f32 %v1806, %v1860
        %s1887 = sld [smem:[#allocation3 + $0xe]]
        %v1888 = vstv %s1887
        %v1889 = vmul.f32 %v1766, %v1888
        %v1890 = vmul.f32 %v1767, %v1888
        %v1891 = vmul.f32 %v1768, %v1888
        %v1892 = vmul.f32 %v1769, %v1888
        %v1893 = vmul.f32 %v1770, %v1888
        %v1894 = vmul.f32 %v1771, %v1888
        %v1895 = vmul.f32 %v1772, %v1888
        %v1896 = vmul.f32 %v1773, %v1888
        %v1897 = vmul.f32 %v1774, %v1888
        %v1898 = vmul.f32 %v1775, %v1888
        %v1899 = vmul.f32 %v1776, %v1888
        %v1900 = vmul.f32 %v1777, %v1888
        %v1901 = vmul.f32 %v1778, %v1888
        %1915 = vrot.lane.b32.xlu0 %v1889, 126
        %v1916 = vpop.permute.xlu0 %1915
        %1917 = vrot.lane.b32.xlu0 %v1890, 126
        %v1918 = vpop.permute.xlu0 %1917
        %1919 = vrot.lane.b32.xlu0 %v1891, 126
        %v1920 = vpop.permute.xlu0 %1919
        %1921 = vrot.lane.b32.xlu0 %v1892, 126
        %v1922 = vpop.permute.xlu0 %1921
        %1923 = vrot.lane.b32.xlu0 %v1893, 126
        %v1924 = vpop.permute.xlu0 %1923
        %1925 = vrot.lane.b32.xlu0 %v1894, 126
        %v1926 = vpop.permute.xlu0 %1925
        %1927 = vrot.lane.b32.xlu0 %v1895, 126
        %v1928 = vpop.permute.xlu0 %1927
        %1929 = vrot.lane.b32.xlu0 %v1896, 126
        %v1930 = vpop.permute.xlu0 %1929
        %1931 = vrot.lane.b32.xlu0 %v1897, 126
        %v1932 = vpop.permute.xlu0 %1931
        %1933 = vrot.lane.b32.xlu0 %v1898, 126
        %v1934 = vpop.permute.xlu0 %1933
        %1935 = vrot.lane.b32.xlu0 %v1899, 126
        %v1936 = vpop.permute.xlu0 %1935
        %1937 = vrot.lane.b32.xlu0 %v1900, 126
        %v1938 = vpop.permute.xlu0 %1937
        %1939 = vrot.lane.b32.xlu0 %v1901, 126
        %v1940 = vpop.permute.xlu0 %1939
        %v1954 = vadd.f32 %v1874, %v1916
        %v1955 = vadd.f32 %v1875, %v1918
        %v1956 = vadd.f32 %v1876, %v1920
        %v1957 = vadd.f32 %v1877, %v1922
        %v1958 = vadd.f32 %v1878, %v1924
        %v1959 = vadd.f32 %v1879, %v1926
        %v1960 = vadd.f32 %v1880, %v1928
        %v1961 = vadd.f32 %v1881, %v1930
        %v1962 = vadd.f32 %v1882, %v1932
        %v1963 = vadd.f32 %v1883, %v1934
        %v1964 = vadd.f32 %v1884, %v1936
        %v1965 = vadd.f32 %v1885, %v1938
        %v1966 = vadd.f32 %v1886, %v1940
        %v1967 = vld [vmem:[%s506 + $0x2] sm:$0xff]
        %v1968 = vld [vmem:[%s506 + $0xa] sm:$0xff]
        %v1969 = vld [vmem:[%s506 + $0x12] sm:$0xff]
        %v1970 = vld [vmem:[%s506 + $0x1a] sm:$0xff]
        %v1971 = vld [vmem:[%s506 + $0x22] sm:$0xff]
        %v1972 = vld [vmem:[%s506 + $0x2a] sm:$0xff]
        %v1973 = vld [vmem:[%s506 + $0x32] sm:$0xff]
        %v1974 = vld [vmem:[%s506 + $0x3a] sm:$0xff]
        %v1975 = vld [vmem:[%s506 + $0x42] sm:$0xff]
        %v1976 = vld [vmem:[%s506 + $0x4a] sm:$0xff]
        %v1977 = vld [vmem:[%s506 + $0x52] sm:$0xff]
        %v1978 = vld [vmem:[%s506 + $0x5a] sm:$0xff]
        %v1979 = vld [vmem:[%s506 + $0x62] sm:$0xff]
        %s1980 = sld [smem:[#allocation3 + $0xf]]
        %v1981 = vstv %s1980
        %v1982 = vmul.f32 %v1967, %v1981
        %v1983 = vmul.f32 %v1968, %v1981
        %v1984 = vmul.f32 %v1969, %v1981
        %v1985 = vmul.f32 %v1970, %v1981
        %v1986 = vmul.f32 %v1971, %v1981
        %v1987 = vmul.f32 %v1972, %v1981
        %v1988 = vmul.f32 %v1973, %v1981
        %v1989 = vmul.f32 %v1974, %v1981
        %v1990 = vmul.f32 %v1975, %v1981
        %v1991 = vmul.f32 %v1976, %v1981
        %v1992 = vmul.f32 %v1977, %v1981
        %v1993 = vmul.f32 %v1978, %v1981
        %v1994 = vmul.f32 %v1979, %v1981
        %v1995 = vadd.f32 %v1954, %v1982
        %v1996 = vadd.f32 %v1955, %v1983
        %v1997 = vadd.f32 %v1956, %v1984
        %v1998 = vadd.f32 %v1957, %v1985
        %v1999 = vadd.f32 %v1958, %v1986
        %v2000 = vadd.f32 %v1959, %v1987
        %v2001 = vadd.f32 %v1960, %v1988
        %v2002 = vadd.f32 %v1961, %v1989
        %v2003 = vadd.f32 %v1962, %v1990
        %v2004 = vadd.f32 %v1963, %v1991
        %v2005 = vadd.f32 %v1964, %v1992
        %v2006 = vadd.f32 %v1965, %v1993
        %v2007 = vadd.f32 %v1966, %v1994
        %s2008 = sld [smem:[#allocation3 + $0x10]]
        %v2009 = vstv %s2008
        %v2010 = vmul.f32 %v1967, %v2009
        %v2011 = vmul.f32 %v1968, %v2009
        %v2012 = vmul.f32 %v1969, %v2009
        %v2013 = vmul.f32 %v1970, %v2009
        %v2014 = vmul.f32 %v1971, %v2009
        %v2015 = vmul.f32 %v1972, %v2009
        %v2016 = vmul.f32 %v1973, %v2009
        %v2017 = vmul.f32 %v1974, %v2009
        %v2018 = vmul.f32 %v1975, %v2009
        %v2019 = vmul.f32 %v1976, %v2009
        %v2020 = vmul.f32 %v1977, %v2009
        %v2021 = vmul.f32 %v1978, %v2009
        %v2022 = vmul.f32 %v1979, %v2009
        %2036 = vrot.lane.b32.xlu0 %v2010, 127
        %v2037 = vpop.permute.xlu0 %2036
        %2038 = vrot.lane.b32.xlu0 %v2011, 127
        %v2039 = vpop.permute.xlu0 %2038
        %2040 = vrot.lane.b32.xlu0 %v2012, 127
        %v2041 = vpop.permute.xlu0 %2040
        %2042 = vrot.lane.b32.xlu0 %v2013, 127
        %v2043 = vpop.permute.xlu0 %2042
        %2044 = vrot.lane.b32.xlu0 %v2014, 127
        %v2045 = vpop.permute.xlu0 %2044
        %2046 = vrot.lane.b32.xlu0 %v2015, 127
        %v2047 = vpop.permute.xlu0 %2046
        %2048 = vrot.lane.b32.xlu0 %v2016, 127
        %v2049 = vpop.permute.xlu0 %2048
        %2050 = vrot.lane.b32.xlu0 %v2017, 127
        %v2051 = vpop.permute.xlu0 %2050
        %2052 = vrot.lane.b32.xlu0 %v2018, 127
        %v2053 = vpop.permute.xlu0 %2052
        %2054 = vrot.lane.b32.xlu0 %v2019, 127
        %v2055 = vpop.permute.xlu0 %2054
        %2056 = vrot.lane.b32.xlu0 %v2020, 127
        %v2057 = vpop.permute.xlu0 %2056
        %2058 = vrot.lane.b32.xlu0 %v2021, 127
        %v2059 = vpop.permute.xlu0 %2058
        %2060 = vrot.lane.b32.xlu0 %v2022, 127
        %v2061 = vpop.permute.xlu0 %2060
        %v2075 = vadd.f32 %v1995, %v2037
        %v2076 = vadd.f32 %v1996, %v2039
        %v2077 = vadd.f32 %v1997, %v2041
        %v2078 = vadd.f32 %v1998, %v2043
        %v2079 = vadd.f32 %v1999, %v2045
        %v2080 = vadd.f32 %v2000, %v2047
        %v2081 = vadd.f32 %v2001, %v2049
        %v2082 = vadd.f32 %v2002, %v2051
        %v2083 = vadd.f32 %v2003, %v2053
        %v2084 = vadd.f32 %v2004, %v2055
        %v2085 = vadd.f32 %v2005, %v2057
        %v2086 = vadd.f32 %v2006, %v2059
        %v2087 = vadd.f32 %v2007, %v2061
        %s2088 = sld [smem:[#allocation3 + $0x11]]
        %v2089 = vstv %s2088
        %v2090 = vmul.f32 %v1967, %v2089
        %v2091 = vmul.f32 %v1968, %v2089
        %v2092 = vmul.f32 %v1969, %v2089
        %v2093 = vmul.f32 %v1970, %v2089
        %v2094 = vmul.f32 %v1971, %v2089
        %v2095 = vmul.f32 %v1972, %v2089
        %v2096 = vmul.f32 %v1973, %v2089
        %v2097 = vmul.f32 %v1974, %v2089
        %v2098 = vmul.f32 %v1975, %v2089
        %v2099 = vmul.f32 %v1976, %v2089
        %v2100 = vmul.f32 %v1977, %v2089
        %v2101 = vmul.f32 %v1978, %v2089
        %v2102 = vmul.f32 %v1979, %v2089
        %2116 = vrot.lane.b32.xlu0 %v2090, 126
        %v2117 = vpop.permute.xlu0 %2116
        %2118 = vrot.lane.b32.xlu0 %v2091, 126
        %v2119 = vpop.permute.xlu0 %2118
        %2120 = vrot.lane.b32.xlu0 %v2092, 126
        %v2121 = vpop.permute.xlu0 %2120
        %2122 = vrot.lane.b32.xlu0 %v2093, 126
        %v2123 = vpop.permute.xlu0 %2122
        %2124 = vrot.lane.b32.xlu0 %v2094, 126
        %v2125 = vpop.permute.xlu0 %2124
        %2126 = vrot.lane.b32.xlu0 %v2095, 126
        %v2127 = vpop.permute.xlu0 %2126
        %2128 = vrot.lane.b32.xlu0 %v2096, 126
        %v2129 = vpop.permute.xlu0 %2128
        %2130 = vrot.lane.b32.xlu0 %v2097, 126
        %v2131 = vpop.permute.xlu0 %2130
        %2132 = vrot.lane.b32.xlu0 %v2098, 126
        %v2133 = vpop.permute.xlu0 %2132
        %2134 = vrot.lane.b32.xlu0 %v2099, 126
        %v2135 = vpop.permute.xlu0 %2134
        %2136 = vrot.lane.b32.xlu0 %v2100, 126
        %v2137 = vpop.permute.xlu0 %2136
        %2138 = vrot.lane.b32.xlu0 %v2101, 126
        %v2139 = vpop.permute.xlu0 %2138
        %2140 = vrot.lane.b32.xlu0 %v2102, 126
        %v2141 = vpop.permute.xlu0 %2140
        %v2155 = vadd.f32 %v2075, %v2117
        %v2156 = vadd.f32 %v2076, %v2119
        %v2157 = vadd.f32 %v2077, %v2121
        %v2158 = vadd.f32 %v2078, %v2123
        %v2159 = vadd.f32 %v2079, %v2125
        %v2160 = vadd.f32 %v2080, %v2127
        %v2161 = vadd.f32 %v2081, %v2129
        %v2162 = vadd.f32 %v2082, %v2131
        %v2163 = vadd.f32 %v2083, %v2133
        %v2164 = vadd.f32 %v2084, %v2135
        %v2165 = vadd.f32 %v2085, %v2137
        %v2166 = vadd.f32 %v2086, %v2139
        %v2167 = vadd.f32 %v2087, %v2141
        %v2181 = vrot.slane %v2155, 1
        %v2182 = vrot.slane %v2156, 1
        %v2183 = vsel %vm1125, %v2181, %v2182
        %v2184 = vrot.slane %v2157, 1
        %v2185 = vsel %vm1125, %v2182, %v2184
        %v2186 = vrot.slane %v2158, 1
        %v2187 = vsel %vm1125, %v2184, %v2186
        %v2188 = vrot.slane %v2159, 1
        %v2189 = vsel %vm1125, %v2186, %v2188
        %v2190 = vrot.slane %v2160, 1
        %v2191 = vsel %vm1125, %v2188, %v2190
        %v2192 = vrot.slane %v2161, 1
        %v2193 = vsel %vm1125, %v2190, %v2192
        %v2194 = vrot.slane %v2162, 1
        %v2195 = vsel %vm1125, %v2192, %v2194
        %v2196 = vrot.slane %v2163, 1
        %v2197 = vsel %vm1125, %v2194, %v2196
        %v2198 = vrot.slane %v2164, 1
        %v2199 = vsel %vm1125, %v2196, %v2198
        %v2200 = vrot.slane %v2165, 1
        %v2201 = vsel %vm1125, %v2198, %v2200
        %v2202 = vrot.slane %v2166, 1
        %v2203 = vsel %vm1125, %v2200, %v2202
        %v2204 = vrot.slane %v2167, 1
        %v2205 = vsel %vm1125, %v2202, %v2204
        %v2219 = vmax.f32 %v2155, %v2183
        %v2220 = vmax.f32 %v2156, %v2185
        %v2221 = vmax.f32 %v2157, %v2187
        %v2222 = vmax.f32 %v2158, %v2189
        %v2223 = vmax.f32 %v2159, %v2191
        %v2224 = vmax.f32 %v2160, %v2193
        %v2225 = vmax.f32 %v2161, %v2195
        %v2226 = vmax.f32 %v2162, %v2197
        %v2227 = vmax.f32 %v2163, %v2199
        %v2228 = vmax.f32 %v2164, %v2201
        %v2229 = vmax.f32 %v2165, %v2203
        %v2230 = vmax.f32 %v2166, %v2205
        %v2231 = vmax.f32 %v2167, %v2204
        %2245 = vrot.lane.b32.xlu0 %v2219, 127
        %v2246 = vpop.permute.xlu0 %2245
        %2247 = vrot.lane.b32.xlu0 %v2220, 127
        %v2248 = vpop.permute.xlu0 %2247
        %2249 = vrot.lane.b32.xlu0 %v2221, 127
        %v2250 = vpop.permute.xlu0 %2249
        %2251 = vrot.lane.b32.xlu0 %v2222, 127
        %v2252 = vpop.permute.xlu0 %2251
        %2253 = vrot.lane.b32.xlu0 %v2223, 127
        %v2254 = vpop.permute.xlu0 %2253
        %2255 = vrot.lane.b32.xlu0 %v2224, 127
        %v2256 = vpop.permute.xlu0 %2255
        %2257 = vrot.lane.b32.xlu0 %v2225, 127
        %v2258 = vpop.permute.xlu0 %2257
        %2259 = vrot.lane.b32.xlu0 %v2226, 127
        %v2260 = vpop.permute.xlu0 %2259
        %2261 = vrot.lane.b32.xlu0 %v2227, 127
        %v2262 = vpop.permute.xlu0 %2261
        %2263 = vrot.lane.b32.xlu0 %v2228, 127
        %v2264 = vpop.permute.xlu0 %2263
        %2265 = vrot.lane.b32.xlu0 %v2229, 127
        %v2266 = vpop.permute.xlu0 %2265
        %2267 = vrot.lane.b32.xlu0 %v2230, 127
        %v2268 = vpop.permute.xlu0 %2267
        %2269 = vrot.lane.b32.xlu0 %v2231, 127
        %v2270 = vpop.permute.xlu0 %2269
        %v2284 = vmax.f32 %v2219, %v2246
        %v2285 = vmax.f32 %v2220, %v2248
        %v2286 = vmax.f32 %v2221, %v2250
        %v2287 = vmax.f32 %v2222, %v2252
        %v2288 = vmax.f32 %v2223, %v2254
        %v2289 = vmax.f32 %v2224, %v2256
        %v2290 = vmax.f32 %v2225, %v2258
        %v2291 = vmax.f32 %v2226, %v2260
        %v2292 = vmax.f32 %v2227, %v2262
        %v2293 = vmax.f32 %v2228, %v2264
        %v2294 = vmax.f32 %v2229, %v2266
        %v2295 = vmax.f32 %v2230, %v2268
        %v2296 = vmax.f32 %v2231, %v2270
        %v2297 = vld [vmem:[#allocation9] sm:$0xff]
        %v2298 = vld [vmem:[#allocation9 + $0x8] sm:$0xff]
        %v2299 = vld [vmem:[#allocation9 + $0x10] sm:$0xff]
        %v2300 = vld [vmem:[#allocation9 + $0x18] sm:$0xff]
        %v2301 = vld [vmem:[#allocation9 + $0x20] sm:$0xff]
        %v2302 = vld [vmem:[#allocation9 + $0x28] sm:$0xff]
        %v2303 = vld [vmem:[#allocation9 + $0x30] sm:$0xff]
        %v2305 = vsel %vm1249, %v2297, 0
        %v2308 = vsel %vm1249, %v2298, 0
        %v2311 = vsel %vm1249, %v2299, 0
        %v2314 = vsel %vm1249, %v2300, 0
        %v2317 = vsel %vm1249, %v2301, 0
        %v2320 = vsel %vm1249, %v2302, 0
        %v2323 = vsel %vm1249, %v2303, 0
        %v2326 = vsel %vm1125, %v2296, 0
        %2328 = vmatprep.subr.mxu0 0.0
        %2329 = vmatpush1.msra.mxu0 %v2284
        %2330 = vmatprep.subr.mxu0 0.0
        %2331 = vmatpush1.msra.mxu0 %v2285
        %2332 = vmatprep.subr.mxu0 0.0
        %2333 = vmatpush1.msra.mxu0 %v2286
        %2334 = vmatprep.subr.mxu0 0.0
        %2335 = vmatpush1.msra.mxu0 %v2287
        %2336 = vmatprep.subr.mxu0 0.0
        %2337 = vmatpush1.msra.mxu0 %v2288
        %2338 = vmatprep.subr.mxu0 0.0
        %2339 = vmatpush1.msra.mxu0 %v2289
        %2340 = vmatprep.subr.mxu0 0.0
        %2341 = vmatpush1.msra.mxu0 %v2290
        %2342 = vmatprep.subr.mxu0 0.0
        %2343 = vmatpush1.msra.mxu0 %v2291
        %2344 = vmatprep.subr.mxu0 0.0
        %2345 = vmatpush1.msra.mxu0 %v2292
        %2346 = vmatprep.subr.mxu0 0.0
        %2347 = vmatpush1.msra.mxu0 %v2293
        %2348 = vmatprep.subr.mxu0 0.0
        %2349 = vmatpush1.msra.mxu0 %v2294
        %2350 = vmatprep.subr.mxu0 0.0
        %2351 = vmatpush1.msra.mxu0 %v2295
        %2352 = vmatprep.subr.mxu0 0.0
        %2353 = vmatpush1.msra.mxu0 %v2326
        %2354 = vmatprep.subr.mxu0 0.0
        %2355 = vmatpush1.msra.mxu0 0.0
        %2356 = vmatprep.subr.mxu0 0.0
        %2357 = vmatpush1.msra.mxu0 0.0
        %2358 = vmatprep.subr.mxu0 0.0
        %2359 = vmatpush1.msra.mxu0 0.0
        %2360 = vmatprep.subr.mxu0 0.0
        %2361 = vmatpush1.msra.mxu0 0.0
        %2362 = vmatprep.subr.mxu0 0.0
        %2363 = vmatpush1.msra.mxu0 0.0
        %2364 = vmatprep.subr.mxu0 0.0
        %2365 = vmatpush1.msra.mxu0 0.0
        %2366 = vmatprep.subr.mxu0 0.0
        %2367 = vmatpush1.msra.mxu0 0.0
        %2368 = vmatprep.subr.mxu0 0.0
        %2369 = vmatpush1.msra.mxu0 0.0
        %2370 = vmatprep.subr.mxu0 0.0
        %2371 = vmatpush1.msra.mxu0 0.0
        %2372 = vmatprep.subr.mxu0 0.0
        %2373 = vmatpush1.msra.mxu0 0.0
        %2374 = vmatprep.subr.mxu0 0.0
        %2375 = vmatpush1.msra.mxu0 0.0
        %2376 = vmatprep.subr.mxu0 0.0
        %2377 = vmatpush1.msra.mxu0 0.0
        %2378 = vmatprep.subr.mxu0 0.0
        %2379 = vmatpush1.msra.mxu0 0.0
        %2380 = vmatprep.subr.mxu0 0.0
        %2381 = vmatpush1.msra.mxu0 0.0
        %2382 = vmatprep.subr.mxu0 0.0
        %2383 = vmatpush1.msra.mxu0 0.0
        %2384 = vmatprep.subr.mxu0 0.0
        %2385 = vmatpush1.msra.mxu0 0.0
        %2386 = vmatprep.subr.mxu0 0.0
        %2387 = vmatpush1.msra.mxu0 0.0
        %2388 = vmatprep.subr.mxu0 0.0
        %2389 = vmatpush1.msra.mxu0 0.0
        %2390 = vmatprep.subr.mxu0 0.0
        %2391 = vmatpush1.msra.mxu0 0.0
        %2392 = vmatprep.mubr.f32.mxu0 0.0
        %2393 = vmatmul.mubr.f32.gmra.mrb[0].mxu0 %v2305
        %v2394 = vpop.f32.mrb[0].mxu0
        %v2395 = vadd.f32 0.0, %v2394
        %v2396 = vpop.f32.mrb[0].mxu0
        %2397 = vmatprep.mubr.f32.mxu0 0.0
        %2398 = vmatmul.mubr.f32.gmra.mrb[0].mxu0 %v2308
        %v2399 = vpop.f32.mrb[0].mxu0
        %v2400 = vadd.f32 0.0, %v2399
        %v2401 = vpop.f32.mrb[0].mxu0
        %2402 = vmatprep.mubr.f32.mxu0 0.0
        %2403 = vmatmul.mubr.f32.gmra.mrb[0].mxu0 %v2311
        %v2404 = vpop.f32.mrb[0].mxu0
        %v2405 = vadd.f32 0.0, %v2404
        %v2406 = vpop.f32.mrb[0].mxu0
        %2407 = vmatprep.mubr.f32.mxu0 0.0
        %2408 = vmatmul.mubr.f32.gmra.mrb[0].mxu0 %v2314
        %v2409 = vpop.f32.mrb[0].mxu0
        %v2410 = vadd.f32 0.0, %v2409
        %v2411 = vpop.f32.mrb[0].mxu0
        %2412 = vmatprep.mubr.f32.mxu0 0.0
        %2413 = vmatmul.mubr.f32.gmra.mrb[0].mxu0 %v2317
        %v2414 = vpop.f32.mrb[0].mxu0
        %v2415 = vadd.f32 0.0, %v2414
        %v2416 = vpop.f32.mrb[0].mxu0
        %2417 = vmatprep.mubr.f32.mxu0 0.0
        %2418 = vmatmul.mubr.f32.gmra.mrb[0].mxu0 %v2320
        %v2419 = vpop.f32.mrb[0].mxu0
        %v2420 = vadd.f32 0.0, %v2419
        %v2421 = vpop.f32.mrb[0].mxu0
        %2422 = vmatprep.mubr.f32.mxu0 0.0
        %2423 = vmatmul.mubr.f32.gmra.mrb[0].mxu0 %v2323
        %v2424 = vpop.f32.mrb[0].mxu0
        %v2425 = vadd.f32 0.0, %v2424
        %v2426 = vpop.f32.mrb[0].mxu0
        %2427 = vdwg.mxu0
        %v2428 = vld [vmem:[%s4] sm:$0xff]
        %v2429 = vld [vmem:[%s4 + $0x8] sm:$0xff]
        %v2430 = vld [vmem:[%s4 + $0x10] sm:$0xff]
        %v2431 = vld [vmem:[%s4 + $0x18] sm:$0xff]
        %v2432 = vld [vmem:[%s4 + $0x20] sm:$0xff]
        %v2433 = vld [vmem:[%s4 + $0x28] sm:$0xff]
        %v2434 = vld [vmem:[%s4 + $0x30] sm:$0xff]
        %v2435 = vld [vmem:[%s4 + $0x38] sm:$0xff]
        %v2436 = vld [vmem:[%s4 + $0x40] sm:$0xff]
        %v2437 = vld [vmem:[%s4 + $0x48] sm:$0xff]
        %v2438 = vld [vmem:[%s4 + $0x50] sm:$0xff]
        %v2439 = vld [vmem:[%s4 + $0x58] sm:$0xff]
        %v2440 = vld [vmem:[%s4 + $0x60] sm:$0xff]
        %v2441 = vld [vmem:[%s4 + $0x68] sm:$0xff]
        %v2442 = vld [vmem:[%s4 + $0x70] sm:$0xff]
        %v2443 = vld [vmem:[%s4 + $0x78] sm:$0xff]
        %v2444 = vld [vmem:[%s4 + $0x80] sm:$0xff]
        %v2445 = vld [vmem:[%s4 + $0x88] sm:$0xff]
        %v2446 = vld [vmem:[%s4 + $0x90] sm:$0xff]
        %v2447 = vld [vmem:[%s4 + $0x98] sm:$0xff]
        %v2448 = vld [vmem:[%s4 + $0xa0] sm:$0xff]
        %v2449 = vld [vmem:[%s4 + $0xa8] sm:$0xff]
        %v2450 = vld [vmem:[%s4 + $0xb0] sm:$0xff]
        %v2451 = vld [vmem:[%s4 + $0xb8] sm:$0xff]
        %v2452 = vld [vmem:[%s4 + $0xc0] sm:$0x7f]
        %v2453 = vld [vmem:[%s4 + $0xc8] sm:$0x7f]
        %v2455 = vsel %vm1249, %v2395, 0
        %v2458 = vsel %vm1249, %v2400, 0
        %v2461 = vsel %vm1249, %v2405, 0
        %v2464 = vsel %vm1249, %v2410, 0
        %v2467 = vsel %vm1249, %v2415, 0
        %v2470 = vsel %vm1249, %v2420, 0
        %v2473 = vsel %vm1249, %v2425, 0
        %v2476 = vsel %vm1125, %v2452, 0
        %v2479 = vsel %vm1125, %v2453, 0
        %2481 = vmatprep.subr.mxu0 %v2429
        %2482 = vmatpush1.msra.mxu0 %v2428
        %2483 = vmatprep.subr.mxu0 %v2431
        %2484 = vmatpush1.msra.mxu0 %v2430
        %2485 = vmatprep.subr.mxu0 %v2433
        %2486 = vmatpush1.msra.mxu0 %v2432
        %2487 = vmatprep.subr.mxu0 %v2435
        %2488 = vmatpush1.msra.mxu0 %v2434
        %2489 = vmatprep.subr.mxu0 %v2437
        %2490 = vmatpush1.msra.mxu0 %v2436
        %2491 = vmatprep.subr.mxu0 %v2439
        %2492 = vmatpush1.msra.mxu0 %v2438
        %2493 = vmatprep.subr.mxu0 %v2441
        %2494 = vmatpush1.msra.mxu0 %v2440
        %2495 = vmatprep.subr.mxu0 %v2443
        %2496 = vmatpush1.msra.mxu0 %v2442
        %2497 = vmatprep.subr.mxu0 %v2445
        %2498 = vmatpush1.msra.mxu0 %v2444
        %2499 = vmatprep.subr.mxu0 %v2447
        %2500 = vmatpush1.msra.mxu0 %v2446
        %2501 = vmatprep.subr.mxu0 %v2449
        %2502 = vmatpush1.msra.mxu0 %v2448
        %2503 = vmatprep.subr.mxu0 %v2451
        %2504 = vmatpush1.msra.mxu0 %v2450
        %2505 = vmatprep.subr.mxu0 %v2479
        %2506 = vmatpush1.msra.mxu0 %v2476
        %2507 = vmatprep.subr.mxu0 0.0
        %2508 = vmatpush1.msra.mxu0 0.0
        %2509 = vmatprep.subr.mxu0 0.0
        %2510 = vmatpush1.msra.mxu0 0.0
        %2511 = vmatprep.subr.mxu0 0.0
        %2512 = vmatpush1.msra.mxu0 0.0
        %2513 = vmatprep.subr.mxu0 0.0
        %2514 = vmatpush1.msra.mxu0 0.0
        %2515 = vmatprep.subr.mxu0 0.0
        %2516 = vmatpush1.msra.mxu0 0.0
        %2517 = vmatprep.subr.mxu0 0.0
        %2518 = vmatpush1.msra.mxu0 0.0
        %2519 = vmatprep.subr.mxu0 0.0
        %2520 = vmatpush1.msra.mxu0 0.0
        %2521 = vmatprep.subr.mxu0 0.0
        %2522 = vmatpush1.msra.mxu0 0.0
        %2523 = vmatprep.subr.mxu0 0.0
        %2524 = vmatpush1.msra.mxu0 0.0
        %2525 = vmatprep.subr.mxu0 0.0
        %2526 = vmatpush1.msra.mxu0 0.0
        %2527 = vmatprep.subr.mxu0 0.0
        %2528 = vmatpush1.msra.mxu0 0.0
        %2529 = vmatprep.subr.mxu0 0.0
        %2530 = vmatpush1.msra.mxu0 0.0
        %2531 = vmatprep.subr.mxu0 0.0
        %2532 = vmatpush1.msra.mxu0 0.0
        %2533 = vmatprep.subr.mxu0 0.0
        %2534 = vmatpush1.msra.mxu0 0.0
        %2535 = vmatprep.subr.mxu0 0.0
        %2536 = vmatpush1.msra.mxu0 0.0
        %2537 = vmatprep.subr.mxu0 0.0
        %2538 = vmatpush1.msra.mxu0 0.0
        %2539 = vmatprep.subr.mxu0 0.0
        %2540 = vmatpush1.msra.mxu0 0.0
        %2541 = vmatprep.subr.mxu0 0.0
        %2542 = vmatpush1.msra.mxu0 0.0
        %2543 = vmatprep.subr.mxu0 0.0
        %2544 = vmatpush1.msra.mxu0 0.0
        %2545 = vmatprep.mubr.f32.mxu0 0.0
        %2546 = vmatmul.mubr.f32.gmra.mrb[0].mxu0 %v2455
        %v2547 = vpop.f32.mrb[0].mxu0
        %v2548 = vadd.f32 0.0, %v2547
        %v2549 = vpop.f32.mrb[0].mxu0
        %v2550 = vadd.f32 0.0, %v2549
        %2551 = vmatprep.mubr.f32.mxu0 0.0
        %2552 = vmatmul.mubr.f32.gmra.mrb[0].mxu0 %v2458
        %v2553 = vpop.f32.mrb[0].mxu0
        %v2554 = vadd.f32 0.0, %v2553
        %v2555 = vpop.f32.mrb[0].mxu0
        %v2556 = vadd.f32 0.0, %v2555
        %2557 = vmatprep.mubr.f32.mxu0 0.0
        %2558 = vmatmul.mubr.f32.gmra.mrb[0].mxu0 %v2461
        %v2559 = vpop.f32.mrb[0].mxu0
        %v2560 = vadd.f32 0.0, %v2559
        %v2561 = vpop.f32.mrb[0].mxu0
        %v2562 = vadd.f32 0.0, %v2561
        %2563 = vmatprep.mubr.f32.mxu0 0.0
        %2564 = vmatmul.mubr.f32.gmra.mrb[0].mxu0 %v2464
        %v2565 = vpop.f32.mrb[0].mxu0
        %v2566 = vadd.f32 0.0, %v2565
        %v2567 = vpop.f32.mrb[0].mxu0
        %v2568 = vadd.f32 0.0, %v2567
        %2569 = vmatprep.mubr.f32.mxu0 0.0
        %2570 = vmatmul.mubr.f32.gmra.mrb[0].mxu0 %v2467
        %v2571 = vpop.f32.mrb[0].mxu0
        %v2572 = vadd.f32 0.0, %v2571
        %v2573 = vpop.f32.mrb[0].mxu0
        %v2574 = vadd.f32 0.0, %v2573
        %2575 = vmatprep.mubr.f32.mxu0 0.0
        %2576 = vmatmul.mubr.f32.gmra.mrb[0].mxu0 %v2470
        %v2577 = vpop.f32.mrb[0].mxu0
        %v2578 = vadd.f32 0.0, %v2577
        %v2579 = vpop.f32.mrb[0].mxu0
        %v2580 = vadd.f32 0.0, %v2579
        %2581 = vmatprep.mubr.f32.mxu0 0.0
        %2582 = vmatmul.mubr.f32.gmra.mrb[0].mxu0 %v2473
        %v2583 = vpop.f32.mrb[0].mxu0
        %v2584 = vadd.f32 0.0, %v2583
        %v2585 = vpop.f32.mrb[0].mxu0
        %v2586 = vadd.f32 0.0, %v2585
        %2587 = vdwg.mxu0
        %v2588 = vmax.f32 %v2548, 0.0
        %v2589 = vmax.f32 %v2550, 0.0
        %v2590 = vmax.f32 %v2554, 0.0
        %v2591 = vmax.f32 %v2556, 0.0
        %v2592 = vmax.f32 %v2560, 0.0
        %v2593 = vmax.f32 %v2562, 0.0
        %v2594 = vmax.f32 %v2566, 0.0
        %v2595 = vmax.f32 %v2568, 0.0
        %v2596 = vmax.f32 %v2572, 0.0
        %v2597 = vmax.f32 %v2574, 0.0
        %v2598 = vmax.f32 %v2578, 0.0
        %v2599 = vmax.f32 %v2580, 0.0
        %v2600 = vmax.f32 %v2584, 0.0
        %v2601 = vmax.f32 %v2586, 0.0
        %2602 = vst [vmem:[#allocation2 + $0x70] sm:$0xff] %v2588
        %2603 = vst.msk [vmem:[#allocation2 + $0x78] sm:$0xff] %vm1549, %v2589
        %2604 = vst [vmem:[#allocation2 + $0x80] sm:$0xff] %v2590
        %2605 = vst.msk [vmem:[#allocation2 + $0x88] sm:$0xff] %vm1549, %v2591
        %2606 = vst [vmem:[#allocation2 + $0x90] sm:$0xff] %v2592
        %2607 = vst.msk [vmem:[#allocation2 + $0x98] sm:$0xff] %vm1549, %v2593
        %2608 = vst [vmem:[#allocation2 + $0xa0] sm:$0xff] %v2594
        %2609 = vst.msk [vmem:[#allocation2 + $0xa8] sm:$0xff] %vm1549, %v2595
        %2610 = vst [vmem:[#allocation2 + $0xb0] sm:$0xff] %v2596
        %2611 = vst.msk [vmem:[#allocation2 + $0xb8] sm:$0xff] %vm1549, %v2597
        %2612 = vst [vmem:[#allocation2 + $0xc0] sm:$0xff] %v2598
        %2613 = vst.msk [vmem:[#allocation2 + $0xc8] sm:$0xff] %vm1549, %v2599
        %2614 = vst [vmem:[#allocation2 + $0xd0] sm:$0xff] %v2600
        %2615 = vst.msk [vmem:[#allocation2 + $0xd8] sm:$0xff] %vm1549, %v2601
        %s2616 = sld [smem:[#allocation8 + $0x2]]
        %v2617 = vstv %s2616
        %v2618 = vld [vmem:[%s506] sm:$0xff]
        %v2619 = vld [vmem:[%s506 + $0x8] sm:$0xff]
        %v2620 = vld [vmem:[%s506 + $0x10] sm:$0xff]
        %v2621 = vld [vmem:[%s506 + $0x18] sm:$0xff]
        %v2622 = vld [vmem:[%s506 + $0x20] sm:$0xff]
        %v2623 = vld [vmem:[%s506 + $0x28] sm:$0xff]
        %v2624 = vld [vmem:[%s506 + $0x30] sm:$0xff]
        %v2625 = vld [vmem:[%s506 + $0x38] sm:$0xff]
        %v2626 = vld [vmem:[%s506 + $0x40] sm:$0xff]
        %v2627 = vld [vmem:[%s506 + $0x48] sm:$0xff]
        %v2628 = vld [vmem:[%s506 + $0x50] sm:$0xff]
        %v2629 = vld [vmem:[%s506 + $0x58] sm:$0xff]
        %v2630 = vld [vmem:[%s506 + $0x60] sm:$0xff]
        %s2631 = sld [smem:[#allocation3 + $0x12]]
        %v2632 = vstv %s2631
        %v2633 = vmul.f32 %v2618, %v2632
        %v2634 = vmul.f32 %v2619, %v2632
        %v2635 = vmul.f32 %v2620, %v2632
        %v2636 = vmul.f32 %v2621, %v2632
        %v2637 = vmul.f32 %v2622, %v2632
        %v2638 = vmul.f32 %v2623, %v2632
        %v2639 = vmul.f32 %v2624, %v2632
        %v2640 = vmul.f32 %v2625, %v2632
        %v2641 = vmul.f32 %v2626, %v2632
        %v2642 = vmul.f32 %v2627, %v2632
        %v2643 = vmul.f32 %v2628, %v2632
        %v2644 = vmul.f32 %v2629, %v2632
        %v2645 = vmul.f32 %v2630, %v2632
        %v2646 = vadd.f32 %v2617, %v2633
        %v2647 = vadd.f32 %v2617, %v2634
        %v2648 = vadd.f32 %v2617, %v2635
        %v2649 = vadd.f32 %v2617, %v2636
        %v2650 = vadd.f32 %v2617, %v2637
        %v2651 = vadd.f32 %v2617, %v2638
        %v2652 = vadd.f32 %v2617, %v2639
        %v2653 = vadd.f32 %v2617, %v2640
        %v2654 = vadd.f32 %v2617, %v2641
        %v2655 = vadd.f32 %v2617, %v2642
        %v2656 = vadd.f32 %v2617, %v2643
        %v2657 = vadd.f32 %v2617, %v2644
        %v2658 = vadd.f32 %v2617, %v2645
        %s2659 = sld [smem:[#allocation3 + $0x13]]
        %v2660 = vstv %s2659
        %v2661 = vmul.f32 %v2618, %v2660
        %v2662 = vmul.f32 %v2619, %v2660
        %v2663 = vmul.f32 %v2620, %v2660
        %v2664 = vmul.f32 %v2621, %v2660
        %v2665 = vmul.f32 %v2622, %v2660
        %v2666 = vmul.f32 %v2623, %v2660
        %v2667 = vmul.f32 %v2624, %v2660
        %v2668 = vmul.f32 %v2625, %v2660
        %v2669 = vmul.f32 %v2626, %v2660
        %v2670 = vmul.f32 %v2627, %v2660
        %v2671 = vmul.f32 %v2628, %v2660
        %v2672 = vmul.f32 %v2629, %v2660
        %v2673 = vmul.f32 %v2630, %v2660
        %2687 = vrot.lane.b32.xlu0 %v2661, 127
        %v2688 = vpop.permute.xlu0 %2687
        %2689 = vrot.lane.b32.xlu0 %v2662, 127
        %v2690 = vpop.permute.xlu0 %2689
        %2691 = vrot.lane.b32.xlu0 %v2663, 127
        %v2692 = vpop.permute.xlu0 %2691
        %2693 = vrot.lane.b32.xlu0 %v2664, 127
        %v2694 = vpop.permute.xlu0 %2693
        %2695 = vrot.lane.b32.xlu0 %v2665, 127
        %v2696 = vpop.permute.xlu0 %2695
        %2697 = vrot.lane.b32.xlu0 %v2666, 127
        %v2698 = vpop.permute.xlu0 %2697
        %2699 = vrot.lane.b32.xlu0 %v2667, 127
        %v2700 = vpop.permute.xlu0 %2699
        %2701 = vrot.lane.b32.xlu0 %v2668, 127
        %v2702 = vpop.permute.xlu0 %2701
        %2703 = vrot.lane.b32.xlu0 %v2669, 127
        %v2704 = vpop.permute.xlu0 %2703
        %2705 = vrot.lane.b32.xlu0 %v2670, 127
        %v2706 = vpop.permute.xlu0 %2705
        %2707 = vrot.lane.b32.xlu0 %v2671, 127
        %v2708 = vpop.permute.xlu0 %2707
        %2709 = vrot.lane.b32.xlu0 %v2672, 127
        %v2710 = vpop.permute.xlu0 %2709
        %2711 = vrot.lane.b32.xlu0 %v2673, 127
        %v2712 = vpop.permute.xlu0 %2711
        %v2726 = vadd.f32 %v2646, %v2688
        %v2727 = vadd.f32 %v2647, %v2690
        %v2728 = vadd.f32 %v2648, %v2692
        %v2729 = vadd.f32 %v2649, %v2694
        %v2730 = vadd.f32 %v2650, %v2696
        %v2731 = vadd.f32 %v2651, %v2698
        %v2732 = vadd.f32 %v2652, %v2700
        %v2733 = vadd.f32 %v2653, %v2702
        %v2734 = vadd.f32 %v2654, %v2704
        %v2735 = vadd.f32 %v2655, %v2706
        %v2736 = vadd.f32 %v2656, %v2708
        %v2737 = vadd.f32 %v2657, %v2710
        %v2738 = vadd.f32 %v2658, %v2712
        %s2739 = sld [smem:[#allocation3 + $0x14]]
        %v2740 = vstv %s2739
        %v2741 = vmul.f32 %v2618, %v2740
        %v2742 = vmul.f32 %v2619, %v2740
        %v2743 = vmul.f32 %v2620, %v2740
        %v2744 = vmul.f32 %v2621, %v2740
        %v2745 = vmul.f32 %v2622, %v2740
        %v2746 = vmul.f32 %v2623, %v2740
        %v2747 = vmul.f32 %v2624, %v2740
        %v2748 = vmul.f32 %v2625, %v2740
        %v2749 = vmul.f32 %v2626, %v2740
        %v2750 = vmul.f32 %v2627, %v2740
        %v2751 = vmul.f32 %v2628, %v2740
        %v2752 = vmul.f32 %v2629, %v2740
        %v2753 = vmul.f32 %v2630, %v2740
        %2767 = vrot.lane.b32.xlu0 %v2741, 126
        %v2768 = vpop.permute.xlu0 %2767
        %2769 = vrot.lane.b32.xlu0 %v2742, 126
        %v2770 = vpop.permute.xlu0 %2769
        %2771 = vrot.lane.b32.xlu0 %v2743, 126
        %v2772 = vpop.permute.xlu0 %2771
        %2773 = vrot.lane.b32.xlu0 %v2744, 126
        %v2774 = vpop.permute.xlu0 %2773
        %2775 = vrot.lane.b32.xlu0 %v2745, 126
        %v2776 = vpop.permute.xlu0 %2775
        %2777 = vrot.lane.b32.xlu0 %v2746, 126
        %v2778 = vpop.permute.xlu0 %2777
        %2779 = vrot.lane.b32.xlu0 %v2747, 126
        %v2780 = vpop.permute.xlu0 %2779
        %2781 = vrot.lane.b32.xlu0 %v2748, 126
        %v2782 = vpop.permute.xlu0 %2781
        %2783 = vrot.lane.b32.xlu0 %v2749, 126
        %v2784 = vpop.permute.xlu0 %2783
        %2785 = vrot.lane.b32.xlu0 %v2750, 126
        %v2786 = vpop.permute.xlu0 %2785
        %2787 = vrot.lane.b32.xlu0 %v2751, 126
        %v2788 = vpop.permute.xlu0 %2787
        %2789 = vrot.lane.b32.xlu0 %v2752, 126
        %v2790 = vpop.permute.xlu0 %2789
        %2791 = vrot.lane.b32.xlu0 %v2753, 126
        %v2792 = vpop.permute.xlu0 %2791
        %v2806 = vadd.f32 %v2726, %v2768
        %v2807 = vadd.f32 %v2727, %v2770
        %v2808 = vadd.f32 %v2728, %v2772
        %v2809 = vadd.f32 %v2729, %v2774
        %v2810 = vadd.f32 %v2730, %v2776
        %v2811 = vadd.f32 %v2731, %v2778
        %v2812 = vadd.f32 %v2732, %v2780
        %v2813 = vadd.f32 %v2733, %v2782
        %v2814 = vadd.f32 %v2734, %v2784
        %v2815 = vadd.f32 %v2735, %v2786
        %v2816 = vadd.f32 %v2736, %v2788
        %v2817 = vadd.f32 %v2737, %v2790
        %v2818 = vadd.f32 %v2738, %v2792
        %v2819 = vld [vmem:[%s506 + $0x1] sm:$0xff]
        %v2820 = vld [vmem:[%s506 + $0x9] sm:$0xff]
        %v2821 = vld [vmem:[%s506 + $0x11] sm:$0xff]
        %v2822 = vld [vmem:[%s506 + $0x19] sm:$0xff]
        %v2823 = vld [vmem:[%s506 + $0x21] sm:$0xff]
        %v2824 = vld [vmem:[%s506 + $0x29] sm:$0xff]
        %v2825 = vld [vmem:[%s506 + $0x31] sm:$0xff]
        %v2826 = vld [vmem:[%s506 + $0x39] sm:$0xff]
        %v2827 = vld [vmem:[%s506 + $0x41] sm:$0xff]
        %v2828 = vld [vmem:[%s506 + $0x49] sm:$0xff]
        %v2829 = vld [vmem:[%s506 + $0x51] sm:$0xff]
        %v2830 = vld [vmem:[%s506 + $0x59] sm:$0xff]
        %v2831 = vld [vmem:[%s506 + $0x61] sm:$0xff]
        %s2832 = sld [smem:[#allocation3 + $0x15]]
        %v2833 = vstv %s2832
        %v2834 = vmul.f32 %v2819, %v2833
        %v2835 = vmul.f32 %v2820, %v2833
        %v2836 = vmul.f32 %v2821, %v2833
        %v2837 = vmul.f32 %v2822, %v2833
        %v2838 = vmul.f32 %v2823, %v2833
        %v2839 = vmul.f32 %v2824, %v2833
        %v2840 = vmul.f32 %v2825, %v2833
        %v2841 = vmul.f32 %v2826, %v2833
        %v2842 = vmul.f32 %v2827, %v2833
        %v2843 = vmul.f32 %v2828, %v2833
        %v2844 = vmul.f32 %v2829, %v2833
        %v2845 = vmul.f32 %v2830, %v2833
        %v2846 = vmul.f32 %v2831, %v2833
        %v2847 = vadd.f32 %v2806, %v2834
        %v2848 = vadd.f32 %v2807, %v2835
        %v2849 = vadd.f32 %v2808, %v2836
        %v2850 = vadd.f32 %v2809, %v2837
        %v2851 = vadd.f32 %v2810, %v2838
        %v2852 = vadd.f32 %v2811, %v2839
        %v2853 = vadd.f32 %v2812, %v2840
        %v2854 = vadd.f32 %v2813, %v2841
        %v2855 = vadd.f32 %v2814, %v2842
        %v2856 = vadd.f32 %v2815, %v2843
        %v2857 = vadd.f32 %v2816, %v2844
        %v2858 = vadd.f32 %v2817, %v2845
        %v2859 = vadd.f32 %v2818, %v2846
        %s2860 = sld [smem:[#allocation3 + $0x16]]
        %v2861 = vstv %s2860
        %v2862 = vmul.f32 %v2819, %v2861
        %v2863 = vmul.f32 %v2820, %v2861
        %v2864 = vmul.f32 %v2821, %v2861
        %v2865 = vmul.f32 %v2822, %v2861
        %v2866 = vmul.f32 %v2823, %v2861
        %v2867 = vmul.f32 %v2824, %v2861
        %v2868 = vmul.f32 %v2825, %v2861
        %v2869 = vmul.f32 %v2826, %v2861
        %v2870 = vmul.f32 %v2827, %v2861
        %v2871 = vmul.f32 %v2828, %v2861
        %v2872 = vmul.f32 %v2829, %v2861
        %v2873 = vmul.f32 %v2830, %v2861
        %v2874 = vmul.f32 %v2831, %v2861
        %2888 = vrot.lane.b32.xlu0 %v2862, 127
        %v2889 = vpop.permute.xlu0 %2888
        %2890 = vrot.lane.b32.xlu0 %v2863, 127
        %v2891 = vpop.permute.xlu0 %2890
        %2892 = vrot.lane.b32.xlu0 %v2864, 127
        %v2893 = vpop.permute.xlu0 %2892
        %2894 = vrot.lane.b32.xlu0 %v2865, 127
        %v2895 = vpop.permute.xlu0 %2894
        %2896 = vrot.lane.b32.xlu0 %v2866, 127
        %v2897 = vpop.permute.xlu0 %2896
        %2898 = vrot.lane.b32.xlu0 %v2867, 127
        %v2899 = vpop.permute.xlu0 %2898
        %2900 = vrot.lane.b32.xlu0 %v2868, 127
        %v2901 = vpop.permute.xlu0 %2900
        %2902 = vrot.lane.b32.xlu0 %v2869, 127
        %v2903 = vpop.permute.xlu0 %2902
        %2904 = vrot.lane.b32.xlu0 %v2870, 127
        %v2905 = vpop.permute.xlu0 %2904
        %2906 = vrot.lane.b32.xlu0 %v2871, 127
        %v2907 = vpop.permute.xlu0 %2906
        %2908 = vrot.lane.b32.xlu0 %v2872, 127
        %v2909 = vpop.permute.xlu0 %2908
        %2910 = vrot.lane.b32.xlu0 %v2873, 127
        %v2911 = vpop.permute.xlu0 %2910
        %2912 = vrot.lane.b32.xlu0 %v2874, 127
        %v2913 = vpop.permute.xlu0 %2912
        %v2927 = vadd.f32 %v2847, %v2889
        %v2928 = vadd.f32 %v2848, %v2891
        %v2929 = vadd.f32 %v2849, %v2893
        %v2930 = vadd.f32 %v2850, %v2895
        %v2931 = vadd.f32 %v2851, %v2897
        %v2932 = vadd.f32 %v2852, %v2899
        %v2933 = vadd.f32 %v2853, %v2901
        %v2934 = vadd.f32 %v2854, %v2903
        %v2935 = vadd.f32 %v2855, %v2905
        %v2936 = vadd.f32 %v2856, %v2907
        %v2937 = vadd.f32 %v2857, %v2909
        %v2938 = vadd.f32 %v2858, %v2911
        %v2939 = vadd.f32 %v2859, %v2913
        %s2940 = sld [smem:[#allocation3 + $0x17]]
        %v2941 = vstv %s2940
        %v2942 = vmul.f32 %v2819, %v2941
        %v2943 = vmul.f32 %v2820, %v2941
        %v2944 = vmul.f32 %v2821, %v2941
        %v2945 = vmul.f32 %v2822, %v2941
        %v2946 = vmul.f32 %v2823, %v2941
        %v2947 = vmul.f32 %v2824, %v2941
        %v2948 = vmul.f32 %v2825, %v2941
        %v2949 = vmul.f32 %v2826, %v2941
        %v2950 = vmul.f32 %v2827, %v2941
        %v2951 = vmul.f32 %v2828, %v2941
        %v2952 = vmul.f32 %v2829, %v2941
        %v2953 = vmul.f32 %v2830, %v2941
        %v2954 = vmul.f32 %v2831, %v2941
        %2968 = vrot.lane.b32.xlu0 %v2942, 126
        %v2969 = vpop.permute.xlu0 %2968
        %2970 = vrot.lane.b32.xlu0 %v2943, 126
        %v2971 = vpop.permute.xlu0 %2970
        %2972 = vrot.lane.b32.xlu0 %v2944, 126
        %v2973 = vpop.permute.xlu0 %2972
        %2974 = vrot.lane.b32.xlu0 %v2945, 126
        %v2975 = vpop.permute.xlu0 %2974
        %2976 = vrot.lane.b32.xlu0 %v2946, 126
        %v2977 = vpop.permute.xlu0 %2976
        %2978 = vrot.lane.b32.xlu0 %v2947, 126
        %v2979 = vpop.permute.xlu0 %2978
        %2980 = vrot.lane.b32.xlu0 %v2948, 126
        %v2981 = vpop.permute.xlu0 %2980
        %2982 = vrot.lane.b32.xlu0 %v2949, 126
        %v2983 = vpop.permute.xlu0 %2982
        %2984 = vrot.lane.b32.xlu0 %v2950, 126
        %v2985 = vpop.permute.xlu0 %2984
        %2986 = vrot.lane.b32.xlu0 %v2951, 126
        %v2987 = vpop.permute.xlu0 %2986
        %2988 = vrot.lane.b32.xlu0 %v2952, 126
        %v2989 = vpop.permute.xlu0 %2988
        %2990 = vrot.lane.b32.xlu0 %v2953, 126
        %v2991 = vpop.permute.xlu0 %2990
        %2992 = vrot.lane.b32.xlu0 %v2954, 126
        %v2993 = vpop.permute.xlu0 %2992
        %v3007 = vadd.f32 %v2927, %v2969
        %v3008 = vadd.f32 %v2928, %v2971
        %v3009 = vadd.f32 %v2929, %v2973
        %v3010 = vadd.f32 %v2930, %v2975
        %v3011 = vadd.f32 %v2931, %v2977
        %v3012 = vadd.f32 %v2932, %v2979
        %v3013 = vadd.f32 %v2933, %v2981
        %v3014 = vadd.f32 %v2934, %v2983
        %v3015 = vadd.f32 %v2935, %v2985
        %v3016 = vadd.f32 %v2936, %v2987
        %v3017 = vadd.f32 %v2937, %v2989
        %v3018 = vadd.f32 %v2938, %v2991
        %v3019 = vadd.f32 %v2939, %v2993
        %v3020 = vld [vmem:[%s506 + $0x2] sm:$0xff]
        %v3021 = vld [vmem:[%s506 + $0xa] sm:$0xff]
        %v3022 = vld [vmem:[%s506 + $0x12] sm:$0xff]
        %v3023 = vld [vmem:[%s506 + $0x1a] sm:$0xff]
        %v3024 = vld [vmem:[%s506 + $0x22] sm:$0xff]
        %v3025 = vld [vmem:[%s506 + $0x2a] sm:$0xff]
        %v3026 = vld [vmem:[%s506 + $0x32] sm:$0xff]
        %v3027 = vld [vmem:[%s506 + $0x3a] sm:$0xff]
        %v3028 = vld [vmem:[%s506 + $0x42] sm:$0xff]
        %v3029 = vld [vmem:[%s506 + $0x4a] sm:$0xff]
        %v3030 = vld [vmem:[%s506 + $0x52] sm:$0xff]
        %v3031 = vld [vmem:[%s506 + $0x5a] sm:$0xff]
        %v3032 = vld [vmem:[%s506 + $0x62] sm:$0xff]
        %s3033 = sld [smem:[#allocation3 + $0x18]]
        %v3034 = vstv %s3033
        %v3035 = vmul.f32 %v3020, %v3034
        %v3036 = vmul.f32 %v3021, %v3034
        %v3037 = vmul.f32 %v3022, %v3034
        %v3038 = vmul.f32 %v3023, %v3034
        %v3039 = vmul.f32 %v3024, %v3034
        %v3040 = vmul.f32 %v3025, %v3034
        %v3041 = vmul.f32 %v3026, %v3034
        %v3042 = vmul.f32 %v3027, %v3034
        %v3043 = vmul.f32 %v3028, %v3034
        %v3044 = vmul.f32 %v3029, %v3034
        %v3045 = vmul.f32 %v3030, %v3034
        %v3046 = vmul.f32 %v3031, %v3034
        %v3047 = vmul.f32 %v3032, %v3034
        %v3048 = vadd.f32 %v3007, %v3035
        %v3049 = vadd.f32 %v3008, %v3036
        %v3050 = vadd.f32 %v3009, %v3037
        %v3051 = vadd.f32 %v3010, %v3038
        %v3052 = vadd.f32 %v3011, %v3039
        %v3053 = vadd.f32 %v3012, %v3040
        %v3054 = vadd.f32 %v3013, %v3041
        %v3055 = vadd.f32 %v3014, %v3042
        %v3056 = vadd.f32 %v3015, %v3043
        %v3057 = vadd.f32 %v3016, %v3044
        %v3058 = vadd.f32 %v3017, %v3045
        %v3059 = vadd.f32 %v3018, %v3046
        %v3060 = vadd.f32 %v3019, %v3047
        %s3061 = sld [smem:[#allocation3 + $0x19]]
        %v3062 = vstv %s3061
        %v3063 = vmul.f32 %v3020, %v3062
        %v3064 = vmul.f32 %v3021, %v3062
        %v3065 = vmul.f32 %v3022, %v3062
        %v3066 = vmul.f32 %v3023, %v3062
        %v3067 = vmul.f32 %v3024, %v3062
        %v3068 = vmul.f32 %v3025, %v3062
        %v3069 = vmul.f32 %v3026, %v3062
        %v3070 = vmul.f32 %v3027, %v3062
        %v3071 = vmul.f32 %v3028, %v3062
        %v3072 = vmul.f32 %v3029, %v3062
        %v3073 = vmul.f32 %v3030, %v3062
        %v3074 = vmul.f32 %v3031, %v3062
        %v3075 = vmul.f32 %v3032, %v3062
        %3089 = vrot.lane.b32.xlu0 %v3063, 127
        %v3090 = vpop.permute.xlu0 %3089
        %3091 = vrot.lane.b32.xlu0 %v3064, 127
        %v3092 = vpop.permute.xlu0 %3091
        %3093 = vrot.lane.b32.xlu0 %v3065, 127
        %v3094 = vpop.permute.xlu0 %3093
        %3095 = vrot.lane.b32.xlu0 %v3066, 127
        %v3096 = vpop.permute.xlu0 %3095
        %3097 = vrot.lane.b32.xlu0 %v3067, 127
        %v3098 = vpop.permute.xlu0 %3097
        %3099 = vrot.lane.b32.xlu0 %v3068, 127
        %v3100 = vpop.permute.xlu0 %3099
        %3101 = vrot.lane.b32.xlu0 %v3069, 127
        %v3102 = vpop.permute.xlu0 %3101
        %3103 = vrot.lane.b32.xlu0 %v3070, 127
        %v3104 = vpop.permute.xlu0 %3103
        %3105 = vrot.lane.b32.xlu0 %v3071, 127
        %v3106 = vpop.permute.xlu0 %3105
        %3107 = vrot.lane.b32.xlu0 %v3072, 127
        %v3108 = vpop.permute.xlu0 %3107
        %3109 = vrot.lane.b32.xlu0 %v3073, 127
        %v3110 = vpop.permute.xlu0 %3109
        %3111 = vrot.lane.b32.xlu0 %v3074, 127
        %v3112 = vpop.permute.xlu0 %3111
        %3113 = vrot.lane.b32.xlu0 %v3075, 127
        %v3114 = vpop.permute.xlu0 %3113
        %v3128 = vadd.f32 %v3048, %v3090
        %v3129 = vadd.f32 %v3049, %v3092
        %v3130 = vadd.f32 %v3050, %v3094
        %v3131 = vadd.f32 %v3051, %v3096
        %v3132 = vadd.f32 %v3052, %v3098
        %v3133 = vadd.f32 %v3053, %v3100
        %v3134 = vadd.f32 %v3054, %v3102
        %v3135 = vadd.f32 %v3055, %v3104
        %v3136 = vadd.f32 %v3056, %v3106
        %v3137 = vadd.f32 %v3057, %v3108
        %v3138 = vadd.f32 %v3058, %v3110
        %v3139 = vadd.f32 %v3059, %v3112
        %v3140 = vadd.f32 %v3060, %v3114
        %s3141 = sld [smem:[#allocation3 + $0x1a]]
        %v3142 = vstv %s3141
        %v3143 = vmul.f32 %v3020, %v3142
        %v3144 = vmul.f32 %v3021, %v3142
        %v3145 = vmul.f32 %v3022, %v3142
        %v3146 = vmul.f32 %v3023, %v3142
        %v3147 = vmul.f32 %v3024, %v3142
        %v3148 = vmul.f32 %v3025, %v3142
        %v3149 = vmul.f32 %v3026, %v3142
        %v3150 = vmul.f32 %v3027, %v3142
        %v3151 = vmul.f32 %v3028, %v3142
        %v3152 = vmul.f32 %v3029, %v3142
        %v3153 = vmul.f32 %v3030, %v3142
        %v3154 = vmul.f32 %v3031, %v3142
        %v3155 = vmul.f32 %v3032, %v3142
        %3169 = vrot.lane.b32.xlu0 %v3143, 126
        %v3170 = vpop.permute.xlu0 %3169
        %3171 = vrot.lane.b32.xlu0 %v3144, 126
        %v3172 = vpop.permute.xlu0 %3171
        %3173 = vrot.lane.b32.xlu0 %v3145, 126
        %v3174 = vpop.permute.xlu0 %3173
        %3175 = vrot.lane.b32.xlu0 %v3146, 126
        %v3176 = vpop.permute.xlu0 %3175
        %3177 = vrot.lane.b32.xlu0 %v3147, 126
        %v3178 = vpop.permute.xlu0 %3177
        %3179 = vrot.lane.b32.xlu0 %v3148, 126
        %v3180 = vpop.permute.xlu0 %3179
        %3181 = vrot.lane.b32.xlu0 %v3149, 126
        %v3182 = vpop.permute.xlu0 %3181
        %3183 = vrot.lane.b32.xlu0 %v3150, 126
        %v3184 = vpop.permute.xlu0 %3183
        %3185 = vrot.lane.b32.xlu0 %v3151, 126
        %v3186 = vpop.permute.xlu0 %3185
        %3187 = vrot.lane.b32.xlu0 %v3152, 126
        %v3188 = vpop.permute.xlu0 %3187
        %3189 = vrot.lane.b32.xlu0 %v3153, 126
        %v3190 = vpop.permute.xlu0 %3189
        %3191 = vrot.lane.b32.xlu0 %v3154, 126
        %v3192 = vpop.permute.xlu0 %3191
        %3193 = vrot.lane.b32.xlu0 %v3155, 126
        %v3194 = vpop.permute.xlu0 %3193
        %v3208 = vadd.f32 %v3128, %v3170
        %v3209 = vadd.f32 %v3129, %v3172
        %v3210 = vadd.f32 %v3130, %v3174
        %v3211 = vadd.f32 %v3131, %v3176
        %v3212 = vadd.f32 %v3132, %v3178
        %v3213 = vadd.f32 %v3133, %v3180
        %v3214 = vadd.f32 %v3134, %v3182
        %v3215 = vadd.f32 %v3135, %v3184
        %v3216 = vadd.f32 %v3136, %v3186
        %v3217 = vadd.f32 %v3137, %v3188
        %v3218 = vadd.f32 %v3138, %v3190
        %v3219 = vadd.f32 %v3139, %v3192
        %v3220 = vadd.f32 %v3140, %v3194
        %v3234 = vrot.slane %v3208, 1
        %v3235 = vrot.slane %v3209, 1
        %v3236 = vsel %vm1125, %v3234, %v3235
        %v3237 = vrot.slane %v3210, 1
        %v3238 = vsel %vm1125, %v3235, %v3237
        %v3239 = vrot.slane %v3211, 1
        %v3240 = vsel %vm1125, %v3237, %v3239
        %v3241 = vrot.slane %v3212, 1
        %v3242 = vsel %vm1125, %v3239, %v3241
        %v3243 = vrot.slane %v3213, 1
        %v3244 = vsel %vm1125, %v3241, %v3243
        %v3245 = vrot.slane %v3214, 1
        %v3246 = vsel %vm1125, %v3243, %v3245
        %v3247 = vrot.slane %v3215, 1
        %v3248 = vsel %vm1125, %v3245, %v3247
        %v3249 = vrot.slane %v3216, 1
        %v3250 = vsel %vm1125, %v3247, %v3249
        %v3251 = vrot.slane %v3217, 1
        %v3252 = vsel %vm1125, %v3249, %v3251
        %v3253 = vrot.slane %v3218, 1
        %v3254 = vsel %vm1125, %v3251, %v3253
        %v3255 = vrot.slane %v3219, 1
        %v3256 = vsel %vm1125, %v3253, %v3255
        %v3257 = vrot.slane %v3220, 1
        %v3258 = vsel %vm1125, %v3255, %v3257
        %v3272 = vmax.f32 %v3208, %v3236
        %v3273 = vmax.f32 %v3209, %v3238
        %v3274 = vmax.f32 %v3210, %v3240
        %v3275 = vmax.f32 %v3211, %v3242
        %v3276 = vmax.f32 %v3212, %v3244
        %v3277 = vmax.f32 %v3213, %v3246
        %v3278 = vmax.f32 %v3214, %v3248
        %v3279 = vmax.f32 %v3215, %v3250
        %v3280 = vmax.f32 %v3216, %v3252
        %v3281 = vmax.f32 %v3217, %v3254
        %v3282 = vmax.f32 %v3218, %v3256
        %v3283 = vmax.f32 %v3219, %v3258
        %v3284 = vmax.f32 %v3220, %v3257
        %3298 = vrot.lane.b32.xlu0 %v3272, 127
        %v3299 = vpop.permute.xlu0 %3298
        %3300 = vrot.lane.b32.xlu0 %v3273, 127
        %v3301 = vpop.permute.xlu0 %3300
        %3302 = vrot.lane.b32.xlu0 %v3274, 127
        %v3303 = vpop.permute.xlu0 %3302
        %3304 = vrot.lane.b32.xlu0 %v3275, 127
        %v3305 = vpop.permute.xlu0 %3304
        %3306 = vrot.lane.b32.xlu0 %v3276, 127
        %v3307 = vpop.permute.xlu0 %3306
        %3308 = vrot.lane.b32.xlu0 %v3277, 127
        %v3309 = vpop.permute.xlu0 %3308
        %3310 = vrot.lane.b32.xlu0 %v3278, 127
        %v3311 = vpop.permute.xlu0 %3310
        %3312 = vrot.lane.b32.xlu0 %v3279, 127
        %v3313 = vpop.permute.xlu0 %3312
        %3314 = vrot.lane.b32.xlu0 %v3280, 127
        %v3315 = vpop.permute.xlu0 %3314
        %3316 = vrot.lane.b32.xlu0 %v3281, 127
        %v3317 = vpop.permute.xlu0 %3316
        %3318 = vrot.lane.b32.xlu0 %v3282, 127
        %v3319 = vpop.permute.xlu0 %3318
        %3320 = vrot.lane.b32.xlu0 %v3283, 127
        %v3321 = vpop.permute.xlu0 %3320
        %3322 = vrot.lane.b32.xlu0 %v3284, 127
        %v3323 = vpop.permute.xlu0 %3322
        %v3337 = vmax.f32 %v3272, %v3299
        %v3338 = vmax.f32 %v3273, %v3301
        %v3339 = vmax.f32 %v3274, %v3303
        %v3340 = vmax.f32 %v3275, %v3305
        %v3341 = vmax.f32 %v3276, %v3307
        %v3342 = vmax.f32 %v3277, %v3309
        %v3343 = vmax.f32 %v3278, %v3311
        %v3344 = vmax.f32 %v3279, %v3313
        %v3345 = vmax.f32 %v3280, %v3315
        %v3346 = vmax.f32 %v3281, %v3317
        %v3347 = vmax.f32 %v3282, %v3319
        %v3348 = vmax.f32 %v3283, %v3321
        %v3349 = vmax.f32 %v3284, %v3323
        %v3350 = vld [vmem:[#allocation9] sm:$0xff]
        %v3351 = vld [vmem:[#allocation9 + $0x8] sm:$0xff]
        %v3352 = vld [vmem:[#allocation9 + $0x10] sm:$0xff]
        %v3353 = vld [vmem:[#allocation9 + $0x18] sm:$0xff]
        %v3354 = vld [vmem:[#allocation9 + $0x20] sm:$0xff]
        %v3355 = vld [vmem:[#allocation9 + $0x28] sm:$0xff]
        %v3356 = vld [vmem:[#allocation9 + $0x30] sm:$0xff]
        %v3358 = vsel %vm1249, %v3350, 0
        %v3361 = vsel %vm1249, %v3351, 0
        %v3364 = vsel %vm1249, %v3352, 0
        %v3367 = vsel %vm1249, %v3353, 0
        %v3370 = vsel %vm1249, %v3354, 0
        %v3373 = vsel %vm1249, %v3355, 0
        %v3376 = vsel %vm1249, %v3356, 0
        %v3379 = vsel %vm1125, %v3349, 0
        %3381 = vmatprep.subr.mxu0 0.0
        %3382 = vmatpush1.msra.mxu0 %v3337
        %3383 = vmatprep.subr.mxu0 0.0
        %3384 = vmatpush1.msra.mxu0 %v3338
        %3385 = vmatprep.subr.mxu0 0.0
        %3386 = vmatpush1.msra.mxu0 %v3339
        %3387 = vmatprep.subr.mxu0 0.0
        %3388 = vmatpush1.msra.mxu0 %v3340
        %3389 = vmatprep.subr.mxu0 0.0
        %3390 = vmatpush1.msra.mxu0 %v3341
        %3391 = vmatprep.subr.mxu0 0.0
        %3392 = vmatpush1.msra.mxu0 %v3342
        %3393 = vmatprep.subr.mxu0 0.0
        %3394 = vmatpush1.msra.mxu0 %v3343
        %3395 = vmatprep.subr.mxu0 0.0
        %3396 = vmatpush1.msra.mxu0 %v3344
        %3397 = vmatprep.subr.mxu0 0.0
        %3398 = vmatpush1.msra.mxu0 %v3345
        %3399 = vmatprep.subr.mxu0 0.0
        %3400 = vmatpush1.msra.mxu0 %v3346
        %3401 = vmatprep.subr.mxu0 0.0
        %3402 = vmatpush1.msra.mxu0 %v3347
        %3403 = vmatprep.subr.mxu0 0.0
        %3404 = vmatpush1.msra.mxu0 %v3348
        %3405 = vmatprep.subr.mxu0 0.0
        %3406 = vmatpush1.msra.mxu0 %v3379
        %3407 = vmatprep.subr.mxu0 0.0
        %3408 = vmatpush1.msra.mxu0 0.0
        %3409 = vmatprep.subr.mxu0 0.0
        %3410 = vmatpush1.msra.mxu0 0.0
        %3411 = vmatprep.subr.mxu0 0.0
        %3412 = vmatpush1.msra.mxu0 0.0
        %3413 = vmatprep.subr.mxu0 0.0
        %3414 = vmatpush1.msra.mxu0 0.0
        %3415 = vmatprep.subr.mxu0 0.0
        %3416 = vmatpush1.msra.mxu0 0.0
        %3417 = vmatprep.subr.mxu0 0.0
        %3418 = vmatpush1.msra.mxu0 0.0
        %3419 = vmatprep.subr.mxu0 0.0
        %3420 = vmatpush1.msra.mxu0 0.0
        %3421 = vmatprep.subr.mxu0 0.0
        %3422 = vmatpush1.msra.mxu0 0.0
        %3423 = vmatprep.subr.mxu0 0.0
        %3424 = vmatpush1.msra.mxu0 0.0
        %3425 = vmatprep.subr.mxu0 0.0
        %3426 = vmatpush1.msra.mxu0 0.0
        %3427 = vmatprep.subr.mxu0 0.0
        %3428 = vmatpush1.msra.mxu0 0.0
        %3429 = vmatprep.subr.mxu0 0.0
        %3430 = vmatpush1.msra.mxu0 0.0
        %3431 = vmatprep.subr.mxu0 0.0
        %3432 = vmatpush1.msra.mxu0 0.0
        %3433 = vmatprep.subr.mxu0 0.0
        %3434 = vmatpush1.msra.mxu0 0.0
        %3435 = vmatprep.subr.mxu0 0.0
        %3436 = vmatpush1.msra.mxu0 0.0
        %3437 = vmatprep.subr.mxu0 0.0
        %3438 = vmatpush1.msra.mxu0 0.0
        %3439 = vmatprep.subr.mxu0 0.0
        %3440 = vmatpush1.msra.mxu0 0.0
        %3441 = vmatprep.subr.mxu0 0.0
        %3442 = vmatpush1.msra.mxu0 0.0
        %3443 = vmatprep.subr.mxu0 0.0
        %3444 = vmatpush1.msra.mxu0 0.0
        %3445 = vmatprep.mubr.f32.mxu0 0.0
        %3446 = vmatmul.mubr.f32.gmra.mrb[0].mxu0 %v3358
        %v3447 = vpop.f32.mrb[0].mxu0
        %v3448 = vadd.f32 0.0, %v3447
        %v3449 = vpop.f32.mrb[0].mxu0
        %3450 = vmatprep.mubr.f32.mxu0 0.0
        %3451 = vmatmul.mubr.f32.gmra.mrb[0].mxu0 %v3361
        %v3452 = vpop.f32.mrb[0].mxu0
        %v3453 = vadd.f32 0.0, %v3452
        %v3454 = vpop.f32.mrb[0].mxu0
        %3455 = vmatprep.mubr.f32.mxu0 0.0
        %3456 = vmatmul.mubr.f32.gmra.mrb[0].mxu0 %v3364
        %v3457 = vpop.f32.mrb[0].mxu0
        %v3458 = vadd.f32 0.0, %v3457
        %v3459 = vpop.f32.mrb[0].mxu0
        %3460 = vmatprep.mubr.f32.mxu0 0.0
        %3461 = vmatmul.mubr.f32.gmra.mrb[0].mxu0 %v3367
        %v3462 = vpop.f32.mrb[0].mxu0
        %v3463 = vadd.f32 0.0, %v3462
        %v3464 = vpop.f32.mrb[0].mxu0
        %3465 = vmatprep.mubr.f32.mxu0 0.0
        %3466 = vmatmul.mubr.f32.gmra.mrb[0].mxu0 %v3370
        %v3467 = vpop.f32.mrb[0].mxu0
        %v3468 = vadd.f32 0.0, %v3467
        %v3469 = vpop.f32.mrb[0].mxu0
        %3470 = vmatprep.mubr.f32.mxu0 0.0
        %3471 = vmatmul.mubr.f32.gmra.mrb[0].mxu0 %v3373
        %v3472 = vpop.f32.mrb[0].mxu0
        %v3473 = vadd.f32 0.0, %v3472
        %v3474 = vpop.f32.mrb[0].mxu0
        %3475 = vmatprep.mubr.f32.mxu0 0.0
        %3476 = vmatmul.mubr.f32.gmra.mrb[0].mxu0 %v3376
        %v3477 = vpop.f32.mrb[0].mxu0
        %v3478 = vadd.f32 0.0, %v3477
        %v3479 = vpop.f32.mrb[0].mxu0
        %3480 = vdwg.mxu0
        %v3481 = vld [vmem:[%s4] sm:$0xff]
        %v3482 = vld [vmem:[%s4 + $0x8] sm:$0xff]
        %v3483 = vld [vmem:[%s4 + $0x10] sm:$0xff]
        %v3484 = vld [vmem:[%s4 + $0x18] sm:$0xff]
        %v3485 = vld [vmem:[%s4 + $0x20] sm:$0xff]
        %v3486 = vld [vmem:[%s4 + $0x28] sm:$0xff]
        %v3487 = vld [vmem:[%s4 + $0x30] sm:$0xff]
        %v3488 = vld [vmem:[%s4 + $0x38] sm:$0xff]
        %v3489 = vld [vmem:[%s4 + $0x40] sm:$0xff]
        %v3490 = vld [vmem:[%s4 + $0x48] sm:$0xff]
        %v3491 = vld [vmem:[%s4 + $0x50] sm:$0xff]
        %v3492 = vld [vmem:[%s4 + $0x58] sm:$0xff]
        %v3493 = vld [vmem:[%s4 + $0x60] sm:$0xff]
        %v3494 = vld [vmem:[%s4 + $0x68] sm:$0xff]
        %v3495 = vld [vmem:[%s4 + $0x70] sm:$0xff]
        %v3496 = vld [vmem:[%s4 + $0x78] sm:$0xff]
        %v3497 = vld [vmem:[%s4 + $0x80] sm:$0xff]
        %v3498 = vld [vmem:[%s4 + $0x88] sm:$0xff]
        %v3499 = vld [vmem:[%s4 + $0x90] sm:$0xff]
        %v3500 = vld [vmem:[%s4 + $0x98] sm:$0xff]
        %v3501 = vld [vmem:[%s4 + $0xa0] sm:$0xff]
        %v3502 = vld [vmem:[%s4 + $0xa8] sm:$0xff]
        %v3503 = vld [vmem:[%s4 + $0xb0] sm:$0xff]
        %v3504 = vld [vmem:[%s4 + $0xb8] sm:$0xff]
        %v3505 = vld [vmem:[%s4 + $0xc0] sm:$0x7f]
        %v3506 = vld [vmem:[%s4 + $0xc8] sm:$0x7f]
        %v3508 = vsel %vm1249, %v3448, 0
        %v3511 = vsel %vm1249, %v3453, 0
        %v3514 = vsel %vm1249, %v3458, 0
        %v3517 = vsel %vm1249, %v3463, 0
        %v3520 = vsel %vm1249, %v3468, 0
        %v3523 = vsel %vm1249, %v3473, 0
        %v3526 = vsel %vm1249, %v3478, 0
        %v3529 = vsel %vm1125, %v3505, 0
        %v3532 = vsel %vm1125, %v3506, 0
        %3534 = vmatprep.subr.mxu0 %v3482
        %3535 = vmatpush1.msra.mxu0 %v3481
        %3536 = vmatprep.subr.mxu0 %v3484
        %3537 = vmatpush1.msra.mxu0 %v3483
        %3538 = vmatprep.subr.mxu0 %v3486
        %3539 = vmatpush1.msra.mxu0 %v3485
        %3540 = vmatprep.subr.mxu0 %v3488
        %3541 = vmatpush1.msra.mxu0 %v3487
        %3542 = vmatprep.subr.mxu0 %v3490
        %3543 = vmatpush1.msra.mxu0 %v3489
        %3544 = vmatprep.subr.mxu0 %v3492
        %3545 = vmatpush1.msra.mxu0 %v3491
        %3546 = vmatprep.subr.mxu0 %v3494
        %3547 = vmatpush1.msra.mxu0 %v3493
        %3548 = vmatprep.subr.mxu0 %v3496
        %3549 = vmatpush1.msra.mxu0 %v3495
        %3550 = vmatprep.subr.mxu0 %v3498
        %3551 = vmatpush1.msra.mxu0 %v3497
        %3552 = vmatprep.subr.mxu0 %v3500
        %3553 = vmatpush1.msra.mxu0 %v3499
        %3554 = vmatprep.subr.mxu0 %v3502
        %3555 = vmatpush1.msra.mxu0 %v3501
        %3556 = vmatprep.subr.mxu0 %v3504
        %3557 = vmatpush1.msra.mxu0 %v3503
        %3558 = vmatprep.subr.mxu0 %v3532
        %3559 = vmatpush1.msra.mxu0 %v3529
        %3560 = vmatprep.subr.mxu0 0.0
        %3561 = vmatpush1.msra.mxu0 0.0
        %3562 = vmatprep.subr.mxu0 0.0
        %3563 = vmatpush1.msra.mxu0 0.0
        %3564 = vmatprep.subr.mxu0 0.0
        %3565 = vmatpush1.msra.mxu0 0.0
        %3566 = vmatprep.subr.mxu0 0.0
        %3567 = vmatpush1.msra.mxu0 0.0
        %3568 = vmatprep.subr.mxu0 0.0
        %3569 = vmatpush1.msra.mxu0 0.0
        %3570 = vmatprep.subr.mxu0 0.0
        %3571 = vmatpush1.msra.mxu0 0.0
        %3572 = vmatprep.subr.mxu0 0.0
        %3573 = vmatpush1.msra.mxu0 0.0
        %3574 = vmatprep.subr.mxu0 0.0
        %3575 = vmatpush1.msra.mxu0 0.0
        %3576 = vmatprep.subr.mxu0 0.0
        %3577 = vmatpush1.msra.mxu0 0.0
        %3578 = vmatprep.subr.mxu0 0.0
        %3579 = vmatpush1.msra.mxu0 0.0
        %3580 = vmatprep.subr.mxu0 0.0
        %3581 = vmatpush1.msra.mxu0 0.0
        %3582 = vmatprep.subr.mxu0 0.0
        %3583 = vmatpush1.msra.mxu0 0.0
        %3584 = vmatprep.subr.mxu0 0.0
        %3585 = vmatpush1.msra.mxu0 0.0
        %3586 = vmatprep.subr.mxu0 0.0
        %3587 = vmatpush1.msra.mxu0 0.0
        %3588 = vmatprep.subr.mxu0 0.0
        %3589 = vmatpush1.msra.mxu0 0.0
        %3590 = vmatprep.subr.mxu0 0.0
        %3591 = vmatpush1.msra.mxu0 0.0
        %3592 = vmatprep.subr.mxu0 0.0
        %3593 = vmatpush1.msra.mxu0 0.0
        %3594 = vmatprep.subr.mxu0 0.0
        %3595 = vmatpush1.msra.mxu0 0.0
        %3596 = vmatprep.subr.mxu0 0.0
        %3597 = vmatpush1.msra.mxu0 0.0
        %3598 = vmatprep.mubr.f32.mxu0 0.0
        %3599 = vmatmul.mubr.f32.gmra.mrb[0].mxu0 %v3508
        %v3600 = vpop.f32.mrb[0].mxu0
        %v3601 = vadd.f32 0.0, %v3600
        %v3602 = vpop.f32.mrb[0].mxu0
        %v3603 = vadd.f32 0.0, %v3602
        %3604 = vmatprep.mubr.f32.mxu0 0.0
        %3605 = vmatmul.mubr.f32.gmra.mrb[0].mxu0 %v3511
        %v3606 = vpop.f32.mrb[0].mxu0
        %v3607 = vadd.f32 0.0, %v3606
        %v3608 = vpop.f32.mrb[0].mxu0
        %v3609 = vadd.f32 0.0, %v3608
        %3610 = vmatprep.mubr.f32.mxu0 0.0
        %3611 = vmatmul.mubr.f32.gmra.mrb[0].mxu0 %v3514
        %v3612 = vpop.f32.mrb[0].mxu0
        %v3613 = vadd.f32 0.0, %v3612
        %v3614 = vpop.f32.mrb[0].mxu0
        %v3615 = vadd.f32 0.0, %v3614
        %3616 = vmatprep.mubr.f32.mxu0 0.0
        %3617 = vmatmul.mubr.f32.gmra.mrb[0].mxu0 %v3517
        %v3618 = vpop.f32.mrb[0].mxu0
        %v3619 = vadd.f32 0.0, %v3618
        %v3620 = vpop.f32.mrb[0].mxu0
        %v3621 = vadd.f32 0.0, %v3620
        %3622 = vmatprep.mubr.f32.mxu0 0.0
        %3623 = vmatmul.mubr.f32.gmra.mrb[0].mxu0 %v3520
        %v3624 = vpop.f32.mrb[0].mxu0
        %v3625 = vadd.f32 0.0, %v3624
        %v3626 = vpop.f32.mrb[0].mxu0
        %v3627 = vadd.f32 0.0, %v3626
        %3628 = vmatprep.mubr.f32.mxu0 0.0
        %3629 = vmatmul.mubr.f32.gmra.mrb[0].mxu0 %v3523
        %v3630 = vpop.f32.mrb[0].mxu0
        %v3631 = vadd.f32 0.0, %v3630
        %v3632 = vpop.f32.mrb[0].mxu0
        %v3633 = vadd.f32 0.0, %v3632
        %3634 = vmatprep.mubr.f32.mxu0 0.0
        %3635 = vmatmul.mubr.f32.gmra.mrb[0].mxu0 %v3526
        %v3636 = vpop.f32.mrb[0].mxu0
        %v3637 = vadd.f32 0.0, %v3636
        %v3638 = vpop.f32.mrb[0].mxu0
        %v3639 = vadd.f32 0.0, %v3638
        %3640 = vdwg.mxu0
        %v3641 = vmax.f32 %v3601, 0.0
        %v3642 = vmax.f32 %v3603, 0.0
        %v3643 = vmax.f32 %v3607, 0.0
        %v3644 = vmax.f32 %v3609, 0.0
        %v3645 = vmax.f32 %v3613, 0.0
        %v3646 = vmax.f32 %v3615, 0.0
        %v3647 = vmax.f32 %v3619, 0.0
        %v3648 = vmax.f32 %v3621, 0.0
        %v3649 = vmax.f32 %v3625, 0.0
        %v3650 = vmax.f32 %v3627, 0.0
        %v3651 = vmax.f32 %v3631, 0.0
        %v3652 = vmax.f32 %v3633, 0.0
        %v3653 = vmax.f32 %v3637, 0.0
        %v3654 = vmax.f32 %v3639, 0.0
        %3655 = vst [vmem:[#allocation2 + $0xe0] sm:$0xff] %v3641
        %3656 = vst.msk [vmem:[#allocation2 + $0xe8] sm:$0xff] %vm1549, %v3642
        %3657 = vst [vmem:[#allocation2 + $0xf0] sm:$0xff] %v3643
        %3658 = vst.msk [vmem:[#allocation2 + $0xf8] sm:$0xff] %vm1549, %v3644
        %3659 = vst [vmem:[#allocation2 + $0x100] sm:$0xff] %v3645
        %3660 = vst.msk [vmem:[#allocation2 + $0x108] sm:$0xff] %vm1549, %v3646
        %3661 = vst [vmem:[#allocation2 + $0x110] sm:$0xff] %v3647
        %3662 = vst.msk [vmem:[#allocation2 + $0x118] sm:$0xff] %vm1549, %v3648
        %3663 = vst [vmem:[#allocation2 + $0x120] sm:$0xff] %v3649
        %3664 = vst.msk [vmem:[#allocation2 + $0x128] sm:$0xff] %vm1549, %v3650
        %3665 = vst [vmem:[#allocation2 + $0x130] sm:$0xff] %v3651
        %3666 = vst.msk [vmem:[#allocation2 + $0x138] sm:$0xff] %vm1549, %v3652
        %3667 = vst [vmem:[#allocation2 + $0x140] sm:$0xff] %v3653
        %3668 = vst.msk [vmem:[#allocation2 + $0x148] sm:$0xff] %vm1549, %v3654
        %s3669 = sld [smem:[#allocation8 + $0x3]]
        %v3670 = vstv %s3669
        %v3671 = vld [vmem:[%s506] sm:$0xff]
        %v3672 = vld [vmem:[%s506 + $0x8] sm:$0xff]
        %v3673 = vld [vmem:[%s506 + $0x10] sm:$0xff]
        %v3674 = vld [vmem:[%s506 + $0x18] sm:$0xff]
        %v3675 = vld [vmem:[%s506 + $0x20] sm:$0xff]
        %v3676 = vld [vmem:[%s506 + $0x28] sm:$0xff]
        %v3677 = vld [vmem:[%s506 + $0x30] sm:$0xff]
        %v3678 = vld [vmem:[%s506 + $0x38] sm:$0xff]
        %v3679 = vld [vmem:[%s506 + $0x40] sm:$0xff]
        %v3680 = vld [vmem:[%s506 + $0x48] sm:$0xff]
        %v3681 = vld [vmem:[%s506 + $0x50] sm:$0xff]
        %v3682 = vld [vmem:[%s506 + $0x58] sm:$0xff]
        %v3683 = vld [vmem:[%s506 + $0x60] sm:$0xff]
        %s3684 = sld [smem:[#allocation3 + $0x1b]]
        %v3685 = vstv %s3684
        %v3686 = vmul.f32 %v3671, %v3685
        %v3687 = vmul.f32 %v3672, %v3685
        %v3688 = vmul.f32 %v3673, %v3685
        %v3689 = vmul.f32 %v3674, %v3685
        %v3690 = vmul.f32 %v3675, %v3685
        %v3691 = vmul.f32 %v3676, %v3685
        %v3692 = vmul.f32 %v3677, %v3685
        %v3693 = vmul.f32 %v3678, %v3685
        %v3694 = vmul.f32 %v3679, %v3685
        %v3695 = vmul.f32 %v3680, %v3685
        %v3696 = vmul.f32 %v3681, %v3685
        %v3697 = vmul.f32 %v3682, %v3685
        %v3698 = vmul.f32 %v3683, %v3685
        %v3699 = vadd.f32 %v3670, %v3686
        %v3700 = vadd.f32 %v3670, %v3687
        %v3701 = vadd.f32 %v3670, %v3688
        %v3702 = vadd.f32 %v3670, %v3689
        %v3703 = vadd.f32 %v3670, %v3690
        %v3704 = vadd.f32 %v3670, %v3691
        %v3705 = vadd.f32 %v3670, %v3692
        %v3706 = vadd.f32 %v3670, %v3693
        %v3707 = vadd.f32 %v3670, %v3694
        %v3708 = vadd.f32 %v3670, %v3695
        %v3709 = vadd.f32 %v3670, %v3696
        %v3710 = vadd.f32 %v3670, %v3697
        %v3711 = vadd.f32 %v3670, %v3698
        %s3712 = sld [smem:[#allocation3 + $0x1c]]
        %v3713 = vstv %s3712
        %v3714 = vmul.f32 %v3671, %v3713
        %v3715 = vmul.f32 %v3672, %v3713
        %v3716 = vmul.f32 %v3673, %v3713
        %v3717 = vmul.f32 %v3674, %v3713
        %v3718 = vmul.f32 %v3675, %v3713
        %v3719 = vmul.f32 %v3676, %v3713
        %v3720 = vmul.f32 %v3677, %v3713
        %v3721 = vmul.f32 %v3678, %v3713
        %v3722 = vmul.f32 %v3679, %v3713
        %v3723 = vmul.f32 %v3680, %v3713
        %v3724 = vmul.f32 %v3681, %v3713
        %v3725 = vmul.f32 %v3682, %v3713
        %v3726 = vmul.f32 %v3683, %v3713
        %3740 = vrot.lane.b32.xlu0 %v3714, 127
        %v3741 = vpop.permute.xlu0 %3740
        %3742 = vrot.lane.b32.xlu0 %v3715, 127
        %v3743 = vpop.permute.xlu0 %3742
        %3744 = vrot.lane.b32.xlu0 %v3716, 127
        %v3745 = vpop.permute.xlu0 %3744
        %3746 = vrot.lane.b32.xlu0 %v3717, 127
        %v3747 = vpop.permute.xlu0 %3746
        %3748 = vrot.lane.b32.xlu0 %v3718, 127
        %v3749 = vpop.permute.xlu0 %3748
        %3750 = vrot.lane.b32.xlu0 %v3719, 127
        %v3751 = vpop.permute.xlu0 %3750
        %3752 = vrot.lane.b32.xlu0 %v3720, 127
        %v3753 = vpop.permute.xlu0 %3752
        %3754 = vrot.lane.b32.xlu0 %v3721, 127
        %v3755 = vpop.permute.xlu0 %3754
        %3756 = vrot.lane.b32.xlu0 %v3722, 127
        %v3757 = vpop.permute.xlu0 %3756
        %3758 = vrot.lane.b32.xlu0 %v3723, 127
        %v3759 = vpop.permute.xlu0 %3758
        %3760 = vrot.lane.b32.xlu0 %v3724, 127
        %v3761 = vpop.permute.xlu0 %3760
        %3762 = vrot.lane.b32.xlu0 %v3725, 127
        %v3763 = vpop.permute.xlu0 %3762
        %3764 = vrot.lane.b32.xlu0 %v3726, 127
        %v3765 = vpop.permute.xlu0 %3764
        %v3779 = vadd.f32 %v3699, %v3741
        %v3780 = vadd.f32 %v3700, %v3743
        %v3781 = vadd.f32 %v3701, %v3745
        %v3782 = vadd.f32 %v3702, %v3747
        %v3783 = vadd.f32 %v3703, %v3749
        %v3784 = vadd.f32 %v3704, %v3751
        %v3785 = vadd.f32 %v3705, %v3753
        %v3786 = vadd.f32 %v3706, %v3755
        %v3787 = vadd.f32 %v3707, %v3757
        %v3788 = vadd.f32 %v3708, %v3759
        %v3789 = vadd.f32 %v3709, %v3761
        %v3790 = vadd.f32 %v3710, %v3763
        %v3791 = vadd.f32 %v3711, %v3765
        %s3792 = sld [smem:[#allocation3 + $0x1d]]
        %v3793 = vstv %s3792
        %v3794 = vmul.f32 %v3671, %v3793
        %v3795 = vmul.f32 %v3672, %v3793
        %v3796 = vmul.f32 %v3673, %v3793
        %v3797 = vmul.f32 %v3674, %v3793
        %v3798 = vmul.f32 %v3675, %v3793
        %v3799 = vmul.f32 %v3676, %v3793
        %v3800 = vmul.f32 %v3677, %v3793
        %v3801 = vmul.f32 %v3678, %v3793
        %v3802 = vmul.f32 %v3679, %v3793
        %v3803 = vmul.f32 %v3680, %v3793
        %v3804 = vmul.f32 %v3681, %v3793
        %v3805 = vmul.f32 %v3682, %v3793
        %v3806 = vmul.f32 %v3683, %v3793
        %3820 = vrot.lane.b32.xlu0 %v3794, 126
        %v3821 = vpop.permute.xlu0 %3820
        %3822 = vrot.lane.b32.xlu0 %v3795, 126
        %v3823 = vpop.permute.xlu0 %3822
        %3824 = vrot.lane.b32.xlu0 %v3796, 126
        %v3825 = vpop.permute.xlu0 %3824
        %3826 = vrot.lane.b32.xlu0 %v3797, 126
        %v3827 = vpop.permute.xlu0 %3826
        %3828 = vrot.lane.b32.xlu0 %v3798, 126
        %v3829 = vpop.permute.xlu0 %3828
        %3830 = vrot.lane.b32.xlu0 %v3799, 126
        %v3831 = vpop.permute.xlu0 %3830
        %3832 = vrot.lane.b32.xlu0 %v3800, 126
        %v3833 = vpop.permute.xlu0 %3832
        %3834 = vrot.lane.b32.xlu0 %v3801, 126
        %v3835 = vpop.permute.xlu0 %3834
        %3836 = vrot.lane.b32.xlu0 %v3802, 126
        %v3837 = vpop.permute.xlu0 %3836
        %3838 = vrot.lane.b32.xlu0 %v3803, 126
        %v3839 = vpop.permute.xlu0 %3838
        %3840 = vrot.lane.b32.xlu0 %v3804, 126
        %v3841 = vpop.permute.xlu0 %3840
        %3842 = vrot.lane.b32.xlu0 %v3805, 126
        %v3843 = vpop.permute.xlu0 %3842
        %3844 = vrot.lane.b32.xlu0 %v3806, 126
        %v3845 = vpop.permute.xlu0 %3844
        %v3859 = vadd.f32 %v3779, %v3821
        %v3860 = vadd.f32 %v3780, %v3823
        %v3861 = vadd.f32 %v3781, %v3825
        %v3862 = vadd.f32 %v3782, %v3827
        %v3863 = vadd.f32 %v3783, %v3829
        %v3864 = vadd.f32 %v3784, %v3831
        %v3865 = vadd.f32 %v3785, %v3833
        %v3866 = vadd.f32 %v3786, %v3835
        %v3867 = vadd.f32 %v3787, %v3837
        %v3868 = vadd.f32 %v3788, %v3839
        %v3869 = vadd.f32 %v3789, %v3841
        %v3870 = vadd.f32 %v3790, %v3843
        %v3871 = vadd.f32 %v3791, %v3845
        %v3872 = vld [vmem:[%s506 + $0x1] sm:$0xff]
        %v3873 = vld [vmem:[%s506 + $0x9] sm:$0xff]
        %v3874 = vld [vmem:[%s506 + $0x11] sm:$0xff]
        %v3875 = vld [vmem:[%s506 + $0x19] sm:$0xff]
        %v3876 = vld [vmem:[%s506 + $0x21] sm:$0xff]
        %v3877 = vld [vmem:[%s506 + $0x29] sm:$0xff]
        %v3878 = vld [vmem:[%s506 + $0x31] sm:$0xff]
        %v3879 = vld [vmem:[%s506 + $0x39] sm:$0xff]
        %v3880 = vld [vmem:[%s506 + $0x41] sm:$0xff]
        %v3881 = vld [vmem:[%s506 + $0x49] sm:$0xff]
        %v3882 = vld [vmem:[%s506 + $0x51] sm:$0xff]
        %v3883 = vld [vmem:[%s506 + $0x59] sm:$0xff]
        %v3884 = vld [vmem:[%s506 + $0x61] sm:$0xff]
        %s3885 = sld [smem:[#allocation3 + $0x1e]]
        %v3886 = vstv %s3885
        %v3887 = vmul.f32 %v3872, %v3886
        %v3888 = vmul.f32 %v3873, %v3886
        %v3889 = vmul.f32 %v3874, %v3886
        %v3890 = vmul.f32 %v3875, %v3886
        %v3891 = vmul.f32 %v3876, %v3886
        %v3892 = vmul.f32 %v3877, %v3886
        %v3893 = vmul.f32 %v3878, %v3886
        %v3894 = vmul.f32 %v3879, %v3886
        %v3895 = vmul.f32 %v3880, %v3886
        %v3896 = vmul.f32 %v3881, %v3886
        %v3897 = vmul.f32 %v3882, %v3886
        %v3898 = vmul.f32 %v3883, %v3886
        %v3899 = vmul.f32 %v3884, %v3886
        %v3900 = vadd.f32 %v3859, %v3887
        %v3901 = vadd.f32 %v3860, %v3888
        %v3902 = vadd.f32 %v3861, %v3889
        %v3903 = vadd.f32 %v3862, %v3890
        %v3904 = vadd.f32 %v3863, %v3891
        %v3905 = vadd.f32 %v3864, %v3892
        %v3906 = vadd.f32 %v3865, %v3893
        %v3907 = vadd.f32 %v3866, %v3894
        %v3908 = vadd.f32 %v3867, %v3895
        %v3909 = vadd.f32 %v3868, %v3896
        %v3910 = vadd.f32 %v3869, %v3897
        %v3911 = vadd.f32 %v3870, %v3898
        %v3912 = vadd.f32 %v3871, %v3899
        %s3913 = sld [smem:[#allocation3 + $0x1f]]
        %v3914 = vstv %s3913
        %v3915 = vmul.f32 %v3872, %v3914
        %v3916 = vmul.f32 %v3873, %v3914
        %v3917 = vmul.f32 %v3874, %v3914
        %v3918 = vmul.f32 %v3875, %v3914
        %v3919 = vmul.f32 %v3876, %v3914
        %v3920 = vmul.f32 %v3877, %v3914
        %v3921 = vmul.f32 %v3878, %v3914
        %v3922 = vmul.f32 %v3879, %v3914
        %v3923 = vmul.f32 %v3880, %v3914
        %v3924 = vmul.f32 %v3881, %v3914
        %v3925 = vmul.f32 %v3882, %v3914
        %v3926 = vmul.f32 %v3883, %v3914
        %v3927 = vmul.f32 %v3884, %v3914
        %3941 = vrot.lane.b32.xlu0 %v3915, 127
        %v3942 = vpop.permute.xlu0 %3941
        %3943 = vrot.lane.b32.xlu0 %v3916, 127
        %v3944 = vpop.permute.xlu0 %3943
        %3945 = vrot.lane.b32.xlu0 %v3917, 127
        %v3946 = vpop.permute.xlu0 %3945
        %3947 = vrot.lane.b32.xlu0 %v3918, 127
        %v3948 = vpop.permute.xlu0 %3947
        %3949 = vrot.lane.b32.xlu0 %v3919, 127
        %v3950 = vpop.permute.xlu0 %3949
        %3951 = vrot.lane.b32.xlu0 %v3920, 127
        %v3952 = vpop.permute.xlu0 %3951
        %3953 = vrot.lane.b32.xlu0 %v3921, 127
        %v3954 = vpop.permute.xlu0 %3953
        %3955 = vrot.lane.b32.xlu0 %v3922, 127
        %v3956 = vpop.permute.xlu0 %3955
        %3957 = vrot.lane.b32.xlu0 %v3923, 127
        %v3958 = vpop.permute.xlu0 %3957
        %3959 = vrot.lane.b32.xlu0 %v3924, 127
        %v3960 = vpop.permute.xlu0 %3959
        %3961 = vrot.lane.b32.xlu0 %v3925, 127
        %v3962 = vpop.permute.xlu0 %3961
        %3963 = vrot.lane.b32.xlu0 %v3926, 127
        %v3964 = vpop.permute.xlu0 %3963
        %3965 = vrot.lane.b32.xlu0 %v3927, 127
        %v3966 = vpop.permute.xlu0 %3965
        %v3980 = vadd.f32 %v3900, %v3942
        %v3981 = vadd.f32 %v3901, %v3944
        %v3982 = vadd.f32 %v3902, %v3946
        %v3983 = vadd.f32 %v3903, %v3948
        %v3984 = vadd.f32 %v3904, %v3950
        %v3985 = vadd.f32 %v3905, %v3952
        %v3986 = vadd.f32 %v3906, %v3954
        %v3987 = vadd.f32 %v3907, %v3956
        %v3988 = vadd.f32 %v3908, %v3958
        %v3989 = vadd.f32 %v3909, %v3960
        %v3990 = vadd.f32 %v3910, %v3962
        %v3991 = vadd.f32 %v3911, %v3964
        %v3992 = vadd.f32 %v3912, %v3966
        %s3993 = sld [smem:[#allocation3 + $0x20]]
        %v3994 = vstv %s3993
        %v3995 = vmul.f32 %v3872, %v3994
        %v3996 = vmul.f32 %v3873, %v3994
        %v3997 = vmul.f32 %v3874, %v3994
        %v3998 = vmul.f32 %v3875, %v3994
        %v3999 = vmul.f32 %v3876, %v3994
        %v4000 = vmul.f32 %v3877, %v3994
        %v4001 = vmul.f32 %v3878, %v3994
        %v4002 = vmul.f32 %v3879, %v3994
        %v4003 = vmul.f32 %v3880, %v3994
        %v4004 = vmul.f32 %v3881, %v3994
        %v4005 = vmul.f32 %v3882, %v3994
        %v4006 = vmul.f32 %v3883, %v3994
        %v4007 = vmul.f32 %v3884, %v3994
        %4021 = vrot.lane.b32.xlu0 %v3995, 126
        %v4022 = vpop.permute.xlu0 %4021
        %4023 = vrot.lane.b32.xlu0 %v3996, 126
        %v4024 = vpop.permute.xlu0 %4023
        %4025 = vrot.lane.b32.xlu0 %v3997, 126
        %v4026 = vpop.permute.xlu0 %4025
        %4027 = vrot.lane.b32.xlu0 %v3998, 126
        %v4028 = vpop.permute.xlu0 %4027
        %4029 = vrot.lane.b32.xlu0 %v3999, 126
        %v4030 = vpop.permute.xlu0 %4029
        %4031 = vrot.lane.b32.xlu0 %v4000, 126
        %v4032 = vpop.permute.xlu0 %4031
        %4033 = vrot.lane.b32.xlu0 %v4001, 126
        %v4034 = vpop.permute.xlu0 %4033
        %4035 = vrot.lane.b32.xlu0 %v4002, 126
        %v4036 = vpop.permute.xlu0 %4035
        %4037 = vrot.lane.b32.xlu0 %v4003, 126
        %v4038 = vpop.permute.xlu0 %4037
        %4039 = vrot.lane.b32.xlu0 %v4004, 126
        %v4040 = vpop.permute.xlu0 %4039
        %4041 = vrot.lane.b32.xlu0 %v4005, 126
        %v4042 = vpop.permute.xlu0 %4041
        %4043 = vrot.lane.b32.xlu0 %v4006, 126
        %v4044 = vpop.permute.xlu0 %4043
        %4045 = vrot.lane.b32.xlu0 %v4007, 126
        %v4046 = vpop.permute.xlu0 %4045
        %v4060 = vadd.f32 %v3980, %v4022
        %v4061 = vadd.f32 %v3981, %v4024
        %v4062 = vadd.f32 %v3982, %v4026
        %v4063 = vadd.f32 %v3983, %v4028
        %v4064 = vadd.f32 %v3984, %v4030
        %v4065 = vadd.f32 %v3985, %v4032
        %v4066 = vadd.f32 %v3986, %v4034
        %v4067 = vadd.f32 %v3987, %v4036
        %v4068 = vadd.f32 %v3988, %v4038
        %v4069 = vadd.f32 %v3989, %v4040
        %v4070 = vadd.f32 %v3990, %v4042
        %v4071 = vadd.f32 %v3991, %v4044
        %v4072 = vadd.f32 %v3992, %v4046
        %v4073 = vld [vmem:[%s506 + $0x2] sm:$0xff]
        %v4074 = vld [vmem:[%s506 + $0xa] sm:$0xff]
        %v4075 = vld [vmem:[%s506 + $0x12] sm:$0xff]
        %v4076 = vld [vmem:[%s506 + $0x1a] sm:$0xff]
        %v4077 = vld [vmem:[%s506 + $0x22] sm:$0xff]
        %v4078 = vld [vmem:[%s506 + $0x2a] sm:$0xff]
        %v4079 = vld [vmem:[%s506 + $0x32] sm:$0xff]
        %v4080 = vld [vmem:[%s506 + $0x3a] sm:$0xff]
        %v4081 = vld [vmem:[%s506 + $0x42] sm:$0xff]
        %v4082 = vld [vmem:[%s506 + $0x4a] sm:$0xff]
        %v4083 = vld [vmem:[%s506 + $0x52] sm:$0xff]
        %v4084 = vld [vmem:[%s506 + $0x5a] sm:$0xff]
        %v4085 = vld [vmem:[%s506 + $0x62] sm:$0xff]
        %s4086 = sld [smem:[#allocation3 + $0x21]]
        %v4087 = vstv %s4086
        %v4088 = vmul.f32 %v4073, %v4087
        %v4089 = vmul.f32 %v4074, %v4087
        %v4090 = vmul.f32 %v4075, %v4087
        %v4091 = vmul.f32 %v4076, %v4087
        %v4092 = vmul.f32 %v4077, %v4087
        %v4093 = vmul.f32 %v4078, %v4087
        %v4094 = vmul.f32 %v4079, %v4087
        %v4095 = vmul.f32 %v4080, %v4087
        %v4096 = vmul.f32 %v4081, %v4087
        %v4097 = vmul.f32 %v4082, %v4087
        %v4098 = vmul.f32 %v4083, %v4087
        %v4099 = vmul.f32 %v4084, %v4087
        %v4100 = vmul.f32 %v4085, %v4087
        %v4101 = vadd.f32 %v4060, %v4088
        %v4102 = vadd.f32 %v4061, %v4089
        %v4103 = vadd.f32 %v4062, %v4090
        %v4104 = vadd.f32 %v4063, %v4091
        %v4105 = vadd.f32 %v4064, %v4092
        %v4106 = vadd.f32 %v4065, %v4093
        %v4107 = vadd.f32 %v4066, %v4094
        %v4108 = vadd.f32 %v4067, %v4095
        %v4109 = vadd.f32 %v4068, %v4096
        %v4110 = vadd.f32 %v4069, %v4097
        %v4111 = vadd.f32 %v4070, %v4098
        %v4112 = vadd.f32 %v4071, %v4099
        %v4113 = vadd.f32 %v4072, %v4100
        %s4114 = sld [smem:[#allocation3 + $0x22]]
        %v4115 = vstv %s4114
        %v4116 = vmul.f32 %v4073, %v4115
        %v4117 = vmul.f32 %v4074, %v4115
        %v4118 = vmul.f32 %v4075, %v4115
        %v4119 = vmul.f32 %v4076, %v4115
        %v4120 = vmul.f32 %v4077, %v4115
        %v4121 = vmul.f32 %v4078, %v4115
        %v4122 = vmul.f32 %v4079, %v4115
        %v4123 = vmul.f32 %v4080, %v4115
        %v4124 = vmul.f32 %v4081, %v4115
        %v4125 = vmul.f32 %v4082, %v4115
        %v4126 = vmul.f32 %v4083, %v4115
        %v4127 = vmul.f32 %v4084, %v4115
        %v4128 = vmul.f32 %v4085, %v4115
        %4142 = vrot.lane.b32.xlu0 %v4116, 127
        %v4143 = vpop.permute.xlu0 %4142
        %4144 = vrot.lane.b32.xlu0 %v4117, 127
        %v4145 = vpop.permute.xlu0 %4144
        %4146 = vrot.lane.b32.xlu0 %v4118, 127
        %v4147 = vpop.permute.xlu0 %4146
        %4148 = vrot.lane.b32.xlu0 %v4119, 127
        %v4149 = vpop.permute.xlu0 %4148
        %4150 = vrot.lane.b32.xlu0 %v4120, 127
        %v4151 = vpop.permute.xlu0 %4150
        %4152 = vrot.lane.b32.xlu0 %v4121, 127
        %v4153 = vpop.permute.xlu0 %4152
        %4154 = vrot.lane.b32.xlu0 %v4122, 127
        %v4155 = vpop.permute.xlu0 %4154
        %4156 = vrot.lane.b32.xlu0 %v4123, 127
        %v4157 = vpop.permute.xlu0 %4156
        %4158 = vrot.lane.b32.xlu0 %v4124, 127
        %v4159 = vpop.permute.xlu0 %4158
        %4160 = vrot.lane.b32.xlu0 %v4125, 127
        %v4161 = vpop.permute.xlu0 %4160
        %4162 = vrot.lane.b32.xlu0 %v4126, 127
        %v4163 = vpop.permute.xlu0 %4162
        %4164 = vrot.lane.b32.xlu0 %v4127, 127
        %v4165 = vpop.permute.xlu0 %4164
        %4166 = vrot.lane.b32.xlu0 %v4128, 127
        %v4167 = vpop.permute.xlu0 %4166
        %v4181 = vadd.f32 %v4101, %v4143
        %v4182 = vadd.f32 %v4102, %v4145
        %v4183 = vadd.f32 %v4103, %v4147
        %v4184 = vadd.f32 %v4104, %v4149
        %v4185 = vadd.f32 %v4105, %v4151
        %v4186 = vadd.f32 %v4106, %v4153
        %v4187 = vadd.f32 %v4107, %v4155
        %v4188 = vadd.f32 %v4108, %v4157
        %v4189 = vadd.f32 %v4109, %v4159
        %v4190 = vadd.f32 %v4110, %v4161
        %v4191 = vadd.f32 %v4111, %v4163
        %v4192 = vadd.f32 %v4112, %v4165
        %v4193 = vadd.f32 %v4113, %v4167
        %s4194 = sld [smem:[#allocation3 + $0x23]]
        %v4195 = vstv %s4194
        %v4196 = vmul.f32 %v4073, %v4195
        %v4197 = vmul.f32 %v4074, %v4195
        %v4198 = vmul.f32 %v4075, %v4195
        %v4199 = vmul.f32 %v4076, %v4195
        %v4200 = vmul.f32 %v4077, %v4195
        %v4201 = vmul.f32 %v4078, %v4195
        %v4202 = vmul.f32 %v4079, %v4195
        %v4203 = vmul.f32 %v4080, %v4195
        %v4204 = vmul.f32 %v4081, %v4195
        %v4205 = vmul.f32 %v4082, %v4195
        %v4206 = vmul.f32 %v4083, %v4195
        %v4207 = vmul.f32 %v4084, %v4195
        %v4208 = vmul.f32 %v4085, %v4195
        %4222 = vrot.lane.b32.xlu0 %v4196, 126
        %v4223 = vpop.permute.xlu0 %4222
        %4224 = vrot.lane.b32.xlu0 %v4197, 126
        %v4225 = vpop.permute.xlu0 %4224
        %4226 = vrot.lane.b32.xlu0 %v4198, 126
        %v4227 = vpop.permute.xlu0 %4226
        %4228 = vrot.lane.b32.xlu0 %v4199, 126
        %v4229 = vpop.permute.xlu0 %4228
        %4230 = vrot.lane.b32.xlu0 %v4200, 126
        %v4231 = vpop.permute.xlu0 %4230
        %4232 = vrot.lane.b32.xlu0 %v4201, 126
        %v4233 = vpop.permute.xlu0 %4232
        %4234 = vrot.lane.b32.xlu0 %v4202, 126
        %v4235 = vpop.permute.xlu0 %4234
        %4236 = vrot.lane.b32.xlu0 %v4203, 126
        %v4237 = vpop.permute.xlu0 %4236
        %4238 = vrot.lane.b32.xlu0 %v4204, 126
        %v4239 = vpop.permute.xlu0 %4238
        %4240 = vrot.lane.b32.xlu0 %v4205, 126
        %v4241 = vpop.permute.xlu0 %4240
        %4242 = vrot.lane.b32.xlu0 %v4206, 126
        %v4243 = vpop.permute.xlu0 %4242
        %4244 = vrot.lane.b32.xlu0 %v4207, 126
        %v4245 = vpop.permute.xlu0 %4244
        %4246 = vrot.lane.b32.xlu0 %v4208, 126
        %v4247 = vpop.permute.xlu0 %4246
        %v4261 = vadd.f32 %v4181, %v4223
        %v4262 = vadd.f32 %v4182, %v4225
        %v4263 = vadd.f32 %v4183, %v4227
        %v4264 = vadd.f32 %v4184, %v4229
        %v4265 = vadd.f32 %v4185, %v4231
        %v4266 = vadd.f32 %v4186, %v4233
        %v4267 = vadd.f32 %v4187, %v4235
        %v4268 = vadd.f32 %v4188, %v4237
        %v4269 = vadd.f32 %v4189, %v4239
        %v4270 = vadd.f32 %v4190, %v4241
        %v4271 = vadd.f32 %v4191, %v4243
        %v4272 = vadd.f32 %v4192, %v4245
        %v4273 = vadd.f32 %v4193, %v4247
        %v4287 = vrot.slane %v4261, 1
        %v4288 = vrot.slane %v4262, 1
        %v4289 = vsel %vm1125, %v4287, %v4288
        %v4290 = vrot.slane %v4263, 1
        %v4291 = vsel %vm1125, %v4288, %v4290
        %v4292 = vrot.slane %v4264, 1
        %v4293 = vsel %vm1125, %v4290, %v4292
        %v4294 = vrot.slane %v4265, 1
        %v4295 = vsel %vm1125, %v4292, %v4294
        %v4296 = vrot.slane %v4266, 1
        %v4297 = vsel %vm1125, %v4294, %v4296
        %v4298 = vrot.slane %v4267, 1
        %v4299 = vsel %vm1125, %v4296, %v4298
        %v4300 = vrot.slane %v4268, 1
        %v4301 = vsel %vm1125, %v4298, %v4300
        %v4302 = vrot.slane %v4269, 1
        %v4303 = vsel %vm1125, %v4300, %v4302
        %v4304 = vrot.slane %v4270, 1
        %v4305 = vsel %vm1125, %v4302, %v4304
        %v4306 = vrot.slane %v4271, 1
        %v4307 = vsel %vm1125, %v4304, %v4306
        %v4308 = vrot.slane %v4272, 1
        %v4309 = vsel %vm1125, %v4306, %v4308
        %v4310 = vrot.slane %v4273, 1
        %v4311 = vsel %vm1125, %v4308, %v4310
        %v4325 = vmax.f32 %v4261, %v4289
        %v4326 = vmax.f32 %v4262, %v4291
        %v4327 = vmax.f32 %v4263, %v4293
        %v4328 = vmax.f32 %v4264, %v4295
        %v4329 = vmax.f32 %v4265, %v4297
        %v4330 = vmax.f32 %v4266, %v4299
        %v4331 = vmax.f32 %v4267, %v4301
        %v4332 = vmax.f32 %v4268, %v4303
        %v4333 = vmax.f32 %v4269, %v4305
        %v4334 = vmax.f32 %v4270, %v4307
        %v4335 = vmax.f32 %v4271, %v4309
        %v4336 = vmax.f32 %v4272, %v4311
        %v4337 = vmax.f32 %v4273, %v4310
        %4351 = vrot.lane.b32.xlu0 %v4325, 127
        %v4352 = vpop.permute.xlu0 %4351
        %4353 = vrot.lane.b32.xlu0 %v4326, 127
        %v4354 = vpop.permute.xlu0 %4353
        %4355 = vrot.lane.b32.xlu0 %v4327, 127
        %v4356 = vpop.permute.xlu0 %4355
        %4357 = vrot.lane.b32.xlu0 %v4328, 127
        %v4358 = vpop.permute.xlu0 %4357
        %4359 = vrot.lane.b32.xlu0 %v4329, 127
        %v4360 = vpop.permute.xlu0 %4359
        %4361 = vrot.lane.b32.xlu0 %v4330, 127
        %v4362 = vpop.permute.xlu0 %4361
        %4363 = vrot.lane.b32.xlu0 %v4331, 127
        %v4364 = vpop.permute.xlu0 %4363
        %4365 = vrot.lane.b32.xlu0 %v4332, 127
        %v4366 = vpop.permute.xlu0 %4365
        %4367 = vrot.lane.b32.xlu0 %v4333, 127
        %v4368 = vpop.permute.xlu0 %4367
        %4369 = vrot.lane.b32.xlu0 %v4334, 127
        %v4370 = vpop.permute.xlu0 %4369
        %4371 = vrot.lane.b32.xlu0 %v4335, 127
        %v4372 = vpop.permute.xlu0 %4371
        %4373 = vrot.lane.b32.xlu0 %v4336, 127
        %v4374 = vpop.permute.xlu0 %4373
        %4375 = vrot.lane.b32.xlu0 %v4337, 127
        %v4376 = vpop.permute.xlu0 %4375
        %v4390 = vmax.f32 %v4325, %v4352
        %v4391 = vmax.f32 %v4326, %v4354
        %v4392 = vmax.f32 %v4327, %v4356
        %v4393 = vmax.f32 %v4328, %v4358
        %v4394 = vmax.f32 %v4329, %v4360
        %v4395 = vmax.f32 %v4330, %v4362
        %v4396 = vmax.f32 %v4331, %v4364
        %v4397 = vmax.f32 %v4332, %v4366
        %v4398 = vmax.f32 %v4333, %v4368
        %v4399 = vmax.f32 %v4334, %v4370
        %v4400 = vmax.f32 %v4335, %v4372
        %v4401 = vmax.f32 %v4336, %v4374
        %v4402 = vmax.f32 %v4337, %v4376
        %v4403 = vld [vmem:[#allocation9] sm:$0xff]
        %v4404 = vld [vmem:[#allocation9 + $0x8] sm:$0xff]
        %v4405 = vld [vmem:[#allocation9 + $0x10] sm:$0xff]
        %v4406 = vld [vmem:[#allocation9 + $0x18] sm:$0xff]
        %v4407 = vld [vmem:[#allocation9 + $0x20] sm:$0xff]
        %v4408 = vld [vmem:[#allocation9 + $0x28] sm:$0xff]
        %v4409 = vld [vmem:[#allocation9 + $0x30] sm:$0xff]
        %v4411 = vsel %vm1249, %v4403, 0
        %v4414 = vsel %vm1249, %v4404, 0
        %v4417 = vsel %vm1249, %v4405, 0
        %v4420 = vsel %vm1249, %v4406, 0
        %v4423 = vsel %vm1249, %v4407, 0
        %v4426 = vsel %vm1249, %v4408, 0
        %v4429 = vsel %vm1249, %v4409, 0
        %v4432 = vsel %vm1125, %v4402, 0
        %4434 = vmatprep.subr.mxu0 0.0
        %4435 = vmatpush1.msra.mxu0 %v4390
        %4436 = vmatprep.subr.mxu0 0.0
        %4437 = vmatpush1.msra.mxu0 %v4391
        %4438 = vmatprep.subr.mxu0 0.0
        %4439 = vmatpush1.msra.mxu0 %v4392
        %4440 = vmatprep.subr.mxu0 0.0
        %4441 = vmatpush1.msra.mxu0 %v4393
        %4442 = vmatprep.subr.mxu0 0.0
        %4443 = vmatpush1.msra.mxu0 %v4394
        %4444 = vmatprep.subr.mxu0 0.0
        %4445 = vmatpush1.msra.mxu0 %v4395
        %4446 = vmatprep.subr.mxu0 0.0
        %4447 = vmatpush1.msra.mxu0 %v4396
        %4448 = vmatprep.subr.mxu0 0.0
        %4449 = vmatpush1.msra.mxu0 %v4397
        %4450 = vmatprep.subr.mxu0 0.0
        %4451 = vmatpush1.msra.mxu0 %v4398
        %4452 = vmatprep.subr.mxu0 0.0
        %4453 = vmatpush1.msra.mxu0 %v4399
        %4454 = vmatprep.subr.mxu0 0.0
        %4455 = vmatpush1.msra.mxu0 %v4400
        %4456 = vmatprep.subr.mxu0 0.0
        %4457 = vmatpush1.msra.mxu0 %v4401
        %4458 = vmatprep.subr.mxu0 0.0
        %4459 = vmatpush1.msra.mxu0 %v4432
        %4460 = vmatprep.subr.mxu0 0.0
        %4461 = vmatpush1.msra.mxu0 0.0
        %4462 = vmatprep.subr.mxu0 0.0
        %4463 = vmatpush1.msra.mxu0 0.0
        %4464 = vmatprep.subr.mxu0 0.0
        %4465 = vmatpush1.msra.mxu0 0.0
        %4466 = vmatprep.subr.mxu0 0.0
        %4467 = vmatpush1.msra.mxu0 0.0
        %4468 = vmatprep.subr.mxu0 0.0
        %4469 = vmatpush1.msra.mxu0 0.0
        %4470 = vmatprep.subr.mxu0 0.0
        %4471 = vmatpush1.msra.mxu0 0.0
        %4472 = vmatprep.subr.mxu0 0.0
        %4473 = vmatpush1.msra.mxu0 0.0
        %4474 = vmatprep.subr.mxu0 0.0
        %4475 = vmatpush1.msra.mxu0 0.0
        %4476 = vmatprep.subr.mxu0 0.0
        %4477 = vmatpush1.msra.mxu0 0.0
        %4478 = vmatprep.subr.mxu0 0.0
        %4479 = vmatpush1.msra.mxu0 0.0
        %4480 = vmatprep.subr.mxu0 0.0
        %4481 = vmatpush1.msra.mxu0 0.0
        %4482 = vmatprep.subr.mxu0 0.0
        %4483 = vmatpush1.msra.mxu0 0.0
        %4484 = vmatprep.subr.mxu0 0.0
        %4485 = vmatpush1.msra.mxu0 0.0
        %4486 = vmatprep.subr.mxu0 0.0
        %4487 = vmatpush1.msra.mxu0 0.0
        %4488 = vmatprep.subr.mxu0 0.0
        %4489 = vmatpush1.msra.mxu0 0.0
        %4490 = vmatprep.subr.mxu0 0.0
        %4491 = vmatpush1.msra.mxu0 0.0
        %4492 = vmatprep.subr.mxu0 0.0
        %4493 = vmatpush1.msra.mxu0 0.0
        %4494 = vmatprep.subr.mxu0 0.0
        %4495 = vmatpush1.msra.mxu0 0.0
        %4496 = vmatprep.subr.mxu0 0.0
        %4497 = vmatpush1.msra.mxu0 0.0
        %4498 = vmatprep.mubr.f32.mxu0 0.0
        %4499 = vmatmul.mubr.f32.gmra.mrb[0].mxu0 %v4411
        %v4500 = vpop.f32.mrb[0].mxu0
        %v4501 = vadd.f32 0.0, %v4500
        %v4502 = vpop.f32.mrb[0].mxu0
        %4503 = vmatprep.mubr.f32.mxu0 0.0
        %4504 = vmatmul.mubr.f32.gmra.mrb[0].mxu0 %v4414
        %v4505 = vpop.f32.mrb[0].mxu0
        %v4506 = vadd.f32 0.0, %v4505
        %v4507 = vpop.f32.mrb[0].mxu0
        %4508 = vmatprep.mubr.f32.mxu0 0.0
        %4509 = vmatmul.mubr.f32.gmra.mrb[0].mxu0 %v4417
        %v4510 = vpop.f32.mrb[0].mxu0
        %v4511 = vadd.f32 0.0, %v4510
        %v4512 = vpop.f32.mrb[0].mxu0
        %4513 = vmatprep.mubr.f32.mxu0 0.0
        %4514 = vmatmul.mubr.f32.gmra.mrb[0].mxu0 %v4420
        %v4515 = vpop.f32.mrb[0].mxu0
        %v4516 = vadd.f32 0.0, %v4515
        %v4517 = vpop.f32.mrb[0].mxu0
        %4518 = vmatprep.mubr.f32.mxu0 0.0
        %4519 = vmatmul.mubr.f32.gmra.mrb[0].mxu0 %v4423
        %v4520 = vpop.f32.mrb[0].mxu0
        %v4521 = vadd.f32 0.0, %v4520
        %v4522 = vpop.f32.mrb[0].mxu0
        %4523 = vmatprep.mubr.f32.mxu0 0.0
        %4524 = vmatmul.mubr.f32.gmra.mrb[0].mxu0 %v4426
        %v4525 = vpop.f32.mrb[0].mxu0
        %v4526 = vadd.f32 0.0, %v4525
        %v4527 = vpop.f32.mrb[0].mxu0
        %4528 = vmatprep.mubr.f32.mxu0 0.0
        %4529 = vmatmul.mubr.f32.gmra.mrb[0].mxu0 %v4429
        %v4530 = vpop.f32.mrb[0].mxu0
        %v4531 = vadd.f32 0.0, %v4530
        %v4532 = vpop.f32.mrb[0].mxu0
        %4533 = vdwg.mxu0
        %v4534 = vld [vmem:[%s4] sm:$0xff]
        %v4535 = vld [vmem:[%s4 + $0x8] sm:$0xff]
        %v4536 = vld [vmem:[%s4 + $0x10] sm:$0xff]
        %v4537 = vld [vmem:[%s4 + $0x18] sm:$0xff]
        %v4538 = vld [vmem:[%s4 + $0x20] sm:$0xff]
        %v4539 = vld [vmem:[%s4 + $0x28] sm:$0xff]
        %v4540 = vld [vmem:[%s4 + $0x30] sm:$0xff]
        %v4541 = vld [vmem:[%s4 + $0x38] sm:$0xff]
        %v4542 = vld [vmem:[%s4 + $0x40] sm:$0xff]
        %v4543 = vld [vmem:[%s4 + $0x48] sm:$0xff]
        %v4544 = vld [vmem:[%s4 + $0x50] sm:$0xff]
        %v4545 = vld [vmem:[%s4 + $0x58] sm:$0xff]
        %v4546 = vld [vmem:[%s4 + $0x60] sm:$0xff]
        %v4547 = vld [vmem:[%s4 + $0x68] sm:$0xff]
        %v4548 = vld [vmem:[%s4 + $0x70] sm:$0xff]
        %v4549 = vld [vmem:[%s4 + $0x78] sm:$0xff]
        %v4550 = vld [vmem:[%s4 + $0x80] sm:$0xff]
        %v4551 = vld [vmem:[%s4 + $0x88] sm:$0xff]
        %v4552 = vld [vmem:[%s4 + $0x90] sm:$0xff]
        %v4553 = vld [vmem:[%s4 + $0x98] sm:$0xff]
        %v4554 = vld [vmem:[%s4 + $0xa0] sm:$0xff]
        %v4555 = vld [vmem:[%s4 + $0xa8] sm:$0xff]
        %v4556 = vld [vmem:[%s4 + $0xb0] sm:$0xff]
        %v4557 = vld [vmem:[%s4 + $0xb8] sm:$0xff]
        %v4558 = vld [vmem:[%s4 + $0xc0] sm:$0x7f]
        %v4559 = vld [vmem:[%s4 + $0xc8] sm:$0x7f]
        %v4561 = vsel %vm1249, %v4501, 0
        %v4564 = vsel %vm1249, %v4506, 0
        %v4567 = vsel %vm1249, %v4511, 0
        %v4570 = vsel %vm1249, %v4516, 0
        %v4573 = vsel %vm1249, %v4521, 0
        %v4576 = vsel %vm1249, %v4526, 0
        %v4579 = vsel %vm1249, %v4531, 0
        %v4582 = vsel %vm1125, %v4558, 0
        %v4585 = vsel %vm1125, %v4559, 0
        %4587 = vmatprep.subr.mxu0 %v4535
        %4588 = vmatpush1.msra.mxu0 %v4534
        %4589 = vmatprep.subr.mxu0 %v4537
        %4590 = vmatpush1.msra.mxu0 %v4536
        %4591 = vmatprep.subr.mxu0 %v4539
        %4592 = vmatpush1.msra.mxu0 %v4538
        %4593 = vmatprep.subr.mxu0 %v4541
        %4594 = vmatpush1.msra.mxu0 %v4540
        %4595 = vmatprep.subr.mxu0 %v4543
        %4596 = vmatpush1.msra.mxu0 %v4542
        %4597 = vmatprep.subr.mxu0 %v4545
        %4598 = vmatpush1.msra.mxu0 %v4544
        %4599 = vmatprep.subr.mxu0 %v4547
        %4600 = vmatpush1.msra.mxu0 %v4546
        %4601 = vmatprep.subr.mxu0 %v4549
        %4602 = vmatpush1.msra.mxu0 %v4548
        %4603 = vmatprep.subr.mxu0 %v4551
        %4604 = vmatpush1.msra.mxu0 %v4550
        %4605 = vmatprep.subr.mxu0 %v4553
        %4606 = vmatpush1.msra.mxu0 %v4552
        %4607 = vmatprep.subr.mxu0 %v4555
        %4608 = vmatpush1.msra.mxu0 %v4554
        %4609 = vmatprep.subr.mxu0 %v4557
        %4610 = vmatpush1.msra.mxu0 %v4556
        %4611 = vmatprep.subr.mxu0 %v4585
        %4612 = vmatpush1.msra.mxu0 %v4582
        %4613 = vmatprep.subr.mxu0 0.0
        %4614 = vmatpush1.msra.mxu0 0.0
        %4615 = vmatprep.subr.mxu0 0.0
        %4616 = vmatpush1.msra.mxu0 0.0
        %4617 = vmatprep.subr.mxu0 0.0
        %4618 = vmatpush1.msra.mxu0 0.0
        %4619 = vmatprep.subr.mxu0 0.0
        %4620 = vmatpush1.msra.mxu0 0.0
        %4621 = vmatprep.subr.mxu0 0.0
        %4622 = vmatpush1.msra.mxu0 0.0
        %4623 = vmatprep.subr.mxu0 0.0
        %4624 = vmatpush1.msra.mxu0 0.0
        %4625 = vmatprep.subr.mxu0 0.0
        %4626 = vmatpush1.msra.mxu0 0.0
        %4627 = vmatprep.subr.mxu0 0.0
        %4628 = vmatpush1.msra.mxu0 0.0
        %4629 = vmatprep.subr.mxu0 0.0
        %4630 = vmatpush1.msra.mxu0 0.0
        %4631 = vmatprep.subr.mxu0 0.0
        %4632 = vmatpush1.msra.mxu0 0.0
        %4633 = vmatprep.subr.mxu0 0.0
        %4634 = vmatpush1.msra.mxu0 0.0
        %4635 = vmatprep.subr.mxu0 0.0
        %4636 = vmatpush1.msra.mxu0 0.0
        %4637 = vmatprep.subr.mxu0 0.0
        %4638 = vmatpush1.msra.mxu0 0.0
        %4639 = vmatprep.subr.mxu0 0.0
        %4640 = vmatpush1.msra.mxu0 0.0
        %4641 = vmatprep.subr.mxu0 0.0
        %4642 = vmatpush1.msra.mxu0 0.0
        %4643 = vmatprep.subr.mxu0 0.0
        %4644 = vmatpush1.msra.mxu0 0.0
        %4645 = vmatprep.subr.mxu0 0.0
        %4646 = vmatpush1.msra.mxu0 0.0
        %4647 = vmatprep.subr.mxu0 0.0
        %4648 = vmatpush1.msra.mxu0 0.0
        %4649 = vmatprep.subr.mxu0 0.0
        %4650 = vmatpush1.msra.mxu0 0.0
        %4651 = vmatprep.mubr.f32.mxu0 0.0
        %4652 = vmatmul.mubr.f32.gmra.mrb[0].mxu0 %v4561
        %v4653 = vpop.f32.mrb[0].mxu0
        %v4654 = vadd.f32 0.0, %v4653
        %v4655 = vpop.f32.mrb[0].mxu0
        %v4656 = vadd.f32 0.0, %v4655
        %4657 = vmatprep.mubr.f32.mxu0 0.0
        %4658 = vmatmul.mubr.f32.gmra.mrb[0].mxu0 %v4564
        %v4659 = vpop.f32.mrb[0].mxu0
        %v4660 = vadd.f32 0.0, %v4659
        %v4661 = vpop.f32.mrb[0].mxu0
        %v4662 = vadd.f32 0.0, %v4661
        %4663 = vmatprep.mubr.f32.mxu0 0.0
        %4664 = vmatmul.mubr.f32.gmra.mrb[0].mxu0 %v4567
        %v4665 = vpop.f32.mrb[0].mxu0
        %v4666 = vadd.f32 0.0, %v4665
        %v4667 = vpop.f32.mrb[0].mxu0
        %v4668 = vadd.f32 0.0, %v4667
        %4669 = vmatprep.mubr.f32.mxu0 0.0
        %4670 = vmatmul.mubr.f32.gmra.mrb[0].mxu0 %v4570
        %v4671 = vpop.f32.mrb[0].mxu0
        %v4672 = vadd.f32 0.0, %v4671
        %v4673 = vpop.f32.mrb[0].mxu0
        %v4674 = vadd.f32 0.0, %v4673
        %4675 = vmatprep.mubr.f32.mxu0 0.0
        %4676 = vmatmul.mubr.f32.gmra.mrb[0].mxu0 %v4573
        %v4677 = vpop.f32.mrb[0].mxu0
        %v4678 = vadd.f32 0.0, %v4677
        %v4679 = vpop.f32.mrb[0].mxu0
        %v4680 = vadd.f32 0.0, %v4679
        %4681 = vmatprep.mubr.f32.mxu0 0.0
        %4682 = vmatmul.mubr.f32.gmra.mrb[0].mxu0 %v4576
        %v4683 = vpop.f32.mrb[0].mxu0
        %v4684 = vadd.f32 0.0, %v4683
        %v4685 = vpop.f32.mrb[0].mxu0
        %v4686 = vadd.f32 0.0, %v4685
        %4687 = vmatprep.mubr.f32.mxu0 0.0
        %4688 = vmatmul.mubr.f32.gmra.mrb[0].mxu0 %v4579
        %v4689 = vpop.f32.mrb[0].mxu0
        %v4690 = vadd.f32 0.0, %v4689
        %v4691 = vpop.f32.mrb[0].mxu0
        %v4692 = vadd.f32 0.0, %v4691
        %4693 = vdwg.mxu0
        %v4694 = vmax.f32 %v4654, 0.0
        %v4695 = vmax.f32 %v4656, 0.0
        %v4696 = vmax.f32 %v4660, 0.0
        %v4697 = vmax.f32 %v4662, 0.0
        %v4698 = vmax.f32 %v4666, 0.0
        %v4699 = vmax.f32 %v4668, 0.0
        %v4700 = vmax.f32 %v4672, 0.0
        %v4701 = vmax.f32 %v4674, 0.0
        %v4702 = vmax.f32 %v4678, 0.0
        %v4703 = vmax.f32 %v4680, 0.0
        %v4704 = vmax.f32 %v4684, 0.0
        %v4705 = vmax.f32 %v4686, 0.0
        %v4706 = vmax.f32 %v4690, 0.0
        %v4707 = vmax.f32 %v4692, 0.0
        %4708 = vst [vmem:[#allocation2 + $0x150] sm:$0xff] %v4694
        %4709 = vst.msk [vmem:[#allocation2 + $0x158] sm:$0xff] %vm1549, %v4695
        %4710 = vst [vmem:[#allocation2 + $0x160] sm:$0xff] %v4696
        %4711 = vst.msk [vmem:[#allocation2 + $0x168] sm:$0xff] %vm1549, %v4697
        %4712 = vst [vmem:[#allocation2 + $0x170] sm:$0xff] %v4698
        %4713 = vst.msk [vmem:[#allocation2 + $0x178] sm:$0xff] %vm1549, %v4699
        %4714 = vst [vmem:[#allocation2 + $0x180] sm:$0xff] %v4700
        %4715 = vst.msk [vmem:[#allocation2 + $0x188] sm:$0xff] %vm1549, %v4701
        %4716 = vst [vmem:[#allocation2 + $0x190] sm:$0xff] %v4702
        %4717 = vst.msk [vmem:[#allocation2 + $0x198] sm:$0xff] %vm1549, %v4703
        %4718 = vst [vmem:[#allocation2 + $0x1a0] sm:$0xff] %v4704
        %4719 = vst.msk [vmem:[#allocation2 + $0x1a8] sm:$0xff] %vm1549, %v4705
        %4720 = vst [vmem:[#allocation2 + $0x1b0] sm:$0xff] %v4706
        %4721 = vst.msk [vmem:[#allocation2 + $0x1b8] sm:$0xff] %vm1549, %v4707
        %v4722 = vld [vmem:[%s6] sm:$0x3]
        %v4724 = vlaneseq
        %v4725 = vshrl.u32 %v4724, 7
        %v4726 = vsub.s32 0, %v4725
        %v4727 = vrot.slane %v4722, %v4726
        %v4728 = vlaneseq
        %v4729 = vshrl.u32 %v4728, 7
        %v4730 = vsub.s32 1, %v4729
        %v4731 = vrot.slane %v4722, %v4730
        %v4734 = vadd.f32 %v4727, 0.0
        %v4735 = vadd.f32 %v4731, 0.0
        %v4736 = vld [vmem:[#allocation2] sm:$0xff]
        %v4737 = vld [vmem:[#allocation2 + $0x8] sm:$0xff]
        %v4738 = vld [vmem:[#allocation2 + $0x10] sm:$0xff]
        %v4739 = vld [vmem:[#allocation2 + $0x18] sm:$0xff]
        %v4740 = vld [vmem:[#allocation2 + $0x20] sm:$0xff]
        %v4741 = vld [vmem:[#allocation2 + $0x28] sm:$0xff]
        %v4742 = vld [vmem:[#allocation2 + $0x30] sm:$0xff]
        %v4743 = vld [vmem:[#allocation2 + $0x38] sm:$0xff]
        %v4744 = vld [vmem:[#allocation2 + $0x40] sm:$0xff]
        %v4745 = vld [vmem:[#allocation2 + $0x48] sm:$0xff]
        %v4746 = vld [vmem:[#allocation2 + $0x50] sm:$0xff]
        %v4747 = vld [vmem:[#allocation2 + $0x58] sm:$0xff]
        %v4748 = vld [vmem:[#allocation2 + $0x60] sm:$0x3]
        %v4749 = vld [vmem:[#allocation2 + $0x68] sm:$0x3]
        %v4750 = vld [vmem:[%s5] ss:$8 sm:$0x3]
        %v4752 = vlaneseq
        %v4753 = vshrl.u32 %v4752, 7
        %v4754 = vsub.s32 0, %v4753
        %v4755 = vrot.slane %v4750, %v4754
        %v4756 = vlaneseq
        %v4757 = vshrl.u32 %v4756, 7
        %v4758 = vsub.s32 1, %v4757
        %v4759 = vrot.slane %v4750, %v4758
        %v4762 = vmul.f32 %v4736, %v4755
        %v4763 = vmul.f32 %v4737, %v4759
        %v4764 = vmul.f32 %v4738, %v4755
        %v4765 = vmul.f32 %v4739, %v4759
        %v4766 = vmul.f32 %v4740, %v4755
        %v4767 = vmul.f32 %v4741, %v4759
        %v4768 = vmul.f32 %v4742, %v4755
        %v4769 = vmul.f32 %v4743, %v4759
        %v4770 = vmul.f32 %v4744, %v4755
        %v4771 = vmul.f32 %v4745, %v4759
        %v4772 = vmul.f32 %v4746, %v4755
        %v4773 = vmul.f32 %v4747, %v4759
        %v4774 = vmul.f32 %v4748, %v4755
        %v4775 = vmul.f32 %v4749, %v4759
        %v4776 = vadd.f32 %v4734, %v4762
        %v4777 = vadd.f32 %v4735, %v4763
        %v4778 = vadd.f32 %v4734, %v4764
        %v4779 = vadd.f32 %v4735, %v4765
        %v4780 = vadd.f32 %v4734, %v4766
        %v4781 = vadd.f32 %v4735, %v4767
        %v4782 = vadd.f32 %v4734, %v4768
        %v4783 = vadd.f32 %v4735, %v4769
        %v4784 = vadd.f32 %v4734, %v4770
        %v4785 = vadd.f32 %v4735, %v4771
        %v4786 = vadd.f32 %v4734, %v4772
        %v4787 = vadd.f32 %v4735, %v4773
        %v4788 = vadd.f32 %v4734, %v4774
        %v4789 = vadd.f32 %v4735, %v4775
        %s4790 = scalar_lea.vmem %s5, 1
        %v4791 = vld [vmem:[%s4790] ss:$8 sm:$0x3]
        %v4793 = vlaneseq
        %v4794 = vshrl.u32 %v4793, 7
        %v4795 = vsub.s32 0, %v4794
        %v4796 = vrot.slane %v4791, %v4795
        %v4797 = vlaneseq
        %v4798 = vshrl.u32 %v4797, 7
        %v4799 = vsub.s32 1, %v4798
        %v4800 = vrot.slane %v4791, %v4799
        %4801 = vrot.lane.b32.xlu0 %v4796, 1
        %v4802 = vpop.permute.xlu0 %4801
        %4803 = vrot.lane.b32.xlu0 %v4800, 1
        %v4804 = vpop.permute.xlu0 %4803
        %vm4805 = vcmask 7168
        %v4806 = vsel %vm4805, %v4802, %v4804
        %v4809 = vmul.f32 %v4736, %v4802
        %v4810 = vmul.f32 %v4737, %v4806
        %v4811 = vmul.f32 %v4738, %v4802
        %v4812 = vmul.f32 %v4739, %v4806
        %v4813 = vmul.f32 %v4740, %v4802
        %v4814 = vmul.f32 %v4741, %v4806
        %v4815 = vmul.f32 %v4742, %v4802
        %v4816 = vmul.f32 %v4743, %v4806
        %v4817 = vmul.f32 %v4744, %v4802
        %v4818 = vmul.f32 %v4745, %v4806
        %v4819 = vmul.f32 %v4746, %v4802
        %v4820 = vmul.f32 %v4747, %v4806
        %v4821 = vmul.f32 %v4748, %v4802
        %v4822 = vmul.f32 %v4749, %v4806
        %4837 = vrot.lane.b32.xlu0 %v4809, 127
        %v4838 = vpop.permute.xlu0 %4837
        %4839 = vrot.lane.b32.xlu0 %v4810, 127
        %v4840 = vpop.permute.xlu0 %4839
        %4841 = vrot.lane.b32.xlu0 %v4811, 127
        %v4842 = vpop.permute.xlu0 %4841
        %4843 = vrot.lane.b32.xlu0 %v4812, 127
        %v4844 = vpop.permute.xlu0 %4843
        %4845 = vrot.lane.b32.xlu0 %v4813, 127
        %v4846 = vpop.permute.xlu0 %4845
        %4847 = vrot.lane.b32.xlu0 %v4814, 127
        %v4848 = vpop.permute.xlu0 %4847
        %4849 = vrot.lane.b32.xlu0 %v4815, 127
        %v4850 = vpop.permute.xlu0 %4849
        %4851 = vrot.lane.b32.xlu0 %v4816, 127
        %v4852 = vpop.permute.xlu0 %4851
        %4853 = vrot.lane.b32.xlu0 %v4817, 127
        %v4854 = vpop.permute.xlu0 %4853
        %4855 = vrot.lane.b32.xlu0 %v4818, 127
        %v4856 = vpop.permute.xlu0 %4855
        %4857 = vrot.lane.b32.xlu0 %v4819, 127
        %v4858 = vpop.permute.xlu0 %4857
        %4859 = vrot.lane.b32.xlu0 %v4820, 127
        %v4860 = vpop.permute.xlu0 %4859
        %4861 = vrot.lane.b32.xlu0 %v4821, 127
        %v4862 = vpop.permute.xlu0 %4861
        %4863 = vrot.lane.b32.xlu0 %v4822, 127
        %v4864 = vpop.permute.xlu0 %4863
        %vm4865 = vcmask 1039360
        %v4866 = vsel %vm4865, %v4838, %v4840
        %v4867 = vsel %vm4865, %v4842, %v4844
        %v4868 = vsel %vm4865, %v4846, %v4848
        %v4869 = vsel %vm4865, %v4850, %v4852
        %v4870 = vsel %vm4865, %v4854, %v4856
        %v4871 = vsel %vm4865, %v4858, %v4860
        %v4872 = vsel %vm4865, %v4862, %v4864
        %v4887 = vadd.f32 %v4776, %v4866
        %v4888 = vadd.f32 %v4777, %v4840
        %v4889 = vadd.f32 %v4778, %v4867
        %v4890 = vadd.f32 %v4779, %v4844
        %v4891 = vadd.f32 %v4780, %v4868
        %v4892 = vadd.f32 %v4781, %v4848
        %v4893 = vadd.f32 %v4782, %v4869
        %v4894 = vadd.f32 %v4783, %v4852
        %v4895 = vadd.f32 %v4784, %v4870
        %v4896 = vadd.f32 %v4785, %v4856
        %v4897 = vadd.f32 %v4786, %v4871
        %v4898 = vadd.f32 %v4787, %v4860
        %v4899 = vadd.f32 %v4788, %v4872
        %v4900 = vadd.f32 %v4789, %v4864
        %s4901 = scalar_lea.vmem %s5, 2
        %v4902 = vld [vmem:[%s4901] ss:$8 sm:$0x3]
        %v4904 = vlaneseq
        %v4905 = vshrl.u32 %v4904, 7
        %v4906 = vsub.s32 0, %v4905
        %v4907 = vrot.slane %v4902, %v4906
        %v4908 = vlaneseq
        %v4909 = vshrl.u32 %v4908, 7
        %v4910 = vsub.s32 1, %v4909
        %v4911 = vrot.slane %v4902, %v4910
        %4912 = vrot.lane.b32.xlu0 %v4907, 2
        %v4913 = vpop.permute.xlu0 %4912
        %4914 = vrot.lane.b32.xlu0 %v4911, 2
        %v4915 = vpop.permute.xlu0 %4914
        %vm4916 = vcmask 15360
        %v4917 = vsel %vm4916, %v4913, %v4915
        %v4920 = vmul.f32 %v4736, %v4913
        %v4921 = vmul.f32 %v4737, %v4917
        %v4922 = vmul.f32 %v4738, %v4913
        %v4923 = vmul.f32 %v4739, %v4917
        %v4924 = vmul.f32 %v4740, %v4913
        %v4925 = vmul.f32 %v4741, %v4917
        %v4926 = vmul.f32 %v4742, %v4913
        %v4927 = vmul.f32 %v4743, %v4917
        %v4928 = vmul.f32 %v4744, %v4913
        %v4929 = vmul.f32 %v4745, %v4917
        %v4930 = vmul.f32 %v4746, %v4913
        %v4931 = vmul.f32 %v4747, %v4917
        %v4932 = vmul.f32 %v4748, %v4913
        %v4933 = vmul.f32 %v4749, %v4917
        %4948 = vrot.lane.b32.xlu0 %v4920, 126
        %v4949 = vpop.permute.xlu0 %4948
        %4950 = vrot.lane.b32.xlu0 %v4921, 126
        %v4951 = vpop.permute.xlu0 %4950
        %4952 = vrot.lane.b32.xlu0 %v4922, 126
        %v4953 = vpop.permute.xlu0 %4952
        %4954 = vrot.lane.b32.xlu0 %v4923, 126
        %v4955 = vpop.permute.xlu0 %4954
        %4956 = vrot.lane.b32.xlu0 %v4924, 126
        %v4957 = vpop.permute.xlu0 %4956
        %4958 = vrot.lane.b32.xlu0 %v4925, 126
        %v4959 = vpop.permute.xlu0 %4958
        %4960 = vrot.lane.b32.xlu0 %v4926, 126
        %v4961 = vpop.permute.xlu0 %4960
        %4962 = vrot.lane.b32.xlu0 %v4927, 126
        %v4963 = vpop.permute.xlu0 %4962
        %4964 = vrot.lane.b32.xlu0 %v4928, 126
        %v4965 = vpop.permute.xlu0 %4964
        %4966 = vrot.lane.b32.xlu0 %v4929, 126
        %v4967 = vpop.permute.xlu0 %4966
        %4968 = vrot.lane.b32.xlu0 %v4930, 126
        %v4969 = vpop.permute.xlu0 %4968
        %4970 = vrot.lane.b32.xlu0 %v4931, 126
        %v4971 = vpop.permute.xlu0 %4970
        %4972 = vrot.lane.b32.xlu0 %v4932, 126
        %v4973 = vpop.permute.xlu0 %4972
        %4974 = vrot.lane.b32.xlu0 %v4933, 126
        %v4975 = vpop.permute.xlu0 %4974
        %vm4976 = vcmask 1031168
        %v4977 = vsel %vm4976, %v4949, %v4951
        %v4978 = vsel %vm4976, %v4953, %v4955
        %v4979 = vsel %vm4976, %v4957, %v4959
        %v4980 = vsel %vm4976, %v4961, %v4963
        %v4981 = vsel %vm4976, %v4965, %v4967
        %v4982 = vsel %vm4976, %v4969, %v4971
        %v4983 = vsel %vm4976, %v4973, %v4975
        %v4998 = vadd.f32 %v4887, %v4977
        %v4999 = vadd.f32 %v4888, %v4951
        %v5000 = vadd.f32 %v4889, %v4978
        %v5001 = vadd.f32 %v4890, %v4955
        %v5002 = vadd.f32 %v4891, %v4979
        %v5003 = vadd.f32 %v4892, %v4959
        %v5004 = vadd.f32 %v4893, %v4980
        %v5005 = vadd.f32 %v4894, %v4963
        %v5006 = vadd.f32 %v4895, %v4981
        %v5007 = vadd.f32 %v4896, %v4967
        %v5008 = vadd.f32 %v4897, %v4982
        %v5009 = vadd.f32 %v4898, %v4971
        %v5010 = vadd.f32 %v4899, %v4983
        %v5011 = vadd.f32 %v4900, %v4975
        %v5012 = vld [vmem:[#allocation2] sm:$0xfe]
        %v5013 = vld [vmem:[#allocation2 + $0x8] sm:$0xfe]
        %v5014 = vld [vmem:[#allocation2 + $0x60] sm:$0x7]
        %v5015 = vld [vmem:[#allocation2 + $0x68] sm:$0x7]
        %s5016 = scalar_lea.vmem %s5, 3
        %v5017 = vld [vmem:[%s5016] ss:$8 sm:$0x3]
        %v5019 = vlaneseq
        %v5020 = vshrl.u32 %v5019, 7
        %v5021 = vsub.s32 0, %v5020
        %v5022 = vrot.slane %v5017, %v5021
        %v5023 = vlaneseq
        %v5024 = vshrl.u32 %v5023, 7
        %v5025 = vsub.s32 1, %v5024
        %v5026 = vrot.slane %v5017, %v5025
        %v5029 = vmul.f32 %v5012, %v5022
        %v5030 = vmul.f32 %v5013, %v5026
        %v5031 = vmul.f32 %v4738, %v5022
        %v5032 = vmul.f32 %v4739, %v5026
        %v5033 = vmul.f32 %v4740, %v5022
        %v5034 = vmul.f32 %v4741, %v5026
        %v5035 = vmul.f32 %v4742, %v5022
        %v5036 = vmul.f32 %v4743, %v5026
        %v5037 = vmul.f32 %v4744, %v5022
        %v5038 = vmul.f32 %v4745, %v5026
        %v5039 = vmul.f32 %v4746, %v5022
        %v5040 = vmul.f32 %v4747, %v5026
        %v5041 = vmul.f32 %v5014, %v5022
        %v5042 = vmul.f32 %v5015, %v5026
        %v5057 = vrot.slane %v5029, 1
        %v5058 = vrot.slane %v5031, 1
        %v5059 = vsel %vm1125, %v5057, %v5058
        %v5060 = vrot.slane %v5030, 1
        %v5061 = vrot.slane %v5032, 1
        %v5062 = vsel %vm1125, %v5060, %v5061
        %v5063 = vrot.slane %v5033, 1
        %v5064 = vsel %vm1125, %v5058, %v5063
        %v5065 = vrot.slane %v5034, 1
        %v5066 = vsel %vm1125, %v5061, %v5065
        %v5067 = vrot.slane %v5035, 1
        %v5068 = vsel %vm1125, %v5063, %v5067
        %v5069 = vrot.slane %v5036, 1
        %v5070 = vsel %vm1125, %v5065, %v5069
        %v5071 = vrot.slane %v5037, 1
        %v5072 = vsel %vm1125, %v5067, %v5071
        %v5073 = vrot.slane %v5038, 1
        %v5074 = vsel %vm1125, %v5069, %v5073
        %v5075 = vrot.slane %v5039, 1
        %v5076 = vsel %vm1125, %v5071, %v5075
        %v5077 = vrot.slane %v5040, 1
        %v5078 = vsel %vm1125, %v5073, %v5077
        %v5079 = vrot.slane %v5041, 1
        %v5080 = vsel %vm1125, %v5075, %v5079
        %v5081 = vrot.slane %v5042, 1
        %v5082 = vsel %vm1125, %v5077, %v5081
        %v5097 = vadd.f32 %v4998, %v5059
        %v5098 = vadd.f32 %v4999, %v5062
        %v5099 = vadd.f32 %v5000, %v5064
        %v5100 = vadd.f32 %v5001, %v5066
        %v5101 = vadd.f32 %v5002, %v5068
        %v5102 = vadd.f32 %v5003, %v5070
        %v5103 = vadd.f32 %v5004, %v5072
        %v5104 = vadd.f32 %v5005, %v5074
        %v5105 = vadd.f32 %v5006, %v5076
        %v5106 = vadd.f32 %v5007, %v5078
        %v5107 = vadd.f32 %v5008, %v5080
        %v5108 = vadd.f32 %v5009, %v5082
        %v5109 = vadd.f32 %v5010, %v5079
        %v5110 = vadd.f32 %v5011, %v5081
        %s5111 = scalar_lea.vmem %s5, 4
        %v5112 = vld [vmem:[%s5111] ss:$8 sm:$0x3]
        %v5114 = vlaneseq
        %v5115 = vshrl.u32 %v5114, 7
        %v5116 = vsub.s32 0, %v5115
        %v5117 = vrot.slane %v5112, %v5116
        %v5118 = vlaneseq
        %v5119 = vshrl.u32 %v5118, 7
        %v5120 = vsub.s32 1, %v5119
        %v5121 = vrot.slane %v5112, %v5120
        %5122 = vrot.lane.b32.xlu0 %v5117, 1
        %v5123 = vpop.permute.xlu0 %5122
        %5124 = vrot.lane.b32.xlu0 %v5121, 1
        %v5125 = vpop.permute.xlu0 %5124
        %v5126 = vsel %vm4805, %v5123, %v5125
        %v5129 = vmul.f32 %v5012, %v5123
        %v5130 = vmul.f32 %v5013, %v5126
        %v5131 = vmul.f32 %v4738, %v5123
        %v5132 = vmul.f32 %v4739, %v5126
        %v5133 = vmul.f32 %v4740, %v5123
        %v5134 = vmul.f32 %v4741, %v5126
        %v5135 = vmul.f32 %v4742, %v5123
        %v5136 = vmul.f32 %v4743, %v5126
        %v5137 = vmul.f32 %v4744, %v5123
        %v5138 = vmul.f32 %v4745, %v5126
        %v5139 = vmul.f32 %v4746, %v5123
        %v5140 = vmul.f32 %v4747, %v5126
        %v5141 = vmul.f32 %v5014, %v5123
        %v5142 = vmul.f32 %v5015, %v5126
        %v5157 = vrot.slane %v5129, 1
        %v5158 = vrot.slane %v5131, 1
        %v5159 = vsel %vm1125, %v5157, %v5158
        %v5160 = vrot.slane %v5130, 1
        %v5161 = vrot.slane %v5132, 1
        %v5162 = vsel %vm1125, %v5160, %v5161
        %v5163 = vrot.slane %v5133, 1
        %v5164 = vsel %vm1125, %v5158, %v5163
        %v5165 = vrot.slane %v5134, 1
        %v5166 = vsel %vm1125, %v5161, %v5165
        %v5167 = vrot.slane %v5135, 1
        %v5168 = vsel %vm1125, %v5163, %v5167
        %v5169 = vrot.slane %v5136, 1
        %v5170 = vsel %vm1125, %v5165, %v5169
        %v5171 = vrot.slane %v5137, 1
        %v5172 = vsel %vm1125, %v5167, %v5171
        %v5173 = vrot.slane %v5138, 1
        %v5174 = vsel %vm1125, %v5169, %v5173
        %v5175 = vrot.slane %v5139, 1
        %v5176 = vsel %vm1125, %v5171, %v5175
        %v5177 = vrot.slane %v5140, 1
        %v5178 = vsel %vm1125, %v5173, %v5177
        %v5179 = vrot.slane %v5141, 1
        %v5180 = vsel %vm1125, %v5175, %v5179
        %v5181 = vrot.slane %v5142, 1
        %v5182 = vsel %vm1125, %v5177, %v5181
        %5183 = vrot.lane.b32.xlu0 %v5159, 127
        %v5184 = vpop.permute.xlu0 %5183
        %5185 = vrot.lane.b32.xlu0 %v5162, 127
        %v5186 = vpop.permute.xlu0 %5185
        %5187 = vrot.lane.b32.xlu0 %v5164, 127
        %v5188 = vpop.permute.xlu0 %5187
        %5189 = vrot.lane.b32.xlu0 %v5166, 127
        %v5190 = vpop.permute.xlu0 %5189
        %5191 = vrot.lane.b32.xlu0 %v5168, 127
        %v5192 = vpop.permute.xlu0 %5191
        %5193 = vrot.lane.b32.xlu0 %v5170, 127
        %v5194 = vpop.permute.xlu0 %5193
        %5195 = vrot.lane.b32.xlu0 %v5172, 127
        %v5196 = vpop.permute.xlu0 %5195
        %5197 = vrot.lane.b32.xlu0 %v5174, 127
        %v5198 = vpop.permute.xlu0 %5197
        %5199 = vrot.lane.b32.xlu0 %v5176, 127
        %v5200 = vpop.permute.xlu0 %5199
        %5201 = vrot.lane.b32.xlu0 %v5178, 127
        %v5202 = vpop.permute.xlu0 %5201
        %5203 = vrot.lane.b32.xlu0 %v5180, 127
        %v5204 = vpop.permute.xlu0 %5203
        %5205 = vrot.lane.b32.xlu0 %v5182, 127
        %v5206 = vpop.permute.xlu0 %5205
        %5207 = vrot.lane.b32.xlu0 %v5179, 127
        %v5208 = vpop.permute.xlu0 %5207
        %5209 = vrot.lane.b32.xlu0 %v5181, 127
        %v5210 = vpop.permute.xlu0 %5209
        %v5211 = vsel %vm4865, %v5184, %v5186
        %v5212 = vsel %vm4865, %v5188, %v5190
        %v5213 = vsel %vm4865, %v5192, %v5194
        %v5214 = vsel %vm4865, %v5196, %v5198
        %v5215 = vsel %vm4865, %v5200, %v5202
        %v5216 = vsel %vm4865, %v5204, %v5206
        %v5217 = vsel %vm4865, %v5208, %v5210
        %v5232 = vadd.f32 %v5097, %v5211
        %v5233 = vadd.f32 %v5098, %v5186
        %v5234 = vadd.f32 %v5099, %v5212
        %v5235 = vadd.f32 %v5100, %v5190
        %v5236 = vadd.f32 %v5101, %v5213
        %v5237 = vadd.f32 %v5102, %v5194
        %v5238 = vadd.f32 %v5103, %v5214
        %v5239 = vadd.f32 %v5104, %v5198
        %v5240 = vadd.f32 %v5105, %v5215
        %v5241 = vadd.f32 %v5106, %v5202
        %v5242 = vadd.f32 %v5107, %v5216
        %v5243 = vadd.f32 %v5108, %v5206
        %v5244 = vadd.f32 %v5109, %v5217
        %v5245 = vadd.f32 %v5110, %v5210
        %s5246 = scalar_lea.vmem %s5, 5
        %v5247 = vld [vmem:[%s5246] ss:$8 sm:$0x3]
        %v5249 = vlaneseq
        %v5250 = vshrl.u32 %v5249, 7
        %v5251 = vsub.s32 0, %v5250
        %v5252 = vrot.slane %v5247, %v5251
        %v5253 = vlaneseq
        %v5254 = vshrl.u32 %v5253, 7
        %v5255 = vsub.s32 1, %v5254
        %v5256 = vrot.slane %v5247, %v5255
        %5257 = vrot.lane.b32.xlu0 %v5252, 2
        %v5258 = vpop.permute.xlu0 %5257
        %5259 = vrot.lane.b32.xlu0 %v5256, 2
        %v5260 = vpop.permute.xlu0 %5259
        %v5261 = vsel %vm4916, %v5258, %v5260
        %v5264 = vmul.f32 %v5012, %v5258
        %v5265 = vmul.f32 %v5013, %v5261
        %v5266 = vmul.f32 %v4738, %v5258
        %v5267 = vmul.f32 %v4739, %v5261
        %v5268 = vmul.f32 %v4740, %v5258
        %v5269 = vmul.f32 %v4741, %v5261
        %v5270 = vmul.f32 %v4742, %v5258
        %v5271 = vmul.f32 %v4743, %v5261
        %v5272 = vmul.f32 %v4744, %v5258
        %v5273 = vmul.f32 %v4745, %v5261
        %v5274 = vmul.f32 %v4746, %v5258
        %v5275 = vmul.f32 %v4747, %v5261
        %v5276 = vmul.f32 %v5014, %v5258
        %v5277 = vmul.f32 %v5015, %v5261
        %v5292 = vrot.slane %v5264, 1
        %v5293 = vrot.slane %v5266, 1
        %v5294 = vsel %vm1125, %v5292, %v5293
        %v5295 = vrot.slane %v5265, 1
        %v5296 = vrot.slane %v5267, 1
        %v5297 = vsel %vm1125, %v5295, %v5296
        %v5298 = vrot.slane %v5268, 1
        %v5299 = vsel %vm1125, %v5293, %v5298
        %v5300 = vrot.slane %v5269, 1
        %v5301 = vsel %vm1125, %v5296, %v5300
        %v5302 = vrot.slane %v5270, 1
        %v5303 = vsel %vm1125, %v5298, %v5302
        %v5304 = vrot.slane %v5271, 1
        %v5305 = vsel %vm1125, %v5300, %v5304
        %v5306 = vrot.slane %v5272, 1
        %v5307 = vsel %vm1125, %v5302, %v5306
        %v5308 = vrot.slane %v5273, 1
        %v5309 = vsel %vm1125, %v5304, %v5308
        %v5310 = vrot.slane %v5274, 1
        %v5311 = vsel %vm1125, %v5306, %v5310
        %v5312 = vrot.slane %v5275, 1
        %v5313 = vsel %vm1125, %v5308, %v5312
        %v5314 = vrot.slane %v5276, 1
        %v5315 = vsel %vm1125, %v5310, %v5314
        %v5316 = vrot.slane %v5277, 1
        %v5317 = vsel %vm1125, %v5312, %v5316
        %5318 = vrot.lane.b32.xlu0 %v5294, 126
        %v5319 = vpop.permute.xlu0 %5318
        %5320 = vrot.lane.b32.xlu0 %v5297, 126
        %v5321 = vpop.permute.xlu0 %5320
        %5322 = vrot.lane.b32.xlu0 %v5299, 126
        %v5323 = vpop.permute.xlu0 %5322
        %5324 = vrot.lane.b32.xlu0 %v5301, 126
        %v5325 = vpop.permute.xlu0 %5324
        %5326 = vrot.lane.b32.xlu0 %v5303, 126
        %v5327 = vpop.permute.xlu0 %5326
        %5328 = vrot.lane.b32.xlu0 %v5305, 126
        %v5329 = vpop.permute.xlu0 %5328
        %5330 = vrot.lane.b32.xlu0 %v5307, 126
        %v5331 = vpop.permute.xlu0 %5330
        %5332 = vrot.lane.b32.xlu0 %v5309, 126
        %v5333 = vpop.permute.xlu0 %5332
        %5334 = vrot.lane.b32.xlu0 %v5311, 126
        %v5335 = vpop.permute.xlu0 %5334
        %5336 = vrot.lane.b32.xlu0 %v5313, 126
        %v5337 = vpop.permute.xlu0 %5336
        %5338 = vrot.lane.b32.xlu0 %v5315, 126
        %v5339 = vpop.permute.xlu0 %5338
        %5340 = vrot.lane.b32.xlu0 %v5317, 126
        %v5341 = vpop.permute.xlu0 %5340
        %5342 = vrot.lane.b32.xlu0 %v5314, 126
        %v5343 = vpop.permute.xlu0 %5342
        %5344 = vrot.lane.b32.xlu0 %v5316, 126
        %v5345 = vpop.permute.xlu0 %5344
        %v5346 = vsel %vm4976, %v5319, %v5321
        %v5347 = vsel %vm4976, %v5323, %v5325
        %v5348 = vsel %vm4976, %v5327, %v5329
        %v5349 = vsel %vm4976, %v5331, %v5333
        %v5350 = vsel %vm4976, %v5335, %v5337
        %v5351 = vsel %vm4976, %v5339, %v5341
        %v5352 = vsel %vm4976, %v5343, %v5345
        %v5367 = vadd.f32 %v5232, %v5346
        %v5368 = vadd.f32 %v5233, %v5321
        %v5369 = vadd.f32 %v5234, %v5347
        %v5370 = vadd.f32 %v5235, %v5325
        %v5371 = vadd.f32 %v5236, %v5348
        %v5372 = vadd.f32 %v5237, %v5329
        %v5373 = vadd.f32 %v5238, %v5349
        %v5374 = vadd.f32 %v5239, %v5333
        %v5375 = vadd.f32 %v5240, %v5350
        %v5376 = vadd.f32 %v5241, %v5337
        %v5377 = vadd.f32 %v5242, %v5351
        %v5378 = vadd.f32 %v5243, %v5341
        %v5379 = vadd.f32 %v5244, %v5352
        %v5380 = vadd.f32 %v5245, %v5345
        %v5381 = vld [vmem:[#allocation2] sm:$0xfc]
        %v5382 = vld [vmem:[#allocation2 + $0x8] sm:$0xfc]
        %v5383 = vld [vmem:[#allocation2 + $0x60] sm:$0xf]
        %v5384 = vld [vmem:[#allocation2 + $0x68] sm:$0xf]
        %s5385 = scalar_lea.vmem %s5, 6
        %v5386 = vld [vmem:[%s5385] ss:$8 sm:$0x3]
        %v5388 = vlaneseq
        %v5389 = vshrl.u32 %v5388, 7
        %v5390 = vsub.s32 0, %v5389
        %v5391 = vrot.slane %v5386, %v5390
        %v5392 = vlaneseq
        %v5393 = vshrl.u32 %v5392, 7
        %v5394 = vsub.s32 1, %v5393
        %v5395 = vrot.slane %v5386, %v5394
        %v5398 = vmul.f32 %v5381, %v5391
        %v5399 = vmul.f32 %v5382, %v5395
        %v5400 = vmul.f32 %v4738, %v5391
        %v5401 = vmul.f32 %v4739, %v5395
        %v5402 = vmul.f32 %v4740, %v5391
        %v5403 = vmul.f32 %v4741, %v5395
        %v5404 = vmul.f32 %v4742, %v5391
        %v5405 = vmul.f32 %v4743, %v5395
        %v5406 = vmul.f32 %v4744, %v5391
        %v5407 = vmul.f32 %v4745, %v5395
        %v5408 = vmul.f32 %v4746, %v5391
        %v5409 = vmul.f32 %v4747, %v5395
        %v5410 = vmul.f32 %v5383, %v5391
        %v5411 = vmul.f32 %v5384, %v5395
        %vm5426 = vcmask 1045504
        %v5427 = vrot.slane %v5398, 2
        %v5428 = vrot.slane %v5400, 2
        %v5429 = vsel %vm5426, %v5427, %v5428
        %v5430 = vrot.slane %v5399, 2
        %v5431 = vrot.slane %v5401, 2
        %v5432 = vsel %vm5426, %v5430, %v5431
        %v5433 = vrot.slane %v5402, 2
        %v5434 = vsel %vm5426, %v5428, %v5433
        %v5435 = vrot.slane %v5403, 2
        %v5436 = vsel %vm5426, %v5431, %v5435
        %v5437 = vrot.slane %v5404, 2
        %v5438 = vsel %vm5426, %v5433, %v5437
        %v5439 = vrot.slane %v5405, 2
        %v5440 = vsel %vm5426, %v5435, %v5439
        %v5441 = vrot.slane %v5406, 2
        %v5442 = vsel %vm5426, %v5437, %v5441
        %v5443 = vrot.slane %v5407, 2
        %v5444 = vsel %vm5426, %v5439, %v5443
        %v5445 = vrot.slane %v5408, 2
        %v5446 = vsel %vm5426, %v5441, %v5445
        %v5447 = vrot.slane %v5409, 2
        %v5448 = vsel %vm5426, %v5443, %v5447
        %v5449 = vrot.slane %v5410, 2
        %v5450 = vsel %vm5426, %v5445, %v5449
        %v5451 = vrot.slane %v5411, 2
        %v5452 = vsel %vm5426, %v5447, %v5451
        %v5467 = vadd.f32 %v5367, %v5429
        %v5468 = vadd.f32 %v5368, %v5432
        %v5469 = vadd.f32 %v5369, %v5434
        %v5470 = vadd.f32 %v5370, %v5436
        %v5471 = vadd.f32 %v5371, %v5438
        %v5472 = vadd.f32 %v5372, %v5440
        %v5473 = vadd.f32 %v5373, %v5442
        %v5474 = vadd.f32 %v5374, %v5444
        %v5475 = vadd.f32 %v5375, %v5446
        %v5476 = vadd.f32 %v5376, %v5448
        %v5477 = vadd.f32 %v5377, %v5450
        %v5478 = vadd.f32 %v5378, %v5452
        %v5479 = vadd.f32 %v5379, %v5449
        %v5480 = vadd.f32 %v5380, %v5451
        %s5481 = scalar_lea.vmem %s5, 7
        %v5482 = vld [vmem:[%s5481] ss:$8 sm:$0x3]
        %v5484 = vlaneseq
        %v5485 = vshrl.u32 %v5484, 7
        %v5486 = vsub.s32 0, %v5485
        %v5487 = vrot.slane %v5482, %v5486
        %v5488 = vlaneseq
        %v5489 = vshrl.u32 %v5488, 7
        %v5490 = vsub.s32 1, %v5489
        %v5491 = vrot.slane %v5482, %v5490
        %5492 = vrot.lane.b32.xlu0 %v5487, 1
        %v5493 = vpop.permute.xlu0 %5492
        %5494 = vrot.lane.b32.xlu0 %v5491, 1
        %v5495 = vpop.permute.xlu0 %5494
        %v5496 = vsel %vm4805, %v5493, %v5495
        %v5499 = vmul.f32 %v5381, %v5493
        %v5500 = vmul.f32 %v5382, %v5496
        %v5501 = vmul.f32 %v4738, %v5493
        %v5502 = vmul.f32 %v4739, %v5496
        %v5503 = vmul.f32 %v4740, %v5493
        %v5504 = vmul.f32 %v4741, %v5496
        %v5505 = vmul.f32 %v4742, %v5493
        %v5506 = vmul.f32 %v4743, %v5496
        %v5507 = vmul.f32 %v4744, %v5493
        %v5508 = vmul.f32 %v4745, %v5496
        %v5509 = vmul.f32 %v4746, %v5493
        %v5510 = vmul.f32 %v4747, %v5496
        %v5511 = vmul.f32 %v5383, %v5493
        %v5512 = vmul.f32 %v5384, %v5496
        %v5527 = vrot.slane %v5499, 2
        %v5528 = vrot.slane %v5501, 2
        %v5529 = vsel %vm5426, %v5527, %v5528
        %v5530 = vrot.slane %v5500, 2
        %v5531 = vrot.slane %v5502, 2
        %v5532 = vsel %vm5426, %v5530, %v5531
        %v5533 = vrot.slane %v5503, 2
        %v5534 = vsel %vm5426, %v5528, %v5533
        %v5535 = vrot.slane %v5504, 2
        %v5536 = vsel %vm5426, %v5531, %v5535
        %v5537 = vrot.slane %v5505, 2
        %v5538 = vsel %vm5426, %v5533, %v5537
        %v5539 = vrot.slane %v5506, 2
        %v5540 = vsel %vm5426, %v5535, %v5539
        %v5541 = vrot.slane %v5507, 2
        %v5542 = vsel %vm5426, %v5537, %v5541
        %v5543 = vrot.slane %v5508, 2
        %v5544 = vsel %vm5426, %v5539, %v5543
        %v5545 = vrot.slane %v5509, 2
        %v5546 = vsel %vm5426, %v5541, %v5545
        %v5547 = vrot.slane %v5510, 2
        %v5548 = vsel %vm5426, %v5543, %v5547
        %v5549 = vrot.slane %v5511, 2
        %v5550 = vsel %vm5426, %v5545, %v5549
        %v5551 = vrot.slane %v5512, 2
        %v5552 = vsel %vm5426, %v5547, %v5551
        %5553 = vrot.lane.b32.xlu0 %v5529, 127
        %v5554 = vpop.permute.xlu0 %5553
        %5555 = vrot.lane.b32.xlu0 %v5532, 127
        %v5556 = vpop.permute.xlu0 %5555
        %5557 = vrot.lane.b32.xlu0 %v5534, 127
        %v5558 = vpop.permute.xlu0 %5557
        %5559 = vrot.lane.b32.xlu0 %v5536, 127
        %v5560 = vpop.permute.xlu0 %5559
        %5561 = vrot.lane.b32.xlu0 %v5538, 127
        %v5562 = vpop.permute.xlu0 %5561
        %5563 = vrot.lane.b32.xlu0 %v5540, 127
        %v5564 = vpop.permute.xlu0 %5563
        %5565 = vrot.lane.b32.xlu0 %v5542, 127
        %v5566 = vpop.permute.xlu0 %5565
        %5567 = vrot.lane.b32.xlu0 %v5544, 127
        %v5568 = vpop.permute.xlu0 %5567
        %5569 = vrot.lane.b32.xlu0 %v5546, 127
        %v5570 = vpop.permute.xlu0 %5569
        %5571 = vrot.lane.b32.xlu0 %v5548, 127
        %v5572 = vpop.permute.xlu0 %5571
        %5573 = vrot.lane.b32.xlu0 %v5550, 127
        %v5574 = vpop.permute.xlu0 %5573
        %5575 = vrot.lane.b32.xlu0 %v5552, 127
        %v5576 = vpop.permute.xlu0 %5575
        %5577 = vrot.lane.b32.xlu0 %v5549, 127
        %v5578 = vpop.permute.xlu0 %5577
        %5579 = vrot.lane.b32.xlu0 %v5551, 127
        %v5580 = vpop.permute.xlu0 %5579
        %v5581 = vsel %vm4865, %v5554, %v5556
        %v5582 = vsel %vm4865, %v5558, %v5560
        %v5583 = vsel %vm4865, %v5562, %v5564
        %v5584 = vsel %vm4865, %v5566, %v5568
        %v5585 = vsel %vm4865, %v5570, %v5572
        %v5586 = vsel %vm4865, %v5574, %v5576
        %v5587 = vsel %vm4865, %v5578, %v5580
        %v5602 = vadd.f32 %v5467, %v5581
        %v5603 = vadd.f32 %v5468, %v5556
        %v5604 = vadd.f32 %v5469, %v5582
        %v5605 = vadd.f32 %v5470, %v5560
        %v5606 = vadd.f32 %v5471, %v5583
        %v5607 = vadd.f32 %v5472, %v5564
        %v5608 = vadd.f32 %v5473, %v5584
        %v5609 = vadd.f32 %v5474, %v5568
        %v5610 = vadd.f32 %v5475, %v5585
        %v5611 = vadd.f32 %v5476, %v5572
        %v5612 = vadd.f32 %v5477, %v5586
        %v5613 = vadd.f32 %v5478, %v5576
        %v5614 = vadd.f32 %v5479, %v5587
        %v5615 = vadd.f32 %v5480, %v5580
        %s5616 = scalar_lea.vmem %s5, 16
        %v5617 = vld [vmem:[%s5616] ss:$8 sm:$0x3]
        %v5619 = vlaneseq
        %v5620 = vshrl.u32 %v5619, 7
        %v5621 = vsub.s32 0, %v5620
        %v5622 = vrot.slane %v5617, %v5621
        %v5623 = vlaneseq
        %v5624 = vshrl.u32 %v5623, 7
        %v5625 = vsub.s32 1, %v5624
        %v5626 = vrot.slane %v5617, %v5625
        %5627 = vrot.lane.b32.xlu0 %v5622, 2
        %v5628 = vpop.permute.xlu0 %5627
        %5629 = vrot.lane.b32.xlu0 %v5626, 2
        %v5630 = vpop.permute.xlu0 %5629
        %v5631 = vsel %vm4916, %v5628, %v5630
        %v5634 = vmul.f32 %v5381, %v5628
        %v5635 = vmul.f32 %v5382, %v5631
        %v5636 = vmul.f32 %v4738, %v5628
        %v5637 = vmul.f32 %v4739, %v5631
        %v5638 = vmul.f32 %v4740, %v5628
        %v5639 = vmul.f32 %v4741, %v5631
        %v5640 = vmul.f32 %v4742, %v5628
        %v5641 = vmul.f32 %v4743, %v5631
        %v5642 = vmul.f32 %v4744, %v5628
        %v5643 = vmul.f32 %v4745, %v5631
        %v5644 = vmul.f32 %v4746, %v5628
        %v5645 = vmul.f32 %v4747, %v5631
        %v5646 = vmul.f32 %v5383, %v5628
        %v5647 = vmul.f32 %v5384, %v5631
        %v5662 = vrot.slane %v5634, 2
        %v5663 = vrot.slane %v5636, 2
        %v5664 = vsel %vm5426, %v5662, %v5663
        %v5665 = vrot.slane %v5635, 2
        %v5666 = vrot.slane %v5637, 2
        %v5667 = vsel %vm5426, %v5665, %v5666
        %v5668 = vrot.slane %v5638, 2
        %v5669 = vsel %vm5426, %v5663, %v5668
        %v5670 = vrot.slane %v5639, 2
        %v5671 = vsel %vm5426, %v5666, %v5670
        %v5672 = vrot.slane %v5640, 2
        %v5673 = vsel %vm5426, %v5668, %v5672
        %v5674 = vrot.slane %v5641, 2
        %v5675 = vsel %vm5426, %v5670, %v5674
        %v5676 = vrot.slane %v5642, 2
        %v5677 = vsel %vm5426, %v5672, %v5676
        %v5678 = vrot.slane %v5643, 2
        %v5679 = vsel %vm5426, %v5674, %v5678
        %v5680 = vrot.slane %v5644, 2
        %v5681 = vsel %vm5426, %v5676, %v5680
        %v5682 = vrot.slane %v5645, 2
        %v5683 = vsel %vm5426, %v5678, %v5682
        %v5684 = vrot.slane %v5646, 2
        %v5685 = vsel %vm5426, %v5680, %v5684
        %v5686 = vrot.slane %v5647, 2
        %v5687 = vsel %vm5426, %v5682, %v5686
        %5688 = vrot.lane.b32.xlu0 %v5664, 126
        %v5689 = vpop.permute.xlu0 %5688
        %5690 = vrot.lane.b32.xlu0 %v5667, 126
        %v5691 = vpop.permute.xlu0 %5690
        %5692 = vrot.lane.b32.xlu0 %v5669, 126
        %v5693 = vpop.permute.xlu0 %5692
        %5694 = vrot.lane.b32.xlu0 %v5671, 126
        %v5695 = vpop.permute.xlu0 %5694
        %5696 = vrot.lane.b32.xlu0 %v5673, 126
        %v5697 = vpop.permute.xlu0 %5696
        %5698 = vrot.lane.b32.xlu0 %v5675, 126
        %v5699 = vpop.permute.xlu0 %5698
        %5700 = vrot.lane.b32.xlu0 %v5677, 126
        %v5701 = vpop.permute.xlu0 %5700
        %5702 = vrot.lane.b32.xlu0 %v5679, 126
        %v5703 = vpop.permute.xlu0 %5702
        %5704 = vrot.lane.b32.xlu0 %v5681, 126
        %v5705 = vpop.permute.xlu0 %5704
        %5706 = vrot.lane.b32.xlu0 %v5683, 126
        %v5707 = vpop.permute.xlu0 %5706
        %5708 = vrot.lane.b32.xlu0 %v5685, 126
        %v5709 = vpop.permute.xlu0 %5708
        %5710 = vrot.lane.b32.xlu0 %v5687, 126
        %v5711 = vpop.permute.xlu0 %5710
        %5712 = vrot.lane.b32.xlu0 %v5684, 126
        %v5713 = vpop.permute.xlu0 %5712
        %5714 = vrot.lane.b32.xlu0 %v5686, 126
        %v5715 = vpop.permute.xlu0 %5714
        %v5716 = vsel %vm4976, %v5689, %v5691
        %v5717 = vsel %vm4976, %v5693, %v5695
        %v5718 = vsel %vm4976, %v5697, %v5699
        %v5719 = vsel %vm4976, %v5701, %v5703
        %v5720 = vsel %vm4976, %v5705, %v5707
        %v5721 = vsel %vm4976, %v5709, %v5711
        %v5722 = vsel %vm4976, %v5713, %v5715
        %v5737 = vadd.f32 %v5602, %v5716
        %v5738 = vadd.f32 %v5603, %v5691
        %v5739 = vadd.f32 %v5604, %v5717
        %v5740 = vadd.f32 %v5605, %v5695
        %v5741 = vadd.f32 %v5606, %v5718
        %v5742 = vadd.f32 %v5607, %v5699
        %v5743 = vadd.f32 %v5608, %v5719
        %v5744 = vadd.f32 %v5609, %v5703
        %v5745 = vadd.f32 %v5610, %v5720
        %v5746 = vadd.f32 %v5611, %v5707
        %v5747 = vadd.f32 %v5612, %v5721
        %v5748 = vadd.f32 %v5613, %v5711
        %v5749 = vadd.f32 %v5614, %v5722
        %v5750 = vadd.f32 %v5615, %v5715
        %v5751 = vld [vmem:[#allocation2 + $0x70] sm:$0xff]
        %v5752 = vld [vmem:[#allocation2 + $0x78] sm:$0xff]
        %v5753 = vld [vmem:[#allocation2 + $0x80] sm:$0xff]
        %v5754 = vld [vmem:[#allocation2 + $0x88] sm:$0xff]
        %v5755 = vld [vmem:[#allocation2 + $0x90] sm:$0xff]
        %v5756 = vld [vmem:[#allocation2 + $0x98] sm:$0xff]
        %v5757 = vld [vmem:[#allocation2 + $0xa0] sm:$0xff]
        %v5758 = vld [vmem:[#allocation2 + $0xa8] sm:$0xff]
        %v5759 = vld [vmem:[#allocation2 + $0xb0] sm:$0xff]
        %v5760 = vld [vmem:[#allocation2 + $0xb8] sm:$0xff]
        %v5761 = vld [vmem:[#allocation2 + $0xc0] sm:$0xff]
        %v5762 = vld [vmem:[#allocation2 + $0xc8] sm:$0xff]
        %v5763 = vld [vmem:[#allocation2 + $0xd0] sm:$0x3]
        %v5764 = vld [vmem:[#allocation2 + $0xd8] sm:$0x3]
        %s5765 = scalar_lea.vmem %s5, 17
        %v5766 = vld [vmem:[%s5765] ss:$8 sm:$0x3]
        %v5768 = vlaneseq
        %v5769 = vshrl.u32 %v5768, 7
        %v5770 = vsub.s32 0, %v5769
        %v5771 = vrot.slane %v5766, %v5770
        %v5772 = vlaneseq
        %v5773 = vshrl.u32 %v5772, 7
        %v5774 = vsub.s32 1, %v5773
        %v5775 = vrot.slane %v5766, %v5774
        %v5778 = vmul.f32 %v5751, %v5771
        %v5779 = vmul.f32 %v5752, %v5775
        %v5780 = vmul.f32 %v5753, %v5771
        %v5781 = vmul.f32 %v5754, %v5775
        %v5782 = vmul.f32 %v5755, %v5771
        %v5783 = vmul.f32 %v5756, %v5775
        %v5784 = vmul.f32 %v5757, %v5771
        %v5785 = vmul.f32 %v5758, %v5775
        %v5786 = vmul.f32 %v5759, %v5771
        %v5787 = vmul.f32 %v5760, %v5775
        %v5788 = vmul.f32 %v5761, %v5771
        %v5789 = vmul.f32 %v5762, %v5775
        %v5790 = vmul.f32 %v5763, %v5771
        %v5791 = vmul.f32 %v5764, %v5775
        %v5792 = vadd.f32 %v5737, %v5778
        %v5793 = vadd.f32 %v5738, %v5779
        %v5794 = vadd.f32 %v5739, %v5780
        %v5795 = vadd.f32 %v5740, %v5781
        %v5796 = vadd.f32 %v5741, %v5782
        %v5797 = vadd.f32 %v5742, %v5783
        %v5798 = vadd.f32 %v5743, %v5784
        %v5799 = vadd.f32 %v5744, %v5785
        %v5800 = vadd.f32 %v5745, %v5786
        %v5801 = vadd.f32 %v5746, %v5787
        %v5802 = vadd.f32 %v5747, %v5788
        %v5803 = vadd.f32 %v5748, %v5789
        %v5804 = vadd.f32 %v5749, %v5790
        %v5805 = vadd.f32 %v5750, %v5791
        %s5806 = scalar_lea.vmem %s5, 18
        %v5807 = vld [vmem:[%s5806] ss:$8 sm:$0x3]
        %v5809 = vlaneseq
        %v5810 = vshrl.u32 %v5809, 7
        %v5811 = vsub.s32 0, %v5810
        %v5812 = vrot.slane %v5807, %v5811
        %v5813 = vlaneseq
        %v5814 = vshrl.u32 %v5813, 7
        %v5815 = vsub.s32 1, %v5814
        %v5816 = vrot.slane %v5807, %v5815
        %5817 = vrot.lane.b32.xlu0 %v5812, 1
        %v5818 = vpop.permute.xlu0 %5817
        %5819 = vrot.lane.b32.xlu0 %v5816, 1
        %v5820 = vpop.permute.xlu0 %5819
        %v5821 = vsel %vm4805, %v5818, %v5820
        %v5824 = vmul.f32 %v5751, %v5818
        %v5825 = vmul.f32 %v5752, %v5821
        %v5826 = vmul.f32 %v5753, %v5818
        %v5827 = vmul.f32 %v5754, %v5821
        %v5828 = vmul.f32 %v5755, %v5818
        %v5829 = vmul.f32 %v5756, %v5821
        %v5830 = vmul.f32 %v5757, %v5818
        %v5831 = vmul.f32 %v5758, %v5821
        %v5832 = vmul.f32 %v5759, %v5818
        %v5833 = vmul.f32 %v5760, %v5821
        %v5834 = vmul.f32 %v5761, %v5818
        %v5835 = vmul.f32 %v5762, %v5821
        %v5836 = vmul.f32 %v5763, %v5818
        %v5837 = vmul.f32 %v5764, %v5821
        %5852 = vrot.lane.b32.xlu0 %v5824, 127
        %v5853 = vpop.permute.xlu0 %5852
        %5854 = vrot.lane.b32.xlu0 %v5825, 127
        %v5855 = vpop.permute.xlu0 %5854
        %5856 = vrot.lane.b32.xlu0 %v5826, 127
        %v5857 = vpop.permute.xlu0 %5856
        %5858 = vrot.lane.b32.xlu0 %v5827, 127
        %v5859 = vpop.permute.xlu0 %5858
        %5860 = vrot.lane.b32.xlu0 %v5828, 127
        %v5861 = vpop.permute.xlu0 %5860
        %5862 = vrot.lane.b32.xlu0 %v5829, 127
        %v5863 = vpop.permute.xlu0 %5862
        %5864 = vrot.lane.b32.xlu0 %v5830, 127
        %v5865 = vpop.permute.xlu0 %5864
        %5866 = vrot.lane.b32.xlu0 %v5831, 127
        %v5867 = vpop.permute.xlu0 %5866
        %5868 = vrot.lane.b32.xlu0 %v5832, 127
        %v5869 = vpop.permute.xlu0 %5868
        %5870 = vrot.lane.b32.xlu0 %v5833, 127
        %v5871 = vpop.permute.xlu0 %5870
        %5872 = vrot.lane.b32.xlu0 %v5834, 127
        %v5873 = vpop.permute.xlu0 %5872
        %5874 = vrot.lane.b32.xlu0 %v5835, 127
        %v5875 = vpop.permute.xlu0 %5874
        %5876 = vrot.lane.b32.xlu0 %v5836, 127
        %v5877 = vpop.permute.xlu0 %5876
        %5878 = vrot.lane.b32.xlu0 %v5837, 127
        %v5879 = vpop.permute.xlu0 %5878
        %v5880 = vsel %vm4865, %v5853, %v5855
        %v5881 = vsel %vm4865, %v5857, %v5859
        %v5882 = vsel %vm4865, %v5861, %v5863
        %v5883 = vsel %vm4865, %v5865, %v5867
        %v5884 = vsel %vm4865, %v5869, %v5871
        %v5885 = vsel %vm4865, %v5873, %v5875
        %v5886 = vsel %vm4865, %v5877, %v5879
        %v5901 = vadd.f32 %v5792, %v5880
        %v5902 = vadd.f32 %v5793, %v5855
        %v5903 = vadd.f32 %v5794, %v5881
        %v5904 = vadd.f32 %v5795, %v5859
        %v5905 = vadd.f32 %v5796, %v5882
        %v5906 = vadd.f32 %v5797, %v5863
        %v5907 = vadd.f32 %v5798, %v5883
        %v5908 = vadd.f32 %v5799, %v5867
        %v5909 = vadd.f32 %v5800, %v5884
        %v5910 = vadd.f32 %v5801, %v5871
        %v5911 = vadd.f32 %v5802, %v5885
        %v5912 = vadd.f32 %v5803, %v5875
        %v5913 = vadd.f32 %v5804, %v5886
        %v5914 = vadd.f32 %v5805, %v5879
        %s5915 = scalar_lea.vmem %s5, 19
        %v5916 = vld [vmem:[%s5915] ss:$8 sm:$0x3]
        %v5918 = vlaneseq
        %v5919 = vshrl.u32 %v5918, 7
        %v5920 = vsub.s32 0, %v5919
        %v5921 = vrot.slane %v5916, %v5920
        %v5922 = vlaneseq
        %v5923 = vshrl.u32 %v5922, 7
        %v5924 = vsub.s32 1, %v5923
        %v5925 = vrot.slane %v5916, %v5924
        %5926 = vrot.lane.b32.xlu0 %v5921, 2
        %v5927 = vpop.permute.xlu0 %5926
        %5928 = vrot.lane.b32.xlu0 %v5925, 2
        %v5929 = vpop.permute.xlu0 %5928
        %v5930 = vsel %vm4916, %v5927, %v5929
        %v5933 = vmul.f32 %v5751, %v5927
        %v5934 = vmul.f32 %v5752, %v5930
        %v5935 = vmul.f32 %v5753, %v5927
        %v5936 = vmul.f32 %v5754, %v5930
        %v5937 = vmul.f32 %v5755, %v5927
        %v5938 = vmul.f32 %v5756, %v5930
        %v5939 = vmul.f32 %v5757, %v5927
        %v5940 = vmul.f32 %v5758, %v5930
        %v5941 = vmul.f32 %v5759, %v5927
        %v5942 = vmul.f32 %v5760, %v5930
        %v5943 = vmul.f32 %v5761, %v5927
        %v5944 = vmul.f32 %v5762, %v5930
        %v5945 = vmul.f32 %v5763, %v5927
        %v5946 = vmul.f32 %v5764, %v5930
        %5961 = vrot.lane.b32.xlu0 %v5933, 126
        %v5962 = vpop.permute.xlu0 %5961
        %5963 = vrot.lane.b32.xlu0 %v5934, 126
        %v5964 = vpop.permute.xlu0 %5963
        %5965 = vrot.lane.b32.xlu0 %v5935, 126
        %v5966 = vpop.permute.xlu0 %5965
        %5967 = vrot.lane.b32.xlu0 %v5936, 126
        %v5968 = vpop.permute.xlu0 %5967
        %5969 = vrot.lane.b32.xlu0 %v5937, 126
        %v5970 = vpop.permute.xlu0 %5969
        %5971 = vrot.lane.b32.xlu0 %v5938, 126
        %v5972 = vpop.permute.xlu0 %5971
        %5973 = vrot.lane.b32.xlu0 %v5939, 126
        %v5974 = vpop.permute.xlu0 %5973
        %5975 = vrot.lane.b32.xlu0 %v5940, 126
        %v5976 = vpop.permute.xlu0 %5975
        %5977 = vrot.lane.b32.xlu0 %v5941, 126
        %v5978 = vpop.permute.xlu0 %5977
        %5979 = vrot.lane.b32.xlu0 %v5942, 126
        %v5980 = vpop.permute.xlu0 %5979
        %5981 = vrot.lane.b32.xlu0 %v5943, 126
        %v5982 = vpop.permute.xlu0 %5981
        %5983 = vrot.lane.b32.xlu0 %v5944, 126
        %v5984 = vpop.permute.xlu0 %5983
        %5985 = vrot.lane.b32.xlu0 %v5945, 126
        %v5986 = vpop.permute.xlu0 %5985
        %5987 = vrot.lane.b32.xlu0 %v5946, 126
        %v5988 = vpop.permute.xlu0 %5987
        %v5989 = vsel %vm4976, %v5962, %v5964
        %v5990 = vsel %vm4976, %v5966, %v5968
        %v5991 = vsel %vm4976, %v5970, %v5972
        %v5992 = vsel %vm4976, %v5974, %v5976
        %v5993 = vsel %vm4976, %v5978, %v5980
        %v5994 = vsel %vm4976, %v5982, %v5984
        %v5995 = vsel %vm4976, %v5986, %v5988
        %v6010 = vadd.f32 %v5901, %v5989
        %v6011 = vadd.f32 %v5902, %v5964
        %v6012 = vadd.f32 %v5903, %v5990
        %v6013 = vadd.f32 %v5904, %v5968
        %v6014 = vadd.f32 %v5905, %v5991
        %v6015 = vadd.f32 %v5906, %v5972
        %v6016 = vadd.f32 %v5907, %v5992
        %v6017 = vadd.f32 %v5908, %v5976
        %v6018 = vadd.f32 %v5909, %v5993
        %v6019 = vadd.f32 %v5910, %v5980
        %v6020 = vadd.f32 %v5911, %v5994
        %v6021 = vadd.f32 %v5912, %v5984
        %v6022 = vadd.f32 %v5913, %v5995
        %v6023 = vadd.f32 %v5914, %v5988
        %v6024 = vld [vmem:[#allocation2 + $0x70] sm:$0xfe]
        %v6025 = vld [vmem:[#allocation2 + $0x78] sm:$0xfe]
        %v6026 = vld [vmem:[#allocation2 + $0xd0] sm:$0x7]
        %v6027 = vld [vmem:[#allocation2 + $0xd8] sm:$0x7]
        %s6028 = scalar_lea.vmem %s5, 20
        %v6029 = vld [vmem:[%s6028] ss:$8 sm:$0x3]
        %v6031 = vlaneseq
        %v6032 = vshrl.u32 %v6031, 7
        %v6033 = vsub.s32 0, %v6032
        %v6034 = vrot.slane %v6029, %v6033
        %v6035 = vlaneseq
        %v6036 = vshrl.u32 %v6035, 7
        %v6037 = vsub.s32 1, %v6036
        %v6038 = vrot.slane %v6029, %v6037
        %v6041 = vmul.f32 %v6024, %v6034
        %v6042 = vmul.f32 %v6025, %v6038
        %v6043 = vmul.f32 %v5753, %v6034
        %v6044 = vmul.f32 %v5754, %v6038
        %v6045 = vmul.f32 %v5755, %v6034
        %v6046 = vmul.f32 %v5756, %v6038
        %v6047 = vmul.f32 %v5757, %v6034
        %v6048 = vmul.f32 %v5758, %v6038
        %v6049 = vmul.f32 %v5759, %v6034
        %v6050 = vmul.f32 %v5760, %v6038
        %v6051 = vmul.f32 %v5761, %v6034
        %v6052 = vmul.f32 %v5762, %v6038
        %v6053 = vmul.f32 %v6026, %v6034
        %v6054 = vmul.f32 %v6027, %v6038
        %v6069 = vrot.slane %v6041, 1
        %v6070 = vrot.slane %v6043, 1
        %v6071 = vsel %vm1125, %v6069, %v6070
        %v6072 = vrot.slane %v6042, 1
        %v6073 = vrot.slane %v6044, 1
        %v6074 = vsel %vm1125, %v6072, %v6073
        %v6075 = vrot.slane %v6045, 1
        %v6076 = vsel %vm1125, %v6070, %v6075
        %v6077 = vrot.slane %v6046, 1
        %v6078 = vsel %vm1125, %v6073, %v6077
        %v6079 = vrot.slane %v6047, 1
        %v6080 = vsel %vm1125, %v6075, %v6079
        %v6081 = vrot.slane %v6048, 1
        %v6082 = vsel %vm1125, %v6077, %v6081
        %v6083 = vrot.slane %v6049, 1
        %v6084 = vsel %vm1125, %v6079, %v6083
        %v6085 = vrot.slane %v6050, 1
        %v6086 = vsel %vm1125, %v6081, %v6085
        %v6087 = vrot.slane %v6051, 1
        %v6088 = vsel %vm1125, %v6083, %v6087
        %v6089 = vrot.slane %v6052, 1
        %v6090 = vsel %vm1125, %v6085, %v6089
        %v6091 = vrot.slane %v6053, 1
        %v6092 = vsel %vm1125, %v6087, %v6091
        %v6093 = vrot.slane %v6054, 1
        %v6094 = vsel %vm1125, %v6089, %v6093
        %v6109 = vadd.f32 %v6010, %v6071
        %v6110 = vadd.f32 %v6011, %v6074
        %v6111 = vadd.f32 %v6012, %v6076
        %v6112 = vadd.f32 %v6013, %v6078
        %v6113 = vadd.f32 %v6014, %v6080
        %v6114 = vadd.f32 %v6015, %v6082
        %v6115 = vadd.f32 %v6016, %v6084
        %v6116 = vadd.f32 %v6017, %v6086
        %v6117 = vadd.f32 %v6018, %v6088
        %v6118 = vadd.f32 %v6019, %v6090
        %v6119 = vadd.f32 %v6020, %v6092
        %v6120 = vadd.f32 %v6021, %v6094
        %v6121 = vadd.f32 %v6022, %v6091
        %v6122 = vadd.f32 %v6023, %v6093
        %s6123 = scalar_lea.vmem %s5, 21
        %v6124 = vld [vmem:[%s6123] ss:$8 sm:$0x3]
        %v6126 = vlaneseq
        %v6127 = vshrl.u32 %v6126, 7
        %v6128 = vsub.s32 0, %v6127
        %v6129 = vrot.slane %v6124, %v6128
        %v6130 = vlaneseq
        %v6131 = vshrl.u32 %v6130, 7
        %v6132 = vsub.s32 1, %v6131
        %v6133 = vrot.slane %v6124, %v6132
        %6134 = vrot.lane.b32.xlu0 %v6129, 1
        %v6135 = vpop.permute.xlu0 %6134
        %6136 = vrot.lane.b32.xlu0 %v6133, 1
        %v6137 = vpop.permute.xlu0 %6136
        %v6138 = vsel %vm4805, %v6135, %v6137
        %v6141 = vmul.f32 %v6024, %v6135
        %v6142 = vmul.f32 %v6025, %v6138
        %v6143 = vmul.f32 %v5753, %v6135
        %v6144 = vmul.f32 %v5754, %v6138
        %v6145 = vmul.f32 %v5755, %v6135
        %v6146 = vmul.f32 %v5756, %v6138
        %v6147 = vmul.f32 %v5757, %v6135
        %v6148 = vmul.f32 %v5758, %v6138
        %v6149 = vmul.f32 %v5759, %v6135
        %v6150 = vmul.f32 %v5760, %v6138
        %v6151 = vmul.f32 %v5761, %v6135
        %v6152 = vmul.f32 %v5762, %v6138
        %v6153 = vmul.f32 %v6026, %v6135
        %v6154 = vmul.f32 %v6027, %v6138
        %v6169 = vrot.slane %v6141, 1
        %v6170 = vrot.slane %v6143, 1
        %v6171 = vsel %vm1125, %v6169, %v6170
        %v6172 = vrot.slane %v6142, 1
        %v6173 = vrot.slane %v6144, 1
        %v6174 = vsel %vm1125, %v6172, %v6173
        %v6175 = vrot.slane %v6145, 1
        %v6176 = vsel %vm1125, %v6170, %v6175
        %v6177 = vrot.slane %v6146, 1
        %v6178 = vsel %vm1125, %v6173, %v6177
        %v6179 = vrot.slane %v6147, 1
        %v6180 = vsel %vm1125, %v6175, %v6179
        %v6181 = vrot.slane %v6148, 1
        %v6182 = vsel %vm1125, %v6177, %v6181
        %v6183 = vrot.slane %v6149, 1
        %v6184 = vsel %vm1125, %v6179, %v6183
        %v6185 = vrot.slane %v6150, 1
        %v6186 = vsel %vm1125, %v6181, %v6185
        %v6187 = vrot.slane %v6151, 1
        %v6188 = vsel %vm1125, %v6183, %v6187
        %v6189 = vrot.slane %v6152, 1
        %v6190 = vsel %vm1125, %v6185, %v6189
        %v6191 = vrot.slane %v6153, 1
        %v6192 = vsel %vm1125, %v6187, %v6191
        %v6193 = vrot.slane %v6154, 1
        %v6194 = vsel %vm1125, %v6189, %v6193
        %6195 = vrot.lane.b32.xlu0 %v6171, 127
        %v6196 = vpop.permute.xlu0 %6195
        %6197 = vrot.lane.b32.xlu0 %v6174, 127
        %v6198 = vpop.permute.xlu0 %6197
        %6199 = vrot.lane.b32.xlu0 %v6176, 127
        %v6200 = vpop.permute.xlu0 %6199
        %6201 = vrot.lane.b32.xlu0 %v6178, 127
        %v6202 = vpop.permute.xlu0 %6201
        %6203 = vrot.lane.b32.xlu0 %v6180, 127
        %v6204 = vpop.permute.xlu0 %6203
        %6205 = vrot.lane.b32.xlu0 %v6182, 127
        %v6206 = vpop.permute.xlu0 %6205
        %6207 = vrot.lane.b32.xlu0 %v6184, 127
        %v6208 = vpop.permute.xlu0 %6207
        %6209 = vrot.lane.b32.xlu0 %v6186, 127
        %v6210 = vpop.permute.xlu0 %6209
        %6211 = vrot.lane.b32.xlu0 %v6188, 127
        %v6212 = vpop.permute.xlu0 %6211
        %6213 = vrot.lane.b32.xlu0 %v6190, 127
        %v6214 = vpop.permute.xlu0 %6213
        %6215 = vrot.lane.b32.xlu0 %v6192, 127
        %v6216 = vpop.permute.xlu0 %6215
        %6217 = vrot.lane.b32.xlu0 %v6194, 127
        %v6218 = vpop.permute.xlu0 %6217
        %6219 = vrot.lane.b32.xlu0 %v6191, 127
        %v6220 = vpop.permute.xlu0 %6219
        %6221 = vrot.lane.b32.xlu0 %v6193, 127
        %v6222 = vpop.permute.xlu0 %6221
        %v6223 = vsel %vm4865, %v6196, %v6198
        %v6224 = vsel %vm4865, %v6200, %v6202
        %v6225 = vsel %vm4865, %v6204, %v6206
        %v6226 = vsel %vm4865, %v6208, %v6210
        %v6227 = vsel %vm4865, %v6212, %v6214
        %v6228 = vsel %vm4865, %v6216, %v6218
        %v6229 = vsel %vm4865, %v6220, %v6222
        %v6244 = vadd.f32 %v6109, %v6223
        %v6245 = vadd.f32 %v6110, %v6198
        %v6246 = vadd.f32 %v6111, %v6224
        %v6247 = vadd.f32 %v6112, %v6202
        %v6248 = vadd.f32 %v6113, %v6225
        %v6249 = vadd.f32 %v6114, %v6206
        %v6250 = vadd.f32 %v6115, %v6226
        %v6251 = vadd.f32 %v6116, %v6210
        %v6252 = vadd.f32 %v6117, %v6227
        %v6253 = vadd.f32 %v6118, %v6214
        %v6254 = vadd.f32 %v6119, %v6228
        %v6255 = vadd.f32 %v6120, %v6218
        %v6256 = vadd.f32 %v6121, %v6229
        %v6257 = vadd.f32 %v6122, %v6222
        %s6258 = scalar_lea.vmem %s5, 22
        %v6259 = vld [vmem:[%s6258] ss:$8 sm:$0x3]
        %v6261 = vlaneseq
        %v6262 = vshrl.u32 %v6261, 7
        %v6263 = vsub.s32 0, %v6262
        %v6264 = vrot.slane %v6259, %v6263
        %v6265 = vlaneseq
        %v6266 = vshrl.u32 %v6265, 7
        %v6267 = vsub.s32 1, %v6266
        %v6268 = vrot.slane %v6259, %v6267
        %6269 = vrot.lane.b32.xlu0 %v6264, 2
        %v6270 = vpop.permute.xlu0 %6269
        %6271 = vrot.lane.b32.xlu0 %v6268, 2
        %v6272 = vpop.permute.xlu0 %6271
        %v6273 = vsel %vm4916, %v6270, %v6272
        %v6276 = vmul.f32 %v6024, %v6270
        %v6277 = vmul.f32 %v6025, %v6273
        %v6278 = vmul.f32 %v5753, %v6270
        %v6279 = vmul.f32 %v5754, %v6273
        %v6280 = vmul.f32 %v5755, %v6270
        %v6281 = vmul.f32 %v5756, %v6273
        %v6282 = vmul.f32 %v5757, %v6270
        %v6283 = vmul.f32 %v5758, %v6273
        %v6284 = vmul.f32 %v5759, %v6270
        %v6285 = vmul.f32 %v5760, %v6273
        %v6286 = vmul.f32 %v5761, %v6270
        %v6287 = vmul.f32 %v5762, %v6273
        %v6288 = vmul.f32 %v6026, %v6270
        %v6289 = vmul.f32 %v6027, %v6273
        %v6304 = vrot.slane %v6276, 1
        %v6305 = vrot.slane %v6278, 1
        %v6306 = vsel %vm1125, %v6304, %v6305
        %v6307 = vrot.slane %v6277, 1
        %v6308 = vrot.slane %v6279, 1
        %v6309 = vsel %vm1125, %v6307, %v6308
        %v6310 = vrot.slane %v6280, 1
        %v6311 = vsel %vm1125, %v6305, %v6310
        %v6312 = vrot.slane %v6281, 1
        %v6313 = vsel %vm1125, %v6308, %v6312
        %v6314 = vrot.slane %v6282, 1
        %v6315 = vsel %vm1125, %v6310, %v6314
        %v6316 = vrot.slane %v6283, 1
        %v6317 = vsel %vm1125, %v6312, %v6316
        %v6318 = vrot.slane %v6284, 1
        %v6319 = vsel %vm1125, %v6314, %v6318
        %v6320 = vrot.slane %v6285, 1
        %v6321 = vsel %vm1125, %v6316, %v6320
        %v6322 = vrot.slane %v6286, 1
        %v6323 = vsel %vm1125, %v6318, %v6322
        %v6324 = vrot.slane %v6287, 1
        %v6325 = vsel %vm1125, %v6320, %v6324
        %v6326 = vrot.slane %v6288, 1
        %v6327 = vsel %vm1125, %v6322, %v6326
        %v6328 = vrot.slane %v6289, 1
        %v6329 = vsel %vm1125, %v6324, %v6328
        %6330 = vrot.lane.b32.xlu0 %v6306, 126
        %v6331 = vpop.permute.xlu0 %6330
        %6332 = vrot.lane.b32.xlu0 %v6309, 126
        %v6333 = vpop.permute.xlu0 %6332
        %6334 = vrot.lane.b32.xlu0 %v6311, 126
        %v6335 = vpop.permute.xlu0 %6334
        %6336 = vrot.lane.b32.xlu0 %v6313, 126
        %v6337 = vpop.permute.xlu0 %6336
        %6338 = vrot.lane.b32.xlu0 %v6315, 126
        %v6339 = vpop.permute.xlu0 %6338
        %6340 = vrot.lane.b32.xlu0 %v6317, 126
        %v6341 = vpop.permute.xlu0 %6340
        %6342 = vrot.lane.b32.xlu0 %v6319, 126
        %v6343 = vpop.permute.xlu0 %6342
        %6344 = vrot.lane.b32.xlu0 %v6321, 126
        %v6345 = vpop.permute.xlu0 %6344
        %6346 = vrot.lane.b32.xlu0 %v6323, 126
        %v6347 = vpop.permute.xlu0 %6346
        %6348 = vrot.lane.b32.xlu0 %v6325, 126
        %v6349 = vpop.permute.xlu0 %6348
        %6350 = vrot.lane.b32.xlu0 %v6327, 126
        %v6351 = vpop.permute.xlu0 %6350
        %6352 = vrot.lane.b32.xlu0 %v6329, 126
        %v6353 = vpop.permute.xlu0 %6352
        %6354 = vrot.lane.b32.xlu0 %v6326, 126
        %v6355 = vpop.permute.xlu0 %6354
        %6356 = vrot.lane.b32.xlu0 %v6328, 126
        %v6357 = vpop.permute.xlu0 %6356
        %v6358 = vsel %vm4976, %v6331, %v6333
        %v6359 = vsel %vm4976, %v6335, %v6337
        %v6360 = vsel %vm4976, %v6339, %v6341
        %v6361 = vsel %vm4976, %v6343, %v6345
        %v6362 = vsel %vm4976, %v6347, %v6349
        %v6363 = vsel %vm4976, %v6351, %v6353
        %v6364 = vsel %vm4976, %v6355, %v6357
        %v6379 = vadd.f32 %v6244, %v6358
        %v6380 = vadd.f32 %v6245, %v6333
        %v6381 = vadd.f32 %v6246, %v6359
        %v6382 = vadd.f32 %v6247, %v6337
        %v6383 = vadd.f32 %v6248, %v6360
        %v6384 = vadd.f32 %v6249, %v6341
        %v6385 = vadd.f32 %v6250, %v6361
        %v6386 = vadd.f32 %v6251, %v6345
        %v6387 = vadd.f32 %v6252, %v6362
        %v6388 = vadd.f32 %v6253, %v6349
        %v6389 = vadd.f32 %v6254, %v6363
        %v6390 = vadd.f32 %v6255, %v6353
        %v6391 = vadd.f32 %v6256, %v6364
        %v6392 = vadd.f32 %v6257, %v6357
        %v6393 = vld [vmem:[#allocation2 + $0x70] sm:$0xfc]
        %v6394 = vld [vmem:[#allocation2 + $0x78] sm:$0xfc]
        %v6395 = vld [vmem:[#allocation2 + $0xd0] sm:$0xf]
        %v6396 = vld [vmem:[#allocation2 + $0xd8] sm:$0xf]
        %s6397 = scalar_lea.vmem %s5, 23
        %v6398 = vld [vmem:[%s6397] ss:$8 sm:$0x3]
        %v6400 = vlaneseq
        %v6401 = vshrl.u32 %v6400, 7
        %v6402 = vsub.s32 0, %v6401
        %v6403 = vrot.slane %v6398, %v6402
        %v6404 = vlaneseq
        %v6405 = vshrl.u32 %v6404, 7
        %v6406 = vsub.s32 1, %v6405
        %v6407 = vrot.slane %v6398, %v6406
        %v6410 = vmul.f32 %v6393, %v6403
        %v6411 = vmul.f32 %v6394, %v6407
        %v6412 = vmul.f32 %v5753, %v6403
        %v6413 = vmul.f32 %v5754, %v6407
        %v6414 = vmul.f32 %v5755, %v6403
        %v6415 = vmul.f32 %v5756, %v6407
        %v6416 = vmul.f32 %v5757, %v6403
        %v6417 = vmul.f32 %v5758, %v6407
        %v6418 = vmul.f32 %v5759, %v6403
        %v6419 = vmul.f32 %v5760, %v6407
        %v6420 = vmul.f32 %v5761, %v6403
        %v6421 = vmul.f32 %v5762, %v6407
        %v6422 = vmul.f32 %v6395, %v6403
        %v6423 = vmul.f32 %v6396, %v6407
        %v6438 = vrot.slane %v6410, 2
        %v6439 = vrot.slane %v6412, 2
        %v6440 = vsel %vm5426, %v6438, %v6439
        %v6441 = vrot.slane %v6411, 2
        %v6442 = vrot.slane %v6413, 2
        %v6443 = vsel %vm5426, %v6441, %v6442
        %v6444 = vrot.slane %v6414, 2
        %v6445 = vsel %vm5426, %v6439, %v6444
        %v6446 = vrot.slane %v6415, 2
        %v6447 = vsel %vm5426, %v6442, %v6446
        %v6448 = vrot.slane %v6416, 2
        %v6449 = vsel %vm5426, %v6444, %v6448
        %v6450 = vrot.slane %v6417, 2
        %v6451 = vsel %vm5426, %v6446, %v6450
        %v6452 = vrot.slane %v6418, 2
        %v6453 = vsel %vm5426, %v6448, %v6452
        %v6454 = vrot.slane %v6419, 2
        %v6455 = vsel %vm5426, %v6450, %v6454
        %v6456 = vrot.slane %v6420, 2
        %v6457 = vsel %vm5426, %v6452, %v6456
        %v6458 = vrot.slane %v6421, 2
        %v6459 = vsel %vm5426, %v6454, %v6458
        %v6460 = vrot.slane %v6422, 2
        %v6461 = vsel %vm5426, %v6456, %v6460
        %v6462 = vrot.slane %v6423, 2
        %v6463 = vsel %vm5426, %v6458, %v6462
        %v6478 = vadd.f32 %v6379, %v6440
        %v6479 = vadd.f32 %v6380, %v6443
        %v6480 = vadd.f32 %v6381, %v6445
        %v6481 = vadd.f32 %v6382, %v6447
        %v6482 = vadd.f32 %v6383, %v6449
        %v6483 = vadd.f32 %v6384, %v6451
        %v6484 = vadd.f32 %v6385, %v6453
        %v6485 = vadd.f32 %v6386, %v6455
        %v6486 = vadd.f32 %v6387, %v6457
        %v6487 = vadd.f32 %v6388, %v6459
        %v6488 = vadd.f32 %v6389, %v6461
        %v6489 = vadd.f32 %v6390, %v6463
        %v6490 = vadd.f32 %v6391, %v6460
        %v6491 = vadd.f32 %v6392, %v6462
        %s6492 = scalar_lea.vmem %s5, 32
        %v6493 = vld [vmem:[%s6492] ss:$8 sm:$0x3]
        %v6495 = vlaneseq
        %v6496 = vshrl.u32 %v6495, 7
        %v6497 = vsub.s32 0, %v6496
        %v6498 = vrot.slane %v6493, %v6497
        %v6499 = vlaneseq
        %v6500 = vshrl.u32 %v6499, 7
        %v6501 = vsub.s32 1, %v6500
        %v6502 = vrot.slane %v6493, %v6501
        %6503 = vrot.lane.b32.xlu0 %v6498, 1
        %v6504 = vpop.permute.xlu0 %6503
        %6505 = vrot.lane.b32.xlu0 %v6502, 1
        %v6506 = vpop.permute.xlu0 %6505
        %v6507 = vsel %vm4805, %v6504, %v6506
        %v6510 = vmul.f32 %v6393, %v6504
        %v6511 = vmul.f32 %v6394, %v6507
        %v6512 = vmul.f32 %v5753, %v6504
        %v6513 = vmul.f32 %v5754, %v6507
        %v6514 = vmul.f32 %v5755, %v6504
        %v6515 = vmul.f32 %v5756, %v6507
        %v6516 = vmul.f32 %v5757, %v6504
        %v6517 = vmul.f32 %v5758, %v6507
        %v6518 = vmul.f32 %v5759, %v6504
        %v6519 = vmul.f32 %v5760, %v6507
        %v6520 = vmul.f32 %v5761, %v6504
        %v6521 = vmul.f32 %v5762, %v6507
        %v6522 = vmul.f32 %v6395, %v6504
        %v6523 = vmul.f32 %v6396, %v6507
        %v6538 = vrot.slane %v6510, 2
        %v6539 = vrot.slane %v6512, 2
        %v6540 = vsel %vm5426, %v6538, %v6539
        %v6541 = vrot.slane %v6511, 2
        %v6542 = vrot.slane %v6513, 2
        %v6543 = vsel %vm5426, %v6541, %v6542
        %v6544 = vrot.slane %v6514, 2
        %v6545 = vsel %vm5426, %v6539, %v6544
        %v6546 = vrot.slane %v6515, 2
        %v6547 = vsel %vm5426, %v6542, %v6546
        %v6548 = vrot.slane %v6516, 2
        %v6549 = vsel %vm5426, %v6544, %v6548
        %v6550 = vrot.slane %v6517, 2
        %v6551 = vsel %vm5426, %v6546, %v6550
        %v6552 = vrot.slane %v6518, 2
        %v6553 = vsel %vm5426, %v6548, %v6552
        %v6554 = vrot.slane %v6519, 2
        %v6555 = vsel %vm5426, %v6550, %v6554
        %v6556 = vrot.slane %v6520, 2
        %v6557 = vsel %vm5426, %v6552, %v6556
        %v6558 = vrot.slane %v6521, 2
        %v6559 = vsel %vm5426, %v6554, %v6558
        %v6560 = vrot.slane %v6522, 2
        %v6561 = vsel %vm5426, %v6556, %v6560
        %v6562 = vrot.slane %v6523, 2
        %v6563 = vsel %vm5426, %v6558, %v6562
        %6564 = vrot.lane.b32.xlu0 %v6540, 127
        %v6565 = vpop.permute.xlu0 %6564
        %6566 = vrot.lane.b32.xlu0 %v6543, 127
        %v6567 = vpop.permute.xlu0 %6566
        %6568 = vrot.lane.b32.xlu0 %v6545, 127
        %v6569 = vpop.permute.xlu0 %6568
        %6570 = vrot.lane.b32.xlu0 %v6547, 127
        %v6571 = vpop.permute.xlu0 %6570
        %6572 = vrot.lane.b32.xlu0 %v6549, 127
        %v6573 = vpop.permute.xlu0 %6572
        %6574 = vrot.lane.b32.xlu0 %v6551, 127
        %v6575 = vpop.permute.xlu0 %6574
        %6576 = vrot.lane.b32.xlu0 %v6553, 127
        %v6577 = vpop.permute.xlu0 %6576
        %6578 = vrot.lane.b32.xlu0 %v6555, 127
        %v6579 = vpop.permute.xlu0 %6578
        %6580 = vrot.lane.b32.xlu0 %v6557, 127
        %v6581 = vpop.permute.xlu0 %6580
        %6582 = vrot.lane.b32.xlu0 %v6559, 127
        %v6583 = vpop.permute.xlu0 %6582
        %6584 = vrot.lane.b32.xlu0 %v6561, 127
        %v6585 = vpop.permute.xlu0 %6584
        %6586 = vrot.lane.b32.xlu0 %v6563, 127
        %v6587 = vpop.permute.xlu0 %6586
        %6588 = vrot.lane.b32.xlu0 %v6560, 127
        %v6589 = vpop.permute.xlu0 %6588
        %6590 = vrot.lane.b32.xlu0 %v6562, 127
        %v6591 = vpop.permute.xlu0 %6590
        %v6592 = vsel %vm4865, %v6565, %v6567
        %v6593 = vsel %vm4865, %v6569, %v6571
        %v6594 = vsel %vm4865, %v6573, %v6575
        %v6595 = vsel %vm4865, %v6577, %v6579
        %v6596 = vsel %vm4865, %v6581, %v6583
        %v6597 = vsel %vm4865, %v6585, %v6587
        %v6598 = vsel %vm4865, %v6589, %v6591
        %v6613 = vadd.f32 %v6478, %v6592
        %v6614 = vadd.f32 %v6479, %v6567
        %v6615 = vadd.f32 %v6480, %v6593
        %v6616 = vadd.f32 %v6481, %v6571
        %v6617 = vadd.f32 %v6482, %v6594
        %v6618 = vadd.f32 %v6483, %v6575
        %v6619 = vadd.f32 %v6484, %v6595
        %v6620 = vadd.f32 %v6485, %v6579
        %v6621 = vadd.f32 %v6486, %v6596
        %v6622 = vadd.f32 %v6487, %v6583
        %v6623 = vadd.f32 %v6488, %v6597
        %v6624 = vadd.f32 %v6489, %v6587
        %v6625 = vadd.f32 %v6490, %v6598
        %v6626 = vadd.f32 %v6491, %v6591
        %s6627 = scalar_lea.vmem %s5, 33
        %v6628 = vld [vmem:[%s6627] ss:$8 sm:$0x3]
        %v6630 = vlaneseq
        %v6631 = vshrl.u32 %v6630, 7
        %v6632 = vsub.s32 0, %v6631
        %v6633 = vrot.slane %v6628, %v6632
        %v6634 = vlaneseq
        %v6635 = vshrl.u32 %v6634, 7
        %v6636 = vsub.s32 1, %v6635
        %v6637 = vrot.slane %v6628, %v6636
        %6638 = vrot.lane.b32.xlu0 %v6633, 2
        %v6639 = vpop.permute.xlu0 %6638
        %6640 = vrot.lane.b32.xlu0 %v6637, 2
        %v6641 = vpop.permute.xlu0 %6640
        %v6642 = vsel %vm4916, %v6639, %v6641
        %v6645 = vmul.f32 %v6393, %v6639
        %v6646 = vmul.f32 %v6394, %v6642
        %v6647 = vmul.f32 %v5753, %v6639
        %v6648 = vmul.f32 %v5754, %v6642
        %v6649 = vmul.f32 %v5755, %v6639
        %v6650 = vmul.f32 %v5756, %v6642
        %v6651 = vmul.f32 %v5757, %v6639
        %v6652 = vmul.f32 %v5758, %v6642
        %v6653 = vmul.f32 %v5759, %v6639
        %v6654 = vmul.f32 %v5760, %v6642
        %v6655 = vmul.f32 %v5761, %v6639
        %v6656 = vmul.f32 %v5762, %v6642
        %v6657 = vmul.f32 %v6395, %v6639
        %v6658 = vmul.f32 %v6396, %v6642
        %v6673 = vrot.slane %v6645, 2
        %v6674 = vrot.slane %v6647, 2
        %v6675 = vsel %vm5426, %v6673, %v6674
        %v6676 = vrot.slane %v6646, 2
        %v6677 = vrot.slane %v6648, 2
        %v6678 = vsel %vm5426, %v6676, %v6677
        %v6679 = vrot.slane %v6649, 2
        %v6680 = vsel %vm5426, %v6674, %v6679
        %v6681 = vrot.slane %v6650, 2
        %v6682 = vsel %vm5426, %v6677, %v6681
        %v6683 = vrot.slane %v6651, 2
        %v6684 = vsel %vm5426, %v6679, %v6683
        %v6685 = vrot.slane %v6652, 2
        %v6686 = vsel %vm5426, %v6681, %v6685
        %v6687 = vrot.slane %v6653, 2
        %v6688 = vsel %vm5426, %v6683, %v6687
        %v6689 = vrot.slane %v6654, 2
        %v6690 = vsel %vm5426, %v6685, %v6689
        %v6691 = vrot.slane %v6655, 2
        %v6692 = vsel %vm5426, %v6687, %v6691
        %v6693 = vrot.slane %v6656, 2
        %v6694 = vsel %vm5426, %v6689, %v6693
        %v6695 = vrot.slane %v6657, 2
        %v6696 = vsel %vm5426, %v6691, %v6695
        %v6697 = vrot.slane %v6658, 2
        %v6698 = vsel %vm5426, %v6693, %v6697
        %6699 = vrot.lane.b32.xlu0 %v6675, 126
        %v6700 = vpop.permute.xlu0 %6699
        %6701 = vrot.lane.b32.xlu0 %v6678, 126
        %v6702 = vpop.permute.xlu0 %6701
        %6703 = vrot.lane.b32.xlu0 %v6680, 126
        %v6704 = vpop.permute.xlu0 %6703
        %6705 = vrot.lane.b32.xlu0 %v6682, 126
        %v6706 = vpop.permute.xlu0 %6705
        %6707 = vrot.lane.b32.xlu0 %v6684, 126
        %v6708 = vpop.permute.xlu0 %6707
        %6709 = vrot.lane.b32.xlu0 %v6686, 126
        %v6710 = vpop.permute.xlu0 %6709
        %6711 = vrot.lane.b32.xlu0 %v6688, 126
        %v6712 = vpop.permute.xlu0 %6711
        %6713 = vrot.lane.b32.xlu0 %v6690, 126
        %v6714 = vpop.permute.xlu0 %6713
        %6715 = vrot.lane.b32.xlu0 %v6692, 126
        %v6716 = vpop.permute.xlu0 %6715
        %6717 = vrot.lane.b32.xlu0 %v6694, 126
        %v6718 = vpop.permute.xlu0 %6717
        %6719 = vrot.lane.b32.xlu0 %v6696, 126
        %v6720 = vpop.permute.xlu0 %6719
        %6721 = vrot.lane.b32.xlu0 %v6698, 126
        %v6722 = vpop.permute.xlu0 %6721
        %6723 = vrot.lane.b32.xlu0 %v6695, 126
        %v6724 = vpop.permute.xlu0 %6723
        %6725 = vrot.lane.b32.xlu0 %v6697, 126
        %v6726 = vpop.permute.xlu0 %6725
        %v6727 = vsel %vm4976, %v6700, %v6702
        %v6728 = vsel %vm4976, %v6704, %v6706
        %v6729 = vsel %vm4976, %v6708, %v6710
        %v6730 = vsel %vm4976, %v6712, %v6714
        %v6731 = vsel %vm4976, %v6716, %v6718
        %v6732 = vsel %vm4976, %v6720, %v6722
        %v6733 = vsel %vm4976, %v6724, %v6726
        %v6748 = vadd.f32 %v6613, %v6727
        %v6749 = vadd.f32 %v6614, %v6702
        %v6750 = vadd.f32 %v6615, %v6728
        %v6751 = vadd.f32 %v6616, %v6706
        %v6752 = vadd.f32 %v6617, %v6729
        %v6753 = vadd.f32 %v6618, %v6710
        %v6754 = vadd.f32 %v6619, %v6730
        %v6755 = vadd.f32 %v6620, %v6714
        %v6756 = vadd.f32 %v6621, %v6731
        %v6757 = vadd.f32 %v6622, %v6718
        %v6758 = vadd.f32 %v6623, %v6732
        %v6759 = vadd.f32 %v6624, %v6722
        %v6760 = vadd.f32 %v6625, %v6733
        %v6761 = vadd.f32 %v6626, %v6726
        %v6762 = vld [vmem:[#allocation2 + $0xe0] sm:$0xff]
        %v6763 = vld [vmem:[#allocation2 + $0xe8] sm:$0xff]
        %v6764 = vld [vmem:[#allocation2 + $0xf0] sm:$0xff]
        %v6765 = vld [vmem:[#allocation2 + $0xf8] sm:$0xff]
        %v6766 = vld [vmem:[#allocation2 + $0x100] sm:$0xff]
        %v6767 = vld [vmem:[#allocation2 + $0x108] sm:$0xff]
        %v6768 = vld [vmem:[#allocation2 + $0x110] sm:$0xff]
        %v6769 = vld [vmem:[#allocation2 + $0x118] sm:$0xff]
        %v6770 = vld [vmem:[#allocation2 + $0x120] sm:$0xff]
        %v6771 = vld [vmem:[#allocation2 + $0x128] sm:$0xff]
        %v6772 = vld [vmem:[#allocation2 + $0x130] sm:$0xff]
        %v6773 = vld [vmem:[#allocation2 + $0x138] sm:$0xff]
        %v6774 = vld [vmem:[#allocation2 + $0x140] sm:$0x3]
        %v6775 = vld [vmem:[#allocation2 + $0x148] sm:$0x3]
        %s6776 = scalar_lea.vmem %s5, 34
        %v6777 = vld [vmem:[%s6776] ss:$8 sm:$0x3]
        %v6779 = vlaneseq
        %v6780 = vshrl.u32 %v6779, 7
        %v6781 = vsub.s32 0, %v6780
        %v6782 = vrot.slane %v6777, %v6781
        %v6783 = vlaneseq
        %v6784 = vshrl.u32 %v6783, 7
        %v6785 = vsub.s32 1, %v6784
        %v6786 = vrot.slane %v6777, %v6785
        %v6789 = vmul.f32 %v6762, %v6782
        %v6790 = vmul.f32 %v6763, %v6786
        %v6791 = vmul.f32 %v6764, %v6782
        %v6792 = vmul.f32 %v6765, %v6786
        %v6793 = vmul.f32 %v6766, %v6782
        %v6794 = vmul.f32 %v6767, %v6786
        %v6795 = vmul.f32 %v6768, %v6782
        %v6796 = vmul.f32 %v6769, %v6786
        %v6797 = vmul.f32 %v6770, %v6782
        %v6798 = vmul.f32 %v6771, %v6786
        %v6799 = vmul.f32 %v6772, %v6782
        %v6800 = vmul.f32 %v6773, %v6786
        %v6801 = vmul.f32 %v6774, %v6782
        %v6802 = vmul.f32 %v6775, %v6786
        %v6803 = vadd.f32 %v6748, %v6789
        %v6804 = vadd.f32 %v6749, %v6790
        %v6805 = vadd.f32 %v6750, %v6791
        %v6806 = vadd.f32 %v6751, %v6792
        %v6807 = vadd.f32 %v6752, %v6793
        %v6808 = vadd.f32 %v6753, %v6794
        %v6809 = vadd.f32 %v6754, %v6795
        %v6810 = vadd.f32 %v6755, %v6796
        %v6811 = vadd.f32 %v6756, %v6797
        %v6812 = vadd.f32 %v6757, %v6798
        %v6813 = vadd.f32 %v6758, %v6799
        %v6814 = vadd.f32 %v6759, %v6800
        %v6815 = vadd.f32 %v6760, %v6801
        %v6816 = vadd.f32 %v6761, %v6802
        %s6817 = scalar_lea.vmem %s5, 35
        %v6818 = vld [vmem:[%s6817] ss:$8 sm:$0x3]
        %v6820 = vlaneseq
        %v6821 = vshrl.u32 %v6820, 7
        %v6822 = vsub.s32 0, %v6821
        %v6823 = vrot.slane %v6818, %v6822
        %v6824 = vlaneseq
        %v6825 = vshrl.u32 %v6824, 7
        %v6826 = vsub.s32 1, %v6825
        %v6827 = vrot.slane %v6818, %v6826
        %6828 = vrot.lane.b32.xlu0 %v6823, 1
        %v6829 = vpop.permute.xlu0 %6828
        %6830 = vrot.lane.b32.xlu0 %v6827, 1
        %v6831 = vpop.permute.xlu0 %6830
        %v6832 = vsel %vm4805, %v6829, %v6831
        %v6835 = vmul.f32 %v6762, %v6829
        %v6836 = vmul.f32 %v6763, %v6832
        %v6837 = vmul.f32 %v6764, %v6829
        %v6838 = vmul.f32 %v6765, %v6832
        %v6839 = vmul.f32 %v6766, %v6829
        %v6840 = vmul.f32 %v6767, %v6832
        %v6841 = vmul.f32 %v6768, %v6829
        %v6842 = vmul.f32 %v6769, %v6832
        %v6843 = vmul.f32 %v6770, %v6829
        %v6844 = vmul.f32 %v6771, %v6832
        %v6845 = vmul.f32 %v6772, %v6829
        %v6846 = vmul.f32 %v6773, %v6832
        %v6847 = vmul.f32 %v6774, %v6829
        %v6848 = vmul.f32 %v6775, %v6832
        %6863 = vrot.lane.b32.xlu0 %v6835, 127
        %v6864 = vpop.permute.xlu0 %6863
        %6865 = vrot.lane.b32.xlu0 %v6836, 127
        %v6866 = vpop.permute.xlu0 %6865
        %6867 = vrot.lane.b32.xlu0 %v6837, 127
        %v6868 = vpop.permute.xlu0 %6867
        %6869 = vrot.lane.b32.xlu0 %v6838, 127
        %v6870 = vpop.permute.xlu0 %6869
        %6871 = vrot.lane.b32.xlu0 %v6839, 127
        %v6872 = vpop.permute.xlu0 %6871
        %6873 = vrot.lane.b32.xlu0 %v6840, 127
        %v6874 = vpop.permute.xlu0 %6873
        %6875 = vrot.lane.b32.xlu0 %v6841, 127
        %v6876 = vpop.permute.xlu0 %6875
        %6877 = vrot.lane.b32.xlu0 %v6842, 127
        %v6878 = vpop.permute.xlu0 %6877
        %6879 = vrot.lane.b32.xlu0 %v6843, 127
        %v6880 = vpop.permute.xlu0 %6879
        %6881 = vrot.lane.b32.xlu0 %v6844, 127
        %v6882 = vpop.permute.xlu0 %6881
        %6883 = vrot.lane.b32.xlu0 %v6845, 127
        %v6884 = vpop.permute.xlu0 %6883
        %6885 = vrot.lane.b32.xlu0 %v6846, 127
        %v6886 = vpop.permute.xlu0 %6885
        %6887 = vrot.lane.b32.xlu0 %v6847, 127
        %v6888 = vpop.permute.xlu0 %6887
        %6889 = vrot.lane.b32.xlu0 %v6848, 127
        %v6890 = vpop.permute.xlu0 %6889
        %v6891 = vsel %vm4865, %v6864, %v6866
        %v6892 = vsel %vm4865, %v6868, %v6870
        %v6893 = vsel %vm4865, %v6872, %v6874
        %v6894 = vsel %vm4865, %v6876, %v6878
        %v6895 = vsel %vm4865, %v6880, %v6882
        %v6896 = vsel %vm4865, %v6884, %v6886
        %v6897 = vsel %vm4865, %v6888, %v6890
        %v6912 = vadd.f32 %v6803, %v6891
        %v6913 = vadd.f32 %v6804, %v6866
        %v6914 = vadd.f32 %v6805, %v6892
        %v6915 = vadd.f32 %v6806, %v6870
        %v6916 = vadd.f32 %v6807, %v6893
        %v6917 = vadd.f32 %v6808, %v6874
        %v6918 = vadd.f32 %v6809, %v6894
        %v6919 = vadd.f32 %v6810, %v6878
        %v6920 = vadd.f32 %v6811, %v6895
        %v6921 = vadd.f32 %v6812, %v6882
        %v6922 = vadd.f32 %v6813, %v6896
        %v6923 = vadd.f32 %v6814, %v6886
        %v6924 = vadd.f32 %v6815, %v6897
        %v6925 = vadd.f32 %v6816, %v6890
        %s6926 = scalar_lea.vmem %s5, 36
        %v6927 = vld [vmem:[%s6926] ss:$8 sm:$0x3]
        %v6929 = vlaneseq
        %v6930 = vshrl.u32 %v6929, 7
        %v6931 = vsub.s32 0, %v6930
        %v6932 = vrot.slane %v6927, %v6931
        %v6933 = vlaneseq
        %v6934 = vshrl.u32 %v6933, 7
        %v6935 = vsub.s32 1, %v6934
        %v6936 = vrot.slane %v6927, %v6935
        %6937 = vrot.lane.b32.xlu0 %v6932, 2
        %v6938 = vpop.permute.xlu0 %6937
        %6939 = vrot.lane.b32.xlu0 %v6936, 2
        %v6940 = vpop.permute.xlu0 %6939
        %v6941 = vsel %vm4916, %v6938, %v6940
        %v6944 = vmul.f32 %v6762, %v6938
        %v6945 = vmul.f32 %v6763, %v6941
        %v6946 = vmul.f32 %v6764, %v6938
        %v6947 = vmul.f32 %v6765, %v6941
        %v6948 = vmul.f32 %v6766, %v6938
        %v6949 = vmul.f32 %v6767, %v6941
        %v6950 = vmul.f32 %v6768, %v6938
        %v6951 = vmul.f32 %v6769, %v6941
        %v6952 = vmul.f32 %v6770, %v6938
        %v6953 = vmul.f32 %v6771, %v6941
        %v6954 = vmul.f32 %v6772, %v6938
        %v6955 = vmul.f32 %v6773, %v6941
        %v6956 = vmul.f32 %v6774, %v6938
        %v6957 = vmul.f32 %v6775, %v6941
        %6972 = vrot.lane.b32.xlu0 %v6944, 126
        %v6973 = vpop.permute.xlu0 %6972
        %6974 = vrot.lane.b32.xlu0 %v6945, 126
        %v6975 = vpop.permute.xlu0 %6974
        %6976 = vrot.lane.b32.xlu0 %v6946, 126
        %v6977 = vpop.permute.xlu0 %6976
        %6978 = vrot.lane.b32.xlu0 %v6947, 126
        %v6979 = vpop.permute.xlu0 %6978
        %6980 = vrot.lane.b32.xlu0 %v6948, 126
        %v6981 = vpop.permute.xlu0 %6980
        %6982 = vrot.lane.b32.xlu0 %v6949, 126
        %v6983 = vpop.permute.xlu0 %6982
        %6984 = vrot.lane.b32.xlu0 %v6950, 126
        %v6985 = vpop.permute.xlu0 %6984
        %6986 = vrot.lane.b32.xlu0 %v6951, 126
        %v6987 = vpop.permute.xlu0 %6986
        %6988 = vrot.lane.b32.xlu0 %v6952, 126
        %v6989 = vpop.permute.xlu0 %6988
        %6990 = vrot.lane.b32.xlu0 %v6953, 126
        %v6991 = vpop.permute.xlu0 %6990
        %6992 = vrot.lane.b32.xlu0 %v6954, 126
        %v6993 = vpop.permute.xlu0 %6992
        %6994 = vrot.lane.b32.xlu0 %v6955, 126
        %v6995 = vpop.permute.xlu0 %6994
        %6996 = vrot.lane.b32.xlu0 %v6956, 126
        %v6997 = vpop.permute.xlu0 %6996
        %6998 = vrot.lane.b32.xlu0 %v6957, 126
        %v6999 = vpop.permute.xlu0 %6998
        %v7000 = vsel %vm4976, %v6973, %v6975
        %v7001 = vsel %vm4976, %v6977, %v6979
        %v7002 = vsel %vm4976, %v6981, %v6983
        %v7003 = vsel %vm4976, %v6985, %v6987
        %v7004 = vsel %vm4976, %v6989, %v6991
        %v7005 = vsel %vm4976, %v6993, %v6995
        %v7006 = vsel %vm4976, %v6997, %v6999
        %v7021 = vadd.f32 %v6912, %v7000
        %v7022 = vadd.f32 %v6913, %v6975
        %v7023 = vadd.f32 %v6914, %v7001
        %v7024 = vadd.f32 %v6915, %v6979
        %v7025 = vadd.f32 %v6916, %v7002
        %v7026 = vadd.f32 %v6917, %v6983
        %v7027 = vadd.f32 %v6918, %v7003
        %v7028 = vadd.f32 %v6919, %v6987
        %v7029 = vadd.f32 %v6920, %v7004
        %v7030 = vadd.f32 %v6921, %v6991
        %v7031 = vadd.f32 %v6922, %v7005
        %v7032 = vadd.f32 %v6923, %v6995
        %v7033 = vadd.f32 %v6924, %v7006
        %v7034 = vadd.f32 %v6925, %v6999
        %v7035 = vld [vmem:[#allocation2 + $0xe0] sm:$0xfe]
        %v7036 = vld [vmem:[#allocation2 + $0xe8] sm:$0xfe]
        %v7037 = vld [vmem:[#allocation2 + $0x140] sm:$0x7]
        %v7038 = vld [vmem:[#allocation2 + $0x148] sm:$0x7]
        %s7039 = scalar_lea.vmem %s5, 37
        %v7040 = vld [vmem:[%s7039] ss:$8 sm:$0x3]
        %v7042 = vlaneseq
        %v7043 = vshrl.u32 %v7042, 7
        %v7044 = vsub.s32 0, %v7043
        %v7045 = vrot.slane %v7040, %v7044
        %v7046 = vlaneseq
        %v7047 = vshrl.u32 %v7046, 7
        %v7048 = vsub.s32 1, %v7047
        %v7049 = vrot.slane %v7040, %v7048
        %v7052 = vmul.f32 %v7035, %v7045
        %v7053 = vmul.f32 %v7036, %v7049
        %v7054 = vmul.f32 %v6764, %v7045
        %v7055 = vmul.f32 %v6765, %v7049
        %v7056 = vmul.f32 %v6766, %v7045
        %v7057 = vmul.f32 %v6767, %v7049
        %v7058 = vmul.f32 %v6768, %v7045
        %v7059 = vmul.f32 %v6769, %v7049
        %v7060 = vmul.f32 %v6770, %v7045
        %v7061 = vmul.f32 %v6771, %v7049
        %v7062 = vmul.f32 %v6772, %v7045
        %v7063 = vmul.f32 %v6773, %v7049
        %v7064 = vmul.f32 %v7037, %v7045
        %v7065 = vmul.f32 %v7038, %v7049
        %v7080 = vrot.slane %v7052, 1
        %v7081 = vrot.slane %v7054, 1
        %v7082 = vsel %vm1125, %v7080, %v7081
        %v7083 = vrot.slane %v7053, 1
        %v7084 = vrot.slane %v7055, 1
        %v7085 = vsel %vm1125, %v7083, %v7084
        %v7086 = vrot.slane %v7056, 1
        %v7087 = vsel %vm1125, %v7081, %v7086
        %v7088 = vrot.slane %v7057, 1
        %v7089 = vsel %vm1125, %v7084, %v7088
        %v7090 = vrot.slane %v7058, 1
        %v7091 = vsel %vm1125, %v7086, %v7090
        %v7092 = vrot.slane %v7059, 1
        %v7093 = vsel %vm1125, %v7088, %v7092
        %v7094 = vrot.slane %v7060, 1
        %v7095 = vsel %vm1125, %v7090, %v7094
        %v7096 = vrot.slane %v7061, 1
        %v7097 = vsel %vm1125, %v7092, %v7096
        %v7098 = vrot.slane %v7062, 1
        %v7099 = vsel %vm1125, %v7094, %v7098
        %v7100 = vrot.slane %v7063, 1
        %v7101 = vsel %vm1125, %v7096, %v7100
        %v7102 = vrot.slane %v7064, 1
        %v7103 = vsel %vm1125, %v7098, %v7102
        %v7104 = vrot.slane %v7065, 1
        %v7105 = vsel %vm1125, %v7100, %v7104
        %v7120 = vadd.f32 %v7021, %v7082
        %v7121 = vadd.f32 %v7022, %v7085
        %v7122 = vadd.f32 %v7023, %v7087
        %v7123 = vadd.f32 %v7024, %v7089
        %v7124 = vadd.f32 %v7025, %v7091
        %v7125 = vadd.f32 %v7026, %v7093
        %v7126 = vadd.f32 %v7027, %v7095
        %v7127 = vadd.f32 %v7028, %v7097
        %v7128 = vadd.f32 %v7029, %v7099
        %v7129 = vadd.f32 %v7030, %v7101
        %v7130 = vadd.f32 %v7031, %v7103
        %v7131 = vadd.f32 %v7032, %v7105
        %v7132 = vadd.f32 %v7033, %v7102
        %v7133 = vadd.f32 %v7034, %v7104
        %s7134 = scalar_lea.vmem %s5, 38
        %v7135 = vld [vmem:[%s7134] ss:$8 sm:$0x3]
        %v7137 = vlaneseq
        %v7138 = vshrl.u32 %v7137, 7
        %v7139 = vsub.s32 0, %v7138
        %v7140 = vrot.slane %v7135, %v7139
        %v7141 = vlaneseq
        %v7142 = vshrl.u32 %v7141, 7
        %v7143 = vsub.s32 1, %v7142
        %v7144 = vrot.slane %v7135, %v7143
        %7145 = vrot.lane.b32.xlu0 %v7140, 1
        %v7146 = vpop.permute.xlu0 %7145
        %7147 = vrot.lane.b32.xlu0 %v7144, 1
        %v7148 = vpop.permute.xlu0 %7147
        %v7149 = vsel %vm4805, %v7146, %v7148
        %v7152 = vmul.f32 %v7035, %v7146
        %v7153 = vmul.f32 %v7036, %v7149
        %v7154 = vmul.f32 %v6764, %v7146
        %v7155 = vmul.f32 %v6765, %v7149
        %v7156 = vmul.f32 %v6766, %v7146
        %v7157 = vmul.f32 %v6767, %v7149
        %v7158 = vmul.f32 %v6768, %v7146
        %v7159 = vmul.f32 %v6769, %v7149
        %v7160 = vmul.f32 %v6770, %v7146
        %v7161 = vmul.f32 %v6771, %v7149
        %v7162 = vmul.f32 %v6772, %v7146
        %v7163 = vmul.f32 %v6773, %v7149
        %v7164 = vmul.f32 %v7037, %v7146
        %v7165 = vmul.f32 %v7038, %v7149
        %v7180 = vrot.slane %v7152, 1
        %v7181 = vrot.slane %v7154, 1
        %v7182 = vsel %vm1125, %v7180, %v7181
        %v7183 = vrot.slane %v7153, 1
        %v7184 = vrot.slane %v7155, 1
        %v7185 = vsel %vm1125, %v7183, %v7184
        %v7186 = vrot.slane %v7156, 1
        %v7187 = vsel %vm1125, %v7181, %v7186
        %v7188 = vrot.slane %v7157, 1
        %v7189 = vsel %vm1125, %v7184, %v7188
        %v7190 = vrot.slane %v7158, 1
        %v7191 = vsel %vm1125, %v7186, %v7190
        %v7192 = vrot.slane %v7159, 1
        %v7193 = vsel %vm1125, %v7188, %v7192
        %v7194 = vrot.slane %v7160, 1
        %v7195 = vsel %vm1125, %v7190, %v7194
        %v7196 = vrot.slane %v7161, 1
        %v7197 = vsel %vm1125, %v7192, %v7196
        %v7198 = vrot.slane %v7162, 1
        %v7199 = vsel %vm1125, %v7194, %v7198
        %v7200 = vrot.slane %v7163, 1
        %v7201 = vsel %vm1125, %v7196, %v7200
        %v7202 = vrot.slane %v7164, 1
        %v7203 = vsel %vm1125, %v7198, %v7202
        %v7204 = vrot.slane %v7165, 1
        %v7205 = vsel %vm1125, %v7200, %v7204
        %7206 = vrot.lane.b32.xlu0 %v7182, 127
        %v7207 = vpop.permute.xlu0 %7206
        %7208 = vrot.lane.b32.xlu0 %v7185, 127
        %v7209 = vpop.permute.xlu0 %7208
        %7210 = vrot.lane.b32.xlu0 %v7187, 127
        %v7211 = vpop.permute.xlu0 %7210
        %7212 = vrot.lane.b32.xlu0 %v7189, 127
        %v7213 = vpop.permute.xlu0 %7212
        %7214 = vrot.lane.b32.xlu0 %v7191, 127
        %v7215 = vpop.permute.xlu0 %7214
        %7216 = vrot.lane.b32.xlu0 %v7193, 127
        %v7217 = vpop.permute.xlu0 %7216
        %7218 = vrot.lane.b32.xlu0 %v7195, 127
        %v7219 = vpop.permute.xlu0 %7218
        %7220 = vrot.lane.b32.xlu0 %v7197, 127
        %v7221 = vpop.permute.xlu0 %7220
        %7222 = vrot.lane.b32.xlu0 %v7199, 127
        %v7223 = vpop.permute.xlu0 %7222
        %7224 = vrot.lane.b32.xlu0 %v7201, 127
        %v7225 = vpop.permute.xlu0 %7224
        %7226 = vrot.lane.b32.xlu0 %v7203, 127
        %v7227 = vpop.permute.xlu0 %7226
        %7228 = vrot.lane.b32.xlu0 %v7205, 127
        %v7229 = vpop.permute.xlu0 %7228
        %7230 = vrot.lane.b32.xlu0 %v7202, 127
        %v7231 = vpop.permute.xlu0 %7230
        %7232 = vrot.lane.b32.xlu0 %v7204, 127
        %v7233 = vpop.permute.xlu0 %7232
        %v7234 = vsel %vm4865, %v7207, %v7209
        %v7235 = vsel %vm4865, %v7211, %v7213
        %v7236 = vsel %vm4865, %v7215, %v7217
        %v7237 = vsel %vm4865, %v7219, %v7221
        %v7238 = vsel %vm4865, %v7223, %v7225
        %v7239 = vsel %vm4865, %v7227, %v7229
        %v7240 = vsel %vm4865, %v7231, %v7233
        %v7255 = vadd.f32 %v7120, %v7234
        %v7256 = vadd.f32 %v7121, %v7209
        %v7257 = vadd.f32 %v7122, %v7235
        %v7258 = vadd.f32 %v7123, %v7213
        %v7259 = vadd.f32 %v7124, %v7236
        %v7260 = vadd.f32 %v7125, %v7217
        %v7261 = vadd.f32 %v7126, %v7237
        %v7262 = vadd.f32 %v7127, %v7221
        %v7263 = vadd.f32 %v7128, %v7238
        %v7264 = vadd.f32 %v7129, %v7225
        %v7265 = vadd.f32 %v7130, %v7239
        %v7266 = vadd.f32 %v7131, %v7229
        %v7267 = vadd.f32 %v7132, %v7240
        %v7268 = vadd.f32 %v7133, %v7233
        %s7269 = scalar_lea.vmem %s5, 39
        %v7270 = vld [vmem:[%s7269] ss:$8 sm:$0x3]
        %v7272 = vlaneseq
        %v7273 = vshrl.u32 %v7272, 7
        %v7274 = vsub.s32 0, %v7273
        %v7275 = vrot.slane %v7270, %v7274
        %v7276 = vlaneseq
        %v7277 = vshrl.u32 %v7276, 7
        %v7278 = vsub.s32 1, %v7277
        %v7279 = vrot.slane %v7270, %v7278
        %7280 = vrot.lane.b32.xlu0 %v7275, 2
        %v7281 = vpop.permute.xlu0 %7280
        %7282 = vrot.lane.b32.xlu0 %v7279, 2
        %v7283 = vpop.permute.xlu0 %7282
        %v7284 = vsel %vm4916, %v7281, %v7283
        %v7287 = vmul.f32 %v7035, %v7281
        %v7288 = vmul.f32 %v7036, %v7284
        %v7289 = vmul.f32 %v6764, %v7281
        %v7290 = vmul.f32 %v6765, %v7284
        %v7291 = vmul.f32 %v6766, %v7281
        %v7292 = vmul.f32 %v6767, %v7284
        %v7293 = vmul.f32 %v6768, %v7281
        %v7294 = vmul.f32 %v6769, %v7284
        %v7295 = vmul.f32 %v6770, %v7281
        %v7296 = vmul.f32 %v6771, %v7284
        %v7297 = vmul.f32 %v6772, %v7281
        %v7298 = vmul.f32 %v6773, %v7284
        %v7299 = vmul.f32 %v7037, %v7281
        %v7300 = vmul.f32 %v7038, %v7284
        %v7315 = vrot.slane %v7287, 1
        %v7316 = vrot.slane %v7289, 1
        %v7317 = vsel %vm1125, %v7315, %v7316
        %v7318 = vrot.slane %v7288, 1
        %v7319 = vrot.slane %v7290, 1
        %v7320 = vsel %vm1125, %v7318, %v7319
        %v7321 = vrot.slane %v7291, 1
        %v7322 = vsel %vm1125, %v7316, %v7321
        %v7323 = vrot.slane %v7292, 1
        %v7324 = vsel %vm1125, %v7319, %v7323
        %v7325 = vrot.slane %v7293, 1
        %v7326 = vsel %vm1125, %v7321, %v7325
        %v7327 = vrot.slane %v7294, 1
        %v7328 = vsel %vm1125, %v7323, %v7327
        %v7329 = vrot.slane %v7295, 1
        %v7330 = vsel %vm1125, %v7325, %v7329
        %v7331 = vrot.slane %v7296, 1
        %v7332 = vsel %vm1125, %v7327, %v7331
        %v7333 = vrot.slane %v7297, 1
        %v7334 = vsel %vm1125, %v7329, %v7333
        %v7335 = vrot.slane %v7298, 1
        %v7336 = vsel %vm1125, %v7331, %v7335
        %v7337 = vrot.slane %v7299, 1
        %v7338 = vsel %vm1125, %v7333, %v7337
        %v7339 = vrot.slane %v7300, 1
        %v7340 = vsel %vm1125, %v7335, %v7339
        %7341 = vrot.lane.b32.xlu0 %v7317, 126
        %v7342 = vpop.permute.xlu0 %7341
        %7343 = vrot.lane.b32.xlu0 %v7320, 126
        %v7344 = vpop.permute.xlu0 %7343
        %7345 = vrot.lane.b32.xlu0 %v7322, 126
        %v7346 = vpop.permute.xlu0 %7345
        %7347 = vrot.lane.b32.xlu0 %v7324, 126
        %v7348 = vpop.permute.xlu0 %7347
        %7349 = vrot.lane.b32.xlu0 %v7326, 126
        %v7350 = vpop.permute.xlu0 %7349
        %7351 = vrot.lane.b32.xlu0 %v7328, 126
        %v7352 = vpop.permute.xlu0 %7351
        %7353 = vrot.lane.b32.xlu0 %v7330, 126
        %v7354 = vpop.permute.xlu0 %7353
        %7355 = vrot.lane.b32.xlu0 %v7332, 126
        %v7356 = vpop.permute.xlu0 %7355
        %7357 = vrot.lane.b32.xlu0 %v7334, 126
        %v7358 = vpop.permute.xlu0 %7357
        %7359 = vrot.lane.b32.xlu0 %v7336, 126
        %v7360 = vpop.permute.xlu0 %7359
        %7361 = vrot.lane.b32.xlu0 %v7338, 126
        %v7362 = vpop.permute.xlu0 %7361
        %7363 = vrot.lane.b32.xlu0 %v7340, 126
        %v7364 = vpop.permute.xlu0 %7363
        %7365 = vrot.lane.b32.xlu0 %v7337, 126
        %v7366 = vpop.permute.xlu0 %7365
        %7367 = vrot.lane.b32.xlu0 %v7339, 126
        %v7368 = vpop.permute.xlu0 %7367
        %v7369 = vsel %vm4976, %v7342, %v7344
        %v7370 = vsel %vm4976, %v7346, %v7348
        %v7371 = vsel %vm4976, %v7350, %v7352
        %v7372 = vsel %vm4976, %v7354, %v7356
        %v7373 = vsel %vm4976, %v7358, %v7360
        %v7374 = vsel %vm4976, %v7362, %v7364
        %v7375 = vsel %vm4976, %v7366, %v7368
        %v7390 = vadd.f32 %v7255, %v7369
        %v7391 = vadd.f32 %v7256, %v7344
        %v7392 = vadd.f32 %v7257, %v7370
        %v7393 = vadd.f32 %v7258, %v7348
        %v7394 = vadd.f32 %v7259, %v7371
        %v7395 = vadd.f32 %v7260, %v7352
        %v7396 = vadd.f32 %v7261, %v7372
        %v7397 = vadd.f32 %v7262, %v7356
        %v7398 = vadd.f32 %v7263, %v7373
        %v7399 = vadd.f32 %v7264, %v7360
        %v7400 = vadd.f32 %v7265, %v7374
        %v7401 = vadd.f32 %v7266, %v7364
        %v7402 = vadd.f32 %v7267, %v7375
        %v7403 = vadd.f32 %v7268, %v7368
        %v7404 = vld [vmem:[#allocation2 + $0xe0] sm:$0xfc]
        %v7405 = vld [vmem:[#allocation2 + $0xe8] sm:$0xfc]
        %v7406 = vld [vmem:[#allocation2 + $0x140] sm:$0xf]
        %v7407 = vld [vmem:[#allocation2 + $0x148] sm:$0xf]
        %s7408 = scalar_lea.vmem %s5, 48
        %v7409 = vld [vmem:[%s7408] ss:$8 sm:$0x3]
        %v7411 = vlaneseq
        %v7412 = vshrl.u32 %v7411, 7
        %v7413 = vsub.s32 0, %v7412
        %v7414 = vrot.slane %v7409, %v7413
        %v7415 = vlaneseq
        %v7416 = vshrl.u32 %v7415, 7
        %v7417 = vsub.s32 1, %v7416
        %v7418 = vrot.slane %v7409, %v7417
        %v7421 = vmul.f32 %v7404, %v7414
        %v7422 = vmul.f32 %v7405, %v7418
        %v7423 = vmul.f32 %v6764, %v7414
        %v7424 = vmul.f32 %v6765, %v7418
        %v7425 = vmul.f32 %v6766, %v7414
        %v7426 = vmul.f32 %v6767, %v7418
        %v7427 = vmul.f32 %v6768, %v7414
        %v7428 = vmul.f32 %v6769, %v7418
        %v7429 = vmul.f32 %v6770, %v7414
        %v7430 = vmul.f32 %v6771, %v7418
        %v7431 = vmul.f32 %v6772, %v7414
        %v7432 = vmul.f32 %v6773, %v7418
        %v7433 = vmul.f32 %v7406, %v7414
        %v7434 = vmul.f32 %v7407, %v7418
        %v7449 = vrot.slane %v7421, 2
        %v7450 = vrot.slane %v7423, 2
        %v7451 = vsel %vm5426, %v7449, %v7450
        %v7452 = vrot.slane %v7422, 2
        %v7453 = vrot.slane %v7424, 2
        %v7454 = vsel %vm5426, %v7452, %v7453
        %v7455 = vrot.slane %v7425, 2
        %v7456 = vsel %vm5426, %v7450, %v7455
        %v7457 = vrot.slane %v7426, 2
        %v7458 = vsel %vm5426, %v7453, %v7457
        %v7459 = vrot.slane %v7427, 2
        %v7460 = vsel %vm5426, %v7455, %v7459
        %v7461 = vrot.slane %v7428, 2
        %v7462 = vsel %vm5426, %v7457, %v7461
        %v7463 = vrot.slane %v7429, 2
        %v7464 = vsel %vm5426, %v7459, %v7463
        %v7465 = vrot.slane %v7430, 2
        %v7466 = vsel %vm5426, %v7461, %v7465
        %v7467 = vrot.slane %v7431, 2
        %v7468 = vsel %vm5426, %v7463, %v7467
        %v7469 = vrot.slane %v7432, 2
        %v7470 = vsel %vm5426, %v7465, %v7469
        %v7471 = vrot.slane %v7433, 2
        %v7472 = vsel %vm5426, %v7467, %v7471
        %v7473 = vrot.slane %v7434, 2
        %v7474 = vsel %vm5426, %v7469, %v7473
        %v7489 = vadd.f32 %v7390, %v7451
        %v7490 = vadd.f32 %v7391, %v7454
        %v7491 = vadd.f32 %v7392, %v7456
        %v7492 = vadd.f32 %v7393, %v7458
        %v7493 = vadd.f32 %v7394, %v7460
        %v7494 = vadd.f32 %v7395, %v7462
        %v7495 = vadd.f32 %v7396, %v7464
        %v7496 = vadd.f32 %v7397, %v7466
        %v7497 = vadd.f32 %v7398, %v7468
        %v7498 = vadd.f32 %v7399, %v7470
        %v7499 = vadd.f32 %v7400, %v7472
        %v7500 = vadd.f32 %v7401, %v7474
        %v7501 = vadd.f32 %v7402, %v7471
        %v7502 = vadd.f32 %v7403, %v7473
        %s7503 = scalar_lea.vmem %s5, 49
        %v7504 = vld [vmem:[%s7503] ss:$8 sm:$0x3]
        %v7506 = vlaneseq
        %v7507 = vshrl.u32 %v7506, 7
        %v7508 = vsub.s32 0, %v7507
        %v7509 = vrot.slane %v7504, %v7508
        %v7510 = vlaneseq
        %v7511 = vshrl.u32 %v7510, 7
        %v7512 = vsub.s32 1, %v7511
        %v7513 = vrot.slane %v7504, %v7512
        %7514 = vrot.lane.b32.xlu0 %v7509, 1
        %v7515 = vpop.permute.xlu0 %7514
        %7516 = vrot.lane.b32.xlu0 %v7513, 1
        %v7517 = vpop.permute.xlu0 %7516
        %v7518 = vsel %vm4805, %v7515, %v7517
        %v7521 = vmul.f32 %v7404, %v7515
        %v7522 = vmul.f32 %v7405, %v7518
        %v7523 = vmul.f32 %v6764, %v7515
        %v7524 = vmul.f32 %v6765, %v7518
        %v7525 = vmul.f32 %v6766, %v7515
        %v7526 = vmul.f32 %v6767, %v7518
        %v7527 = vmul.f32 %v6768, %v7515
        %v7528 = vmul.f32 %v6769, %v7518
        %v7529 = vmul.f32 %v6770, %v7515
        %v7530 = vmul.f32 %v6771, %v7518
        %v7531 = vmul.f32 %v6772, %v7515
        %v7532 = vmul.f32 %v6773, %v7518
        %v7533 = vmul.f32 %v7406, %v7515
        %v7534 = vmul.f32 %v7407, %v7518
        %v7549 = vrot.slane %v7521, 2
        %v7550 = vrot.slane %v7523, 2
        %v7551 = vsel %vm5426, %v7549, %v7550
        %v7552 = vrot.slane %v7522, 2
        %v7553 = vrot.slane %v7524, 2
        %v7554 = vsel %vm5426, %v7552, %v7553
        %v7555 = vrot.slane %v7525, 2
        %v7556 = vsel %vm5426, %v7550, %v7555
        %v7557 = vrot.slane %v7526, 2
        %v7558 = vsel %vm5426, %v7553, %v7557
        %v7559 = vrot.slane %v7527, 2
        %v7560 = vsel %vm5426, %v7555, %v7559
        %v7561 = vrot.slane %v7528, 2
        %v7562 = vsel %vm5426, %v7557, %v7561
        %v7563 = vrot.slane %v7529, 2
        %v7564 = vsel %vm5426, %v7559, %v7563
        %v7565 = vrot.slane %v7530, 2
        %v7566 = vsel %vm5426, %v7561, %v7565
        %v7567 = vrot.slane %v7531, 2
        %v7568 = vsel %vm5426, %v7563, %v7567
        %v7569 = vrot.slane %v7532, 2
        %v7570 = vsel %vm5426, %v7565, %v7569
        %v7571 = vrot.slane %v7533, 2
        %v7572 = vsel %vm5426, %v7567, %v7571
        %v7573 = vrot.slane %v7534, 2
        %v7574 = vsel %vm5426, %v7569, %v7573
        %7575 = vrot.lane.b32.xlu0 %v7551, 127
        %v7576 = vpop.permute.xlu0 %7575
        %7577 = vrot.lane.b32.xlu0 %v7554, 127
        %v7578 = vpop.permute.xlu0 %7577
        %7579 = vrot.lane.b32.xlu0 %v7556, 127
        %v7580 = vpop.permute.xlu0 %7579
        %7581 = vrot.lane.b32.xlu0 %v7558, 127
        %v7582 = vpop.permute.xlu0 %7581
        %7583 = vrot.lane.b32.xlu0 %v7560, 127
        %v7584 = vpop.permute.xlu0 %7583
        %7585 = vrot.lane.b32.xlu0 %v7562, 127
        %v7586 = vpop.permute.xlu0 %7585
        %7587 = vrot.lane.b32.xlu0 %v7564, 127
        %v7588 = vpop.permute.xlu0 %7587
        %7589 = vrot.lane.b32.xlu0 %v7566, 127
        %v7590 = vpop.permute.xlu0 %7589
        %7591 = vrot.lane.b32.xlu0 %v7568, 127
        %v7592 = vpop.permute.xlu0 %7591
        %7593 = vrot.lane.b32.xlu0 %v7570, 127
        %v7594 = vpop.permute.xlu0 %7593
        %7595 = vrot.lane.b32.xlu0 %v7572, 127
        %v7596 = vpop.permute.xlu0 %7595
        %7597 = vrot.lane.b32.xlu0 %v7574, 127
        %v7598 = vpop.permute.xlu0 %7597
        %7599 = vrot.lane.b32.xlu0 %v7571, 127
        %v7600 = vpop.permute.xlu0 %7599
        %7601 = vrot.lane.b32.xlu0 %v7573, 127
        %v7602 = vpop.permute.xlu0 %7601
        %v7603 = vsel %vm4865, %v7576, %v7578
        %v7604 = vsel %vm4865, %v7580, %v7582
        %v7605 = vsel %vm4865, %v7584, %v7586
        %v7606 = vsel %vm4865, %v7588, %v7590
        %v7607 = vsel %vm4865, %v7592, %v7594
        %v7608 = vsel %vm4865, %v7596, %v7598
        %v7609 = vsel %vm4865, %v7600, %v7602
        %v7624 = vadd.f32 %v7489, %v7603
        %v7625 = vadd.f32 %v7490, %v7578
        %v7626 = vadd.f32 %v7491, %v7604
        %v7627 = vadd.f32 %v7492, %v7582
        %v7628 = vadd.f32 %v7493, %v7605
        %v7629 = vadd.f32 %v7494, %v7586
        %v7630 = vadd.f32 %v7495, %v7606
        %v7631 = vadd.f32 %v7496, %v7590
        %v7632 = vadd.f32 %v7497, %v7607
        %v7633 = vadd.f32 %v7498, %v7594
        %v7634 = vadd.f32 %v7499, %v7608
        %v7635 = vadd.f32 %v7500, %v7598
        %v7636 = vadd.f32 %v7501, %v7609
        %v7637 = vadd.f32 %v7502, %v7602
        %s7638 = scalar_lea.vmem %s5, 50
        %v7639 = vld [vmem:[%s7638] ss:$8 sm:$0x3]
        %v7641 = vlaneseq
        %v7642 = vshrl.u32 %v7641, 7
        %v7643 = vsub.s32 0, %v7642
        %v7644 = vrot.slane %v7639, %v7643
        %v7645 = vlaneseq
        %v7646 = vshrl.u32 %v7645, 7
        %v7647 = vsub.s32 1, %v7646
        %v7648 = vrot.slane %v7639, %v7647
        %7649 = vrot.lane.b32.xlu0 %v7644, 2
        %v7650 = vpop.permute.xlu0 %7649
        %7651 = vrot.lane.b32.xlu0 %v7648, 2
        %v7652 = vpop.permute.xlu0 %7651
        %v7653 = vsel %vm4916, %v7650, %v7652
        %v7656 = vmul.f32 %v7404, %v7650
        %v7657 = vmul.f32 %v7405, %v7653
        %v7658 = vmul.f32 %v6764, %v7650
        %v7659 = vmul.f32 %v6765, %v7653
        %v7660 = vmul.f32 %v6766, %v7650
        %v7661 = vmul.f32 %v6767, %v7653
        %v7662 = vmul.f32 %v6768, %v7650
        %v7663 = vmul.f32 %v6769, %v7653
        %v7664 = vmul.f32 %v6770, %v7650
        %v7665 = vmul.f32 %v6771, %v7653
        %v7666 = vmul.f32 %v6772, %v7650
        %v7667 = vmul.f32 %v6773, %v7653
        %v7668 = vmul.f32 %v7406, %v7650
        %v7669 = vmul.f32 %v7407, %v7653
        %v7684 = vrot.slane %v7656, 2
        %v7685 = vrot.slane %v7658, 2
        %v7686 = vsel %vm5426, %v7684, %v7685
        %v7687 = vrot.slane %v7657, 2
        %v7688 = vrot.slane %v7659, 2
        %v7689 = vsel %vm5426, %v7687, %v7688
        %v7690 = vrot.slane %v7660, 2
        %v7691 = vsel %vm5426, %v7685, %v7690
        %v7692 = vrot.slane %v7661, 2
        %v7693 = vsel %vm5426, %v7688, %v7692
        %v7694 = vrot.slane %v7662, 2
        %v7695 = vsel %vm5426, %v7690, %v7694
        %v7696 = vrot.slane %v7663, 2
        %v7697 = vsel %vm5426, %v7692, %v7696
        %v7698 = vrot.slane %v7664, 2
        %v7699 = vsel %vm5426, %v7694, %v7698
        %v7700 = vrot.slane %v7665, 2
        %v7701 = vsel %vm5426, %v7696, %v7700
        %v7702 = vrot.slane %v7666, 2
        %v7703 = vsel %vm5426, %v7698, %v7702
        %v7704 = vrot.slane %v7667, 2
        %v7705 = vsel %vm5426, %v7700, %v7704
        %v7706 = vrot.slane %v7668, 2
        %v7707 = vsel %vm5426, %v7702, %v7706
        %v7708 = vrot.slane %v7669, 2
        %v7709 = vsel %vm5426, %v7704, %v7708
        %7710 = vrot.lane.b32.xlu0 %v7686, 126
        %v7711 = vpop.permute.xlu0 %7710
        %7712 = vrot.lane.b32.xlu0 %v7689, 126
        %v7713 = vpop.permute.xlu0 %7712
        %7714 = vrot.lane.b32.xlu0 %v7691, 126
        %v7715 = vpop.permute.xlu0 %7714
        %7716 = vrot.lane.b32.xlu0 %v7693, 126
        %v7717 = vpop.permute.xlu0 %7716
        %7718 = vrot.lane.b32.xlu0 %v7695, 126
        %v7719 = vpop.permute.xlu0 %7718
        %7720 = vrot.lane.b32.xlu0 %v7697, 126
        %v7721 = vpop.permute.xlu0 %7720
        %7722 = vrot.lane.b32.xlu0 %v7699, 126
        %v7723 = vpop.permute.xlu0 %7722
        %7724 = vrot.lane.b32.xlu0 %v7701, 126
        %v7725 = vpop.permute.xlu0 %7724
        %7726 = vrot.lane.b32.xlu0 %v7703, 126
        %v7727 = vpop.permute.xlu0 %7726
        %7728 = vrot.lane.b32.xlu0 %v7705, 126
        %v7729 = vpop.permute.xlu0 %7728
        %7730 = vrot.lane.b32.xlu0 %v7707, 126
        %v7731 = vpop.permute.xlu0 %7730
        %7732 = vrot.lane.b32.xlu0 %v7709, 126
        %v7733 = vpop.permute.xlu0 %7732
        %7734 = vrot.lane.b32.xlu0 %v7706, 126
        %v7735 = vpop.permute.xlu0 %7734
        %7736 = vrot.lane.b32.xlu0 %v7708, 126
        %v7737 = vpop.permute.xlu0 %7736
        %v7738 = vsel %vm4976, %v7711, %v7713
        %v7739 = vsel %vm4976, %v7715, %v7717
        %v7740 = vsel %vm4976, %v7719, %v7721
        %v7741 = vsel %vm4976, %v7723, %v7725
        %v7742 = vsel %vm4976, %v7727, %v7729
        %v7743 = vsel %vm4976, %v7731, %v7733
        %v7744 = vsel %vm4976, %v7735, %v7737
        %v7759 = vadd.f32 %v7624, %v7738
        %v7760 = vadd.f32 %v7625, %v7713
        %v7761 = vadd.f32 %v7626, %v7739
        %v7762 = vadd.f32 %v7627, %v7717
        %v7763 = vadd.f32 %v7628, %v7740
        %v7764 = vadd.f32 %v7629, %v7721
        %v7765 = vadd.f32 %v7630, %v7741
        %v7766 = vadd.f32 %v7631, %v7725
        %v7767 = vadd.f32 %v7632, %v7742
        %v7768 = vadd.f32 %v7633, %v7729
        %v7769 = vadd.f32 %v7634, %v7743
        %v7770 = vadd.f32 %v7635, %v7733
        %v7771 = vadd.f32 %v7636, %v7744
        %v7772 = vadd.f32 %v7637, %v7737
        %v7773 = vld [vmem:[#allocation2 + $0x150] sm:$0xff]
        %v7774 = vld [vmem:[#allocation2 + $0x158] sm:$0xff]
        %v7775 = vld [vmem:[#allocation2 + $0x160] sm:$0xff]
        %v7776 = vld [vmem:[#allocation2 + $0x168] sm:$0xff]
        %v7777 = vld [vmem:[#allocation2 + $0x170] sm:$0xff]
        %v7778 = vld [vmem:[#allocation2 + $0x178] sm:$0xff]
        %v7779 = vld [vmem:[#allocation2 + $0x180] sm:$0xff]
        %v7780 = vld [vmem:[#allocation2 + $0x188] sm:$0xff]
        %v7781 = vld [vmem:[#allocation2 + $0x190] sm:$0xff]
        %v7782 = vld [vmem:[#allocation2 + $0x198] sm:$0xff]
        %v7783 = vld [vmem:[#allocation2 + $0x1a0] sm:$0xff]
        %v7784 = vld [vmem:[#allocation2 + $0x1a8] sm:$0xff]
        %v7785 = vld [vmem:[#allocation2 + $0x1b0] sm:$0x3]
        %v7786 = vld [vmem:[#allocation2 + $0x1b8] sm:$0x3]
        %s7787 = scalar_lea.vmem %s5, 51
        %v7788 = vld [vmem:[%s7787] ss:$8 sm:$0x3]
        %v7790 = vlaneseq
        %v7791 = vshrl.u32 %v7790, 7
        %v7792 = vsub.s32 0, %v7791
        %v7793 = vrot.slane %v7788, %v7792
        %v7794 = vlaneseq
        %v7795 = vshrl.u32 %v7794, 7
        %v7796 = vsub.s32 1, %v7795
        %v7797 = vrot.slane %v7788, %v7796
        %v7800 = vmul.f32 %v7773, %v7793
        %v7801 = vmul.f32 %v7774, %v7797
        %v7802 = vmul.f32 %v7775, %v7793
        %v7803 = vmul.f32 %v7776, %v7797
        %v7804 = vmul.f32 %v7777, %v7793
        %v7805 = vmul.f32 %v7778, %v7797
        %v7806 = vmul.f32 %v7779, %v7793
        %v7807 = vmul.f32 %v7780, %v7797
        %v7808 = vmul.f32 %v7781, %v7793
        %v7809 = vmul.f32 %v7782, %v7797
        %v7810 = vmul.f32 %v7783, %v7793
        %v7811 = vmul.f32 %v7784, %v7797
        %v7812 = vmul.f32 %v7785, %v7793
        %v7813 = vmul.f32 %v7786, %v7797
        %v7814 = vadd.f32 %v7759, %v7800
        %v7815 = vadd.f32 %v7760, %v7801
        %v7816 = vadd.f32 %v7761, %v7802
        %v7817 = vadd.f32 %v7762, %v7803
        %v7818 = vadd.f32 %v7763, %v7804
        %v7819 = vadd.f32 %v7764, %v7805
        %v7820 = vadd.f32 %v7765, %v7806
        %v7821 = vadd.f32 %v7766, %v7807
        %v7822 = vadd.f32 %v7767, %v7808
        %v7823 = vadd.f32 %v7768, %v7809
        %v7824 = vadd.f32 %v7769, %v7810
        %v7825 = vadd.f32 %v7770, %v7811
        %v7826 = vadd.f32 %v7771, %v7812
        %v7827 = vadd.f32 %v7772, %v7813
        %s7828 = scalar_lea.vmem %s5, 52
        %v7829 = vld [vmem:[%s7828] ss:$8 sm:$0x3]
        %v7831 = vlaneseq
        %v7832 = vshrl.u32 %v7831, 7
        %v7833 = vsub.s32 0, %v7832
        %v7834 = vrot.slane %v7829, %v7833
        %v7835 = vlaneseq
        %v7836 = vshrl.u32 %v7835, 7
        %v7837 = vsub.s32 1, %v7836
        %v7838 = vrot.slane %v7829, %v7837
        %7839 = vrot.lane.b32.xlu0 %v7834, 1
        %v7840 = vpop.permute.xlu0 %7839
        %7841 = vrot.lane.b32.xlu0 %v7838, 1
        %v7842 = vpop.permute.xlu0 %7841
        %v7843 = vsel %vm4805, %v7840, %v7842
        %v7846 = vmul.f32 %v7773, %v7840
        %v7847 = vmul.f32 %v7774, %v7843
        %v7848 = vmul.f32 %v7775, %v7840
        %v7849 = vmul.f32 %v7776, %v7843
        %v7850 = vmul.f32 %v7777, %v7840
        %v7851 = vmul.f32 %v7778, %v7843
        %v7852 = vmul.f32 %v7779, %v7840
        %v7853 = vmul.f32 %v7780, %v7843
        %v7854 = vmul.f32 %v7781, %v7840
        %v7855 = vmul.f32 %v7782, %v7843
        %v7856 = vmul.f32 %v7783, %v7840
        %v7857 = vmul.f32 %v7784, %v7843
        %v7858 = vmul.f32 %v7785, %v7840
        %v7859 = vmul.f32 %v7786, %v7843
        %7874 = vrot.lane.b32.xlu0 %v7846, 127
        %v7875 = vpop.permute.xlu0 %7874
        %7876 = vrot.lane.b32.xlu0 %v7847, 127
        %v7877 = vpop.permute.xlu0 %7876
        %7878 = vrot.lane.b32.xlu0 %v7848, 127
        %v7879 = vpop.permute.xlu0 %7878
        %7880 = vrot.lane.b32.xlu0 %v7849, 127
        %v7881 = vpop.permute.xlu0 %7880
        %7882 = vrot.lane.b32.xlu0 %v7850, 127
        %v7883 = vpop.permute.xlu0 %7882
        %7884 = vrot.lane.b32.xlu0 %v7851, 127
        %v7885 = vpop.permute.xlu0 %7884
        %7886 = vrot.lane.b32.xlu0 %v7852, 127
        %v7887 = vpop.permute.xlu0 %7886
        %7888 = vrot.lane.b32.xlu0 %v7853, 127
        %v7889 = vpop.permute.xlu0 %7888
        %7890 = vrot.lane.b32.xlu0 %v7854, 127
        %v7891 = vpop.permute.xlu0 %7890
        %7892 = vrot.lane.b32.xlu0 %v7855, 127
        %v7893 = vpop.permute.xlu0 %7892
        %7894 = vrot.lane.b32.xlu0 %v7856, 127
        %v7895 = vpop.permute.xlu0 %7894
        %7896 = vrot.lane.b32.xlu0 %v7857, 127
        %v7897 = vpop.permute.xlu0 %7896
        %7898 = vrot.lane.b32.xlu0 %v7858, 127
        %v7899 = vpop.permute.xlu0 %7898
        %7900 = vrot.lane.b32.xlu0 %v7859, 127
        %v7901 = vpop.permute.xlu0 %7900
        %v7902 = vsel %vm4865, %v7875, %v7877
        %v7903 = vsel %vm4865, %v7879, %v7881
        %v7904 = vsel %vm4865, %v7883, %v7885
        %v7905 = vsel %vm4865, %v7887, %v7889
        %v7906 = vsel %vm4865, %v7891, %v7893
        %v7907 = vsel %vm4865, %v7895, %v7897
        %v7908 = vsel %vm4865, %v7899, %v7901
        %v7923 = vadd.f32 %v7814, %v7902
        %v7924 = vadd.f32 %v7815, %v7877
        %v7925 = vadd.f32 %v7816, %v7903
        %v7926 = vadd.f32 %v7817, %v7881
        %v7927 = vadd.f32 %v7818, %v7904
        %v7928 = vadd.f32 %v7819, %v7885
        %v7929 = vadd.f32 %v7820, %v7905
        %v7930 = vadd.f32 %v7821, %v7889
        %v7931 = vadd.f32 %v7822, %v7906
        %v7932 = vadd.f32 %v7823, %v7893
        %v7933 = vadd.f32 %v7824, %v7907
        %v7934 = vadd.f32 %v7825, %v7897
        %v7935 = vadd.f32 %v7826, %v7908
        %v7936 = vadd.f32 %v7827, %v7901
        %s7937 = scalar_lea.vmem %s5, 53
        %v7938 = vld [vmem:[%s7937] ss:$8 sm:$0x3]
        %v7940 = vlaneseq
        %v7941 = vshrl.u32 %v7940, 7
        %v7942 = vsub.s32 0, %v7941
        %v7943 = vrot.slane %v7938, %v7942
        %v7944 = vlaneseq
        %v7945 = vshrl.u32 %v7944, 7
        %v7946 = vsub.s32 1, %v7945
        %v7947 = vrot.slane %v7938, %v7946
        %7948 = vrot.lane.b32.xlu0 %v7943, 2
        %v7949 = vpop.permute.xlu0 %7948
        %7950 = vrot.lane.b32.xlu0 %v7947, 2
        %v7951 = vpop.permute.xlu0 %7950
        %v7952 = vsel %vm4916, %v7949, %v7951
        %v7955 = vmul.f32 %v7773, %v7949
        %v7956 = vmul.f32 %v7774, %v7952
        %v7957 = vmul.f32 %v7775, %v7949
        %v7958 = vmul.f32 %v7776, %v7952
        %v7959 = vmul.f32 %v7777, %v7949
        %v7960 = vmul.f32 %v7778, %v7952
        %v7961 = vmul.f32 %v7779, %v7949
        %v7962 = vmul.f32 %v7780, %v7952
        %v7963 = vmul.f32 %v7781, %v7949
        %v7964 = vmul.f32 %v7782, %v7952
        %v7965 = vmul.f32 %v7783, %v7949
        %v7966 = vmul.f32 %v7784, %v7952
        %v7967 = vmul.f32 %v7785, %v7949
        %v7968 = vmul.f32 %v7786, %v7952
        %7983 = vrot.lane.b32.xlu0 %v7955, 126
        %v7984 = vpop.permute.xlu0 %7983
        %7985 = vrot.lane.b32.xlu0 %v7956, 126
        %v7986 = vpop.permute.xlu0 %7985
        %7987 = vrot.lane.b32.xlu0 %v7957, 126
        %v7988 = vpop.permute.xlu0 %7987
        %7989 = vrot.lane.b32.xlu0 %v7958, 126
        %v7990 = vpop.permute.xlu0 %7989
        %7991 = vrot.lane.b32.xlu0 %v7959, 126
        %v7992 = vpop.permute.xlu0 %7991
        %7993 = vrot.lane.b32.xlu0 %v7960, 126
        %v7994 = vpop.permute.xlu0 %7993
        %7995 = vrot.lane.b32.xlu0 %v7961, 126
        %v7996 = vpop.permute.xlu0 %7995
        %7997 = vrot.lane.b32.xlu0 %v7962, 126
        %v7998 = vpop.permute.xlu0 %7997
        %7999 = vrot.lane.b32.xlu0 %v7963, 126
        %v8000 = vpop.permute.xlu0 %7999
        %8001 = vrot.lane.b32.xlu0 %v7964, 126
        %v8002 = vpop.permute.xlu0 %8001
        %8003 = vrot.lane.b32.xlu0 %v7965, 126
        %v8004 = vpop.permute.xlu0 %8003
        %8005 = vrot.lane.b32.xlu0 %v7966, 126
        %v8006 = vpop.permute.xlu0 %8005
        %8007 = vrot.lane.b32.xlu0 %v7967, 126
        %v8008 = vpop.permute.xlu0 %8007
        %8009 = vrot.lane.b32.xlu0 %v7968, 126
        %v8010 = vpop.permute.xlu0 %8009
        %v8011 = vsel %vm4976, %v7984, %v7986
        %v8012 = vsel %vm4976, %v7988, %v7990
        %v8013 = vsel %vm4976, %v7992, %v7994
        %v8014 = vsel %vm4976, %v7996, %v7998
        %v8015 = vsel %vm4976, %v8000, %v8002
        %v8016 = vsel %vm4976, %v8004, %v8006
        %v8017 = vsel %vm4976, %v8008, %v8010
        %v8032 = vadd.f32 %v7923, %v8011
        %v8033 = vadd.f32 %v7924, %v7986
        %v8034 = vadd.f32 %v7925, %v8012
        %v8035 = vadd.f32 %v7926, %v7990
        %v8036 = vadd.f32 %v7927, %v8013
        %v8037 = vadd.f32 %v7928, %v7994
        %v8038 = vadd.f32 %v7929, %v8014
        %v8039 = vadd.f32 %v7930, %v7998
        %v8040 = vadd.f32 %v7931, %v8015
        %v8041 = vadd.f32 %v7932, %v8002
        %v8042 = vadd.f32 %v7933, %v8016
        %v8043 = vadd.f32 %v7934, %v8006
        %v8044 = vadd.f32 %v7935, %v8017
        %v8045 = vadd.f32 %v7936, %v8010
        %v8046 = vld [vmem:[#allocation2 + $0x150] sm:$0xfe]
        %v8047 = vld [vmem:[#allocation2 + $0x158] sm:$0xfe]
        %v8048 = vld [vmem:[#allocation2 + $0x1b0] sm:$0x7]
        %v8049 = vld [vmem:[#allocation2 + $0x1b8] sm:$0x7]
        %s8050 = scalar_lea.vmem %s5, 54
        %v8051 = vld [vmem:[%s8050] ss:$8 sm:$0x3]
        %v8053 = vlaneseq
        %v8054 = vshrl.u32 %v8053, 7
        %v8055 = vsub.s32 0, %v8054
        %v8056 = vrot.slane %v8051, %v8055
        %v8057 = vlaneseq
        %v8058 = vshrl.u32 %v8057, 7
        %v8059 = vsub.s32 1, %v8058
        %v8060 = vrot.slane %v8051, %v8059
        %v8063 = vmul.f32 %v8046, %v8056
        %v8064 = vmul.f32 %v8047, %v8060
        %v8065 = vmul.f32 %v7775, %v8056
        %v8066 = vmul.f32 %v7776, %v8060
        %v8067 = vmul.f32 %v7777, %v8056
        %v8068 = vmul.f32 %v7778, %v8060
        %v8069 = vmul.f32 %v7779, %v8056
        %v8070 = vmul.f32 %v7780, %v8060
        %v8071 = vmul.f32 %v7781, %v8056
        %v8072 = vmul.f32 %v7782, %v8060
        %v8073 = vmul.f32 %v7783, %v8056
        %v8074 = vmul.f32 %v7784, %v8060
        %v8075 = vmul.f32 %v8048, %v8056
        %v8076 = vmul.f32 %v8049, %v8060
        %v8091 = vrot.slane %v8063, 1
        %v8092 = vrot.slane %v8065, 1
        %v8093 = vsel %vm1125, %v8091, %v8092
        %v8094 = vrot.slane %v8064, 1
        %v8095 = vrot.slane %v8066, 1
        %v8096 = vsel %vm1125, %v8094, %v8095
        %v8097 = vrot.slane %v8067, 1
        %v8098 = vsel %vm1125, %v8092, %v8097
        %v8099 = vrot.slane %v8068, 1
        %v8100 = vsel %vm1125, %v8095, %v8099
        %v8101 = vrot.slane %v8069, 1
        %v8102 = vsel %vm1125, %v8097, %v8101
        %v8103 = vrot.slane %v8070, 1
        %v8104 = vsel %vm1125, %v8099, %v8103
        %v8105 = vrot.slane %v8071, 1
        %v8106 = vsel %vm1125, %v8101, %v8105
        %v8107 = vrot.slane %v8072, 1
        %v8108 = vsel %vm1125, %v8103, %v8107
        %v8109 = vrot.slane %v8073, 1
        %v8110 = vsel %vm1125, %v8105, %v8109
        %v8111 = vrot.slane %v8074, 1
        %v8112 = vsel %vm1125, %v8107, %v8111
        %v8113 = vrot.slane %v8075, 1
        %v8114 = vsel %vm1125, %v8109, %v8113
        %v8115 = vrot.slane %v8076, 1
        %v8116 = vsel %vm1125, %v8111, %v8115
        %v8131 = vadd.f32 %v8032, %v8093
        %v8132 = vadd.f32 %v8033, %v8096
        %v8133 = vadd.f32 %v8034, %v8098
        %v8134 = vadd.f32 %v8035, %v8100
        %v8135 = vadd.f32 %v8036, %v8102
        %v8136 = vadd.f32 %v8037, %v8104
        %v8137 = vadd.f32 %v8038, %v8106
        %v8138 = vadd.f32 %v8039, %v8108
        %v8139 = vadd.f32 %v8040, %v8110
        %v8140 = vadd.f32 %v8041, %v8112
        %v8141 = vadd.f32 %v8042, %v8114
        %v8142 = vadd.f32 %v8043, %v8116
        %v8143 = vadd.f32 %v8044, %v8113
        %v8144 = vadd.f32 %v8045, %v8115
        %s8145 = scalar_lea.vmem %s5, 55
        %v8146 = vld [vmem:[%s8145] ss:$8 sm:$0x3]
        %v8148 = vlaneseq
        %v8149 = vshrl.u32 %v8148, 7
        %v8150 = vsub.s32 0, %v8149
        %v8151 = vrot.slane %v8146, %v8150
        %v8152 = vlaneseq
        %v8153 = vshrl.u32 %v8152, 7
        %v8154 = vsub.s32 1, %v8153
        %v8155 = vrot.slane %v8146, %v8154
        %8156 = vrot.lane.b32.xlu0 %v8151, 1
        %v8157 = vpop.permute.xlu0 %8156
        %8158 = vrot.lane.b32.xlu0 %v8155, 1
        %v8159 = vpop.permute.xlu0 %8158
        %v8160 = vsel %vm4805, %v8157, %v8159
        %v8163 = vmul.f32 %v8046, %v8157
        %v8164 = vmul.f32 %v8047, %v8160
        %v8165 = vmul.f32 %v7775, %v8157
        %v8166 = vmul.f32 %v7776, %v8160
        %v8167 = vmul.f32 %v7777, %v8157
        %v8168 = vmul.f32 %v7778, %v8160
        %v8169 = vmul.f32 %v7779, %v8157
        %v8170 = vmul.f32 %v7780, %v8160
        %v8171 = vmul.f32 %v7781, %v8157
        %v8172 = vmul.f32 %v7782, %v8160
        %v8173 = vmul.f32 %v7783, %v8157
        %v8174 = vmul.f32 %v7784, %v8160
        %v8175 = vmul.f32 %v8048, %v8157
        %v8176 = vmul.f32 %v8049, %v8160
        %v8191 = vrot.slane %v8163, 1
        %v8192 = vrot.slane %v8165, 1
        %v8193 = vsel %vm1125, %v8191, %v8192
        %v8194 = vrot.slane %v8164, 1
        %v8195 = vrot.slane %v8166, 1
        %v8196 = vsel %vm1125, %v8194, %v8195
        %v8197 = vrot.slane %v8167, 1
        %v8198 = vsel %vm1125, %v8192, %v8197
        %v8199 = vrot.slane %v8168, 1
        %v8200 = vsel %vm1125, %v8195, %v8199
        %v8201 = vrot.slane %v8169, 1
        %v8202 = vsel %vm1125, %v8197, %v8201
        %v8203 = vrot.slane %v8170, 1
        %v8204 = vsel %vm1125, %v8199, %v8203
        %v8205 = vrot.slane %v8171, 1
        %v8206 = vsel %vm1125, %v8201, %v8205
        %v8207 = vrot.slane %v8172, 1
        %v8208 = vsel %vm1125, %v8203, %v8207
        %v8209 = vrot.slane %v8173, 1
        %v8210 = vsel %vm1125, %v8205, %v8209
        %v8211 = vrot.slane %v8174, 1
        %v8212 = vsel %vm1125, %v8207, %v8211
        %v8213 = vrot.slane %v8175, 1
        %v8214 = vsel %vm1125, %v8209, %v8213
        %v8215 = vrot.slane %v8176, 1
        %v8216 = vsel %vm1125, %v8211, %v8215
        %8217 = vrot.lane.b32.xlu0 %v8193, 127
        %v8218 = vpop.permute.xlu0 %8217
        %8219 = vrot.lane.b32.xlu0 %v8196, 127
        %v8220 = vpop.permute.xlu0 %8219
        %8221 = vrot.lane.b32.xlu0 %v8198, 127
        %v8222 = vpop.permute.xlu0 %8221
        %8223 = vrot.lane.b32.xlu0 %v8200, 127
        %v8224 = vpop.permute.xlu0 %8223
        %8225 = vrot.lane.b32.xlu0 %v8202, 127
        %v8226 = vpop.permute.xlu0 %8225
        %8227 = vrot.lane.b32.xlu0 %v8204, 127
        %v8228 = vpop.permute.xlu0 %8227
        %8229 = vrot.lane.b32.xlu0 %v8206, 127
        %v8230 = vpop.permute.xlu0 %8229
        %8231 = vrot.lane.b32.xlu0 %v8208, 127
        %v8232 = vpop.permute.xlu0 %8231
        %8233 = vrot.lane.b32.xlu0 %v8210, 127
        %v8234 = vpop.permute.xlu0 %8233
        %8235 = vrot.lane.b32.xlu0 %v8212, 127
        %v8236 = vpop.permute.xlu0 %8235
        %8237 = vrot.lane.b32.xlu0 %v8214, 127
        %v8238 = vpop.permute.xlu0 %8237
        %8239 = vrot.lane.b32.xlu0 %v8216, 127
        %v8240 = vpop.permute.xlu0 %8239
        %8241 = vrot.lane.b32.xlu0 %v8213, 127
        %v8242 = vpop.permute.xlu0 %8241
        %8243 = vrot.lane.b32.xlu0 %v8215, 127
        %v8244 = vpop.permute.xlu0 %8243
        %v8245 = vsel %vm4865, %v8218, %v8220
        %v8246 = vsel %vm4865, %v8222, %v8224
        %v8247 = vsel %vm4865, %v8226, %v8228
        %v8248 = vsel %vm4865, %v8230, %v8232
        %v8249 = vsel %vm4865, %v8234, %v8236
        %v8250 = vsel %vm4865, %v8238, %v8240
        %v8251 = vsel %vm4865, %v8242, %v8244
        %v8266 = vadd.f32 %v8131, %v8245
        %v8267 = vadd.f32 %v8132, %v8220
        %v8268 = vadd.f32 %v8133, %v8246
        %v8269 = vadd.f32 %v8134, %v8224
        %v8270 = vadd.f32 %v8135, %v8247
        %v8271 = vadd.f32 %v8136, %v8228
        %v8272 = vadd.f32 %v8137, %v8248
        %v8273 = vadd.f32 %v8138, %v8232
        %v8274 = vadd.f32 %v8139, %v8249
        %v8275 = vadd.f32 %v8140, %v8236
        %v8276 = vadd.f32 %v8141, %v8250
        %v8277 = vadd.f32 %v8142, %v8240
        %v8278 = vadd.f32 %v8143, %v8251
        %v8279 = vadd.f32 %v8144, %v8244
        %s8280 = scalar_lea.vmem %s5, 64
        %v8281 = vld [vmem:[%s8280] ss:$8 sm:$0x3]
        %v8283 = vlaneseq
        %v8284 = vshrl.u32 %v8283, 7
        %v8285 = vsub.s32 0, %v8284
        %v8286 = vrot.slane %v8281, %v8285
        %v8287 = vlaneseq
        %v8288 = vshrl.u32 %v8287, 7
        %v8289 = vsub.s32 1, %v8288
        %v8290 = vrot.slane %v8281, %v8289
        %8291 = vrot.lane.b32.xlu0 %v8286, 2
        %v8292 = vpop.permute.xlu0 %8291
        %8293 = vrot.lane.b32.xlu0 %v8290, 2
        %v8294 = vpop.permute.xlu0 %8293
        %v8295 = vsel %vm4916, %v8292, %v8294
        %v8298 = vmul.f32 %v8046, %v8292
        %v8299 = vmul.f32 %v8047, %v8295
        %v8300 = vmul.f32 %v7775, %v8292
        %v8301 = vmul.f32 %v7776, %v8295
        %v8302 = vmul.f32 %v7777, %v8292
        %v8303 = vmul.f32 %v7778, %v8295
        %v8304 = vmul.f32 %v7779, %v8292
        %v8305 = vmul.f32 %v7780, %v8295
        %v8306 = vmul.f32 %v7781, %v8292
        %v8307 = vmul.f32 %v7782, %v8295
        %v8308 = vmul.f32 %v7783, %v8292
        %v8309 = vmul.f32 %v7784, %v8295
        %v8310 = vmul.f32 %v8048, %v8292
        %v8311 = vmul.f32 %v8049, %v8295
        %v8326 = vrot.slane %v8298, 1
        %v8327 = vrot.slane %v8300, 1
        %v8328 = vsel %vm1125, %v8326, %v8327
        %v8329 = vrot.slane %v8299, 1
        %v8330 = vrot.slane %v8301, 1
        %v8331 = vsel %vm1125, %v8329, %v8330
        %v8332 = vrot.slane %v8302, 1
        %v8333 = vsel %vm1125, %v8327, %v8332
        %v8334 = vrot.slane %v8303, 1
        %v8335 = vsel %vm1125, %v8330, %v8334
        %v8336 = vrot.slane %v8304, 1
        %v8337 = vsel %vm1125, %v8332, %v8336
        %v8338 = vrot.slane %v8305, 1
        %v8339 = vsel %vm1125, %v8334, %v8338
        %v8340 = vrot.slane %v8306, 1
        %v8341 = vsel %vm1125, %v8336, %v8340
        %v8342 = vrot.slane %v8307, 1
        %v8343 = vsel %vm1125, %v8338, %v8342
        %v8344 = vrot.slane %v8308, 1
        %v8345 = vsel %vm1125, %v8340, %v8344
        %v8346 = vrot.slane %v8309, 1
        %v8347 = vsel %vm1125, %v8342, %v8346
        %v8348 = vrot.slane %v8310, 1
        %v8349 = vsel %vm1125, %v8344, %v8348
        %v8350 = vrot.slane %v8311, 1
        %v8351 = vsel %vm1125, %v8346, %v8350
        %8352 = vrot.lane.b32.xlu0 %v8328, 126
        %v8353 = vpop.permute.xlu0 %8352
        %8354 = vrot.lane.b32.xlu0 %v8331, 126
        %v8355 = vpop.permute.xlu0 %8354
        %8356 = vrot.lane.b32.xlu0 %v8333, 126
        %v8357 = vpop.permute.xlu0 %8356
        %8358 = vrot.lane.b32.xlu0 %v8335, 126
        %v8359 = vpop.permute.xlu0 %8358
        %8360 = vrot.lane.b32.xlu0 %v8337, 126
        %v8361 = vpop.permute.xlu0 %8360
        %8362 = vrot.lane.b32.xlu0 %v8339, 126
        %v8363 = vpop.permute.xlu0 %8362
        %8364 = vrot.lane.b32.xlu0 %v8341, 126
        %v8365 = vpop.permute.xlu0 %8364
        %8366 = vrot.lane.b32.xlu0 %v8343, 126
        %v8367 = vpop.permute.xlu0 %8366
        %8368 = vrot.lane.b32.xlu0 %v8345, 126
        %v8369 = vpop.permute.xlu0 %8368
        %8370 = vrot.lane.b32.xlu0 %v8347, 126
        %v8371 = vpop.permute.xlu0 %8370
        %8372 = vrot.lane.b32.xlu0 %v8349, 126
        %v8373 = vpop.permute.xlu0 %8372
        %8374 = vrot.lane.b32.xlu0 %v8351, 126
        %v8375 = vpop.permute.xlu0 %8374
        %8376 = vrot.lane.b32.xlu0 %v8348, 126
        %v8377 = vpop.permute.xlu0 %8376
        %8378 = vrot.lane.b32.xlu0 %v8350, 126
        %v8379 = vpop.permute.xlu0 %8378
        %v8380 = vsel %vm4976, %v8353, %v8355
        %v8381 = vsel %vm4976, %v8357, %v8359
        %v8382 = vsel %vm4976, %v8361, %v8363
        %v8383 = vsel %vm4976, %v8365, %v8367
        %v8384 = vsel %vm4976, %v8369, %v8371
        %v8385 = vsel %vm4976, %v8373, %v8375
        %v8386 = vsel %vm4976, %v8377, %v8379
        %v8401 = vadd.f32 %v8266, %v8380
        %v8402 = vadd.f32 %v8267, %v8355
        %v8403 = vadd.f32 %v8268, %v8381
        %v8404 = vadd.f32 %v8269, %v8359
        %v8405 = vadd.f32 %v8270, %v8382
        %v8406 = vadd.f32 %v8271, %v8363
        %v8407 = vadd.f32 %v8272, %v8383
        %v8408 = vadd.f32 %v8273, %v8367
        %v8409 = vadd.f32 %v8274, %v8384
        %v8410 = vadd.f32 %v8275, %v8371
        %v8411 = vadd.f32 %v8276, %v8385
        %v8412 = vadd.f32 %v8277, %v8375
        %v8413 = vadd.f32 %v8278, %v8386
        %v8414 = vadd.f32 %v8279, %v8379
        %v8415 = vld [vmem:[#allocation2 + $0x150] sm:$0xfc]
        %v8416 = vld [vmem:[#allocation2 + $0x158] sm:$0xfc]
        %v8417 = vld [vmem:[#allocation2 + $0x1b0] sm:$0xf]
        %v8418 = vld [vmem:[#allocation2 + $0x1b8] sm:$0xf]
        %s8419 = scalar_lea.vmem %s5, 65
        %v8420 = vld [vmem:[%s8419] ss:$8 sm:$0x3]
        %v8422 = vlaneseq
        %v8423 = vshrl.u32 %v8422, 7
        %v8424 = vsub.s32 0, %v8423
        %v8425 = vrot.slane %v8420, %v8424
        %v8426 = vlaneseq
        %v8427 = vshrl.u32 %v8426, 7
        %v8428 = vsub.s32 1, %v8427
        %v8429 = vrot.slane %v8420, %v8428
        %v8432 = vmul.f32 %v8415, %v8425
        %v8433 = vmul.f32 %v8416, %v8429
        %v8434 = vmul.f32 %v7775, %v8425
        %v8435 = vmul.f32 %v7776, %v8429
        %v8436 = vmul.f32 %v7777, %v8425
        %v8437 = vmul.f32 %v7778, %v8429
        %v8438 = vmul.f32 %v7779, %v8425
        %v8439 = vmul.f32 %v7780, %v8429
        %v8440 = vmul.f32 %v7781, %v8425
        %v8441 = vmul.f32 %v7782, %v8429
        %v8442 = vmul.f32 %v7783, %v8425
        %v8443 = vmul.f32 %v7784, %v8429
        %v8444 = vmul.f32 %v8417, %v8425
        %v8445 = vmul.f32 %v8418, %v8429
        %v8460 = vrot.slane %v8432, 2
        %v8461 = vrot.slane %v8434, 2
        %v8462 = vsel %vm5426, %v8460, %v8461
        %v8463 = vrot.slane %v8433, 2
        %v8464 = vrot.slane %v8435, 2
        %v8465 = vsel %vm5426, %v8463, %v8464
        %v8466 = vrot.slane %v8436, 2
        %v8467 = vsel %vm5426, %v8461, %v8466
        %v8468 = vrot.slane %v8437, 2
        %v8469 = vsel %vm5426, %v8464, %v8468
        %v8470 = vrot.slane %v8438, 2
        %v8471 = vsel %vm5426, %v8466, %v8470
        %v8472 = vrot.slane %v8439, 2
        %v8473 = vsel %vm5426, %v8468, %v8472
        %v8474 = vrot.slane %v8440, 2
        %v8475 = vsel %vm5426, %v8470, %v8474
        %v8476 = vrot.slane %v8441, 2
        %v8477 = vsel %vm5426, %v8472, %v8476
        %v8478 = vrot.slane %v8442, 2
        %v8479 = vsel %vm5426, %v8474, %v8478
        %v8480 = vrot.slane %v8443, 2
        %v8481 = vsel %vm5426, %v8476, %v8480
        %v8482 = vrot.slane %v8444, 2
        %v8483 = vsel %vm5426, %v8478, %v8482
        %v8484 = vrot.slane %v8445, 2
        %v8485 = vsel %vm5426, %v8480, %v8484
        %v8500 = vadd.f32 %v8401, %v8462
        %v8501 = vadd.f32 %v8402, %v8465
        %v8502 = vadd.f32 %v8403, %v8467
        %v8503 = vadd.f32 %v8404, %v8469
        %v8504 = vadd.f32 %v8405, %v8471
        %v8505 = vadd.f32 %v8406, %v8473
        %v8506 = vadd.f32 %v8407, %v8475
        %v8507 = vadd.f32 %v8408, %v8477
        %v8508 = vadd.f32 %v8409, %v8479
        %v8509 = vadd.f32 %v8410, %v8481
        %v8510 = vadd.f32 %v8411, %v8483
        %v8511 = vadd.f32 %v8412, %v8485
        %v8512 = vadd.f32 %v8413, %v8482
        %v8513 = vadd.f32 %v8414, %v8484
        %s8514 = scalar_lea.vmem %s5, 66
        %v8515 = vld [vmem:[%s8514] ss:$8 sm:$0x3]
        %v8517 = vlaneseq
        %v8518 = vshrl.u32 %v8517, 7
        %v8519 = vsub.s32 0, %v8518
        %v8520 = vrot.slane %v8515, %v8519
        %v8521 = vlaneseq
        %v8522 = vshrl.u32 %v8521, 7
        %v8523 = vsub.s32 1, %v8522
        %v8524 = vrot.slane %v8515, %v8523
        %8525 = vrot.lane.b32.xlu0 %v8520, 1
        %v8526 = vpop.permute.xlu0 %8525
        %8527 = vrot.lane.b32.xlu0 %v8524, 1
        %v8528 = vpop.permute.xlu0 %8527
        %v8529 = vsel %vm4805, %v8526, %v8528
        %v8532 = vmul.f32 %v8415, %v8526
        %v8533 = vmul.f32 %v8416, %v8529
        %v8534 = vmul.f32 %v7775, %v8526
        %v8535 = vmul.f32 %v7776, %v8529
        %v8536 = vmul.f32 %v7777, %v8526
        %v8537 = vmul.f32 %v7778, %v8529
        %v8538 = vmul.f32 %v7779, %v8526
        %v8539 = vmul.f32 %v7780, %v8529
        %v8540 = vmul.f32 %v7781, %v8526
        %v8541 = vmul.f32 %v7782, %v8529
        %v8542 = vmul.f32 %v7783, %v8526
        %v8543 = vmul.f32 %v7784, %v8529
        %v8544 = vmul.f32 %v8417, %v8526
        %v8545 = vmul.f32 %v8418, %v8529
        %v8560 = vrot.slane %v8532, 2
        %v8561 = vrot.slane %v8534, 2
        %v8562 = vsel %vm5426, %v8560, %v8561
        %v8563 = vrot.slane %v8533, 2
        %v8564 = vrot.slane %v8535, 2
        %v8565 = vsel %vm5426, %v8563, %v8564
        %v8566 = vrot.slane %v8536, 2
        %v8567 = vsel %vm5426, %v8561, %v8566
        %v8568 = vrot.slane %v8537, 2
        %v8569 = vsel %vm5426, %v8564, %v8568
        %v8570 = vrot.slane %v8538, 2
        %v8571 = vsel %vm5426, %v8566, %v8570
        %v8572 = vrot.slane %v8539, 2
        %v8573 = vsel %vm5426, %v8568, %v8572
        %v8574 = vrot.slane %v8540, 2
        %v8575 = vsel %vm5426, %v8570, %v8574
        %v8576 = vrot.slane %v8541, 2
        %v8577 = vsel %vm5426, %v8572, %v8576
        %v8578 = vrot.slane %v8542, 2
        %v8579 = vsel %vm5426, %v8574, %v8578
        %v8580 = vrot.slane %v8543, 2
        %v8581 = vsel %vm5426, %v8576, %v8580
        %v8582 = vrot.slane %v8544, 2
        %v8583 = vsel %vm5426, %v8578, %v8582
        %v8584 = vrot.slane %v8545, 2
        %v8585 = vsel %vm5426, %v8580, %v8584
        %8586 = vrot.lane.b32.xlu0 %v8562, 127
        %v8587 = vpop.permute.xlu0 %8586
        %8588 = vrot.lane.b32.xlu0 %v8565, 127
        %v8589 = vpop.permute.xlu0 %8588
        %8590 = vrot.lane.b32.xlu0 %v8567, 127
        %v8591 = vpop.permute.xlu0 %8590
        %8592 = vrot.lane.b32.xlu0 %v8569, 127
        %v8593 = vpop.permute.xlu0 %8592
        %8594 = vrot.lane.b32.xlu0 %v8571, 127
        %v8595 = vpop.permute.xlu0 %8594
        %8596 = vrot.lane.b32.xlu0 %v8573, 127
        %v8597 = vpop.permute.xlu0 %8596
        %8598 = vrot.lane.b32.xlu0 %v8575, 127
        %v8599 = vpop.permute.xlu0 %8598
        %8600 = vrot.lane.b32.xlu0 %v8577, 127
        %v8601 = vpop.permute.xlu0 %8600
        %8602 = vrot.lane.b32.xlu0 %v8579, 127
        %v8603 = vpop.permute.xlu0 %8602
        %8604 = vrot.lane.b32.xlu0 %v8581, 127
        %v8605 = vpop.permute.xlu0 %8604
        %8606 = vrot.lane.b32.xlu0 %v8583, 127
        %v8607 = vpop.permute.xlu0 %8606
        %8608 = vrot.lane.b32.xlu0 %v8585, 127
        %v8609 = vpop.permute.xlu0 %8608
        %8610 = vrot.lane.b32.xlu0 %v8582, 127
        %v8611 = vpop.permute.xlu0 %8610
        %8612 = vrot.lane.b32.xlu0 %v8584, 127
        %v8613 = vpop.permute.xlu0 %8612
        %v8614 = vsel %vm4865, %v8587, %v8589
        %v8615 = vsel %vm4865, %v8591, %v8593
        %v8616 = vsel %vm4865, %v8595, %v8597
        %v8617 = vsel %vm4865, %v8599, %v8601
        %v8618 = vsel %vm4865, %v8603, %v8605
        %v8619 = vsel %vm4865, %v8607, %v8609
        %v8620 = vsel %vm4865, %v8611, %v8613
        %v8635 = vadd.f32 %v8500, %v8614
        %v8636 = vadd.f32 %v8501, %v8589
        %v8637 = vadd.f32 %v8502, %v8615
        %v8638 = vadd.f32 %v8503, %v8593
        %v8639 = vadd.f32 %v8504, %v8616
        %v8640 = vadd.f32 %v8505, %v8597
        %v8641 = vadd.f32 %v8506, %v8617
        %v8642 = vadd.f32 %v8507, %v8601
        %v8643 = vadd.f32 %v8508, %v8618
        %v8644 = vadd.f32 %v8509, %v8605
        %v8645 = vadd.f32 %v8510, %v8619
        %v8646 = vadd.f32 %v8511, %v8609
        %v8647 = vadd.f32 %v8512, %v8620
        %v8648 = vadd.f32 %v8513, %v8613
        %s8649 = scalar_lea.vmem %s5, 67
        %v8650 = vld [vmem:[%s8649] ss:$8 sm:$0x3]
        %v8652 = vlaneseq
        %v8653 = vshrl.u32 %v8652, 7
        %v8654 = vsub.s32 0, %v8653
        %v8655 = vrot.slane %v8650, %v8654
        %v8656 = vlaneseq
        %v8657 = vshrl.u32 %v8656, 7
        %v8658 = vsub.s32 1, %v8657
        %v8659 = vrot.slane %v8650, %v8658
        %8660 = vrot.lane.b32.xlu0 %v8655, 2
        %v8661 = vpop.permute.xlu0 %8660
        %8662 = vrot.lane.b32.xlu0 %v8659, 2
        %v8663 = vpop.permute.xlu0 %8662
        %v8664 = vsel %vm4916, %v8661, %v8663
        %v8667 = vmul.f32 %v8415, %v8661
        %v8668 = vmul.f32 %v8416, %v8664
        %v8669 = vmul.f32 %v7775, %v8661
        %v8670 = vmul.f32 %v7776, %v8664
        %v8671 = vmul.f32 %v7777, %v8661
        %v8672 = vmul.f32 %v7778, %v8664
        %v8673 = vmul.f32 %v7779, %v8661
        %v8674 = vmul.f32 %v7780, %v8664
        %v8675 = vmul.f32 %v7781, %v8661
        %v8676 = vmul.f32 %v7782, %v8664
        %v8677 = vmul.f32 %v7783, %v8661
        %v8678 = vmul.f32 %v7784, %v8664
        %v8679 = vmul.f32 %v8417, %v8661
        %v8680 = vmul.f32 %v8418, %v8664
        %v8695 = vrot.slane %v8667, 2
        %v8696 = vrot.slane %v8669, 2
        %v8697 = vsel %vm5426, %v8695, %v8696
        %v8698 = vrot.slane %v8668, 2
        %v8699 = vrot.slane %v8670, 2
        %v8700 = vsel %vm5426, %v8698, %v8699
        %v8701 = vrot.slane %v8671, 2
        %v8702 = vsel %vm5426, %v8696, %v8701
        %v8703 = vrot.slane %v8672, 2
        %v8704 = vsel %vm5426, %v8699, %v8703
        %v8705 = vrot.slane %v8673, 2
        %v8706 = vsel %vm5426, %v8701, %v8705
        %v8707 = vrot.slane %v8674, 2
        %v8708 = vsel %vm5426, %v8703, %v8707
        %v8709 = vrot.slane %v8675, 2
        %v8710 = vsel %vm5426, %v8705, %v8709
        %v8711 = vrot.slane %v8676, 2
        %v8712 = vsel %vm5426, %v8707, %v8711
        %v8713 = vrot.slane %v8677, 2
        %v8714 = vsel %vm5426, %v8709, %v8713
        %v8715 = vrot.slane %v8678, 2
        %v8716 = vsel %vm5426, %v8711, %v8715
        %v8717 = vrot.slane %v8679, 2
        %v8718 = vsel %vm5426, %v8713, %v8717
        %v8719 = vrot.slane %v8680, 2
        %v8720 = vsel %vm5426, %v8715, %v8719
        %8721 = vrot.lane.b32.xlu0 %v8697, 126
        %v8722 = vpop.permute.xlu0 %8721
        %8723 = vrot.lane.b32.xlu0 %v8700, 126
        %v8724 = vpop.permute.xlu0 %8723
        %8725 = vrot.lane.b32.xlu0 %v8702, 126
        %v8726 = vpop.permute.xlu0 %8725
        %8727 = vrot.lane.b32.xlu0 %v8704, 126
        %v8728 = vpop.permute.xlu0 %8727
        %8729 = vrot.lane.b32.xlu0 %v8706, 126
        %v8730 = vpop.permute.xlu0 %8729
        %8731 = vrot.lane.b32.xlu0 %v8708, 126
        %v8732 = vpop.permute.xlu0 %8731
        %8733 = vrot.lane.b32.xlu0 %v8710, 126
        %v8734 = vpop.permute.xlu0 %8733
        %8735 = vrot.lane.b32.xlu0 %v8712, 126
        %v8736 = vpop.permute.xlu0 %8735
        %8737 = vrot.lane.b32.xlu0 %v8714, 126
        %v8738 = vpop.permute.xlu0 %8737
        %8739 = vrot.lane.b32.xlu0 %v8716, 126
        %v8740 = vpop.permute.xlu0 %8739
        %8741 = vrot.lane.b32.xlu0 %v8718, 126
        %v8742 = vpop.permute.xlu0 %8741
        %8743 = vrot.lane.b32.xlu0 %v8720, 126
        %v8744 = vpop.permute.xlu0 %8743
        %8745 = vrot.lane.b32.xlu0 %v8717, 126
        %v8746 = vpop.permute.xlu0 %8745
        %8747 = vrot.lane.b32.xlu0 %v8719, 126
        %v8748 = vpop.permute.xlu0 %8747
        %v8749 = vsel %vm4976, %v8722, %v8724
        %v8750 = vsel %vm4976, %v8726, %v8728
        %v8751 = vsel %vm4976, %v8730, %v8732
        %v8752 = vsel %vm4976, %v8734, %v8736
        %v8753 = vsel %vm4976, %v8738, %v8740
        %v8754 = vsel %vm4976, %v8742, %v8744
        %v8755 = vsel %vm4976, %v8746, %v8748
        %v8770 = vadd.f32 %v8635, %v8749
        %v8771 = vadd.f32 %v8636, %v8724
        %v8772 = vadd.f32 %v8637, %v8750
        %v8773 = vadd.f32 %v8638, %v8728
        %v8774 = vadd.f32 %v8639, %v8751
        %v8775 = vadd.f32 %v8640, %v8732
        %v8776 = vadd.f32 %v8641, %v8752
        %v8777 = vadd.f32 %v8642, %v8736
        %v8778 = vadd.f32 %v8643, %v8753
        %v8779 = vadd.f32 %v8644, %v8740
        %v8780 = vadd.f32 %v8645, %v8754
        %v8781 = vadd.f32 %v8646, %v8744
        %v8782 = vadd.f32 %v8647, %v8755
        %v8783 = vadd.f32 %v8648, %v8748
        %v8798 = vrot.slane %v8770, 1
        %v8799 = vrot.slane %v8772, 1
        %v8800 = vsel %vm1125, %v8798, %v8799
        %v8801 = vrot.slane %v8771, 1
        %v8802 = vrot.slane %v8773, 1
        %v8803 = vsel %vm1125, %v8801, %v8802
        %v8804 = vrot.slane %v8774, 1
        %v8805 = vsel %vm1125, %v8799, %v8804
        %v8806 = vrot.slane %v8775, 1
        %v8807 = vsel %vm1125, %v8802, %v8806
        %v8808 = vrot.slane %v8776, 1
        %v8809 = vsel %vm1125, %v8804, %v8808
        %v8810 = vrot.slane %v8777, 1
        %v8811 = vsel %vm1125, %v8806, %v8810
        %v8812 = vrot.slane %v8778, 1
        %v8813 = vsel %vm1125, %v8808, %v8812
        %v8814 = vrot.slane %v8779, 1
        %v8815 = vsel %vm1125, %v8810, %v8814
        %v8816 = vrot.slane %v8780, 1
        %v8817 = vsel %vm1125, %v8812, %v8816
        %v8818 = vrot.slane %v8781, 1
        %v8819 = vsel %vm1125, %v8814, %v8818
        %v8820 = vrot.slane %v8782, 1
        %v8821 = vsel %vm1125, %v8816, %v8820
        %v8822 = vrot.slane %v8783, 1
        %v8823 = vsel %vm1125, %v8818, %v8822
        %v8838 = vmax.f32 %v8770, %v8800
        %v8839 = vmax.f32 %v8771, %v8803
        %v8840 = vmax.f32 %v8772, %v8805
        %v8841 = vmax.f32 %v8773, %v8807
        %v8842 = vmax.f32 %v8774, %v8809
        %v8843 = vmax.f32 %v8775, %v8811
        %v8844 = vmax.f32 %v8776, %v8813
        %v8845 = vmax.f32 %v8777, %v8815
        %v8846 = vmax.f32 %v8778, %v8817
        %v8847 = vmax.f32 %v8779, %v8819
        %v8848 = vmax.f32 %v8780, %v8821
        %v8849 = vmax.f32 %v8781, %v8823
        %v8850 = vmax.f32 %v8782, %v8820
        %v8851 = vmax.f32 %v8783, %v8822
        %8866 = vrot.lane.b32.xlu0 %v8838, 127
        %v8867 = vpop.permute.xlu0 %8866
        %8868 = vrot.lane.b32.xlu0 %v8839, 127
        %v8869 = vpop.permute.xlu0 %8868
        %8870 = vrot.lane.b32.xlu0 %v8840, 127
        %v8871 = vpop.permute.xlu0 %8870
        %8872 = vrot.lane.b32.xlu0 %v8841, 127
        %v8873 = vpop.permute.xlu0 %8872
        %8874 = vrot.lane.b32.xlu0 %v8842, 127
        %v8875 = vpop.permute.xlu0 %8874
        %8876 = vrot.lane.b32.xlu0 %v8843, 127
        %v8877 = vpop.permute.xlu0 %8876
        %8878 = vrot.lane.b32.xlu0 %v8844, 127
        %v8879 = vpop.permute.xlu0 %8878
        %8880 = vrot.lane.b32.xlu0 %v8845, 127
        %v8881 = vpop.permute.xlu0 %8880
        %8882 = vrot.lane.b32.xlu0 %v8846, 127
        %v8883 = vpop.permute.xlu0 %8882
        %8884 = vrot.lane.b32.xlu0 %v8847, 127
        %v8885 = vpop.permute.xlu0 %8884
        %8886 = vrot.lane.b32.xlu0 %v8848, 127
        %v8887 = vpop.permute.xlu0 %8886
        %8888 = vrot.lane.b32.xlu0 %v8849, 127
        %v8889 = vpop.permute.xlu0 %8888
        %8890 = vrot.lane.b32.xlu0 %v8850, 127
        %v8891 = vpop.permute.xlu0 %8890
        %8892 = vrot.lane.b32.xlu0 %v8851, 127
        %v8893 = vpop.permute.xlu0 %8892
        %v8894 = vsel %vm4865, %v8867, %v8869
        %v8895 = vsel %vm4865, %v8871, %v8873
        %v8896 = vsel %vm4865, %v8875, %v8877
        %v8897 = vsel %vm4865, %v8879, %v8881
        %v8898 = vsel %vm4865, %v8883, %v8885
        %v8899 = vsel %vm4865, %v8887, %v8889
        %v8900 = vsel %vm4865, %v8891, %v8893
        %v8915 = vmax.f32 %v8838, %v8894
        %v8916 = vmax.f32 %v8839, %v8869
        %v8917 = vmax.f32 %v8840, %v8895
        %v8918 = vmax.f32 %v8841, %v8873
        %v8919 = vmax.f32 %v8842, %v8896
        %v8920 = vmax.f32 %v8843, %v8877
        %v8921 = vmax.f32 %v8844, %v8897
        %v8922 = vmax.f32 %v8845, %v8881
        %v8923 = vmax.f32 %v8846, %v8898
        %v8924 = vmax.f32 %v8847, %v8885
        %v8925 = vmax.f32 %v8848, %v8899
        %v8926 = vmax.f32 %v8849, %v8889
        %v8927 = vmax.f32 %v8850, %v8900
        %v8928 = vmax.f32 %v8851, %v8893
        %v8929 = vld [vmem:[#allocation10] sm:$0xff]
        %v8930 = vld [vmem:[#allocation10 + $0x8] sm:$0xff]
        %v8931 = vld [vmem:[#allocation10 + $0x10] sm:$0xff]
        %v8932 = vld [vmem:[#allocation10 + $0x18] sm:$0x1]
        %vm8933 = vcmask 400384
        %v8935 = vsel %vm8933, %v8929, 0
        %v8938 = vsel %vm8933, %v8930, 0
        %v8941 = vsel %vm8933, %v8931, 0
        %v8944 = vsel %vm8933, %v8932, 0
        %vm8946 = vcmask 1040384
        %v8948 = vsel %vm8946, %v8927, 0
        %v8951 = vsel %vm8946, %v8928, 0
        %8953 = vmatprep.subr.mxu0 %v8916
        %8954 = vmatpush1.msra.mxu0 %v8915
        %8955 = vmatprep.subr.mxu0 %v8918
        %8956 = vmatpush1.msra.mxu0 %v8917
        %8957 = vmatprep.subr.mxu0 %v8920
        %8958 = vmatpush1.msra.mxu0 %v8919
        %8959 = vmatprep.subr.mxu0 %v8922
        %8960 = vmatpush1.msra.mxu0 %v8921
        %8961 = vmatprep.subr.mxu0 %v8924
        %8962 = vmatpush1.msra.mxu0 %v8923
        %8963 = vmatprep.subr.mxu0 %v8926
        %8964 = vmatpush1.msra.mxu0 %v8925
        %8965 = vmatprep.subr.mxu0 %v8951
        %8966 = vmatpush1.msra.mxu0 %v8948
        %8967 = vmatprep.subr.mxu0 0.0
        %8968 = vmatpush1.msra.mxu0 0.0
        %8969 = vmatprep.subr.mxu0 0.0
        %8970 = vmatpush1.msra.mxu0 0.0
        %8971 = vmatprep.subr.mxu0 0.0
        %8972 = vmatpush1.msra.mxu0 0.0
        %8973 = vmatprep.subr.mxu0 0.0
        %8974 = vmatpush1.msra.mxu0 0.0
        %8975 = vmatprep.subr.mxu0 0.0
        %8976 = vmatpush1.msra.mxu0 0.0
        %8977 = vmatprep.subr.mxu0 0.0
        %8978 = vmatpush1.msra.mxu0 0.0
        %8979 = vmatprep.subr.mxu0 0.0
        %8980 = vmatpush1.msra.mxu0 0.0
        %8981 = vmatprep.subr.mxu0 0.0
        %8982 = vmatpush1.msra.mxu0 0.0
        %8983 = vmatprep.subr.mxu0 0.0
        %8984 = vmatpush1.msra.mxu0 0.0
        %8985 = vmatprep.subr.mxu0 0.0
        %8986 = vmatpush1.msra.mxu0 0.0
        %8987 = vmatprep.subr.mxu0 0.0
        %8988 = vmatpush1.msra.mxu0 0.0
        %8989 = vmatprep.subr.mxu0 0.0
        %8990 = vmatpush1.msra.mxu0 0.0
        %8991 = vmatprep.subr.mxu0 0.0
        %8992 = vmatpush1.msra.mxu0 0.0
        %8993 = vmatprep.subr.mxu0 0.0
        %8994 = vmatpush1.msra.mxu0 0.0
        %8995 = vmatprep.subr.mxu0 0.0
        %8996 = vmatpush1.msra.mxu0 0.0
        %8997 = vmatprep.subr.mxu0 0.0
        %8998 = vmatpush1.msra.mxu0 0.0
        %8999 = vmatprep.subr.mxu0 0.0
        %9000 = vmatpush1.msra.mxu0 0.0
        %9001 = vmatprep.subr.mxu0 0.0
        %9002 = vmatpush1.msra.mxu0 0.0
        %9003 = vmatprep.subr.mxu0 0.0
        %9004 = vmatpush1.msra.mxu0 0.0
        %9005 = vmatprep.subr.mxu0 0.0
        %9006 = vmatpush1.msra.mxu0 0.0
        %9007 = vmatprep.subr.mxu0 0.0
        %9008 = vmatpush1.msra.mxu0 0.0
        %9009 = vmatprep.subr.mxu0 0.0
        %9010 = vmatpush1.msra.mxu0 0.0
        %9011 = vmatprep.subr.mxu0 0.0
        %9012 = vmatpush1.msra.mxu0 0.0
        %9013 = vmatprep.subr.mxu0 0.0
        %9014 = vmatpush1.msra.mxu0 0.0
        %9015 = vmatprep.subr.mxu0 0.0
        %9016 = vmatpush1.msra.mxu0 0.0
        %9017 = vmatprep.mubr.f32.mxu0 0.0
        %9018 = vmatmul.mubr.f32.gmra.mrb[0].mxu0 %v8935
        %v9019 = vpop.f32.mrb[0].mxu0
        %v9020 = vadd.f32 0.0, %v9019
        %v9021 = vpop.f32.mrb[0].mxu0
        %v9022 = vadd.f32 0.0, %v9021
        %9023 = vmatprep.mubr.f32.mxu0 0.0
        %9024 = vmatmul.mubr.f32.gmra.mrb[0].mxu0 %v8938
        %v9025 = vpop.f32.mrb[0].mxu0
        %v9026 = vadd.f32 0.0, %v9025
        %v9027 = vpop.f32.mrb[0].mxu0
        %v9028 = vadd.f32 0.0, %v9027
        %9029 = vmatprep.mubr.f32.mxu0 0.0
        %9030 = vmatmul.mubr.f32.gmra.mrb[0].mxu0 %v8941
        %v9031 = vpop.f32.mrb[0].mxu0
        %v9032 = vadd.f32 0.0, %v9031
        %v9033 = vpop.f32.mrb[0].mxu0
        %v9034 = vadd.f32 0.0, %v9033
        %9035 = vmatprep.mubr.f32.mxu0 0.0
        %9036 = vmatmul.mubr.f32.gmra.mrb[0].mxu0 %v8944
        %v9037 = vpop.f32.mrb[0].mxu0
        %v9038 = vadd.f32 0.0, %v9037
        %v9039 = vpop.f32.mrb[0].mxu0
        %v9040 = vadd.f32 0.0, %v9039
        %9041 = vdwg.mxu0
        %v9042 = vld [vmem:[%s8] sm:$0xff]
        %v9043 = vld [vmem:[%s8 + $0x8] sm:$0xff]
        %v9044 = vld [vmem:[%s8 + $0x10] sm:$0xff]
        %v9045 = vld [vmem:[%s8 + $0x18] sm:$0xff]
        %v9046 = vld [vmem:[%s8 + $0x20] sm:$0xff]
        %v9047 = vld [vmem:[%s8 + $0x28] sm:$0xff]
        %v9048 = vld [vmem:[%s8 + $0x30] sm:$0xff]
        %v9049 = vld [vmem:[%s8 + $0x38] sm:$0xff]
        %v9050 = vld [vmem:[%s8 + $0x40] sm:$0xff]
        %v9051 = vld [vmem:[%s8 + $0x48] sm:$0xff]
        %v9052 = vld [vmem:[%s8 + $0x50] sm:$0xff]
        %v9053 = vld [vmem:[%s8 + $0x58] sm:$0xff]
        %v9054 = vld [vmem:[%s8 + $0x60] sm:$0xff]
        %v9055 = vld [vmem:[%s8 + $0x68] sm:$0xff]
        %v9056 = vld [vmem:[%s8 + $0x70] sm:$0xff]
        %v9057 = vld [vmem:[%s8 + $0x78] sm:$0xff]
        %v9058 = vld [vmem:[%s8 + $0x80] sm:$0xff]
        %v9059 = vld [vmem:[%s8 + $0x88] sm:$0xff]
        %v9060 = vld [vmem:[%s8 + $0x90] sm:$0xff]
        %v9061 = vld [vmem:[%s8 + $0x98] sm:$0xff]
        %v9062 = vld [vmem:[%s8 + $0xa0] sm:$0xff]
        %v9063 = vld [vmem:[%s8 + $0xa8] sm:$0xff]
        %v9064 = vld [vmem:[%s8 + $0xb0] sm:$0xff]
        %v9065 = vld [vmem:[%s8 + $0xb8] sm:$0xff]
        %v9066 = vld [vmem:[%s8 + $0xc0] sm:$0xff]
        %v9067 = vld [vmem:[%s8 + $0xc8] sm:$0x7f]
        %vm9068 = vcmask 646144
        %v9070 = vsel %vm9068, %v9022, 0
        %v9073 = vsel %vm9068, %v9028, 0
        %v9076 = vsel %vm9068, %v9034, 0
        %v9079 = vsel %vm9068, %v9040, 0
        %v9082 = vsel %vm1125, %v9067, 0
        %9084 = vmatprep.subr.mxu0 0.0
        %9085 = vmatpush1.msra.mxu0 %v9042
        %9086 = vmatprep.subr.mxu0 0.0
        %9087 = vmatpush1.msra.mxu0 %v9043
        %9088 = vmatprep.subr.mxu0 0.0
        %9089 = vmatpush1.msra.mxu0 %v9044
        %9090 = vmatprep.subr.mxu0 0.0
        %9091 = vmatpush1.msra.mxu0 %v9045
        %9092 = vmatprep.subr.mxu0 0.0
        %9093 = vmatpush1.msra.mxu0 %v9046
        %9094 = vmatprep.subr.mxu0 0.0
        %9095 = vmatpush1.msra.mxu0 %v9047
        %9096 = vmatprep.subr.mxu0 0.0
        %9097 = vmatpush1.msra.mxu0 %v9048
        %9098 = vmatprep.subr.mxu0 0.0
        %9099 = vmatpush1.msra.mxu0 %v9049
        %9100 = vmatprep.subr.mxu0 0.0
        %9101 = vmatpush1.msra.mxu0 %v9050
        %9102 = vmatprep.subr.mxu0 0.0
        %9103 = vmatpush1.msra.mxu0 %v9051
        %9104 = vmatprep.subr.mxu0 0.0
        %9105 = vmatpush1.msra.mxu0 %v9052
        %9106 = vmatprep.subr.mxu0 0.0
        %9107 = vmatpush1.msra.mxu0 %v9053
        %9108 = vmatprep.subr.mxu0 0.0
        %9109 = vmatpush1.msra.mxu0 %v9054
        %9110 = vmatprep.subr.mxu0 0.0
        %9111 = vmatpush1.msra.mxu0 %v9055
        %9112 = vmatprep.subr.mxu0 0.0
        %9113 = vmatpush1.msra.mxu0 %v9056
        %9114 = vmatprep.subr.mxu0 0.0
        %9115 = vmatpush1.msra.mxu0 %v9057
        %9116 = vmatprep.subr.mxu0 0.0
        %9117 = vmatpush1.msra.mxu0 %v9058
        %9118 = vmatprep.subr.mxu0 0.0
        %9119 = vmatpush1.msra.mxu0 %v9059
        %9120 = vmatprep.subr.mxu0 0.0
        %9121 = vmatpush1.msra.mxu0 %v9060
        %9122 = vmatprep.subr.mxu0 0.0
        %9123 = vmatpush1.msra.mxu0 %v9061
        %9124 = vmatprep.subr.mxu0 0.0
        %9125 = vmatpush1.msra.mxu0 %v9062
        %9126 = vmatprep.subr.mxu0 0.0
        %9127 = vmatpush1.msra.mxu0 %v9063
        %9128 = vmatprep.subr.mxu0 0.0
        %9129 = vmatpush1.msra.mxu0 %v9064
        %9130 = vmatprep.subr.mxu0 0.0
        %9131 = vmatpush1.msra.mxu0 %v9065
        %9132 = vmatprep.subr.mxu0 0.0
        %9133 = vmatpush1.msra.mxu0 %v9066
        %9134 = vmatprep.subr.mxu0 0.0
        %9135 = vmatpush1.msra.mxu0 %v9082
        %9136 = vmatprep.subr.mxu0 0.0
        %9137 = vmatpush1.msra.mxu0 0.0
        %9138 = vmatprep.subr.mxu0 0.0
        %9139 = vmatpush1.msra.mxu0 0.0
        %9140 = vmatprep.subr.mxu0 0.0
        %9141 = vmatpush1.msra.mxu0 0.0
        %9142 = vmatprep.subr.mxu0 0.0
        %9143 = vmatpush1.msra.mxu0 0.0
        %9144 = vmatprep.subr.mxu0 0.0
        %9145 = vmatpush1.msra.mxu0 0.0
        %9146 = vmatprep.subr.mxu0 0.0
        %9147 = vmatpush1.msra.mxu0 0.0
        %9148 = vmatprep.mubr.f32.mxu0 %v9070
        %9149 = vmatmul.mubr.f32.gmra.mrb[0].mxu0 %v9020
        %v9150 = vpop.f32.mrb[0].mxu0
        %v9151 = vadd.f32 0.0, %v9150
        %v9152 = vpop.f32.mrb[0].mxu0
        %9153 = vmatprep.mubr.f32.mxu0 %v9073
        %9154 = vmatmul.mubr.f32.gmra.mrb[0].mxu0 %v9026
        %v9155 = vpop.f32.mrb[0].mxu0
        %v9156 = vadd.f32 0.0, %v9155
        %v9157 = vpop.f32.mrb[0].mxu0
        %9158 = vmatprep.mubr.f32.mxu0 %v9076
        %9159 = vmatmul.mubr.f32.gmra.mrb[0].mxu0 %v9032
        %v9160 = vpop.f32.mrb[0].mxu0
        %v9161 = vadd.f32 0.0, %v9160
        %v9162 = vpop.f32.mrb[0].mxu0
        %9163 = vmatprep.mubr.f32.mxu0 %v9079
        %9164 = vmatmul.mubr.f32.gmra.mrb[0].mxu0 %v9038
        %v9165 = vpop.f32.mrb[0].mxu0
        %v9166 = vadd.f32 0.0, %v9165
        %v9167 = vpop.f32.mrb[0].mxu0
        %9168 = vdwg.mxu0
        %v9169 = vmax.f32 %v9151, 0.0
        %v9170 = vmax.f32 %v9156, 0.0
        %v9171 = vmax.f32 %v9161, 0.0
        %v9172 = vmax.f32 %v9166, 0.0
        %v9173 = vld [vmem:[%s9] sm:$0xff]
        %v9174 = vld [vmem:[%s9 + $0x8] sm:$0xff]
        %v9175 = vld [vmem:[%s9 + $0x10] sm:$0xff]
        %v9176 = vld [vmem:[%s9 + $0x18] sm:$0xff]
        %v9177 = vld [vmem:[%s9 + $0x20] sm:$0xff]
        %v9178 = vld [vmem:[%s9 + $0x28] sm:$0xff]
        %v9179 = vld [vmem:[%s9 + $0x30] sm:$0xff]
        %v9180 = vld [vmem:[%s9 + $0x38] sm:$0xff]
        %v9181 = vld [vmem:[%s9 + $0x40] sm:$0xff]
        %v9182 = vld [vmem:[%s9 + $0x48] sm:$0xff]
        %v9183 = vld [vmem:[%s9 + $0x50] sm:$0xff]
        %v9184 = vld [vmem:[%s9 + $0x58] sm:$0xff]
        %v9185 = vld [vmem:[%s9 + $0x60] sm:$0xff]
        %v9186 = vld [vmem:[%s9 + $0x68] sm:$0xff]
        %v9187 = vld [vmem:[%s9 + $0x70] sm:$0xff]
        %v9188 = vld [vmem:[%s9 + $0x78] sm:$0xff]
        %v9189 = vld [vmem:[%s9 + $0x80] sm:$0xff]
        %v9190 = vld [vmem:[%s9 + $0x88] sm:$0xff]
        %v9191 = vld [vmem:[%s9 + $0x90] sm:$0xff]
        %v9192 = vld [vmem:[%s9 + $0x98] sm:$0xff]
        %v9193 = vld [vmem:[%s9 + $0xa0] sm:$0xff]
        %v9194 = vld [vmem:[%s9 + $0xa8] sm:$0xff]
        %v9195 = vld [vmem:[%s9 + $0xb0] sm:$0xff]
        %v9196 = vld [vmem:[%s9 + $0xb8] sm:$0xff]
        %v9197 = vld [vmem:[%s9 + $0xc0] sm:$0xf]
        %v9198 = vld [vmem:[%s9 + $0xc8] sm:$0xf]
        %vm9199 = vcmask 818176
        %v9201 = vsel %vm9199, %v9169, 0
        %v9204 = vsel %vm9199, %v9170, 0
        %v9207 = vsel %vm9199, %v9171, 0
        %v9210 = vsel %vm9199, %v9172, 0
        %vm9212 = vcmask 1043456
        %v9214 = vsel %vm9212, %v9197, 0
        %v9217 = vsel %vm9212, %v9198, 0
        %9219 = vmatprep.subr.mxu0 %v9174
        %9220 = vmatpush1.msra.mxu0 %v9173
        %9221 = vmatprep.subr.mxu0 %v9176
        %9222 = vmatpush1.msra.mxu0 %v9175
        %9223 = vmatprep.subr.mxu0 %v9178
        %9224 = vmatpush1.msra.mxu0 %v9177
        %9225 = vmatprep.subr.mxu0 %v9180
        %9226 = vmatpush1.msra.mxu0 %v9179
        %9227 = vmatprep.subr.mxu0 %v9182
        %9228 = vmatpush1.msra.mxu0 %v9181
        %9229 = vmatprep.subr.mxu0 %v9184
        %9230 = vmatpush1.msra.mxu0 %v9183
        %9231 = vmatprep.subr.mxu0 %v9186
        %9232 = vmatpush1.msra.mxu0 %v9185
        %9233 = vmatprep.subr.mxu0 %v9188
        %9234 = vmatpush1.msra.mxu0 %v9187
        %9235 = vmatprep.subr.mxu0 %v9190
        %9236 = vmatpush1.msra.mxu0 %v9189
        %9237 = vmatprep.subr.mxu0 %v9192
        %9238 = vmatpush1.msra.mxu0 %v9191
        %9239 = vmatprep.subr.mxu0 %v9194
        %9240 = vmatpush1.msra.mxu0 %v9193
        %9241 = vmatprep.subr.mxu0 %v9196
        %9242 = vmatpush1.msra.mxu0 %v9195
        %9243 = vmatprep.subr.mxu0 %v9217
        %9244 = vmatpush1.msra.mxu0 %v9214
        %9245 = vmatprep.subr.mxu0 0.0
        %9246 = vmatpush1.msra.mxu0 0.0
        %9247 = vmatprep.subr.mxu0 0.0
        %9248 = vmatpush1.msra.mxu0 0.0
        %9249 = vmatprep.subr.mxu0 0.0
        %9250 = vmatpush1.msra.mxu0 0.0
        %9251 = vmatprep.subr.mxu0 0.0
        %9252 = vmatpush1.msra.mxu0 0.0
        %9253 = vmatprep.subr.mxu0 0.0
        %9254 = vmatpush1.msra.mxu0 0.0
        %9255 = vmatprep.subr.mxu0 0.0
        %9256 = vmatpush1.msra.mxu0 0.0
        %9257 = vmatprep.subr.mxu0 0.0
        %9258 = vmatpush1.msra.mxu0 0.0
        %9259 = vmatprep.subr.mxu0 0.0
        %9260 = vmatpush1.msra.mxu0 0.0
        %9261 = vmatprep.subr.mxu0 0.0
        %9262 = vmatpush1.msra.mxu0 0.0
        %9263 = vmatprep.subr.mxu0 0.0
        %9264 = vmatpush1.msra.mxu0 0.0
        %9265 = vmatprep.subr.mxu0 0.0
        %9266 = vmatpush1.msra.mxu0 0.0
        %9267 = vmatprep.subr.mxu0 0.0
        %9268 = vmatpush1.msra.mxu0 0.0
        %9269 = vmatprep.subr.mxu0 0.0
        %9270 = vmatpush1.msra.mxu0 0.0
        %9271 = vmatprep.subr.mxu0 0.0
        %9272 = vmatpush1.msra.mxu0 0.0
        %9273 = vmatprep.subr.mxu0 0.0
        %9274 = vmatpush1.msra.mxu0 0.0
        %9275 = vmatprep.subr.mxu0 0.0
        %9276 = vmatpush1.msra.mxu0 0.0
        %9277 = vmatprep.subr.mxu0 0.0
        %9278 = vmatpush1.msra.mxu0 0.0
        %9279 = vmatprep.subr.mxu0 0.0
        %9280 = vmatpush1.msra.mxu0 0.0
        %9281 = vmatprep.subr.mxu0 0.0
        %9282 = vmatpush1.msra.mxu0 0.0
        %9283 = vmatprep.mubr.f32.mxu0 0.0
        %9284 = vmatmul.mubr.f32.gmra.mrb[0].mxu0 %v9201
        %v9285 = vpop.f32.mrb[0].mxu0
        %v9286 = vadd.f32 0.0, %v9285
        %v9287 = vpop.f32.mrb[0].mxu0
        %v9288 = vadd.f32 0.0, %v9287
        %9289 = vmatprep.mubr.f32.mxu0 0.0
        %9290 = vmatmul.mubr.f32.gmra.mrb[0].mxu0 %v9204
        %v9291 = vpop.f32.mrb[0].mxu0
        %v9292 = vadd.f32 0.0, %v9291
        %v9293 = vpop.f32.mrb[0].mxu0
        %v9294 = vadd.f32 0.0, %v9293
        %9295 = vmatprep.mubr.f32.mxu0 0.0
        %9296 = vmatmul.mubr.f32.gmra.mrb[0].mxu0 %v9207
        %v9297 = vpop.f32.mrb[0].mxu0
        %v9298 = vadd.f32 0.0, %v9297
        %v9299 = vpop.f32.mrb[0].mxu0
        %v9300 = vadd.f32 0.0, %v9299
        %9301 = vmatprep.mubr.f32.mxu0 0.0
        %9302 = vmatmul.mubr.f32.gmra.mrb[0].mxu0 %v9210
        %v9303 = vpop.f32.mrb[0].mxu0
        %v9304 = vadd.f32 0.0, %v9303
        %v9305 = vpop.f32.mrb[0].mxu0
        %v9306 = vadd.f32 0.0, %v9305
        %9307 = vdwg.mxu0
        %v9308 = vld [vmem:[#allocation12] sm:$0xff]
        %v9309 = vld [vmem:[#allocation12 + $0x8] sm:$0xff]
        %v9310 = vld [vmem:[#allocation12 + $0x10] sm:$0xff]
        %v9311 = vld [vmem:[#allocation12 + $0x18] sm:$0xff]
        %v9312 = vld [vmem:[#allocation12 + $0x20] sm:$0xff]
        %v9313 = vld [vmem:[#allocation12 + $0x28] sm:$0xff]
        %v9314 = vld [vmem:[#allocation12 + $0x30] sm:$0x1]
        %v9315 = vld [vmem:[#allocation12 + $0x38] sm:$0x1]
        %v9316 = vmul.f32 %v9286, %v9308
        %v9317 = vmul.f32 %v9288, %v9309
        %v9318 = vmul.f32 %v9292, %v9310
        %v9319 = vmul.f32 %v9294, %v9311
        %v9320 = vmul.f32 %v9298, %v9312
        %v9321 = vmul.f32 %v9300, %v9313
        %v9322 = vmul.f32 %v9304, %v9314
        %v9323 = vmul.f32 %v9306, %v9315
        %v9324 = vadd.f32 %v9316, %v9318
        %v9325 = vadd.f32 %v9324, %v9320
        %v9326 = vsel %vm8946, %v9322, 0.0
        %v9327 = vadd.f32 %v9325, %v9326
        %v9328 = vrot.slane %v9327, 4
        %v9329 = vadd.f32 %v9327, %v9328
        %v9330 = vrot.slane %v9329, 2
        %v9331 = vadd.f32 %v9329, %v9330
        %v9332 = vrot.slane %v9331, 1
        %v9333 = vadd.f32 %v9331, %v9332
        %vm9334 = vcmask 998400
        %v9335 = vsel %vm9334, %v9317, 0.0
        %v9336 = vsel %vm9334, %v9319, 0.0
        %v9337 = vadd.f32 %v9335, %v9336
        %v9338 = vsel %vm9334, %v9321, 0.0
        %v9339 = vadd.f32 %v9337, %v9338
        %vm9340 = vcmask 991232
        %v9341 = vsel %vm9340, %v9323, 0.0
        %v9342 = vadd.f32 %v9339, %v9341
        %v9343 = vrot.slane %v9342, 4
        %v9344 = vadd.f32 %v9342, %v9343
        %v9345 = vrot.slane %v9344, 2
        %v9346 = vadd.f32 %v9344, %v9345
        %v9347 = vrot.slane %v9346, 1
        %v9348 = vadd.f32 %v9346, %v9347
        %v9349 = vld [vmem:[%s11] sm:$0xff]
        %v9350 = vld [vmem:[%s11 + $0x8] sm:$0xff]
        %v9351 = vld [vmem:[%s11 + $0x10] sm:$0xff]
        %v9352 = vld [vmem:[%s11 + $0x18] sm:$0xff]
        %v9353 = vld [vmem:[%s11 + $0x20] sm:$0xff]
        %v9354 = vld [vmem:[%s11 + $0x28] sm:$0xff]
        %v9355 = vld [vmem:[%s11 + $0x30] sm:$0xff]
        %v9356 = vld [vmem:[%s11 + $0x38] sm:$0xff]
        %v9357 = vld [vmem:[%s11 + $0x40] sm:$0xff]
        %v9358 = vld [vmem:[%s11 + $0x48] sm:$0xff]
        %v9359 = vld [vmem:[%s11 + $0x50] sm:$0xff]
        %v9360 = vld [vmem:[%s11 + $0x58] sm:$0xff]
        %v9361 = vld [vmem:[%s11 + $0x60] sm:$0xff]
        %v9362 = vld [vmem:[%s11 + $0x68] sm:$0xff]
        %v9363 = vld [vmem:[%s11 + $0x70] sm:$0xff]
        %v9364 = vld [vmem:[%s11 + $0x78] sm:$0xff]
        %v9365 = vld [vmem:[%s11 + $0x80] sm:$0xff]
        %v9366 = vld [vmem:[%s11 + $0x88] sm:$0xff]
        %v9367 = vld [vmem:[%s11 + $0x90] sm:$0xff]
        %v9368 = vld [vmem:[%s11 + $0x98] sm:$0xff]
        %v9369 = vld [vmem:[%s11 + $0xa0] sm:$0xff]
        %v9370 = vld [vmem:[%s11 + $0xa8] sm:$0xff]
        %v9371 = vld [vmem:[%s11 + $0xb0] sm:$0xff]
        %v9372 = vld [vmem:[%s11 + $0xb8] sm:$0xff]
        %v9373 = vld [vmem:[%s11 + $0xc0] sm:$0xff]
        %v9374 = vld [vmem:[%s11 + $0xc8] sm:$0xff]
        %v9375 = vld [vmem:[%s11 + $0xd0] sm:$0xff]
        %v9376 = vld [vmem:[%s11 + $0xd8] sm:$0xff]
        %v9377 = vld [vmem:[%s11 + $0xe0] sm:$0xff]
        %v9378 = vld [vmem:[%s11 + $0xe8] sm:$0xff]
        %v9379 = vld [vmem:[%s11 + $0xf0] sm:$0xff]
        %v9380 = vld [vmem:[%s11 + $0xf8] sm:$0x3]
        %v9381 = vld [vmem:[%s12] sm:$0x1]
        %v9383 = vsel %vm9334, %v9348, 0
        %vm9385 = vcmask 1041408
        %v9387 = vsel %vm9385, %v9380, 0
        %9389 = vmatprep.subr.mxu0 0.0
        %9390 = vmatpush1.msra.mxu0 %v9349
        %9391 = vmatprep.subr.mxu0 0.0
        %9392 = vmatpush1.msra.mxu0 %v9350
        %9393 = vmatprep.subr.mxu0 0.0
        %9394 = vmatpush1.msra.mxu0 %v9351
        %9395 = vmatprep.subr.mxu0 0.0
        %9396 = vmatpush1.msra.mxu0 %v9352
        %9397 = vmatprep.subr.mxu0 0.0
        %9398 = vmatpush1.msra.mxu0 %v9353
        %9399 = vmatprep.subr.mxu0 0.0
        %9400 = vmatpush1.msra.mxu0 %v9354
        %9401 = vmatprep.subr.mxu0 0.0
        %9402 = vmatpush1.msra.mxu0 %v9355
        %9403 = vmatprep.subr.mxu0 0.0
        %9404 = vmatpush1.msra.mxu0 %v9356
        %9405 = vmatprep.subr.mxu0 0.0
        %9406 = vmatpush1.msra.mxu0 %v9357
        %9407 = vmatprep.subr.mxu0 0.0
        %9408 = vmatpush1.msra.mxu0 %v9358
        %9409 = vmatprep.subr.mxu0 0.0
        %9410 = vmatpush1.msra.mxu0 %v9359
        %9411 = vmatprep.subr.mxu0 0.0
        %9412 = vmatpush1.msra.mxu0 %v9360
        %9413 = vmatprep.subr.mxu0 0.0
        %9414 = vmatpush1.msra.mxu0 %v9361
        %9415 = vmatprep.subr.mxu0 0.0
        %9416 = vmatpush1.msra.mxu0 %v9362
        %9417 = vmatprep.subr.mxu0 0.0
        %9418 = vmatpush1.msra.mxu0 %v9363
        %9419 = vmatprep.subr.mxu0 0.0
        %9420 = vmatpush1.msra.mxu0 %v9364
        %9421 = vmatprep.subr.mxu0 0.0
        %9422 = vmatpush1.msra.mxu0 %v9365
        %9423 = vmatprep.subr.mxu0 0.0
        %9424 = vmatpush1.msra.mxu0 %v9366
        %9425 = vmatprep.subr.mxu0 0.0
        %9426 = vmatpush1.msra.mxu0 %v9367
        %9427 = vmatprep.subr.mxu0 0.0
        %9428 = vmatpush1.msra.mxu0 %v9368
        %9429 = vmatprep.subr.mxu0 0.0
        %9430 = vmatpush1.msra.mxu0 %v9369
        %9431 = vmatprep.subr.mxu0 0.0
        %9432 = vmatpush1.msra.mxu0 %v9370
        %9433 = vmatprep.subr.mxu0 0.0
        %9434 = vmatpush1.msra.mxu0 %v9371
        %9435 = vmatprep.subr.mxu0 0.0
        %9436 = vmatpush1.msra.mxu0 %v9372
        %9437 = vmatprep.subr.mxu0 0.0
        %9438 = vmatpush1.msra.mxu0 %v9373
        %9439 = vmatprep.subr.mxu0 0.0
        %9440 = vmatpush1.msra.mxu0 %v9374
        %9441 = vmatprep.subr.mxu0 0.0
        %9442 = vmatpush1.msra.mxu0 %v9375
        %9443 = vmatprep.subr.mxu0 0.0
        %9444 = vmatpush1.msra.mxu0 %v9376
        %9445 = vmatprep.subr.mxu0 0.0
        %9446 = vmatpush1.msra.mxu0 %v9377
        %9447 = vmatprep.subr.mxu0 0.0
        %9448 = vmatpush1.msra.mxu0 %v9378
        %9449 = vmatprep.subr.mxu0 0.0
        %9450 = vmatpush1.msra.mxu0 %v9379
        %9451 = vmatprep.subr.mxu0 0.0
        %9452 = vmatpush1.msra.mxu0 %v9387
        %9453 = vmatprep.mubr.f32.mxu0 %v9383
        %9454 = vmatmul.mubr.f32.gmra.mrb[0].mxu0 %v9333
        %v9455 = vpop.f32.mrb[0].mxu0
        %v9456 = vadd.f32 %v9381, %v9455
        %v9457 = vpop.f32.mrb[0].mxu0
        %9458 = vdwg.mxu0
        %vm9459 = vcmask 73728
        %v9460 = vsel %vm9459, %v9456, -inf
        %9461 = vmax.xlane.f32.xlu0 %v9460
        %v9462 = vpop.xlane.xlu0 %9461
        %v9463 = vsub.f32 %v9456, %v9462
        %v9464 = vmul.f32 %v9463, 1.442695
        %v9465 = vpow.pop %v9464
        %v9466 = vsel %vm9459, %v9465, 0.0
        %9467 = vadd.xlane.f32.xlu0 %v9466
        %v9468 = vpop.xlane.xlu0 %9467
        %v9469 = vlog2.pop %v9468
        %v9470 = vmul.f32 %v9469, 0.6931472
        %v9471 = vsub.f32 %v9463, %v9470
        %9472 = vst.msk [vmem:[%s501] sm:$0x1] %vm9459, %v9471
        %s9473 = sand.u32 %s317, 1
        %s9474 = scalar_lea.sflag [#allocation5], %s9473
        %s9475 = sand.u32 %s317, 1
        %s9476 = scalar_lea.vmem [#allocation13], %s9475
        // Predicated region
        $region93: #{tpu_custom_call.1} parent=71 // pred_check
          %p9477 = pneg %p327
        $region94: #{tpu_custom_call.1} parent=71 // pred_check_branch
          %9479 = sbr.rel (%p9477) target = $region96
        $region95: #{tpu_custom_call.1} parent=71 // pred_region
          %s9481 = ssub.s32 16, 16
          %9482 = vsyncadd %s9474, %s9481
          %s9483 = smul.addr %s31, 16
          %s9484 = scalar_lea.hbm %s13, %s9483
          %s9486 = sshll.u32 %s9476, 4
          %s9487 = int_to_ptr.vmem [resolvable:$true] %s9486
          %9489 = dma.vmem_to_hbm [thread:$0]  %s9487, 16, %s9484, %s9474
        $region96: #{tpu_custom_call.1} parent=71 // pred_fallthru
          _
      $region72: #{tpu_custom_call.1} parent=5 // pred_fallthru
        _
      %p9490 = scmp.le.s32.totalorder 2, %s26
      // Predicated region
      $region97: #{tpu_custom_call.1} parent=5 // pred_check
        %p9491 = pneg %p9490
      $region98: #{tpu_custom_call.1} parent=5 // pred_check_branch
        %9493 = sbr.rel (%p9491) target = $region100
      $region99: #{tpu_custom_call.1} parent=5 // pred_region
        %s9494 = ssub.s32 %s26, 2
        // Predicated region
        $region101: #{tpu_custom_call.1} parent=99 // pred_check
          %p9495 = pneg %p333
        $region102: #{tpu_custom_call.1} parent=99 // pred_check_branch
          %9497 = sbr.rel (%p9495) target = $region104
        $region103: #{tpu_custom_call.1} parent=99 // pred_region
          %s9498 = sand.u32 %s318, 1
          %s9499 = scalar_lea.sflag [#allocation5], %s9498
          %s9500 = sand.u32 %s318, 1
          %s9501 = scalar_lea.vmem [#allocation13], %s9500
          %9502 = dma.done %s9499, 16
        $region104: #{tpu_custom_call.1} parent=99 // pred_fallthru
          _
      $region100: #{tpu_custom_call.1} parent=5 // pred_fallthru
        _
    $region6: #{tpu_custom_call.1} parent=1 // loop_footer
      %s30 = sadd.s32 1, %s26
    $region7: #{tpu_custom_call.1} parent=1 // loop_footer_branch
      %25 = sbr.rel target = $region3
    $region8: #{tpu_custom_call.1} parent=1 // loop_exit
      _
    %9503 = vsyncpa [#allocation4], 1
    %s9504 = scalar_lea.sflag [#allocation4], 1
    %9505 = vsyncpa %s9504, 1
    %9506 = vsyncpa [#allocation11], 1
    %9507 = vsyncpa [#allocation5], 1
    %s9508 = scalar_lea.sflag [#allocation5], 1
    %9509 = vsyncpa %s9508, 1
    %9510 = vsyncpa [#allocation6], 1
    %s9511 = scalar_lea.sflag [#allocation6], 1
    %9512 = vsyncpa %s9511, 1
    %9513 = vsyncpa [#allocation7], 1
    %s9514 = scalar_lea.sflag [#allocation7], 1
    %9515 = vsyncpa %s9514, 1

</llo_original>
